<compile_context>
chip_gen: v5e
topology: v5e:2x2
jax: 0.10.0
libtpu: 0.0.40
codegen_flags: <defaults>
</compile_context>

<pallas_src>
import functools
import math

import jax
import jax.numpy as jnp
from jax.experimental import pallas as pl
from jax.experimental.pallas import tpu as pltpu

# ---- small synthetic config (BERT-base / 23040-dim channel scaled down) ----
VOCAB = 64          # stands in for bert vocab 30522
EMB_DIM = 32        # stands in for emb_dim = 768
N_HEADS = 4         # stands in for n_heads = 8
HIDDEN_DIM = 64     # stands in for hidden_dim = 1024
NUM_LAYERS = 2      # num_layers = 2 (decoder); also used for the synthetic encoder
MAX_LEN = 8         # stands in for max_length = 30 -> channel in_dims = MAX_LEN * EMB_DIM
CH_MID = 64         # channel latent dim
SNR_DB = 15.0       # arg.snr
USE_CGE = True      # arg.use_CGE

_VMEM_LIMIT = 32 * 1024 * 1024   # explicit scoped-VMEM budget (re-derive at real shapes)


# ---------------------------------------------------------------------------
# In-kernel helpers
# ---------------------------------------------------------------------------
def _ln(x, g, b, eps):
    mu = jnp.mean(x, axis=-1, keepdims=True)
    xc = x - mu
    var = jnp.mean(xc * xc, axis=-1, keepdims=True)
    return xc * jax.lax.rsqrt(var + eps) * g + b


def _softmax(s):
    s = s - jnp.max(s, axis=-1, keepdims=True)
    e = jnp.exp(s)
    return e * pl.reciprocal(jnp.sum(e, axis=-1, keepdims=True), approx=True)


def _bdot(a, b):
    # MXU matmul with bf16 operands, f32 accumulation.
    return jnp.dot(a.astype(jnp.bfloat16), b.astype(jnp.bfloat16),
                   preferred_element_type=jnp.float32)


def _qkT(q, k):
    # scores = q @ k.T (contract last dims of both), bf16 operands, f32 accumulation.
    return jax.lax.dot_general(q.astype(jnp.bfloat16), k.astype(jnp.bfloat16),
                               (((1,), (1,)), ((), ())),
                               preferred_element_type=jnp.float32)


# ---------------------------------------------------------------------------
# Fused BERT-style encoder stack: grid = (B, L), activations carried in VMEM
# ---------------------------------------------------------------------------
def _enc_stack_kernel(x_ref, mask_ref, embg_ref, embb_ref,
                      wqkv_ref, bqkv_ref, wo_ref, bo_ref,
                      ln1g_ref, ln1b_ref, w1_ref, b1_ref, w2_ref, b2_ref,
                      ln2g_ref, ln2b_ref, o_ref, h_scr, *, n_heads, eps):
    l = pl.program_id(1)

    @pl.when(l == 0)
    def _():
        # BERT embedding LayerNorm folded in (runs once per batch element).
        h_scr[...] = _ln(x_ref[0].astype(jnp.float32), embg_ref[...], embb_ref[...], eps)

    x2 = h_scr[...]                                  # (S, E) f32 carried across layers
    S, E = x2.shape
    dh = E // n_heads
    scale = 1.0 / math.sqrt(dh)
    bias = mask_ref[0]                               # (1, S) additive key mask

    qkv = _bdot(x2, wqkv_ref[0]) + bqkv_ref[0]       # (S, 3E) f32
    ctx = []
    for h in range(n_heads):
        q = qkv[:, h * dh:(h + 1) * dh]
        k = qkv[:, E + h * dh:E + (h + 1) * dh]
        v = qkv[:, 2 * E + h * dh:2 * E + (h + 1) * dh]
        p = _softmax(_qkT(q, k) * scale + bias)
        ctx.append(_bdot(p, v))
    ctx = jnp.concatenate(ctx, axis=-1)              # contiguous (S, E) head contexts
    attn = _bdot(ctx, wo_ref[0]) + bo_ref[0]         # ONE full-K output projection
    y = _ln(x2 + attn, ln1g_ref[0], ln1b_ref[0], eps)

    # TODO(synk): BERT uses exact erf GELU; tanh approximation kept (erf lowering not relied on).
    hid = jax.nn.gelu(_bdot(y, w1_ref[0]) + b1_ref[0], approximate=True)
    out = _ln(y + (_bdot(hid, w2_ref[0]) + b2_ref[0]), ln2g_ref[0], ln2b_ref[0], eps)

    h_scr[...] = out

    @pl.when(l == pl.num_programs(1) - 1)
    def _():
        o_ref[0] = out.astype(o_ref.dtype)


_ENC_W = ("wqkv", "bqkv", "wo", "bo", "ln1_g", "ln1_b",
          "ffn_w1", "ffn_b1", "ffn_w2", "ffn_b2", "ln2_g", "ln2_b")


def encoder_stack(x_emb, mask_bias, ep):
    B, S, E = x_emb.shape
    L = ep["wqkv"].shape[0]
    weights = [ep[k] for k in _ENC_W]
    w_specs = [pl.BlockSpec((1,) + w.shape[1:], lambda b, l: (l, 0, 0)) for w in weights]
    return pl.pallas_call(
        functools.partial(_enc_stack_kernel, n_heads=N_HEADS, eps=1e-12),
        out_shape=jax.ShapeDtypeStruct((B, S, E), jnp.float32),
        grid=(B, L),
        in_specs=([pl.BlockSpec((1, S, E), lambda b, l: (b, 0, 0)),
                   pl.BlockSpec((1, 1, S), lambda b, l: (b, 0, 0)),
                   pl.BlockSpec(ep["emb_ln_g"].shape, lambda b, l: (0, 0)),
                   pl.BlockSpec(ep["emb_ln_b"].shape, lambda b, l: (0, 0))]
                  + w_specs),
        out_specs=pl.BlockSpec((1, S, E), lambda b, l: (b, 0, 0)),
        scratch_shapes=[pltpu.VMEM((S, E), jnp.float32)],
        compiler_params=pltpu.CompilerParams(
            dimension_semantics=("parallel", "arbitrary"),
            vmem_limit_bytes=_VMEM_LIMIT),
    )(x_emb, mask_bias, ep["emb_ln_g"], ep["emb_ln_b"], *weights)


# ---------------------------------------------------------------------------
# Fused transformer-decoder stack: grid = (L,), all T processed batched per step
# ---------------------------------------------------------------------------
def _dec_stack_kernel(tgt_ref, mem_ref,
                      wqkv_s_ref, bqkv_s_ref, wo_s_ref, bo_s_ref, ln1g_ref, ln1b_ref,
                      wq_c_ref, bq_c_ref, wkv_c_ref, bkv_c_ref, wo_c_ref, bo_c_ref,
                      ln2g_ref, ln2b_ref,
                      w1_ref, b1_ref, w2_ref, b2_ref, ln3g_ref, ln3b_ref,
                      o_ref, y_scr, *, n_heads, eps):
    l = pl.program_id(0)
    T, Nb, E = tgt_ref.shape                 # "batch"=T, "seq"=Nb (batch_first=False quirk)
    TN = T * Nb
    dh = E // n_heads
    scale = 1.0 / math.sqrt(dh)

    @pl.when(l == 0)
    def _():
        y_scr[...] = tgt_ref[...].astype(jnp.float32).reshape(TN, E)

    y = y_scr[...]                            # (T*Nb, E) f32 carried across layers
    m = mem_ref[...].astype(jnp.float32).reshape(TN, E)

    def mha(q3, k3, v3):
        ctx = []
        for h in range(n_heads):
            q = q3[:, :, h * dh:(h + 1) * dh]
            k = k3[:, :, h * dh:(h + 1) * dh]
            v = v3[:, :, h * dh:(h + 1) * dh]
            s = jnp.einsum('tqd,tkd->tqk', q.astype(jnp.bfloat16),
                           k.astype(jnp.bfloat16),
                           preferred_element_type=jnp.float32) * scale
            p = _softmax(s)
            ctx.append(jnp.einsum('tqk,tkd->tqd', p.astype(jnp.bfloat16),
                                  v.astype(jnp.bfloat16),
                                  preferred_element_type=jnp.float32))
        return jnp.concatenate(ctx, axis=-1).reshape(TN, E)

    # --- self-attention (post-norm, no mask; nn.TransformerDecoderLayer defaults) ---
    qkv = (_bdot(y, wqkv_s_ref[0]) + bqkv_s_ref[0]).reshape(T, Nb, 3 * E)
    ctx = mha(qkv[:, :, :E], qkv[:, :, E:2 * E], qkv[:, :, 2 * E:])
    y = _ln(y + _bdot(ctx, wo_s_ref[0]) + bo_s_ref[0], ln1g_ref[0], ln1b_ref[0], eps)

    # --- cross-attention over the channel-decoded memory ---
    qc = (_bdot(y, wq_c_ref[0]) + bq_c_ref[0]).reshape(T, Nb, E)
    kv = (_bdot(m, wkv_c_ref[0]) + bkv_c_ref[0]).reshape(T, Nb, 2 * E)
    ctx = mha(qc, kv[:, :, :E], kv[:, :, E:])
    y = _ln(y + _bdot(ctx, wo_c_ref[0]) + bo_c_ref[0], ln2g_ref[0], ln2b_ref[0], eps)

    # --- feed-forward (relu) ---
    hid = jnp.maximum(_bdot(y, w1_ref[0]) + b1_ref[0], 0.0)
    y = _ln(y + _bdot(hid, w2_ref[0]) + b2_ref[0], ln3g_ref[0], ln3b_ref[0], eps)

    y_scr[...] = y

    @pl.when(l == pl.num_programs(0) - 1)
    def _():
        o_ref[...] = y.reshape(T, Nb, E).astype(o_ref.dtype)


_DEC_W = ("wqkv_s", "bqkv_s", "wo_s", "bo_s", "ln1_g", "ln1_b",
          "wq_c", "bq_c", "wkv_c", "bkv_c", "wo_c", "bo_c",
          "ln2_g", "ln2_b", "ffn_w1", "ffn_b1", "ffn_w2", "ffn_b2",
          "ln3_g", "ln3_b")


def decoder_stack(tgt, mem, dp):
    T, Nb, E = tgt.shape
    L = dp["wqkv_s"].shape[0]
    weights = [dp[k] for k in _DEC_W]
    w_specs = [pl.BlockSpec((1,) + w.shape[1:], lambda l: (l, 0, 0)) for w in weights]
    return pl.pallas_call(
        functools.partial(_dec_stack_kernel, n_heads=N_HEADS, eps=1e-5),
        out_shape=jax.ShapeDtypeStruct((T, Nb, E), jnp.float32),
        grid=(L,),
        in_specs=([pl.BlockSpec((T, Nb, E), lambda l: (0, 0, 0)),
                   pl.BlockSpec((T, Nb, E), lambda l: (0, 0, 0))]
                  + w_specs),
        out_specs=pl.BlockSpec((T, Nb, E), lambda l: (0, 0, 0)),
        scratch_shapes=[pltpu.VMEM((T * Nb, E), jnp.float32)],
        compiler_params=pltpu.CompilerParams(
            dimension_semantics=("arbitrary",),
            vmem_limit_bytes=_VMEM_LIMIT),
    )(tgt, mem, *weights)


# ---------------------------------------------------------------------------
# Fused channel path: Linear encode -> Rayleigh fading + AWGN + CGE -> Linear decode
# ---------------------------------------------------------------------------
def _channel_kernel(s_ref, ew_ref, eb_ref, h_ref, n_ref, dw_ref, db_ref,
                    cc_ref, ccn_ref, sd_ref, *, snr_db):
    # TODO(synk): channel_net source not provided; standard Rayleigh + AWGN + perfect-CGE model.
    s = s_ref[...].astype(jnp.float32)
    c = _bdot(s, ew_ref[...]) + eb_ref[...]                       # (B, CH)
    CH = c.shape[-1]
    sig_pow = jnp.sum(c * c, axis=-1, keepdims=True) / CH         # per-sample power
    sigma = jnp.sqrt(sig_pow * (10.0 ** (-snr_db / 10.0)))
    noise = n_ref[...] * sigma
    hf = jnp.maximum(h_ref[...], 1e-6)                            # numeric floor only
    c_eq = (hf * c + noise) / hf                                  # exact equalization (CGE)
    sd = _bdot(c_eq, dw_ref[...]) + db_ref[...]
    cc_ref[...] = c
    ccn_ref[...] = c_eq
    sd_ref[...] = sd


def channel_transmit(s_code, chp, h, n_unit):
    B, D = s_code.shape
    CH = chp["enc_w"].shape[1]
    return pl.pallas_call(
        functools.partial(_channel_kernel, snr_db=SNR_DB),
        out_shape=(jax.ShapeDtypeStruct((B, CH), jnp.float32),
                   jax.ShapeDtypeStruct((B, CH), jnp.float32),
                   jax.ShapeDtypeStruct((B, D), jnp.float32)),
        compiler_params=pltpu.CompilerParams(vmem_limit_bytes=_VMEM_LIMIT),
    )(s_code, chp["enc_w"], chp["enc_b"], h, n_unit, chp["dec_w"], chp["dec_b"])


# ---------------------------------------------------------------------------
# Tiled dense (final vocab projection): parallel (row, col) grid
# ---------------------------------------------------------------------------
def _dense_kernel(x_ref, w_ref, b_ref, o_ref):
    o_ref[...] = (_bdot(x_ref[...], w_ref[...]) + b_ref[...]).astype(o_ref.dtype)


def dense(x, w, b):
    shape = x.shape
    K = shape[-1]
    x2 = x.reshape(-1, K)
    M = x2.shape[0]
    N = w.shape[1]
    # tile sizes degrade gracefully to the toy shapes; at BERT-base scale the N grid keeps
    # the 768x30522 weight out of a single VMEM block and pipelines its DMA under the MXU.
    tm = 128 if M % 128 == 0 else (8 if M % 8 == 0 else M)
    tn = 512 if N % 512 == 0 else (128 if N % 128 == 0 else N)
    out = pl.pallas_call(
        _dense_kernel,
        out_shape=jax.ShapeDtypeStruct((M, N), jnp.float32),
        grid=(M // tm, N // tn),
        in_specs=[pl.BlockSpec((tm, K), lambda i, j: (i, 0)),
                  pl.BlockSpec((K, tn), lambda i, j: (0, j)),
                  pl.BlockSpec((1, tn), lambda i, j: (0, j))],
        out_specs=pl.BlockSpec((tm, tn), lambda i, j: (i, j)),
        compiler_params=pltpu.CompilerParams(
            dimension_semantics=("parallel", "parallel"),
            vmem_limit_bytes=_VMEM_LIMIT),
    )(x2, w, b)
    return out.reshape(shape[:-1] + (N,))


# ---------------------------------------------------------------------------
# Forward pass
# ---------------------------------------------------------------------------
def text_scnet_forward(params, src_input_ids, src_attention_mask, trg_input_ids, noise_key):
    B, S = src_input_ids.shape
    T = trg_input_ids.shape[1]
    E = EMB_DIM
    # The PyTorch reference feeds batch-first tensors into a batch_first=False decoder, so
    # the attention "batch" axes of tgt (=T) and memory (=S) must agree.
    assert T == S, "batch_first=False quirk requires T == S"

    # --- encoder: BERT-style transformer encoder (single fused stack kernel) ---
    # TODO(synk): real BertModel('bert-base-uncased') has 12 pretrained layers; this is a
    # deterministically-initialized 2-layer stand-in with the same computational structure.
    emb = (params["enc"]["word_emb"][src_input_ids]
           + params["enc"]["pos_emb"][:S][None, :, :]
           + params["enc"]["tok_emb"][0][None, None, :])
    mask_bias = ((1.0 - src_attention_mask.astype(jnp.float32)) * -1e9).reshape(B, 1, S)
    x = encoder_stack(emb, mask_bias, params["enc"])
    s_code = x.reshape(B, S * E)                    # last_hidden_state.view(b_s, -1)

    # --- fused channel model ---
    k_h, k_n = jax.random.split(noise_key)
    n_unit = jax.random.normal(k_n, (B, CH_MID), jnp.float32)
    if USE_CGE:
        hr = jax.random.normal(k_h, (B, CH_MID), jnp.float32)
        hi = jax.random.normal(jax.random.fold_in(k_h, 1), (B, CH_MID), jnp.float32)
        h = jnp.sqrt((hr * hr + hi * hi) / 2.0)
    else:
        h = jnp.ones((B, CH_MID), jnp.float32)
    ch_code, ch_code_, s_code_d = channel_transmit(s_code, params["ch"], h, n_unit)

    # --- transformer decoder (single fused stack kernel) + output projection ---
    trg_emb = params["embedding"][trg_input_ids]    # (B, T, E)
    s_code_ = s_code_d.reshape(B, S, E)
    # PyTorch nn.TransformerDecoder default batch_first=False: dim0 = sequence, dim1 = batch.
    # The reference passes (B, T, E) tensors straight in, so attention runs over dim0 (B)
    # batched over dim1 (T); we reproduce exactly that via a transpose.
    tgt = jnp.transpose(trg_emb, (1, 0, 2))         # (T, B, E): "batch"=T, "seq"=B
    mem = jnp.transpose(s_code_, (1, 0, 2))         # (S, B, E)
    y = decoder_stack(tgt, mem, params["dec"])
    decoded = jnp.transpose(y, (1, 0, 2))           # back to (B, T, E)
    decoded_output = dense(decoded, params["fc_w"], params["fc_b"])
    return ch_code, ch_code_, s_code, s_code_d, decoded_output


# ---------------------------------------------------------------------------
# Deterministic parameter init (weights stacked per-stack; MXU weights in bf16)
# ---------------------------------------------------------------------------
def init_params(key):
    keys = iter(jax.random.split(key, 64))
    bf = jnp.bfloat16

    def nrm(shape, scale=0.02, dtype=jnp.float32):
        return (scale * jax.random.normal(next(keys), shape)).astype(dtype)

    def zeros(shape):
        return jnp.zeros(shape, jnp.float32)

    def ones(shape):
        return jnp.ones(shape, jnp.float32)

    E, F, L = EMB_DIM, HIDDEN_DIM, NUM_LAYERS

    enc = dict(
        word_emb=nrm((VOCAB, E)),
        pos_emb=nrm((MAX_LEN, E)),
        tok_emb=nrm((2, E)),
        emb_ln_g=ones((1, E)), emb_ln_b=zeros((1, E)),
        wqkv=nrm((L, E, 3 * E), dtype=bf), bqkv=zeros((L, 1, 3 * E)),
        wo=nrm((L, E, E), dtype=bf), bo=zeros((L, 1, E)),
        ln1_g=ones((L, 1, E)), ln1_b=zeros((L, 1, E)),
        ffn_w1=nrm((L, E, F), dtype=bf), ffn_b1=zeros((L, 1, F)),
        ffn_w2=nrm((L, F, E), dtype=bf), ffn_b2=zeros((L, 1, E)),
        ln2_g=ones((L, 1, E)), ln2_b=zeros((L, 1, E)),
    )
    dec = dict(
        wqkv_s=nrm((L, E, 3 * E), dtype=bf), bqkv_s=zeros((L, 1, 3 * E)),
        wo_s=nrm((L, E, E), dtype=bf), bo_s=zeros((L, 1, E)),
        ln1_g=ones((L, 1, E)), ln1_b=zeros((L, 1, E)),
        wq_c=nrm((L, E, E), dtype=bf), bq_c=zeros((L, 1, E)),
        wkv_c=nrm((L, E, 2 * E), dtype=bf), bkv_c=zeros((L, 1, 2 * E)),
        wo_c=nrm((L, E, E), dtype=bf), bo_c=zeros((L, 1, E)),
        ln2_g=ones((L, 1, E)), ln2_b=zeros((L, 1, E)),
        ffn_w1=nrm((L, E, F), dtype=bf), ffn_b1=zeros((L, 1, F)),
        ffn_w2=nrm((L, F, E), dtype=bf), ffn_b2=zeros((L, 1, E)),
        ln3_g=ones((L, 1, E)), ln3_b=zeros((L, 1, E)),
    )
    in_dims = MAX_LEN * E  # scaled-down analogue of 23040 = 30 * 768
    ch = dict(enc_w=nrm((in_dims, CH_MID), dtype=bf), enc_b=zeros((1, CH_MID)),
              dec_w=nrm((CH_MID, in_dims), dtype=bf), dec_b=zeros((1, in_dims)))
    return dict(
        enc=enc,
        ch=ch,
        embedding=nrm((VOCAB, E), scale=1.0),       # nn.Embedding(vocab, emb_dim)
        dec=dec,
        fc_w=nrm((E, VOCAB), dtype=bf), fc_b=zeros((1, VOCAB)),
    )


if __name__ == "__main__":
    key = jax.random.PRNGKey(0)
    k_param, k_src, k_trg, k_noise = jax.random.split(key, 4)
    params = init_params(k_param)

    B = 2
    src_input_ids = jax.random.randint(k_src, (B, MAX_LEN), 0, VOCAB)
    src_attention_mask = jnp.ones((B, MAX_LEN), jnp.int32).at[:, MAX_LEN - 2:].set(0)
    trg_input_ids = jax.random.randint(k_trg, (B, MAX_LEN), 0, VOCAB)

    fwd = jax.jit(text_scnet_forward)
    outs = fwd(params, src_input_ids, src_attention_mask, trg_input_ids, k_noise)
    outs = jax.block_until_ready(outs)

    ch_code, ch_code_, s_code, s_code_d, decoded_output = outs
    assert ch_code.shape == (B, CH_MID)
    assert ch_code_.shape == (B, CH_MID)
    assert s_code.shape == (B, MAX_LEN * EMB_DIM)
    assert s_code_d.shape == (B, MAX_LEN * EMB_DIM)
    assert decoded_output.shape == (B, MAX_LEN, VOCAB)
    assert all(bool(jnp.all(jnp.isfinite(o))) for o in outs)
    print("KERNEL_OK")
</pallas_src>

<mosaic_0001>
module attributes {stable_mosaic.version = 11 : i64} {
  func.func @_channel_kernel(%arg0: memref<2x256xf32, #tpu.memory_space<vmem>>, %arg1: memref<256x64xbf16, #tpu.memory_space<vmem>>, %arg2: memref<1x64xf32, #tpu.memory_space<vmem>>, %arg3: memref<2x64xf32, #tpu.memory_space<vmem>>, %arg4: memref<2x64xf32, #tpu.memory_space<vmem>>, %arg5: memref<64x256xbf16, #tpu.memory_space<vmem>>, %arg6: memref<1x256xf32, #tpu.memory_space<vmem>>, %arg7: memref<2x64xf32, #tpu.memory_space<vmem>>, %arg8: memref<2x64xf32, #tpu.memory_space<vmem>>, %arg9: memref<2x256xf32, #tpu.memory_space<vmem>>) attributes {dimension_semantics = [], scalar_prefetch = 0 : i64, scratch_operands = 0 : i64, tpu.core_type = #tpu.core_type<tc>} {
    %c0 = arith.constant 0 : index
    %c0_0 = arith.constant 0 : index
    %0 = vector.load %arg0[%c0, %c0_0] : memref<2x256xf32, #tpu.memory_space<vmem>>, vector<2x256xf32>
    %c0_1 = arith.constant 0 : index
    %c0_2 = arith.constant 0 : index
    %1 = vector.load %arg1[%c0_1, %c0_2] : memref<256x64xbf16, #tpu.memory_space<vmem>>, vector<256x64xbf16>
    %2 = arith.truncf %0 : vector<2x256xf32> to vector<2x256xbf16>
    %cst = arith.constant dense<0.000000e+00> : vector<2x64xf32>
    %3 = tpu.matmul %2, %1, %cst {dimension_numbers = #tpu.dot_dimension_numbers<[1], [0], [0], [1], [0, 0, 1, 1], [], []>} : vector<2x256xbf16>, vector<256x64xbf16>, vector<2x64xf32> -> vector<2x64xf32>
    %c0_3 = arith.constant 0 : index
    %c0_4 = arith.constant 0 : index
    %4 = vector.load %arg2[%c0_3, %c0_4] : memref<1x64xf32, #tpu.memory_space<vmem>>, vector<1x64xf32>
    %5 = vector.broadcast %4 : vector<1x64xf32> to vector<2x64xf32>
    %6 = arith.addf %3, %5 : vector<2x64xf32>
    %7 = arith.mulf %6, %6 : vector<2x64xf32>
    %cst_5 = arith.constant dense<0.000000e+00> : vector<2xf32>
    %8 = vector.multi_reduction <add>, %7, %cst_5 [1] : vector<2x64xf32> to vector<2xf32>
    %9 = vector.shape_cast %8 : vector<2xf32> to vector<2x1xf32>
    %cst_6 = arith.constant 6.400000e+01 : f32
    %10 = vector.broadcast %cst_6 : f32 to vector<2x1xf32>
    %11 = arith.divf %9, %10 : vector<2x1xf32>
    %cst_7 = arith.constant 0.0316227749 : f32
    %12 = vector.broadcast %cst_7 : f32 to vector<2x1xf32>
    %13 = arith.mulf %11, %12 : vector<2x1xf32>
    %14 = math.sqrt %13 : vector<2x1xf32>
    %c0_8 = arith.constant 0 : index
    %c0_9 = arith.constant 0 : index
    %15 = vector.load %arg4[%c0_8, %c0_9] : memref<2x64xf32, #tpu.memory_space<vmem>>, vector<2x64xf32>
    %16 = vector.broadcast %14 : vector<2x1xf32> to vector<2x64xf32>
    %17 = arith.mulf %15, %16 : vector<2x64xf32>
    %c0_10 = arith.constant 0 : index
    %c0_11 = arith.constant 0 : index
    %18 = vector.load %arg3[%c0_10, %c0_11] : memref<2x64xf32, #tpu.memory_space<vmem>>, vector<2x64xf32>
    %cst_12 = arith.constant 9.99999997E-7 : f32
    %19 = vector.broadcast %cst_12 : f32 to vector<2x64xf32>
    %20 = arith.maximumf %18, %19 : vector<2x64xf32>
    %21 = arith.mulf %20, %6 : vector<2x64xf32>
    %22 = arith.addf %21, %17 : vector<2x64xf32>
    %23 = arith.divf %22, %20 : vector<2x64xf32>
    %c0_13 = arith.constant 0 : index
    %c0_14 = arith.constant 0 : index
    %24 = vector.load %arg5[%c0_13, %c0_14] : memref<64x256xbf16, #tpu.memory_space<vmem>>, vector<64x256xbf16>
    %25 = arith.truncf %23 : vector<2x64xf32> to vector<2x64xbf16>
    %cst_15 = arith.constant dense<0.000000e+00> : vector<2x256xf32>
    %26 = tpu.matmul %25, %24, %cst_15 {dimension_numbers = #tpu.dot_dimension_numbers<[1], [0], [0], [1], [0, 0, 1, 1], [], []>} : vector<2x64xbf16>, vector<64x256xbf16>, vector<2x256xf32> -> vector<2x256xf32>
    %c0_16 = arith.constant 0 : index
    %c0_17 = arith.constant 0 : index
    %27 = vector.load %arg6[%c0_16, %c0_17] : memref<1x256xf32, #tpu.memory_space<vmem>>, vector<1x256xf32>
    %28 = vector.broadcast %27 : vector<1x256xf32> to vector<2x256xf32>
    %29 = arith.addf %26, %28 : vector<2x256xf32>
    %c0_18 = arith.constant 0 : index
    %c0_19 = arith.constant 0 : index
    %30 = vector.load %arg7[%c0_18, %c0_19] : memref<2x64xf32, #tpu.memory_space<vmem>>, vector<2x64xf32>
    tpu.vector_store %arg7[%c0_18, %c0_19], %6 {strides = array<i32>} : memref<2x64xf32, #tpu.memory_space<vmem>>, vector<2x64xf32>,
    %c0_20 = arith.constant 0 : index
    %c0_21 = arith.constant 0 : index
    %31 = vector.load %arg8[%c0_20, %c0_21] : memref<2x64xf32, #tpu.memory_space<vmem>>, vector<2x64xf32>
    tpu.vector_store %arg8[%c0_20, %c0_21], %23 {strides = array<i32>} : memref<2x64xf32, #tpu.memory_space<vmem>>, vector<2x64xf32>,
    %c0_22 = arith.constant 0 : index
    %c0_23 = arith.constant 0 : index
    %32 = vector.load %arg9[%c0_22, %c0_23] : memref<2x256xf32, #tpu.memory_space<vmem>>, vector<2x256xf32>
    tpu.vector_store %arg9[%c0_22, %c0_23], %29 {strides = array<i32>} : memref<2x256xf32, #tpu.memory_space<vmem>>, vector<2x256xf32>,
    return
  }
}

module attributes {stable_mosaic.version = 11 : i64} {
  func.func @_enc_stack_kernel(%arg0: i32, %arg1: i32, %arg2: memref<1x8x32xf32, #tpu.memory_space<vmem>>, %arg3: memref<1x1x8xf32, #tpu.memory_space<vmem>>, %arg4: memref<1x32xf32, #tpu.memory_space<vmem>>, %arg5: memref<1x32xf32, #tpu.memory_space<vmem>>, %arg6: memref<1x32x96xbf16, #tpu.memory_space<vmem>>, %arg7: memref<1x1x96xf32, #tpu.memory_space<vmem>>, %arg8: memref<1x32x32xbf16, #tpu.memory_space<vmem>>, %arg9: memref<1x1x32xf32, #tpu.memory_space<vmem>>, %arg10: memref<1x1x32xf32, #tpu.memory_space<vmem>>, %arg11: memref<1x1x32xf32, #tpu.memory_space<vmem>>, %arg12: memref<1x32x64xbf16, #tpu.memory_space<vmem>>, %arg13: memref<1x1x64xf32, #tpu.memory_space<vmem>>, %arg14: memref<1x64x32xbf16, #tpu.memory_space<vmem>>, %arg15: memref<1x1x32xf32, #tpu.memory_space<vmem>>, %arg16: memref<1x1x32xf32, #tpu.memory_space<vmem>>, %arg17: memref<1x1x32xf32, #tpu.memory_space<vmem>>, %arg18: memref<1x8x32xf32, #tpu.memory_space<vmem>>, %arg19: memref<8x32xf32, #tpu.memory_space<vmem>>) attributes {dimension_semantics = [#tpu.dimension_semantics<parallel>, #tpu.dimension_semantics<arbitrary>], iteration_bounds = array<i64: 2, 2>, scalar_prefetch = 0 : i64, scratch_operands = 1 : i64, tpu.core_type = #tpu.core_type<tc>, window_params = [{transform_indices = @transform_0, window_bounds = array<i64: 1, 8, 32>}, {transform_indices = @transform_1, window_bounds = array<i64: 1, 1, 8>}, {pipeline_mode = #tpu.pipeline_mode<synchronous>, transform_indices = @transform_2, window_bounds = array<i64: 1, 32>}, {pipeline_mode = #tpu.pipeline_mode<synchronous>, transform_indices = @transform_3, window_bounds = array<i64: 1, 32>}, {transform_indices = @transform_4, window_bounds = array<i64: 1, 32, 96>}, {transform_indices = @transform_5, window_bounds = array<i64: 1, 1, 96>}, {transform_indices = @transform_6, window_bounds = array<i64: 1, 32, 32>}, {transform_indices = @transform_7, window_bounds = array<i64: 1, 1, 32>}, {transform_indices = @transform_8, window_bounds = array<i64: 1, 1, 32>}, {transform_indices = @transform_9, window_bounds = array<i64: 1, 1, 32>}, {transform_indices = @transform_10, window_bounds = array<i64: 1, 32, 64>}, {transform_indices = @transform_11, window_bounds = array<i64: 1, 1, 64>}, {transform_indices = @transform_12, window_bounds = array<i64: 1, 64, 32>}, {transform_indices = @transform_13, window_bounds = array<i64: 1, 1, 32>}, {transform_indices = @transform_14, window_bounds = array<i64: 1, 1, 32>}, {transform_indices = @transform_15, window_bounds = array<i64: 1, 1, 32>}, {transform_indices = @transform_16, window_bounds = array<i64: 1, 8, 32>}]} {
    %c0_i32 = arith.constant 0 : i32
    %0 = arith.cmpi eq, %arg1, %c0_i32 : i32
    %1 = arith.extui %0 : i1 to i32
    %c0_i32_0 = arith.constant 0 : i32
    %2 = arith.cmpi ne, %1, %c0_i32_0 : i32
    scf.if %2 {
      %c0_81 = arith.constant 0 : index
      %c0_82 = arith.constant 0 : index
      %c0_83 = arith.constant 0 : index
      %198 = vector.load %arg2[%c0_81, %c0_82, %c0_83] : memref<1x8x32xf32, #tpu.memory_space<vmem>>, vector<1x8x32xf32>
      %199 = vector.shape_cast %198 : vector<1x8x32xf32> to vector<8x32xf32>
      %c0_84 = arith.constant 0 : index
      %c0_85 = arith.constant 0 : index
      %200 = vector.load %arg4[%c0_84, %c0_85] : memref<1x32xf32, #tpu.memory_space<vmem>>, vector<1x32xf32>
      %c0_86 = arith.constant 0 : index
      %c0_87 = arith.constant 0 : index
      %201 = vector.load %arg5[%c0_86, %c0_87] : memref<1x32xf32, #tpu.memory_space<vmem>>, vector<1x32xf32>
      %cst_88 = arith.constant dense<0.000000e+00> : vector<8xf32>
      %202 = vector.multi_reduction <add>, %199, %cst_88 [1] : vector<8x32xf32> to vector<8xf32>
      %203 = vector.shape_cast %202 : vector<8xf32> to vector<8x1xf32>
      %cst_89 = arith.constant 3.200000e+01 : f32
      %204 = vector.broadcast %cst_89 : f32 to vector<8x1xf32>
      %205 = arith.divf %203, %204 : vector<8x1xf32>
      %206 = vector.broadcast %205 : vector<8x1xf32> to vector<8x32xf32>
      %207 = arith.subf %199, %206 : vector<8x32xf32>
      %208 = arith.mulf %207, %207 : vector<8x32xf32>
      %cst_90 = arith.constant dense<0.000000e+00> : vector<8xf32>
      %209 = vector.multi_reduction <add>, %208, %cst_90 [1] : vector<8x32xf32> to vector<8xf32>
      %210 = vector.shape_cast %209 : vector<8xf32> to vector<8x1xf32>
      %cst_91 = arith.constant 3.200000e+01 : f32
      %211 = vector.broadcast %cst_91 : f32 to vector<8x1xf32>
      %212 = arith.divf %210, %211 : vector<8x1xf32>
      %cst_92 = arith.constant 9.99999996E-13 : f32
      %213 = vector.broadcast %cst_92 : f32 to vector<8x1xf32>
      %214 = arith.addf %212, %213 : vector<8x1xf32>
      %215 = math.rsqrt %214 : vector<8x1xf32>
      %216 = vector.broadcast %215 : vector<8x1xf32> to vector<8x32xf32>
      %217 = arith.mulf %207, %216 : vector<8x32xf32>
      %218 = vector.broadcast %200 : vector<1x32xf32> to vector<8x32xf32>
      %219 = arith.mulf %217, %218 : vector<8x32xf32>
      %220 = vector.broadcast %201 : vector<1x32xf32> to vector<8x32xf32>
      %221 = arith.addf %219, %220 : vector<8x32xf32>
      %c0_93 = arith.constant 0 : index
      %c0_94 = arith.constant 0 : index
      %222 = vector.load %arg19[%c0_93, %c0_94] : memref<8x32xf32, #tpu.memory_space<vmem>>, vector<8x32xf32>
      tpu.vector_store %arg19[%c0_93, %c0_94], %221 {strides = array<i32>} : memref<8x32xf32, #tpu.memory_space<vmem>>, vector<8x32xf32>,
    } else {
    }
    %c0 = arith.constant 0 : index
    %c0_1 = arith.constant 0 : index
    %3 = vector.load %arg19[%c0, %c0_1] : memref<8x32xf32, #tpu.memory_space<vmem>>, vector<8x32xf32>
    %c0_2 = arith.constant 0 : index
    %c0_3 = arith.constant 0 : index
    %c0_4 = arith.constant 0 : index
    %4 = vector.load %arg3[%c0_2, %c0_3, %c0_4] : memref<1x1x8xf32, #tpu.memory_space<vmem>>, vector<1x1x8xf32>
    %5 = vector.shape_cast %4 : vector<1x1x8xf32> to vector<1x8xf32>
    %c0_5 = arith.constant 0 : index
    %c0_6 = arith.constant 0 : index
    %c0_7 = arith.constant 0 : index
    %6 = vector.load %arg6[%c0_5, %c0_6, %c0_7] : memref<1x32x96xbf16, #tpu.memory_space<vmem>>, vector<1x32x96xbf16>
    %7 = vector.shape_cast %6 : vector<1x32x96xbf16> to vector<32x96xbf16>
    %8 = arith.truncf %3 : vector<8x32xf32> to vector<8x32xbf16>
    %cst = arith.constant dense<0.000000e+00> : vector<8x96xf32>
    %9 = tpu.matmul %8, %7, %cst {dimension_numbers = #tpu.dot_dimension_numbers<[1], [0], [0], [1], [0, 0, 1, 1], [], []>} : vector<8x32xbf16>, vector<32x96xbf16>, vector<8x96xf32> -> vector<8x96xf32>
    %c0_8 = arith.constant 0 : index
    %c0_9 = arith.constant 0 : index
    %c0_10 = arith.constant 0 : index
    %10 = vector.load %arg7[%c0_8, %c0_9, %c0_10] : memref<1x1x96xf32, #tpu.memory_space<vmem>>, vector<1x1x96xf32>
    %11 = vector.shape_cast %10 : vector<1x1x96xf32> to vector<1x96xf32>
    %12 = vector.broadcast %11 : vector<1x96xf32> to vector<8x96xf32>
    %13 = arith.addf %9, %12 : vector<8x96xf32>
    %14 = vector.extract_strided_slice %13 {offsets = [0, 0], sizes = [8, 8], strides = [1, 1]} : vector<8x96xf32> to vector<8x8xf32>
    %15 = vector.extract_strided_slice %13 {offsets = [0, 32], sizes = [8, 8], strides = [1, 1]} : vector<8x96xf32> to vector<8x8xf32>
    %16 = vector.extract_strided_slice %13 {offsets = [0, 64], sizes = [8, 8], strides = [1, 1]} : vector<8x96xf32> to vector<8x8xf32>
    %17 = arith.truncf %14 : vector<8x8xf32> to vector<8x8xbf16>
    %18 = arith.truncf %15 : vector<8x8xf32> to vector<8x8xbf16>
    %cst_11 = arith.constant dense<0.000000e+00> : vector<8x8xf32>
    %19 = tpu.matmul %17, %18, %cst_11 {dimension_numbers = #tpu.dot_dimension_numbers<[1], [1], [0], [0], [0, 0, 1, 0], [], []>} : vector<8x8xbf16>, vector<8x8xbf16>, vector<8x8xf32> -> vector<8x8xf32>
    %cst_12 = arith.constant 0.353553385 : f32
    %20 = vector.broadcast %cst_12 : f32 to vector<8x8xf32>
    %21 = arith.mulf %19, %20 : vector<8x8xf32>
    %22 = vector.broadcast %5 : vector<1x8xf32> to vector<8x8xf32>
    %23 = arith.addf %21, %22 : vector<8x8xf32>
    %cst_13 = arith.constant dense<0xFF800000> : vector<8xf32>
    %24 = vector.multi_reduction <maximumf>, %23, %cst_13 [1] : vector<8x8xf32> to vector<8xf32>
    %25 = vector.shape_cast %24 : vector<8xf32> to vector<8x1xf32>
    %26 = vector.broadcast %25 : vector<8x1xf32> to vector<8x8xf32>
    %27 = arith.subf %23, %26 : vector<8x8xf32>
    %28 = math.exp %27 : vector<8x8xf32>
    %cst_14 = arith.constant dense<0.000000e+00> : vector<8xf32>
    %29 = vector.multi_reduction <add>, %28, %cst_14 [1] : vector<8x8xf32> to vector<8xf32>
    %30 = vector.shape_cast %29 : vector<8xf32> to vector<8x1xf32>
    %31 = tpu.reciprocal %30 {approx = true} : vector<8x1xf32> -> vector<8x1xf32>
    %32 = vector.broadcast %31 : vector<8x1xf32> to vector<8x8xf32>
    %33 = arith.mulf %28, %32 : vector<8x8xf32>
    %34 = arith.truncf %33 : vector<8x8xf32> to vector<8x8xbf16>
    %35 = arith.truncf %16 : vector<8x8xf32> to vector<8x8xbf16>
    %cst_15 = arith.constant dense<0.000000e+00> : vector<8x8xf32>
    %36 = tpu.matmul %34, %35, %cst_15 {dimension_numbers = #tpu.dot_dimension_numbers<[1], [0], [0], [1], [0, 0, 1, 1], [], []>} : vector<8x8xbf16>, vector<8x8xbf16>, vector<8x8xf32> -> vector<8x8xf32>
    %37 = vector.extract_strided_slice %13 {offsets = [0, 8], sizes = [8, 8], strides = [1, 1]} : vector<8x96xf32> to vector<8x8xf32>
    %38 = vector.extract_strided_slice %13 {offsets = [0, 40], sizes = [8, 8], strides = [1, 1]} : vector<8x96xf32> to vector<8x8xf32>
    %39 = vector.extract_strided_slice %13 {offsets = [0, 72], sizes = [8, 8], strides = [1, 1]} : vector<8x96xf32> to vector<8x8xf32>
    %40 = arith.truncf %37 : vector<8x8xf32> to vector<8x8xbf16>
    %41 = arith.truncf %38 : vector<8x8xf32> to vector<8x8xbf16>
    %cst_16 = arith.constant dense<0.000000e+00> : vector<8x8xf32>
    %42 = tpu.matmul %40, %41, %cst_16 {dimension_numbers = #tpu.dot_dimension_numbers<[1], [1], [0], [0], [0, 0, 1, 0], [], []>} : vector<8x8xbf16>, vector<8x8xbf16>, vector<8x8xf32> -> vector<8x8xf32>
    %cst_17 = arith.constant 0.353553385 : f32
    %43 = vector.broadcast %cst_17 : f32 to vector<8x8xf32>
    %44 = arith.mulf %42, %43 : vector<8x8xf32>
    %45 = vector.broadcast %5 : vector<1x8xf32> to vector<8x8xf32>
    %46 = arith.addf %44, %45 : vector<8x8xf32>
    %cst_18 = arith.constant dense<0xFF800000> : vector<8xf32>
    %47 = vector.multi_reduction <maximumf>, %46, %cst_18 [1] : vector<8x8xf32> to vector<8xf32>
    %48 = vector.shape_cast %47 : vector<8xf32> to vector<8x1xf32>
    %49 = vector.broadcast %48 : vector<8x1xf32> to vector<8x8xf32>
    %50 = arith.subf %46, %49 : vector<8x8xf32>
    %51 = math.exp %50 : vector<8x8xf32>
    %cst_19 = arith.constant dense<0.000000e+00> : vector<8xf32>
    %52 = vector.multi_reduction <add>, %51, %cst_19 [1] : vector<8x8xf32> to vector<8xf32>
    %53 = vector.shape_cast %52 : vector<8xf32> to vector<8x1xf32>
    %54 = tpu.reciprocal %53 {approx = true} : vector<8x1xf32> -> vector<8x1xf32>
    %55 = vector.broadcast %54 : vector<8x1xf32> to vector<8x8xf32>
    %56 = arith.mulf %51, %55 : vector<8x8xf32>
    %57 = arith.truncf %56 : vector<8x8xf32> to vector<8x8xbf16>
    %58 = arith.truncf %39 : vector<8x8xf32> to vector<8x8xbf16>
    %cst_20 = arith.constant dense<0.000000e+00> : vector<8x8xf32>
    %59 = tpu.matmul %57, %58, %cst_20 {dimension_numbers = #tpu.dot_dimension_numbers<[1], [0], [0], [1], [0, 0, 1, 1], [], []>} : vector<8x8xbf16>, vector<8x8xbf16>, vector<8x8xf32> -> vector<8x8xf32>
    %60 = vector.extract_strided_slice %13 {offsets = [0, 16], sizes = [8, 8], strides = [1, 1]} : vector<8x96xf32> to vector<8x8xf32>
    %61 = vector.extract_strided_slice %13 {offsets = [0, 48], sizes = [8, 8], strides = [1, 1]} : vector<8x96xf32> to vector<8x8xf32>
    %62 = vector.extract_strided_slice %13 {offsets = [0, 80], sizes = [8, 8], strides = [1, 1]} : vector<8x96xf32> to vector<8x8xf32>
    %63 = arith.truncf %60 : vector<8x8xf32> to vector<8x8xbf16>
    %64 = arith.truncf %61 : vector<8x8xf32> to vector<8x8xbf16>
    %cst_21 = arith.constant dense<0.000000e+00> : vector<8x8xf32>
    %65 = tpu.matmul %63, %64, %cst_21 {dimension_numbers = #tpu.dot_dimension_numbers<[1], [1], [0], [0], [0, 0, 1, 0], [], []>} : vector<8x8xbf16>, vector<8x8xbf16>, vector<8x8xf32> -> vector<8x8xf32>
    %cst_22 = arith.constant 0.353553385 : f32
    %66 = vector.broadcast %cst_22 : f32 to vector<8x8xf32>
    %67 = arith.mulf %65, %66 : vector<8x8xf32>
    %68 = vector.broadcast %5 : vector<1x8xf32> to vector<8x8xf32>
    %69 = arith.addf %67, %68 : vector<8x8xf32>
    %cst_23 = arith.constant dense<0xFF800000> : vector<8xf32>
    %70 = vector.multi_reduction <maximumf>, %69, %cst_23 [1] : vector<8x8xf32> to vector<8xf32>
    %71 = vector.shape_cast %70 : vector<8xf32> to vector<8x1xf32>
    %72 = vector.broadcast %71 : vector<8x1xf32> to vector<8x8xf32>
    %73 = arith.subf %69, %72 : vector<8x8xf32>
    %74 = math.exp %73 : vector<8x8xf32>
    %cst_24 = arith.constant dense<0.000000e+00> : vector<8xf32>
    %75 = vector.multi_reduction <add>, %74, %cst_24 [1] : vector<8x8xf32> to vector<8xf32>
    %76 = vector.shape_cast %75 : vector<8xf32> to vector<8x1xf32>
    %77 = tpu.reciprocal %76 {approx = true} : vector<8x1xf32> -> vector<8x1xf32>
    %78 = vector.broadcast %77 : vector<8x1xf32> to vector<8x8xf32>
    %79 = arith.mulf %74, %78 : vector<8x8xf32>
    %80 = arith.truncf %79 : vector<8x8xf32> to vector<8x8xbf16>
    %81 = arith.truncf %62 : vector<8x8xf32> to vector<8x8xbf16>
    %cst_25 = arith.constant dense<0.000000e+00> : vector<8x8xf32>
    %82 = tpu.matmul %80, %81, %cst_25 {dimension_numbers = #tpu.dot_dimension_numbers<[1], [0], [0], [1], [0, 0, 1, 1], [], []>} : vector<8x8xbf16>, vector<8x8xbf16>, vector<8x8xf32> -> vector<8x8xf32>
    %83 = vector.extract_strided_slice %13 {offsets = [0, 24], sizes = [8, 8], strides = [1, 1]} : vector<8x96xf32> to vector<8x8xf32>
    %84 = vector.extract_strided_slice %13 {offsets = [0, 56], sizes = [8, 8], strides = [1, 1]} : vector<8x96xf32> to vector<8x8xf32>
    %85 = vector.extract_strided_slice %13 {offsets = [0, 88], sizes = [8, 8], strides = [1, 1]} : vector<8x96xf32> to vector<8x8xf32>
    %86 = arith.truncf %83 : vector<8x8xf32> to vector<8x8xbf16>
    %87 = arith.truncf %84 : vector<8x8xf32> to vector<8x8xbf16>
    %cst_26 = arith.constant dense<0.000000e+00> : vector<8x8xf32>
    %88 = tpu.matmul %86, %87, %cst_26 {dimension_numbers = #tpu.dot_dimension_numbers<[1], [1], [0], [0], [0, 0, 1, 0], [], []>} : vector<8x8xbf16>, vector<8x8xbf16>, vector<8x8xf32> -> vector<8x8xf32>
    %cst_27 = arith.constant 0.353553385 : f32
    %89 = vector.broadcast %cst_27 : f32 to vector<8x8xf32>
    %90 = arith.mulf %88, %89 : vector<8x8xf32>
    %91 = vector.broadcast %5 : vector<1x8xf32> to vector<8x8xf32>
    %92 = arith.addf %90, %91 : vector<8x8xf32>
    %cst_28 = arith.constant dense<0xFF800000> : vector<8xf32>
    %93 = vector.multi_reduction <maximumf>, %92, %cst_28 [1] : vector<8x8xf32> to vector<8xf32>
    %94 = vector.shape_cast %93 : vector<8xf32> to vector<8x1xf32>
    %95 = vector.broadcast %94 : vector<8x1xf32> to vector<8x8xf32>
    %96 = arith.subf %92, %95 : vector<8x8xf32>
    %97 = math.exp %96 : vector<8x8xf32>
    %cst_29 = arith.constant dense<0.000000e+00> : vector<8xf32>
    %98 = vector.multi_reduction <add>, %97, %cst_29 [1] : vector<8x8xf32> to vector<8xf32>
    %99 = vector.shape_cast %98 : vector<8xf32> to vector<8x1xf32>
    %100 = tpu.reciprocal %99 {approx = true} : vector<8x1xf32> -> vector<8x1xf32>
    %101 = vector.broadcast %100 : vector<8x1xf32> to vector<8x8xf32>
    %102 = arith.mulf %97, %101 : vector<8x8xf32>
    %103 = arith.truncf %102 : vector<8x8xf32> to vector<8x8xbf16>
    %104 = arith.truncf %85 : vector<8x8xf32> to vector<8x8xbf16>
    %cst_30 = arith.constant dense<0.000000e+00> : vector<8x8xf32>
    %105 = tpu.matmul %103, %104, %cst_30 {dimension_numbers = #tpu.dot_dimension_numbers<[1], [0], [0], [1], [0, 0, 1, 1], [], []>} : vector<8x8xbf16>, vector<8x8xbf16>, vector<8x8xf32> -> vector<8x8xf32>
    %106 = tpu.concatenate %36, %59, %82, %105 in 1 : vector<8x8xf32>, vector<8x8xf32>, vector<8x8xf32>, vector<8x8xf32> -> vector<8x32xf32>
    %c0_31 = arith.constant 0 : index
    %c0_32 = arith.constant 0 : index
    %c0_33 = arith.constant 0 : index
    %107 = vector.load %arg8[%c0_31, %c0_32, %c0_33] : memref<1x32x32xbf16, #tpu.memory_space<vmem>>, vector<1x32x32xbf16>
    %108 = vector.shape_cast %107 : vector<1x32x32xbf16> to vector<32x32xbf16>
    %109 = arith.truncf %106 : vector<8x32xf32> to vector<8x32xbf16>
    %cst_34 = arith.constant dense<0.000000e+00> : vector<8x32xf32>
    %110 = tpu.matmul %109, %108, %cst_34 {dimension_numbers = #tpu.dot_dimension_numbers<[1], [0], [0], [1], [0, 0, 1, 1], [], []>} : vector<8x32xbf16>, vector<32x32xbf16>, vector<8x32xf32> -> vector<8x32xf32>
    %c0_35 = arith.constant 0 : index
    %c0_36 = arith.constant 0 : index
    %c0_37 = arith.constant 0 : index
    %111 = vector.load %arg9[%c0_35, %c0_36, %c0_37] : memref<1x1x32xf32, #tpu.memory_space<vmem>>, vector<1x1x32xf32>
    %112 = vector.shape_cast %111 : vector<1x1x32xf32> to vector<1x32xf32>
    %113 = vector.broadcast %112 : vector<1x32xf32> to vector<8x32xf32>
    %114 = arith.addf %110, %113 : vector<8x32xf32>
    %115 = arith.addf %3, %114 : vector<8x32xf32>
    %c0_38 = arith.constant 0 : index
    %c0_39 = arith.constant 0 : index
    %c0_40 = arith.constant 0 : index
    %116 = vector.load %arg10[%c0_38, %c0_39, %c0_40] : memref<1x1x32xf32, #tpu.memory_space<vmem>>, vector<1x1x32xf32>
    %117 = vector.shape_cast %116 : vector<1x1x32xf32> to vector<1x32xf32>
    %c0_41 = arith.constant 0 : index
    %c0_42 = arith.constant 0 : index
    %c0_43 = arith.constant 0 : index
    %118 = vector.load %arg11[%c0_41, %c0_42, %c0_43] : memref<1x1x32xf32, #tpu.memory_space<vmem>>, vector<1x1x32xf32>
    %119 = vector.shape_cast %118 : vector<1x1x32xf32> to vector<1x32xf32>
    %cst_44 = arith.constant dense<0.000000e+00> : vector<8xf32>
    %120 = vector.multi_reduction <add>, %115, %cst_44 [1] : vector<8x32xf32> to vector<8xf32>
    %121 = vector.shape_cast %120 : vector<8xf32> to vector<8x1xf32>
    %cst_45 = arith.constant 3.200000e+01 : f32
    %122 = vector.broadcast %cst_45 : f32 to vector<8x1xf32>
    %123 = arith.divf %121, %122 : vector<8x1xf32>
    %124 = vector.broadcast %123 : vector<8x1xf32> to vector<8x32xf32>
    %125 = arith.subf %115, %124 : vector<8x32xf32>
    %126 = arith.mulf %125, %125 : vector<8x32xf32>
    %cst_46 = arith.constant dense<0.000000e+00> : vector<8xf32>
    %127 = vector.multi_reduction <add>, %126, %cst_46 [1] : vector<8x32xf32> to vector<8xf32>
    %128 = vector.shape_cast %127 : vector<8xf32> to vector<8x1xf32>
    %cst_47 = arith.constant 3.200000e+01 : f32
    %129 = vector.broadcast %cst_47 : f32 to vector<8x1xf32>
    %130 = arith.divf %128, %129 : vector<8x1xf32>
    %cst_48 = arith.constant 9.99999996E-13 : f32
    %131 = vector.broadcast %cst_48 : f32 to vector<8x1xf32>
    %132 = arith.addf %130, %131 : vector<8x1xf32>
    %133 = math.rsqrt %132 : vector<8x1xf32>
    %134 = vector.broadcast %133 : vector<8x1xf32> to vector<8x32xf32>
    %135 = arith.mulf %125, %134 : vector<8x32xf32>
    %136 = vector.broadcast %117 : vector<1x32xf32> to vector<8x32xf32>
    %137 = arith.mulf %135, %136 : vector<8x32xf32>
    %138 = vector.broadcast %119 : vector<1x32xf32> to vector<8x32xf32>
    %139 = arith.addf %137, %138 : vector<8x32xf32>
    %c0_49 = arith.constant 0 : index
    %c0_50 = arith.constant 0 : index
    %c0_51 = arith.constant 0 : index
    %140 = vector.load %arg12[%c0_49, %c0_50, %c0_51] : memref<1x32x64xbf16, #tpu.memory_space<vmem>>, vector<1x32x64xbf16>
    %141 = vector.shape_cast %140 : vector<1x32x64xbf16> to vector<32x64xbf16>
    %142 = arith.truncf %139 : vector<8x32xf32> to vector<8x32xbf16>
    %cst_52 = arith.constant dense<0.000000e+00> : vector<8x64xf32>
    %143 = tpu.matmul %142, %141, %cst_52 {dimension_numbers = #tpu.dot_dimension_numbers<[1], [0], [0], [1], [0, 0, 1, 1], [], []>} : vector<8x32xbf16>, vector<32x64xbf16>, vector<8x64xf32> -> vector<8x64xf32>
    %c0_53 = arith.constant 0 : index
    %c0_54 = arith.constant 0 : index
    %c0_55 = arith.constant 0 : index
    %144 = vector.load %arg13[%c0_53, %c0_54, %c0_55] : memref<1x1x64xf32, #tpu.memory_space<vmem>>, vector<1x1x64xf32>
    %145 = vector.shape_cast %144 : vector<1x1x64xf32> to vector<1x64xf32>
    %146 = vector.broadcast %145 : vector<1x64xf32> to vector<8x64xf32>
    %147 = arith.addf %143, %146 : vector<8x64xf32>
    %148 = arith.mulf %147, %147 : vector<8x64xf32>
    %149 = arith.mulf %147, %148 : vector<8x64xf32>
    %cst_56 = arith.constant 4.471500e-02 : f32
    %150 = vector.broadcast %cst_56 : f32 to vector<8x64xf32>
    %151 = arith.mulf %150, %149 : vector<8x64xf32>
    %152 = arith.addf %147, %151 : vector<8x64xf32>
    %cst_57 = arith.constant 0.797884583 : f32
    %153 = vector.broadcast %cst_57 : f32 to vector<8x64xf32>
    %154 = arith.mulf %153, %152 : vector<8x64xf32>
    %155 = math.tanh %154 : vector<8x64xf32>
    %cst_58 = arith.constant 1.000000e+00 : f32
    %156 = vector.broadcast %cst_58 : f32 to vector<8x64xf32>
    %157 = arith.addf %156, %155 : vector<8x64xf32>
    %cst_59 = arith.constant 5.000000e-01 : f32
    %158 = vector.broadcast %cst_59 : f32 to vector<8x64xf32>
    %159 = arith.mulf %158, %157 : vector<8x64xf32>
    %160 = arith.mulf %147, %159 : vector<8x64xf32>
    %c0_60 = arith.constant 0 : index
    %c0_61 = arith.constant 0 : index
    %c0_62 = arith.constant 0 : index
    %161 = vector.load %arg14[%c0_60, %c0_61, %c0_62] : memref<1x64x32xbf16, #tpu.memory_space<vmem>>, vector<1x64x32xbf16>
    %162 = vector.shape_cast %161 : vector<1x64x32xbf16> to vector<64x32xbf16>
    %163 = arith.truncf %160 : vector<8x64xf32> to vector<8x64xbf16>
    %cst_63 = arith.constant dense<0.000000e+00> : vector<8x32xf32>
    %164 = tpu.matmul %163, %162, %cst_63 {dimension_numbers = #tpu.dot_dimension_numbers<[1], [0], [0], [1], [0, 0, 1, 1], [], []>} : vector<8x64xbf16>, vector<64x32xbf16>, vector<8x32xf32> -> vector<8x32xf32>
    %c0_64 = arith.constant 0 : index
    %c0_65 = arith.constant 0 : index
    %c0_66 = arith.constant 0 : index
    %165 = vector.load %arg15[%c0_64, %c0_65, %c0_66] : memref<1x1x32xf32, #tpu.memory_space<vmem>>, vector<1x1x32xf32>
    %166 = vector.shape_cast %165 : vector<1x1x32xf32> to vector<1x32xf32>
    %167 = vector.broadcast %166 : vector<1x32xf32> to vector<8x32xf32>
    %168 = arith.addf %164, %167 : vector<8x32xf32>
    %169 = arith.addf %139, %168 : vector<8x32xf32>
    %c0_67 = arith.constant 0 : index
    %c0_68 = arith.constant 0 : index
    %c0_69 = arith.constant 0 : index
    %170 = vector.load %arg16[%c0_67, %c0_68, %c0_69] : memref<1x1x32xf32, #tpu.memory_space<vmem>>, vector<1x1x32xf32>
    %171 = vector.shape_cast %170 : vector<1x1x32xf32> to vector<1x32xf32>
    %c0_70 = arith.constant 0 : index
    %c0_71 = arith.constant 0 : index
    %c0_72 = arith.constant 0 : index
    %172 = vector.load %arg17[%c0_70, %c0_71, %c0_72] : memref<1x1x32xf32, #tpu.memory_space<vmem>>, vector<1x1x32xf32>
    %173 = vector.shape_cast %172 : vector<1x1x32xf32> to vector<1x32xf32>
    %cst_73 = arith.constant dense<0.000000e+00> : vector<8xf32>
    %174 = vector.multi_reduction <add>, %169, %cst_73 [1] : vector<8x32xf32> to vector<8xf32>
    %175 = vector.shape_cast %174 : vector<8xf32> to vector<8x1xf32>
    %cst_74 = arith.constant 3.200000e+01 : f32
    %176 = vector.broadcast %cst_74 : f32 to vector<8x1xf32>
    %177 = arith.divf %175, %176 : vector<8x1xf32>
    %178 = vector.broadcast %177 : vector<8x1xf32> to vector<8x32xf32>
    %179 = arith.subf %169, %178 : vector<8x32xf32>
    %180 = arith.mulf %179, %179 : vector<8x32xf32>
    %cst_75 = arith.constant dense<0.000000e+00> : vector<8xf32>
    %181 = vector.multi_reduction <add>, %180, %cst_75 [1] : vector<8x32xf32> to vector<8xf32>
    %182 = vector.shape_cast %181 : vector<8xf32> to vector<8x1xf32>
    %cst_76 = arith.constant 3.200000e+01 : f32
    %183 = vector.broadcast %cst_76 : f32 to vector<8x1xf32>
    %184 = arith.divf %182, %183 : vector<8x1xf32>
    %cst_77 = arith.constant 9.99999996E-13 : f32
    %185 = vector.broadcast %cst_77 : f32 to vector<8x1xf32>
    %186 = arith.addf %184, %185 : vector<8x1xf32>
    %187 = math.rsqrt %186 : vector<8x1xf32>
    %188 = vector.broadcast %187 : vector<8x1xf32> to vector<8x32xf32>
    %189 = arith.mulf %179, %188 : vector<8x32xf32>
    %190 = vector.broadcast %171 : vector<1x32xf32> to vector<8x32xf32>
    %191 = arith.mulf %189, %190 : vector<8x32xf32>
    %192 = vector.broadcast %173 : vector<1x32xf32> to vector<8x32xf32>
    %193 = arith.addf %191, %192 : vector<8x32xf32>
    %c0_78 = arith.constant 0 : index
    %c0_79 = arith.constant 0 : index
    %194 = vector.load %arg19[%c0_78, %c0_79] : memref<8x32xf32, #tpu.memory_space<vmem>>, vector<8x32xf32>
    tpu.vector_store %arg19[%c0_78, %c0_79], %193 {strides = array<i32>} : memref<8x32xf32, #tpu.memory_space<vmem>>, vector<8x32xf32>,
    %c1_i32 = arith.constant 1 : i32
    %195 = arith.cmpi eq, %arg1, %c1_i32 : i32
    %196 = arith.extui %195 : i1 to i32
    %c0_i32_80 = arith.constant 0 : i32
    %197 = arith.cmpi ne, %196, %c0_i32_80 : i32
    scf.if %197 {
      %c0_81 = arith.constant 0 : index
      %c0_82 = arith.constant 0 : index
      %c0_83 = arith.constant 0 : index
      %198 = vector.load %arg18[%c0_81, %c0_82, %c0_83] : memref<1x8x32xf32, #tpu.memory_space<vmem>>, vector<1x8x32xf32>
      %199 = vector.shape_cast %198 : vector<1x8x32xf32> to vector<8x32xf32>
      %200 = vector.shape_cast %193 : vector<8x32xf32> to vector<1x8x32xf32>
      tpu.vector_store %arg18[%c0_81, %c0_82, %c0_83], %200 {strides = array<i32>} : memref<1x8x32xf32, #tpu.memory_space<vmem>>, vector<1x8x32xf32>,
    } else {
    }
    return
  }
  func.func @transform_0(%arg0: i32, %arg1: i32) -> (i32, i32, i32) {
    %c0_i32 = arith.constant 0 : i32
    %c0_i32_0 = arith.constant 0 : i32
    %c0_i32_1 = arith.constant 0 : i32
    return %arg0, %c0_i32, %c0_i32_0 : i32, i32, i32
  }
  func.func @transform_1(%arg0: i32, %arg1: i32) -> (i32, i32, i32) {
    %c0_i32 = arith.constant 0 : i32
    %c0_i32_0 = arith.constant 0 : i32
    %c0_i32_1 = arith.constant 0 : i32
    return %arg0, %c0_i32, %c0_i32_0 : i32, i32, i32
  }
  func.func @transform_2(%arg0: i32, %arg1: i32) -> (i32, i32) {
    %c0_i32 = arith.constant 0 : i32
    %c0_i32_0 = arith.constant 0 : i32
    %c0_i32_1 = arith.constant 0 : i32
    return %c0_i32, %c0_i32_0 : i32, i32
  }
  func.func @transform_3(%arg0: i32, %arg1: i32) -> (i32, i32) {
    %c0_i32 = arith.constant 0 : i32
    %c0_i32_0 = arith.constant 0 : i32
    %c0_i32_1 = arith.constant 0 : i32
    return %c0_i32, %c0_i32_0 : i32, i32
  }
  func.func @transform_4(%arg0: i32, %arg1: i32) -> (i32, i32, i32) {
    %c0_i32 = arith.constant 0 : i32
    %c0_i32_0 = arith.constant 0 : i32
    %c0_i32_1 = arith.constant 0 : i32
    return %arg1, %c0_i32, %c0_i32_0 : i32, i32, i32
  }
  func.func @transform_5(%arg0: i32, %arg1: i32) -> (i32, i32, i32) {
    %c0_i32 = arith.constant 0 : i32
    %c0_i32_0 = arith.constant 0 : i32
    %c0_i32_1 = arith.constant 0 : i32
    return %arg1, %c0_i32, %c0_i32_0 : i32, i32, i32
  }
  func.func @transform_6(%arg0: i32, %arg1: i32) -> (i32, i32, i32) {
    %c0_i32 = arith.constant 0 : i32
    %c0_i32_0 = arith.constant 0 : i32
    %c0_i32_1 = arith.constant 0 : i32
    return %arg1, %c0_i32, %c0_i32_0 : i32, i32, i32
  }
  func.func @transform_7(%arg0: i32, %arg1: i32) -> (i32, i32, i32) {
    %c0_i32 = arith.constant 0 : i32
    %c0_i32_0 = arith.constant 0 : i32
    %c0_i32_1 = arith.constant 0 : i32
    return %arg1, %c0_i32, %c0_i32_0 : i32, i32, i32
  }
  func.func @transform_8(%arg0: i32, %arg1: i32) -> (i32, i32, i32) {
    %c0_i32 = arith.constant 0 : i32
    %c0_i32_0 = arith.constant 0 : i32
    %c0_i32_1 = arith.constant 0 : i32
    return %arg1, %c0_i32, %c0_i32_0 : i32, i32, i32
  }
  func.func @transform_9(%arg0: i32, %arg1: i32) -> (i32, i32, i32) {
    %c0_i32 = arith.constant 0 : i32
    %c0_i32_0 = arith.constant 0 : i32
    %c0_i32_1 = arith.constant 0 : i32
    return %arg1, %c0_i32, %c0_i32_0 : i32, i32, i32
  }
  func.func @transform_10(%arg0: i32, %arg1: i32) -> (i32, i32, i32) {
    %c0_i32 = arith.constant 0 : i32
    %c0_i32_0 = arith.constant 0 : i32
    %c0_i32_1 = arith.constant 0 : i32
    return %arg1, %c0_i32, %c0_i32_0 : i32, i32, i32
  }
  func.func @transform_11(%arg0: i32, %arg1: i32) -> (i32, i32, i32) {
    %c0_i32 = arith.constant 0 : i32
    %c0_i32_0 = arith.constant 0 : i32
    %c0_i32_1 = arith.constant 0 : i32
    return %arg1, %c0_i32, %c0_i32_0 : i32, i32, i32
  }
  func.func @transform_12(%arg0: i32, %arg1: i32) -> (i32, i32, i32) {
    %c0_i32 = arith.constant 0 : i32
    %c0_i32_0 = arith.constant 0 : i32
    %c0_i32_1 = arith.constant 0 : i32
    return %arg1, %c0_i32, %c0_i32_0 : i32, i32, i32
  }
  func.func @transform_13(%arg0: i32, %arg1: i32) -> (i32, i32, i32) {
    %c0_i32 = arith.constant 0 : i32
    %c0_i32_0 = arith.constant 0 : i32
    %c0_i32_1 = arith.constant 0 : i32
    return %arg1, %c0_i32, %c0_i32_0 : i32, i32, i32
  }
  func.func @transform_14(%arg0: i32, %arg1: i32) -> (i32, i32, i32) {
    %c0_i32 = arith.constant 0 : i32
    %c0_i32_0 = arith.constant 0 : i32
    %c0_i32_1 = arith.constant 0 : i32
    return %arg1, %c0_i32, %c0_i32_0 : i32, i32, i32
  }
  func.func @transform_15(%arg0: i32, %arg1: i32) -> (i32, i32, i32) {
    %c0_i32 = arith.constant 0 : i32
    %c0_i32_0 = arith.constant 0 : i32
    %c0_i32_1 = arith.constant 0 : i32
    return %arg1, %c0_i32, %c0_i32_0 : i32, i32, i32
  }
  func.func @transform_16(%arg0: i32, %arg1: i32) -> (i32, i32, i32) {
    %c0_i32 = arith.constant 0 : i32
    %c0_i32_0 = arith.constant 0 : i32
    %c0_i32_1 = arith.constant 0 : i32
    return %arg0, %c0_i32, %c0_i32_0 : i32, i32, i32
  }
}

module attributes {stable_mosaic.version = 11 : i64} {
  func.func @_dense_kernel(%arg0: i32, %arg1: i32, %arg2: memref<8x32xf32, #tpu.memory_space<vmem>>, %arg3: memref<32x64xbf16, #tpu.memory_space<vmem>>, %arg4: memref<1x64xf32, #tpu.memory_space<vmem>>, %arg5: memref<8x64xf32, #tpu.memory_space<vmem>>) attributes {dimension_semantics = [#tpu.dimension_semantics<parallel>, #tpu.dimension_semantics<parallel>], iteration_bounds = array<i64: 2, 1>, scalar_prefetch = 0 : i64, scratch_operands = 0 : i64, tpu.core_type = #tpu.core_type<tc>, window_params = [{transform_indices = @transform_0, window_bounds = array<i64: 8, 32>}, {transform_indices = @transform_1, window_bounds = array<i64: 32, 64>}, {transform_indices = @transform_2, window_bounds = array<i64: 1, 64>}, {transform_indices = @transform_3, window_bounds = array<i64: 8, 64>}]} {
    %c0 = arith.constant 0 : index
    %c0_0 = arith.constant 0 : index
    %0 = vector.load %arg2[%c0, %c0_0] : memref<8x32xf32, #tpu.memory_space<vmem>>, vector<8x32xf32>
    %c0_1 = arith.constant 0 : index
    %c0_2 = arith.constant 0 : index
    %1 = vector.load %arg3[%c0_1, %c0_2] : memref<32x64xbf16, #tpu.memory_space<vmem>>, vector<32x64xbf16>
    %2 = arith.truncf %0 : vector<8x32xf32> to vector<8x32xbf16>
    %cst = arith.constant dense<0.000000e+00> : vector<8x64xf32>
    %3 = tpu.matmul %2, %1, %cst {dimension_numbers = #tpu.dot_dimension_numbers<[1], [0], [0], [1], [0, 0, 1, 1], [], []>} : vector<8x32xbf16>, vector<32x64xbf16>, vector<8x64xf32> -> vector<8x64xf32>
    %c0_3 = arith.constant 0 : index
    %c0_4 = arith.constant 0 : index
    %4 = vector.load %arg4[%c0_3, %c0_4] : memref<1x64xf32, #tpu.memory_space<vmem>>, vector<1x64xf32>
    %5 = vector.broadcast %4 : vector<1x64xf32> to vector<8x64xf32>
    %6 = arith.addf %3, %5 : vector<8x64xf32>
    %c0_5 = arith.constant 0 : index
    %c0_6 = arith.constant 0 : index
    %7 = vector.load %arg5[%c0_5, %c0_6] : memref<8x64xf32, #tpu.memory_space<vmem>>, vector<8x64xf32>
    tpu.vector_store %arg5[%c0_5, %c0_6], %6 {strides = array<i32>} : memref<8x64xf32, #tpu.memory_space<vmem>>, vector<8x64xf32>,
    return
  }
  func.func @transform_0(%arg0: i32, %arg1: i32) -> (i32, i32) {
    %c0_i32 = arith.constant 0 : i32
    %c0_i32_0 = arith.constant 0 : i32
    return %arg0, %c0_i32 : i32, i32
  }
  func.func @transform_1(%arg0: i32, %arg1: i32) -> (i32, i32) {
    %c0_i32 = arith.constant 0 : i32
    %c0_i32_0 = arith.constant 0 : i32
    return %c0_i32, %arg1 : i32, i32
  }
  func.func @transform_2(%arg0: i32, %arg1: i32) -> (i32, i32) {
    %c0_i32 = arith.constant 0 : i32
    %c0_i32_0 = arith.constant 0 : i32
    return %c0_i32, %arg1 : i32, i32
  }
  func.func @transform_3(%arg0: i32, %arg1: i32) -> (i32, i32) {
    %c0_i32 = arith.constant 0 : i32
    return %arg0, %arg1 : i32, i32
  }
}

module attributes {stable_mosaic.version = 11 : i64} {
  func.func @_dec_stack_kernel(%arg0: i32, %arg1: memref<8x2x32xf32, #tpu.memory_space<vmem>>, %arg2: memref<8x2x32xf32, #tpu.memory_space<vmem>>, %arg3: memref<1x32x96xbf16, #tpu.memory_space<vmem>>, %arg4: memref<1x1x96xf32, #tpu.memory_space<vmem>>, %arg5: memref<1x32x32xbf16, #tpu.memory_space<vmem>>, %arg6: memref<1x1x32xf32, #tpu.memory_space<vmem>>, %arg7: memref<1x1x32xf32, #tpu.memory_space<vmem>>, %arg8: memref<1x1x32xf32, #tpu.memory_space<vmem>>, %arg9: memref<1x32x32xbf16, #tpu.memory_space<vmem>>, %arg10: memref<1x1x32xf32, #tpu.memory_space<vmem>>, %arg11: memref<1x32x64xbf16, #tpu.memory_space<vmem>>, %arg12: memref<1x1x64xf32, #tpu.memory_space<vmem>>, %arg13: memref<1x32x32xbf16, #tpu.memory_space<vmem>>, %arg14: memref<1x1x32xf32, #tpu.memory_space<vmem>>, %arg15: memref<1x1x32xf32, #tpu.memory_space<vmem>>, %arg16: memref<1x1x32xf32, #tpu.memory_space<vmem>>, %arg17: memref<1x32x64xbf16, #tpu.memory_space<vmem>>, %arg18: memref<1x1x64xf32, #tpu.memory_space<vmem>>, %arg19: memref<1x64x32xbf16, #tpu.memory_space<vmem>>, %arg20: memref<1x1x32xf32, #tpu.memory_space<vmem>>, %arg21: memref<1x1x32xf32, #tpu.memory_space<vmem>>, %arg22: memref<1x1x32xf32, #tpu.memory_space<vmem>>, %arg23: memref<8x2x32xf32, #tpu.memory_space<vmem>>, %arg24: memref<16x32xf32, #tpu.memory_space<vmem>>) attributes {dimension_semantics = [#tpu.dimension_semantics<arbitrary>], iteration_bounds = array<i64: 2>, scalar_prefetch = 0 : i64, scratch_operands = 1 : i64, tpu.core_type = #tpu.core_type<tc>, window_params = [{pipeline_mode = #tpu.pipeline_mode<synchronous>, transform_indices = @transform_0, window_bounds = array<i64: 8, 2, 32>}, {pipeline_mode = #tpu.pipeline_mode<synchronous>, transform_indices = @transform_1, window_bounds = array<i64: 8, 2, 32>}, {transform_indices = @transform_2, window_bounds = array<i64: 1, 32, 96>}, {transform_indices = @transform_3, window_bounds = array<i64: 1, 1, 96>}, {transform_indices = @transform_4, window_bounds = array<i64: 1, 32, 32>}, {transform_indices = @transform_5, window_bounds = array<i64: 1, 1, 32>}, {transform_indices = @transform_6, window_bounds = array<i64: 1, 1, 32>}, {transform_indices = @transform_7, window_bounds = array<i64: 1, 1, 32>}, {transform_indices = @transform_8, window_bounds = array<i64: 1, 32, 32>}, {transform_indices = @transform_9, window_bounds = array<i64: 1, 1, 32>}, {transform_indices = @transform_10, window_bounds = array<i64: 1, 32, 64>}, {transform_indices = @transform_11, window_bounds = array<i64: 1, 1, 64>}, {transform_indices = @transform_12, window_bounds = array<i64: 1, 32, 32>}, {transform_indices = @transform_13, window_bounds = array<i64: 1, 1, 32>}, {transform_indices = @transform_14, window_bounds = array<i64: 1, 1, 32>}, {transform_indices = @transform_15, window_bounds = array<i64: 1, 1, 32>}, {transform_indices = @transform_16, window_bounds = array<i64: 1, 32, 64>}, {transform_indices = @transform_17, window_bounds = array<i64: 1, 1, 64>}, {transform_indices = @transform_18, window_bounds = array<i64: 1, 64, 32>}, {transform_indices = @transform_19, window_bounds = array<i64: 1, 1, 32>}, {transform_indices = @transform_20, window_bounds = array<i64: 1, 1, 32>}, {transform_indices = @transform_21, window_bounds = array<i64: 1, 1, 32>}, {pipeline_mode = #tpu.pipeline_mode<synchronous>, transform_indices = @transform_22, window_bounds = array<i64: 8, 2, 32>}]} {
    %c0_i32 = arith.constant 0 : i32
    %0 = arith.cmpi eq, %arg0, %c0_i32 : i32
    %1 = arith.extui %0 : i1 to i32
    %c0_i32_0 = arith.constant 0 : i32
    %2 = arith.cmpi ne, %1, %c0_i32_0 : i32
    scf.if %2 {
      %c0_130 = arith.constant 0 : index
      %c0_131 = arith.constant 0 : index
      %c0_132 = arith.constant 0 : index
      %323 = vector.load %arg1[%c0_130, %c0_131, %c0_132] : memref<8x2x32xf32, #tpu.memory_space<vmem>>, vector<8x2x32xf32>
      %324 = vector.shape_cast %323 : vector<8x2x32xf32> to vector<16x32xf32>
      %c0_133 = arith.constant 0 : index
      %c0_134 = arith.constant 0 : index
      %325 = vector.load %arg24[%c0_133, %c0_134] : memref<16x32xf32, #tpu.memory_space<vmem>>, vector<16x32xf32>
      tpu.vector_store %arg24[%c0_133, %c0_134], %324 {strides = array<i32>} : memref<16x32xf32, #tpu.memory_space<vmem>>, vector<16x32xf32>,
    } else {
    }
    %c0 = arith.constant 0 : index
    %c0_1 = arith.constant 0 : index
    %3 = vector.load %arg24[%c0, %c0_1] : memref<16x32xf32, #tpu.memory_space<vmem>>, vector<16x32xf32>
    %c0_2 = arith.constant 0 : index
    %c0_3 = arith.constant 0 : index
    %c0_4 = arith.constant 0 : index
    %4 = vector.load %arg2[%c0_2, %c0_3, %c0_4] : memref<8x2x32xf32, #tpu.memory_space<vmem>>, vector<8x2x32xf32>
    %5 = vector.shape_cast %4 : vector<8x2x32xf32> to vector<16x32xf32>
    %c0_5 = arith.constant 0 : index
    %c0_6 = arith.constant 0 : index
    %c0_7 = arith.constant 0 : index
    %6 = vector.load %arg3[%c0_5, %c0_6, %c0_7] : memref<1x32x96xbf16, #tpu.memory_space<vmem>>, vector<1x32x96xbf16>
    %7 = vector.shape_cast %6 : vector<1x32x96xbf16> to vector<32x96xbf16>
    %8 = arith.truncf %3 : vector<16x32xf32> to vector<16x32xbf16>
    %cst = arith.constant dense<0.000000e+00> : vector<16x96xf32>
    %9 = tpu.matmul %8, %7, %cst {dimension_numbers = #tpu.dot_dimension_numbers<[1], [0], [0], [1], [0, 0, 1, 1], [], []>} : vector<16x32xbf16>, vector<32x96xbf16>, vector<16x96xf32> -> vector<16x96xf32>
    %c0_8 = arith.constant 0 : index
    %c0_9 = arith.constant 0 : index
    %c0_10 = arith.constant 0 : index
    %10 = vector.load %arg4[%c0_8, %c0_9, %c0_10] : memref<1x1x96xf32, #tpu.memory_space<vmem>>, vector<1x1x96xf32>
    %11 = vector.shape_cast %10 : vector<1x1x96xf32> to vector<1x96xf32>
    %12 = vector.broadcast %11 : vector<1x96xf32> to vector<16x96xf32>
    %13 = arith.addf %9, %12 : vector<16x96xf32>
    %14 = vector.shape_cast %13 : vector<16x96xf32> to vector<8x2x96xf32>
    %15 = vector.extract_strided_slice %14 {offsets = [0, 0, 0], sizes = [8, 2, 32], strides = [1, 1, 1]} : vector<8x2x96xf32> to vector<8x2x32xf32>
    %16 = vector.extract_strided_slice %14 {offsets = [0, 0, 32], sizes = [8, 2, 32], strides = [1, 1, 1]} : vector<8x2x96xf32> to vector<8x2x32xf32>
    %17 = vector.extract_strided_slice %14 {offsets = [0, 0, 64], sizes = [8, 2, 32], strides = [1, 1, 1]} : vector<8x2x96xf32> to vector<8x2x32xf32>
    %18 = vector.extract_strided_slice %15 {offsets = [0, 0, 0], sizes = [8, 2, 8], strides = [1, 1, 1]} : vector<8x2x32xf32> to vector<8x2x8xf32>
    %19 = vector.extract_strided_slice %16 {offsets = [0, 0, 0], sizes = [8, 2, 8], strides = [1, 1, 1]} : vector<8x2x32xf32> to vector<8x2x8xf32>
    %20 = vector.extract_strided_slice %17 {offsets = [0, 0, 0], sizes = [8, 2, 8], strides = [1, 1, 1]} : vector<8x2x32xf32> to vector<8x2x8xf32>
    %21 = arith.truncf %18 : vector<8x2x8xf32> to vector<8x2x8xbf16>
    %22 = arith.truncf %19 : vector<8x2x8xf32> to vector<8x2x8xbf16>
    "tpu.trace_start"() <{level = 10 : i32, message = "tqd,tkd->tqk"}> : () -> ()
    %cst_11 = arith.constant dense<0.000000e+00> : vector<8x2x2xf32>
    %23 = tpu.matmul %21, %22, %cst_11 {dimension_numbers = #tpu.dot_dimension_numbers<[2], [2], [1], [1], [0, 0, 0, 1, 1, 1], [0], [0]>} : vector<8x2x8xbf16>, vector<8x2x8xbf16>, vector<8x2x2xf32> -> vector<8x2x2xf32>
    "tpu.trace_stop"() : () -> ()
    %cst_12 = arith.constant 0.353553385 : f32
    %24 = vector.broadcast %cst_12 : f32 to vector<8x2x2xf32>
    %25 = arith.mulf %23, %24 : vector<8x2x2xf32>
    %cst_13 = arith.constant dense<0xFF800000> : vector<8x2xf32>
    %26 = vector.multi_reduction <maximumf>, %25, %cst_13 [2] : vector<8x2x2xf32> to vector<8x2xf32>
    %27 = vector.shape_cast %26 : vector<8x2xf32> to vector<8x2x1xf32>
    %28 = vector.broadcast %27 : vector<8x2x1xf32> to vector<8x2x2xf32>
    %29 = arith.subf %25, %28 : vector<8x2x2xf32>
    %30 = math.exp %29 : vector<8x2x2xf32>
    %cst_14 = arith.constant dense<0.000000e+00> : vector<8x2xf32>
    %31 = vector.multi_reduction <add>, %30, %cst_14 [2] : vector<8x2x2xf32> to vector<8x2xf32>
    %32 = vector.shape_cast %31 : vector<8x2xf32> to vector<8x2x1xf32>
    %33 = tpu.reciprocal %32 {approx = true} : vector<8x2x1xf32> -> vector<8x2x1xf32>
    %34 = vector.broadcast %33 : vector<8x2x1xf32> to vector<8x2x2xf32>
    %35 = arith.mulf %30, %34 : vector<8x2x2xf32>
    %36 = arith.truncf %35 : vector<8x2x2xf32> to vector<8x2x2xbf16>
    %37 = arith.truncf %20 : vector<8x2x8xf32> to vector<8x2x8xbf16>
    "tpu.trace_start"() <{level = 10 : i32, message = "tqk,tkd->tqd"}> : () -> ()
    %cst_15 = arith.constant dense<0.000000e+00> : vector<8x2x8xf32>
    %38 = tpu.matmul %36, %37, %cst_15 {dimension_numbers = #tpu.dot_dimension_numbers<[2], [1], [1], [2], [0, 0, 0, 1, 1, 2], [0], [0]>} : vector<8x2x2xbf16>, vector<8x2x8xbf16>, vector<8x2x8xf32> -> vector<8x2x8xf32>
    "tpu.trace_stop"() : () -> ()
    %39 = vector.extract_strided_slice %15 {offsets = [0, 0, 8], sizes = [8, 2, 8], strides = [1, 1, 1]} : vector<8x2x32xf32> to vector<8x2x8xf32>
    %40 = vector.extract_strided_slice %16 {offsets = [0, 0, 8], sizes = [8, 2, 8], strides = [1, 1, 1]} : vector<8x2x32xf32> to vector<8x2x8xf32>
    %41 = vector.extract_strided_slice %17 {offsets = [0, 0, 8], sizes = [8, 2, 8], strides = [1, 1, 1]} : vector<8x2x32xf32> to vector<8x2x8xf32>
    %42 = arith.truncf %39 : vector<8x2x8xf32> to vector<8x2x8xbf16>
    %43 = arith.truncf %40 : vector<8x2x8xf32> to vector<8x2x8xbf16>
    "tpu.trace_start"() <{level = 10 : i32, message = "tqd,tkd->tqk"}> : () -> ()
    %cst_16 = arith.constant dense<0.000000e+00> : vector<8x2x2xf32>
    %44 = tpu.matmul %42, %43, %cst_16 {dimension_numbers = #tpu.dot_dimension_numbers<[2], [2], [1], [1], [0, 0, 0, 1, 1, 1], [0], [0]>} : vector<8x2x8xbf16>, vector<8x2x8xbf16>, vector<8x2x2xf32> -> vector<8x2x2xf32>
    "tpu.trace_stop"() : () -> ()
    %cst_17 = arith.constant 0.353553385 : f32
    %45 = vector.broadcast %cst_17 : f32 to vector<8x2x2xf32>
    %46 = arith.mulf %44, %45 : vector<8x2x2xf32>
    %cst_18 = arith.constant dense<0xFF800000> : vector<8x2xf32>
    %47 = vector.multi_reduction <maximumf>, %46, %cst_18 [2] : vector<8x2x2xf32> to vector<8x2xf32>
    %48 = vector.shape_cast %47 : vector<8x2xf32> to vector<8x2x1xf32>
    %49 = vector.broadcast %48 : vector<8x2x1xf32> to vector<8x2x2xf32>
    %50 = arith.subf %46, %49 : vector<8x2x2xf32>
    %51 = math.exp %50 : vector<8x2x2xf32>
    %cst_19 = arith.constant dense<0.000000e+00> : vector<8x2xf32>
    %52 = vector.multi_reduction <add>, %51, %cst_19 [2] : vector<8x2x2xf32> to vector<8x2xf32>
    %53 = vector.shape_cast %52 : vector<8x2xf32> to vector<8x2x1xf32>
    %54 = tpu.reciprocal %53 {approx = true} : vector<8x2x1xf32> -> vector<8x2x1xf32>
    %55 = vector.broadcast %54 : vector<8x2x1xf32> to vector<8x2x2xf32>
    %56 = arith.mulf %51, %55 : vector<8x2x2xf32>
    %57 = arith.truncf %56 : vector<8x2x2xf32> to vector<8x2x2xbf16>
    %58 = arith.truncf %41 : vector<8x2x8xf32> to vector<8x2x8xbf16>
    "tpu.trace_start"() <{level = 10 : i32, message = "tqk,tkd->tqd"}> : () -> ()
    %cst_20 = arith.constant dense<0.000000e+00> : vector<8x2x8xf32>
    %59 = tpu.matmul %57, %58, %cst_20 {dimension_numbers = #tpu.dot_dimension_numbers<[2], [1], [1], [2], [0, 0, 0, 1, 1, 2], [0], [0]>} : vector<8x2x2xbf16>, vector<8x2x8xbf16>, vector<8x2x8xf32> -> vector<8x2x8xf32>
    "tpu.trace_stop"() : () -> ()
    %60 = vector.extract_strided_slice %15 {offsets = [0, 0, 16], sizes = [8, 2, 8], strides = [1, 1, 1]} : vector<8x2x32xf32> to vector<8x2x8xf32>
    %61 = vector.extract_strided_slice %16 {offsets = [0, 0, 16], sizes = [8, 2, 8], strides = [1, 1, 1]} : vector<8x2x32xf32> to vector<8x2x8xf32>
    %62 = vector.extract_strided_slice %17 {offsets = [0, 0, 16], sizes = [8, 2, 8], strides = [1, 1, 1]} : vector<8x2x32xf32> to vector<8x2x8xf32>
    %63 = arith.truncf %60 : vector<8x2x8xf32> to vector<8x2x8xbf16>
    %64 = arith.truncf %61 : vector<8x2x8xf32> to vector<8x2x8xbf16>
    "tpu.trace_start"() <{level = 10 : i32, message = "tqd,tkd->tqk"}> : () -> ()
    %cst_21 = arith.constant dense<0.000000e+00> : vector<8x2x2xf32>
    %65 = tpu.matmul %63, %64, %cst_21 {dimension_numbers = #tpu.dot_dimension_numbers<[2], [2], [1], [1], [0, 0, 0, 1, 1, 1], [0], [0]>} : vector<8x2x8xbf16>, vector<8x2x8xbf16>, vector<8x2x2xf32> -> vector<8x2x2xf32>
    "tpu.trace_stop"() : () -> ()
    %cst_22 = arith.constant 0.353553385 : f32
    %66 = vector.broadcast %cst_22 : f32 to vector<8x2x2xf32>
    %67 = arith.mulf %65, %66 : vector<8x2x2xf32>
    %cst_23 = arith.constant dense<0xFF800000> : vector<8x2xf32>
    %68 = vector.multi_reduction <maximumf>, %67, %cst_23 [2] : vector<8x2x2xf32> to vector<8x2xf32>
    %69 = vector.shape_cast %68 : vector<8x2xf32> to vector<8x2x1xf32>
    %70 = vector.broadcast %69 : vector<8x2x1xf32> to vector<8x2x2xf32>
    %71 = arith.subf %67, %70 : vector<8x2x2xf32>
    %72 = math.exp %71 : vector<8x2x2xf32>
    %cst_24 = arith.constant dense<0.000000e+00> : vector<8x2xf32>
    %73 = vector.multi_reduction <add>, %72, %cst_24 [2] : vector<8x2x2xf32> to vector<8x2xf32>
    %74 = vector.shape_cast %73 : vector<8x2xf32> to vector<8x2x1xf32>
    %75 = tpu.reciprocal %74 {approx = true} : vector<8x2x1xf32> -> vector<8x2x1xf32>
    %76 = vector.broadcast %75 : vector<8x2x1xf32> to vector<8x2x2xf32>
    %77 = arith.mulf %72, %76 : vector<8x2x2xf32>
    %78 = arith.truncf %77 : vector<8x2x2xf32> to vector<8x2x2xbf16>
    %79 = arith.truncf %62 : vector<8x2x8xf32> to vector<8x2x8xbf16>
    "tpu.trace_start"() <{level = 10 : i32, message = "tqk,tkd->tqd"}> : () -> ()
    %cst_25 = arith.constant dense<0.000000e+00> : vector<8x2x8xf32>
    %80 = tpu.matmul %78, %79, %cst_25 {dimension_numbers = #tpu.dot_dimension_numbers<[2], [1], [1], [2], [0, 0, 0, 1, 1, 2], [0], [0]>} : vector<8x2x2xbf16>, vector<8x2x8xbf16>, vector<8x2x8xf32> -> vector<8x2x8xf32>
    "tpu.trace_stop"() : () -> ()
    %81 = vector.extract_strided_slice %15 {offsets = [0, 0, 24], sizes = [8, 2, 8], strides = [1, 1, 1]} : vector<8x2x32xf32> to vector<8x2x8xf32>
    %82 = vector.extract_strided_slice %16 {offsets = [0, 0, 24], sizes = [8, 2, 8], strides = [1, 1, 1]} : vector<8x2x32xf32> to vector<8x2x8xf32>
    %83 = vector.extract_strided_slice %17 {offsets = [0, 0, 24], sizes = [8, 2, 8], strides = [1, 1, 1]} : vector<8x2x32xf32> to vector<8x2x8xf32>
    %84 = arith.truncf %81 : vector<8x2x8xf32> to vector<8x2x8xbf16>
    %85 = arith.truncf %82 : vector<8x2x8xf32> to vector<8x2x8xbf16>
    "tpu.trace_start"() <{level = 10 : i32, message = "tqd,tkd->tqk"}> : () -> ()
    %cst_26 = arith.constant dense<0.000000e+00> : vector<8x2x2xf32>
    %86 = tpu.matmul %84, %85, %cst_26 {dimension_numbers = #tpu.dot_dimension_numbers<[2], [2], [1], [1], [0, 0, 0, 1, 1, 1], [0], [0]>} : vector<8x2x8xbf16>, vector<8x2x8xbf16>, vector<8x2x2xf32> -> vector<8x2x2xf32>
    "tpu.trace_stop"() : () -> ()
    %cst_27 = arith.constant 0.353553385 : f32
    %87 = vector.broadcast %cst_27 : f32 to vector<8x2x2xf32>
    %88 = arith.mulf %86, %87 : vector<8x2x2xf32>
    %cst_28 = arith.constant dense<0xFF800000> : vector<8x2xf32>
    %89 = vector.multi_reduction <maximumf>, %88, %cst_28 [2] : vector<8x2x2xf32> to vector<8x2xf32>
    %90 = vector.shape_cast %89 : vector<8x2xf32> to vector<8x2x1xf32>
    %91 = vector.broadcast %90 : vector<8x2x1xf32> to vector<8x2x2xf32>
    %92 = arith.subf %88, %91 : vector<8x2x2xf32>
    %93 = math.exp %92 : vector<8x2x2xf32>
    %cst_29 = arith.constant dense<0.000000e+00> : vector<8x2xf32>
    %94 = vector.multi_reduction <add>, %93, %cst_29 [2] : vector<8x2x2xf32> to vector<8x2xf32>
    %95 = vector.shape_cast %94 : vector<8x2xf32> to vector<8x2x1xf32>
    %96 = tpu.reciprocal %95 {approx = true} : vector<8x2x1xf32> -> vector<8x2x1xf32>
    %97 = vector.broadcast %96 : vector<8x2x1xf32> to vector<8x2x2xf32>
    %98 = arith.mulf %93, %97 : vector<8x2x2xf32>
    %99 = arith.truncf %98 : vector<8x2x2xf32> to vector<8x2x2xbf16>
    %100 = arith.truncf %83 : vector<8x2x8xf32> to vector<8x2x8xbf16>
    "tpu.trace_start"() <{level = 10 : i32, message = "tqk,tkd->tqd"}> : () -> ()
    %cst_30 = arith.constant dense<0.000000e+00> : vector<8x2x8xf32>
    %101 = tpu.matmul %99, %100, %cst_30 {dimension_numbers = #tpu.dot_dimension_numbers<[2], [1], [1], [2], [0, 0, 0, 1, 1, 2], [0], [0]>} : vector<8x2x2xbf16>, vector<8x2x8xbf16>, vector<8x2x8xf32> -> vector<8x2x8xf32>
    "tpu.trace_stop"() : () -> ()
    %102 = tpu.concatenate %38, %59, %80, %101 in 2 : vector<8x2x8xf32>, vector<8x2x8xf32>, vector<8x2x8xf32>, vector<8x2x8xf32> -> vector<8x2x32xf32>
    %103 = vector.shape_cast %102 : vector<8x2x32xf32> to vector<16x32xf32>
    %c0_31 = arith.constant 0 : index
    %c0_32 = arith.constant 0 : index
    %c0_33 = arith.constant 0 : index
    %104 = vector.load %arg5[%c0_31, %c0_32, %c0_33] : memref<1x32x32xbf16, #tpu.memory_space<vmem>>, vector<1x32x32xbf16>
    %105 = vector.shape_cast %104 : vector<1x32x32xbf16> to vector<32x32xbf16>
    %106 = arith.truncf %103 : vector<16x32xf32> to vector<16x32xbf16>
    %cst_34 = arith.constant dense<0.000000e+00> : vector<16x32xf32>
    %107 = tpu.matmul %106, %105, %cst_34 {dimension_numbers = #tpu.dot_dimension_numbers<[1], [0], [0], [1], [0, 0, 1, 1], [], []>} : vector<16x32xbf16>, vector<32x32xbf16>, vector<16x32xf32> -> vector<16x32xf32>
    %108 = arith.addf %3, %107 : vector<16x32xf32>
    %c0_35 = arith.constant 0 : index
    %c0_36 = arith.constant 0 : index
    %c0_37 = arith.constant 0 : index
    %109 = vector.load %arg6[%c0_35, %c0_36, %c0_37] : memref<1x1x32xf32, #tpu.memory_space<vmem>>, vector<1x1x32xf32>
    %110 = vector.shape_cast %109 : vector<1x1x32xf32> to vector<1x32xf32>
    %111 = vector.broadcast %110 : vector<1x32xf32> to vector<16x32xf32>
    %112 = arith.addf %108, %111 : vector<16x32xf32>
    %c0_38 = arith.constant 0 : index
    %c0_39 = arith.constant 0 : index
    %c0_40 = arith.constant 0 : index
    %113 = vector.load %arg7[%c0_38, %c0_39, %c0_40] : memref<1x1x32xf32, #tpu.memory_space<vmem>>, vector<1x1x32xf32>
    %114 = vector.shape_cast %113 : vector<1x1x32xf32> to vector<1x32xf32>
    %c0_41 = arith.constant 0 : index
    %c0_42 = arith.constant 0 : index
    %c0_43 = arith.constant 0 : index
    %115 = vector.load %arg8[%c0_41, %c0_42, %c0_43] : memref<1x1x32xf32, #tpu.memory_space<vmem>>, vector<1x1x32xf32>
    %116 = vector.shape_cast %115 : vector<1x1x32xf32> to vector<1x32xf32>
    %cst_44 = arith.constant dense<0.000000e+00> : vector<16xf32>
    %117 = vector.multi_reduction <add>, %112, %cst_44 [1] : vector<16x32xf32> to vector<16xf32>
    %118 = vector.shape_cast %117 : vector<16xf32> to vector<16x1xf32>
    %cst_45 = arith.constant 3.200000e+01 : f32
    %119 = vector.broadcast %cst_45 : f32 to vector<16x1xf32>
    %120 = arith.divf %118, %119 : vector<16x1xf32>
    %121 = vector.broadcast %120 : vector<16x1xf32> to vector<16x32xf32>
    %122 = arith.subf %112, %121 : vector<16x32xf32>
    %123 = arith.mulf %122, %122 : vector<16x32xf32>
    %cst_46 = arith.constant dense<0.000000e+00> : vector<16xf32>
    %124 = vector.multi_reduction <add>, %123, %cst_46 [1] : vector<16x32xf32> to vector<16xf32>
    %125 = vector.shape_cast %124 : vector<16xf32> to vector<16x1xf32>
    %cst_47 = arith.constant 3.200000e+01 : f32
    %126 = vector.broadcast %cst_47 : f32 to vector<16x1xf32>
    %127 = arith.divf %125, %126 : vector<16x1xf32>
    %cst_48 = arith.constant 9.99999974E-6 : f32
    %128 = vector.broadcast %cst_48 : f32 to vector<16x1xf32>
    %129 = arith.addf %127, %128 : vector<16x1xf32>
    %130 = math.rsqrt %129 : vector<16x1xf32>
    %131 = vector.broadcast %130 : vector<16x1xf32> to vector<16x32xf32>
    %132 = arith.mulf %122, %131 : vector<16x32xf32>
    %133 = vector.broadcast %114 : vector<1x32xf32> to vector<16x32xf32>
    %134 = arith.mulf %132, %133 : vector<16x32xf32>
    %135 = vector.broadcast %116 : vector<1x32xf32> to vector<16x32xf32>
    %136 = arith.addf %134, %135 : vector<16x32xf32>
    %c0_49 = arith.constant 0 : index
    %c0_50 = arith.constant 0 : index
    %c0_51 = arith.constant 0 : index
    %137 = vector.load %arg9[%c0_49, %c0_50, %c0_51] : memref<1x32x32xbf16, #tpu.memory_space<vmem>>, vector<1x32x32xbf16>
    %138 = vector.shape_cast %137 : vector<1x32x32xbf16> to vector<32x32xbf16>
    %139 = arith.truncf %136 : vector<16x32xf32> to vector<16x32xbf16>
    %cst_52 = arith.constant dense<0.000000e+00> : vector<16x32xf32>
    %140 = tpu.matmul %139, %138, %cst_52 {dimension_numbers = #tpu.dot_dimension_numbers<[1], [0], [0], [1], [0, 0, 1, 1], [], []>} : vector<16x32xbf16>, vector<32x32xbf16>, vector<16x32xf32> -> vector<16x32xf32>
    %c0_53 = arith.constant 0 : index
    %c0_54 = arith.constant 0 : index
    %c0_55 = arith.constant 0 : index
    %141 = vector.load %arg10[%c0_53, %c0_54, %c0_55] : memref<1x1x32xf32, #tpu.memory_space<vmem>>, vector<1x1x32xf32>
    %142 = vector.shape_cast %141 : vector<1x1x32xf32> to vector<1x32xf32>
    %143 = vector.broadcast %142 : vector<1x32xf32> to vector<16x32xf32>
    %144 = arith.addf %140, %143 : vector<16x32xf32>
    %145 = vector.shape_cast %144 : vector<16x32xf32> to vector<8x2x32xf32>
    %c0_56 = arith.constant 0 : index
    %c0_57 = arith.constant 0 : index
    %c0_58 = arith.constant 0 : index
    %146 = vector.load %arg11[%c0_56, %c0_57, %c0_58] : memref<1x32x64xbf16, #tpu.memory_space<vmem>>, vector<1x32x64xbf16>
    %147 = vector.shape_cast %146 : vector<1x32x64xbf16> to vector<32x64xbf16>
    %148 = arith.truncf %5 : vector<16x32xf32> to vector<16x32xbf16>
    %cst_59 = arith.constant dense<0.000000e+00> : vector<16x64xf32>
    %149 = tpu.matmul %148, %147, %cst_59 {dimension_numbers = #tpu.dot_dimension_numbers<[1], [0], [0], [1], [0, 0, 1, 1], [], []>} : vector<16x32xbf16>, vector<32x64xbf16>, vector<16x64xf32> -> vector<16x64xf32>
    %c0_60 = arith.constant 0 : index
    %c0_61 = arith.constant 0 : index
    %c0_62 = arith.constant 0 : index
    %150 = vector.load %arg12[%c0_60, %c0_61, %c0_62] : memref<1x1x64xf32, #tpu.memory_space<vmem>>, vector<1x1x64xf32>
    %151 = vector.shape_cast %150 : vector<1x1x64xf32> to vector<1x64xf32>
    %152 = vector.broadcast %151 : vector<1x64xf32> to vector<16x64xf32>
    %153 = arith.addf %149, %152 : vector<16x64xf32>
    %154 = vector.shape_cast %153 : vector<16x64xf32> to vector<8x2x64xf32>
    %155 = vector.extract_strided_slice %154 {offsets = [0, 0, 0], sizes = [8, 2, 32], strides = [1, 1, 1]} : vector<8x2x64xf32> to vector<8x2x32xf32>
    %156 = vector.extract_strided_slice %154 {offsets = [0, 0, 32], sizes = [8, 2, 32], strides = [1, 1, 1]} : vector<8x2x64xf32> to vector<8x2x32xf32>
    %157 = vector.extract_strided_slice %145 {offsets = [0, 0, 0], sizes = [8, 2, 8], strides = [1, 1, 1]} : vector<8x2x32xf32> to vector<8x2x8xf32>
    %158 = vector.extract_strided_slice %155 {offsets = [0, 0, 0], sizes = [8, 2, 8], strides = [1, 1, 1]} : vector<8x2x32xf32> to vector<8x2x8xf32>
    %159 = vector.extract_strided_slice %156 {offsets = [0, 0, 0], sizes = [8, 2, 8], strides = [1, 1, 1]} : vector<8x2x32xf32> to vector<8x2x8xf32>
    %160 = arith.truncf %157 : vector<8x2x8xf32> to vector<8x2x8xbf16>
    %161 = arith.truncf %158 : vector<8x2x8xf32> to vector<8x2x8xbf16>
    "tpu.trace_start"() <{level = 10 : i32, message = "tqd,tkd->tqk"}> : () -> ()
    %cst_63 = arith.constant dense<0.000000e+00> : vector<8x2x2xf32>
    %162 = tpu.matmul %160, %161, %cst_63 {dimension_numbers = #tpu.dot_dimension_numbers<[2], [2], [1], [1], [0, 0, 0, 1, 1, 1], [0], [0]>} : vector<8x2x8xbf16>, vector<8x2x8xbf16>, vector<8x2x2xf32> -> vector<8x2x2xf32>
    "tpu.trace_stop"() : () -> ()
    %cst_64 = arith.constant 0.353553385 : f32
    %163 = vector.broadcast %cst_64 : f32 to vector<8x2x2xf32>
    %164 = arith.mulf %162, %163 : vector<8x2x2xf32>
    %cst_65 = arith.constant dense<0xFF800000> : vector<8x2xf32>
    %165 = vector.multi_reduction <maximumf>, %164, %cst_65 [2] : vector<8x2x2xf32> to vector<8x2xf32>
    %166 = vector.shape_cast %165 : vector<8x2xf32> to vector<8x2x1xf32>
    %167 = vector.broadcast %166 : vector<8x2x1xf32> to vector<8x2x2xf32>
    %168 = arith.subf %164, %167 : vector<8x2x2xf32>
    %169 = math.exp %168 : vector<8x2x2xf32>
    %cst_66 = arith.constant dense<0.000000e+00> : vector<8x2xf32>
    %170 = vector.multi_reduction <add>, %169, %cst_66 [2] : vector<8x2x2xf32> to vector<8x2xf32>
    %171 = vector.shape_cast %170 : vector<8x2xf32> to vector<8x2x1xf32>
    %172 = tpu.reciprocal %171 {approx = true} : vector<8x2x1xf32> -> vector<8x2x1xf32>
    %173 = vector.broadcast %172 : vector<8x2x1xf32> to vector<8x2x2xf32>
    %174 = arith.mulf %169, %173 : vector<8x2x2xf32>
    %175 = arith.truncf %174 : vector<8x2x2xf32> to vector<8x2x2xbf16>
    %176 = arith.truncf %159 : vector<8x2x8xf32> to vector<8x2x8xbf16>
    "tpu.trace_start"() <{level = 10 : i32, message = "tqk,tkd->tqd"}> : () -> ()
    %cst_67 = arith.constant dense<0.000000e+00> : vector<8x2x8xf32>
    %177 = tpu.matmul %175, %176, %cst_67 {dimension_numbers = #tpu.dot_dimension_numbers<[2], [1], [1], [2], [0, 0, 0, 1, 1, 2], [0], [0]>} : vector<8x2x2xbf16>, vector<8x2x8xbf16>, vector<8x2x8xf32> -> vector<8x2x8xf32>
    "tpu.trace_stop"() : () -> ()
    %178 = vector.extract_strided_slice %145 {offsets = [0, 0, 8], sizes = [8, 2, 8], strides = [1, 1, 1]} : vector<8x2x32xf32> to vector<8x2x8xf32>
    %179 = vector.extract_strided_slice %155 {offsets = [0, 0, 8], sizes = [8, 2, 8], strides = [1, 1, 1]} : vector<8x2x32xf32> to vector<8x2x8xf32>
    %180 = vector.extract_strided_slice %156 {offsets = [0, 0, 8], sizes = [8, 2, 8], strides = [1, 1, 1]} : vector<8x2x32xf32> to vector<8x2x8xf32>
    %181 = arith.truncf %178 : vector<8x2x8xf32> to vector<8x2x8xbf16>
    %182 = arith.truncf %179 : vector<8x2x8xf32> to vector<8x2x8xbf16>
    "tpu.trace_start"() <{level = 10 : i32, message = "tqd,tkd->tqk"}> : () -> ()
    %cst_68 = arith.constant dense<0.000000e+00> : vector<8x2x2xf32>
    %183 = tpu.matmul %181, %182, %cst_68 {dimension_numbers = #tpu.dot_dimension_numbers<[2], [2], [1], [1], [0, 0, 0, 1, 1, 1], [0], [0]>} : vector<8x2x8xbf16>, vector<8x2x8xbf16>, vector<8x2x2xf32> -> vector<8x2x2xf32>
    "tpu.trace_stop"() : () -> ()
    %cst_69 = arith.constant 0.353553385 : f32
    %184 = vector.broadcast %cst_69 : f32 to vector<8x2x2xf32>
    %185 = arith.mulf %183, %184 : vector<8x2x2xf32>
    %cst_70 = arith.constant dense<0xFF800000> : vector<8x2xf32>
    %186 = vector.multi_reduction <maximumf>, %185, %cst_70 [2] : vector<8x2x2xf32> to vector<8x2xf32>
    %187 = vector.shape_cast %186 : vector<8x2xf32> to vector<8x2x1xf32>
    %188 = vector.broadcast %187 : vector<8x2x1xf32> to vector<8x2x2xf32>
    %189 = arith.subf %185, %188 : vector<8x2x2xf32>
    %190 = math.exp %189 : vector<8x2x2xf32>
    %cst_71 = arith.constant dense<0.000000e+00> : vector<8x2xf32>
    %191 = vector.multi_reduction <add>, %190, %cst_71 [2] : vector<8x2x2xf32> to vector<8x2xf32>
    %192 = vector.shape_cast %191 : vector<8x2xf32> to vector<8x2x1xf32>
    %193 = tpu.reciprocal %192 {approx = true} : vector<8x2x1xf32> -> vector<8x2x1xf32>
    %194 = vector.broadcast %193 : vector<8x2x1xf32> to vector<8x2x2xf32>
    %195 = arith.mulf %190, %194 : vector<8x2x2xf32>
    %196 = arith.truncf %195 : vector<8x2x2xf32> to vector<8x2x2xbf16>
    %197 = arith.truncf %180 : vector<8x2x8xf32> to vector<8x2x8xbf16>
    "tpu.trace_start"() <{level = 10 : i32, message = "tqk,tkd->tqd"}> : () -> ()
    %cst_72 = arith.constant dense<0.000000e+00> : vector<8x2x8xf32>
    %198 = tpu.matmul %196, %197, %cst_72 {dimension_numbers = #tpu.dot_dimension_numbers<[2], [1], [1], [2], [0, 0, 0, 1, 1, 2], [0], [0]>} : vector<8x2x2xbf16>, vector<8x2x8xbf16>, vector<8x2x8xf32> -> vector<8x2x8xf32>
    "tpu.trace_stop"() : () -> ()
    %199 = vector.extract_strided_slice %145 {offsets = [0, 0, 16], sizes = [8, 2, 8], strides = [1, 1, 1]} : vector<8x2x32xf32> to vector<8x2x8xf32>
    %200 = vector.extract_strided_slice %155 {offsets = [0, 0, 16], sizes = [8, 2, 8], strides = [1, 1, 1]} : vector<8x2x32xf32> to vector<8x2x8xf32>
    %201 = vector.extract_strided_slice %156 {offsets = [0, 0, 16], sizes = [8, 2, 8], strides = [1, 1, 1]} : vector<8x2x32xf32> to vector<8x2x8xf32>
    %202 = arith.truncf %199 : vector<8x2x8xf32> to vector<8x2x8xbf16>
    %203 = arith.truncf %200 : vector<8x2x8xf32> to vector<8x2x8xbf16>
    "tpu.trace_start"() <{level = 10 : i32, message = "tqd,tkd->tqk"}> : () -> ()
    %cst_73 = arith.constant dense<0.000000e+00> : vector<8x2x2xf32>
    %204 = tpu.matmul %202, %203, %cst_73 {dimension_numbers = #tpu.dot_dimension_numbers<[2], [2], [1], [1], [0, 0, 0, 1, 1, 1], [0], [0]>} : vector<8x2x8xbf16>, vector<8x2x8xbf16>, vector<8x2x2xf32> -> vector<8x2x2xf32>
    "tpu.trace_stop"() : () -> ()
    %cst_74 = arith.constant 0.353553385 : f32
    %205 = vector.broadcast %cst_74 : f32 to vector<8x2x2xf32>
    %206 = arith.mulf %204, %205 : vector<8x2x2xf32>
    %cst_75 = arith.constant dense<0xFF800000> : vector<8x2xf32>
    %207 = vector.multi_reduction <maximumf>, %206, %cst_75 [2] : vector<8x2x2xf32> to vector<8x2xf32>
    %208 = vector.shape_cast %207 : vector<8x2xf32> to vector<8x2x1xf32>
    %209 = vector.broadcast %208 : vector<8x2x1xf32> to vector<8x2x2xf32>
    %210 = arith.subf %206, %209 : vector<8x2x2xf32>
    %211 = math.exp %210 : vector<8x2x2xf32>
    %cst_76 = arith.constant dense<0.000000e+00> : vector<8x2xf32>
    %212 = vector.multi_reduction <add>, %211, %cst_76 [2] : vector<8x2x2xf32> to vector<8x2xf32>
    %213 = vector.shape_cast %212 : vector<8x2xf32> to vector<8x2x1xf32>
    %214 = tpu.reciprocal %213 {approx = true} : vector<8x2x1xf32> -> vector<8x2x1xf32>
    %215 = vector.broadcast %214 : vector<8x2x1xf32> to vector<8x2x2xf32>
    %216 = arith.mulf %211, %215 : vector<8x2x2xf32>
    %217 = arith.truncf %216 : vector<8x2x2xf32> to vector<8x2x2xbf16>
    %218 = arith.truncf %201 : vector<8x2x8xf32> to vector<8x2x8xbf16>
    "tpu.trace_start"() <{level = 10 : i32, message = "tqk,tkd->tqd"}> : () -> ()
    %cst_77 = arith.constant dense<0.000000e+00> : vector<8x2x8xf32>
    %219 = tpu.matmul %217, %218, %cst_77 {dimension_numbers = #tpu.dot_dimension_numbers<[2], [1], [1], [2], [0, 0, 0, 1, 1, 2], [0], [0]>} : vector<8x2x2xbf16>, vector<8x2x8xbf16>, vector<8x2x8xf32> -> vector<8x2x8xf32>
    "tpu.trace_stop"() : () -> ()
    %220 = vector.extract_strided_slice %145 {offsets = [0, 0, 24], sizes = [8, 2, 8], strides = [1, 1, 1]} : vector<8x2x32xf32> to vector<8x2x8xf32>
    %221 = vector.extract_strided_slice %155 {offsets = [0, 0, 24], sizes = [8, 2, 8], strides = [1, 1, 1]} : vector<8x2x32xf32> to vector<8x2x8xf32>
    %222 = vector.extract_strided_slice %156 {offsets = [0, 0, 24], sizes = [8, 2, 8], strides = [1, 1, 1]} : vector<8x2x32xf32> to vector<8x2x8xf32>
    %223 = arith.truncf %220 : vector<8x2x8xf32> to vector<8x2x8xbf16>
    %224 = arith.truncf %221 : vector<8x2x8xf32> to vector<8x2x8xbf16>
    "tpu.trace_start"() <{level = 10 : i32, message = "tqd,tkd->tqk"}> : () -> ()
    %cst_78 = arith.constant dense<0.000000e+00> : vector<8x2x2xf32>
    %225 = tpu.matmul %223, %224, %cst_78 {dimension_numbers = #tpu.dot_dimension_numbers<[2], [2], [1], [1], [0, 0, 0, 1, 1, 1], [0], [0]>} : vector<8x2x8xbf16>, vector<8x2x8xbf16>, vector<8x2x2xf32> -> vector<8x2x2xf32>
    "tpu.trace_stop"() : () -> ()
    %cst_79 = arith.constant 0.353553385 : f32
    %226 = vector.broadcast %cst_79 : f32 to vector<8x2x2xf32>
    %227 = arith.mulf %225, %226 : vector<8x2x2xf32>
    %cst_80 = arith.constant dense<0xFF800000> : vector<8x2xf32>
    %228 = vector.multi_reduction <maximumf>, %227, %cst_80 [2] : vector<8x2x2xf32> to vector<8x2xf32>
    %229 = vector.shape_cast %228 : vector<8x2xf32> to vector<8x2x1xf32>
    %230 = vector.broadcast %229 : vector<8x2x1xf32> to vector<8x2x2xf32>
    %231 = arith.subf %227, %230 : vector<8x2x2xf32>
    %232 = math.exp %231 : vector<8x2x2xf32>
    %cst_81 = arith.constant dense<0.000000e+00> : vector<8x2xf32>
    %233 = vector.multi_reduction <add>, %232, %cst_81 [2] : vector<8x2x2xf32> to vector<8x2xf32>
    %234 = vector.shape_cast %233 : vector<8x2xf32> to vector<8x2x1xf32>
    %235 = tpu.reciprocal %234 {approx = true} : vector<8x2x1xf32> -> vector<8x2x1xf32>
    %236 = vector.broadcast %235 : vector<8x2x1xf32> to vector<8x2x2xf32>
    %237 = arith.mulf %232, %236 : vector<8x2x2xf32>
    %238 = arith.truncf %237 : vector<8x2x2xf32> to vector<8x2x2xbf16>
    %239 = arith.truncf %222 : vector<8x2x8xf32> to vector<8x2x8xbf16>
    "tpu.trace_start"() <{level = 10 : i32, message = "tqk,tkd->tqd"}> : () -> ()
    %cst_82 = arith.constant dense<0.000000e+00> : vector<8x2x8xf32>
    %240 = tpu.matmul %238, %239, %cst_82 {dimension_numbers = #tpu.dot_dimension_numbers<[2], [1], [1], [2], [0, 0, 0, 1, 1, 2], [0], [0]>} : vector<8x2x2xbf16>, vector<8x2x8xbf16>, vector<8x2x8xf32> -> vector<8x2x8xf32>
    "tpu.trace_stop"() : () -> ()
    %241 = tpu.concatenate %177, %198, %219, %240 in 2 : vector<8x2x8xf32>, vector<8x2x8xf32>, vector<8x2x8xf32>, vector<8x2x8xf32> -> vector<8x2x32xf32>
    %242 = vector.shape_cast %241 : vector<8x2x32xf32> to vector<16x32xf32>
    %c0_83 = arith.constant 0 : index
    %c0_84 = arith.constant 0 : index
    %c0_85 = arith.constant 0 : index
    %243 = vector.load %arg13[%c0_83, %c0_84, %c0_85] : memref<1x32x32xbf16, #tpu.memory_space<vmem>>, vector<1x32x32xbf16>
    %244 = vector.shape_cast %243 : vector<1x32x32xbf16> to vector<32x32xbf16>
    %245 = arith.truncf %242 : vector<16x32xf32> to vector<16x32xbf16>
    %cst_86 = arith.constant dense<0.000000e+00> : vector<16x32xf32>
    %246 = tpu.matmul %245, %244, %cst_86 {dimension_numbers = #tpu.dot_dimension_numbers<[1], [0], [0], [1], [0, 0, 1, 1], [], []>} : vector<16x32xbf16>, vector<32x32xbf16>, vector<16x32xf32> -> vector<16x32xf32>
    %247 = arith.addf %136, %246 : vector<16x32xf32>
    %c0_87 = arith.constant 0 : index
    %c0_88 = arith.constant 0 : index
    %c0_89 = arith.constant 0 : index
    %248 = vector.load %arg14[%c0_87, %c0_88, %c0_89] : memref<1x1x32xf32, #tpu.memory_space<vmem>>, vector<1x1x32xf32>
    %249 = vector.shape_cast %248 : vector<1x1x32xf32> to vector<1x32xf32>
    %250 = vector.broadcast %249 : vector<1x32xf32> to vector<16x32xf32>
    %251 = arith.addf %247, %250 : vector<16x32xf32>
    %c0_90 = arith.constant 0 : index
    %c0_91 = arith.constant 0 : index
    %c0_92 = arith.constant 0 : index
    %252 = vector.load %arg15[%c0_90, %c0_91, %c0_92] : memref<1x1x32xf32, #tpu.memory_space<vmem>>, vector<1x1x32xf32>
    %253 = vector.shape_cast %252 : vector<1x1x32xf32> to vector<1x32xf32>
    %c0_93 = arith.constant 0 : index
    %c0_94 = arith.constant 0 : index
    %c0_95 = arith.constant 0 : index
    %254 = vector.load %arg16[%c0_93, %c0_94, %c0_95] : memref<1x1x32xf32, #tpu.memory_space<vmem>>, vector<1x1x32xf32>
    %255 = vector.shape_cast %254 : vector<1x1x32xf32> to vector<1x32xf32>
    %cst_96 = arith.constant dense<0.000000e+00> : vector<16xf32>
    %256 = vector.multi_reduction <add>, %251, %cst_96 [1] : vector<16x32xf32> to vector<16xf32>
    %257 = vector.shape_cast %256 : vector<16xf32> to vector<16x1xf32>
    %cst_97 = arith.constant 3.200000e+01 : f32
    %258 = vector.broadcast %cst_97 : f32 to vector<16x1xf32>
    %259 = arith.divf %257, %258 : vector<16x1xf32>
    %260 = vector.broadcast %259 : vector<16x1xf32> to vector<16x32xf32>
    %261 = arith.subf %251, %260 : vector<16x32xf32>
    %262 = arith.mulf %261, %261 : vector<16x32xf32>
    %cst_98 = arith.constant dense<0.000000e+00> : vector<16xf32>
    %263 = vector.multi_reduction <add>, %262, %cst_98 [1] : vector<16x32xf32> to vector<16xf32>
    %264 = vector.shape_cast %263 : vector<16xf32> to vector<16x1xf32>
    %cst_99 = arith.constant 3.200000e+01 : f32
    %265 = vector.broadcast %cst_99 : f32 to vector<16x1xf32>
    %266 = arith.divf %264, %265 : vector<16x1xf32>
    %cst_100 = arith.constant 9.99999974E-6 : f32
    %267 = vector.broadcast %cst_100 : f32 to vector<16x1xf32>
    %268 = arith.addf %266, %267 : vector<16x1xf32>
    %269 = math.rsqrt %268 : vector<16x1xf32>
    %270 = vector.broadcast %269 : vector<16x1xf32> to vector<16x32xf32>
    %271 = arith.mulf %261, %270 : vector<16x32xf32>
    %272 = vector.broadcast %253 : vector<1x32xf32> to vector<16x32xf32>
    %273 = arith.mulf %271, %272 : vector<16x32xf32>
    %274 = vector.broadcast %255 : vector<1x32xf32> to vector<16x32xf32>
    %275 = arith.addf %273, %274 : vector<16x32xf32>
    %c0_101 = arith.constant 0 : index
    %c0_102 = arith.constant 0 : index
    %c0_103 = arith.constant 0 : index
    %276 = vector.load %arg17[%c0_101, %c0_102, %c0_103] : memref<1x32x64xbf16, #tpu.memory_space<vmem>>, vector<1x32x64xbf16>
    %277 = vector.shape_cast %276 : vector<1x32x64xbf16> to vector<32x64xbf16>
    %278 = arith.truncf %275 : vector<16x32xf32> to vector<16x32xbf16>
    %cst_104 = arith.constant dense<0.000000e+00> : vector<16x64xf32>
    %279 = tpu.matmul %278, %277, %cst_104 {dimension_numbers = #tpu.dot_dimension_numbers<[1], [0], [0], [1], [0, 0, 1, 1], [], []>} : vector<16x32xbf16>, vector<32x64xbf16>, vector<16x64xf32> -> vector<16x64xf32>
    %c0_105 = arith.constant 0 : index
    %c0_106 = arith.constant 0 : index
    %c0_107 = arith.constant 0 : index
    %280 = vector.load %arg18[%c0_105, %c0_106, %c0_107] : memref<1x1x64xf32, #tpu.memory_space<vmem>>, vector<1x1x64xf32>
    %281 = vector.shape_cast %280 : vector<1x1x64xf32> to vector<1x64xf32>
    %282 = vector.broadcast %281 : vector<1x64xf32> to vector<16x64xf32>
    %283 = arith.addf %279, %282 : vector<16x64xf32>
    %cst_108 = arith.constant 0.000000e+00 : f32
    %284 = vector.broadcast %cst_108 : f32 to vector<16x64xf32>
    %285 = arith.maximumf %283, %284 : vector<16x64xf32>
    %c0_109 = arith.constant 0 : index
    %c0_110 = arith.constant 0 : index
    %c0_111 = arith.constant 0 : index
    %286 = vector.load %arg19[%c0_109, %c0_110, %c0_111] : memref<1x64x32xbf16, #tpu.memory_space<vmem>>, vector<1x64x32xbf16>
    %287 = vector.shape_cast %286 : vector<1x64x32xbf16> to vector<64x32xbf16>
    %288 = arith.truncf %285 : vector<16x64xf32> to vector<16x64xbf16>
    %cst_112 = arith.constant dense<0.000000e+00> : vector<16x32xf32>
    %289 = tpu.matmul %288, %287, %cst_112 {dimension_numbers = #tpu.dot_dimension_numbers<[1], [0], [0], [1], [0, 0, 1, 1], [], []>} : vector<16x64xbf16>, vector<64x32xbf16>, vector<16x32xf32> -> vector<16x32xf32>
    %290 = arith.addf %275, %289 : vector<16x32xf32>
    %c0_113 = arith.constant 0 : index
    %c0_114 = arith.constant 0 : index
    %c0_115 = arith.constant 0 : index
    %291 = vector.load %arg20[%c0_113, %c0_114, %c0_115] : memref<1x1x32xf32, #tpu.memory_space<vmem>>, vector<1x1x32xf32>
    %292 = vector.shape_cast %291 : vector<1x1x32xf32> to vector<1x32xf32>
    %293 = vector.broadcast %292 : vector<1x32xf32> to vector<16x32xf32>
    %294 = arith.addf %290, %293 : vector<16x32xf32>
    %c0_116 = arith.constant 0 : index
    %c0_117 = arith.constant 0 : index
    %c0_118 = arith.constant 0 : index
    %295 = vector.load %arg21[%c0_116, %c0_117, %c0_118] : memref<1x1x32xf32, #tpu.memory_space<vmem>>, vector<1x1x32xf32>
    %296 = vector.shape_cast %295 : vector<1x1x32xf32> to vector<1x32xf32>
    %c0_119 = arith.constant 0 : index
    %c0_120 = arith.constant 0 : index
    %c0_121 = arith.constant 0 : index
    %297 = vector.load %arg22[%c0_119, %c0_120, %c0_121] : memref<1x1x32xf32, #tpu.memory_space<vmem>>, vector<1x1x32xf32>
    %298 = vector.shape_cast %297 : vector<1x1x32xf32> to vector<1x32xf32>
    %cst_122 = arith.constant dense<0.000000e+00> : vector<16xf32>
    %299 = vector.multi_reduction <add>, %294, %cst_122 [1] : vector<16x32xf32> to vector<16xf32>
    %300 = vector.shape_cast %299 : vector<16xf32> to vector<16x1xf32>
    %cst_123 = arith.constant 3.200000e+01 : f32
    %301 = vector.broadcast %cst_123 : f32 to vector<16x1xf32>
    %302 = arith.divf %300, %301 : vector<16x1xf32>
    %303 = vector.broadcast %302 : vector<16x1xf32> to vector<16x32xf32>
    %304 = arith.subf %294, %303 : vector<16x32xf32>
    %305 = arith.mulf %304, %304 : vector<16x32xf32>
    %cst_124 = arith.constant dense<0.000000e+00> : vector<16xf32>
    %306 = vector.multi_reduction <add>, %305, %cst_124 [1] : vector<16x32xf32> to vector<16xf32>
    %307 = vector.shape_cast %306 : vector<16xf32> to vector<16x1xf32>
    %cst_125 = arith.constant 3.200000e+01 : f32
    %308 = vector.broadcast %cst_125 : f32 to vector<16x1xf32>
    %309 = arith.divf %307, %308 : vector<16x1xf32>
    %cst_126 = arith.constant 9.99999974E-6 : f32
    %310 = vector.broadcast %cst_126 : f32 to vector<16x1xf32>
    %311 = arith.addf %309, %310 : vector<16x1xf32>
    %312 = math.rsqrt %311 : vector<16x1xf32>
    %313 = vector.broadcast %312 : vector<16x1xf32> to vector<16x32xf32>
    %314 = arith.mulf %304, %313 : vector<16x32xf32>
    %315 = vector.broadcast %296 : vector<1x32xf32> to vector<16x32xf32>
    %316 = arith.mulf %314, %315 : vector<16x32xf32>
    %317 = vector.broadcast %298 : vector<1x32xf32> to vector<16x32xf32>
    %318 = arith.addf %316, %317 : vector<16x32xf32>
    %c0_127 = arith.constant 0 : index
    %c0_128 = arith.constant 0 : index
    %319 = vector.load %arg24[%c0_127, %c0_128] : memref<16x32xf32, #tpu.memory_space<vmem>>, vector<16x32xf32>
    tpu.vector_store %arg24[%c0_127, %c0_128], %318 {strides = array<i32>} : memref<16x32xf32, #tpu.memory_space<vmem>>, vector<16x32xf32>,
    %c1_i32 = arith.constant 1 : i32
    %320 = arith.cmpi eq, %arg0, %c1_i32 : i32
    %321 = arith.extui %320 : i1 to i32
    %c0_i32_129 = arith.constant 0 : i32
    %322 = arith.cmpi ne, %321, %c0_i32_129 : i32
    scf.if %322 {
      %323 = vector.shape_cast %318 : vector<16x32xf32> to vector<8x2x32xf32>
      %c0_130 = arith.constant 0 : index
      %c0_131 = arith.constant 0 : index
      %c0_132 = arith.constant 0 : index
      %324 = vector.load %arg23[%c0_130, %c0_131, %c0_132] : memref<8x2x32xf32, #tpu.memory_space<vmem>>, vector<8x2x32xf32>
      tpu.vector_store %arg23[%c0_130, %c0_131, %c0_132], %323 {strides = array<i32>} : memref<8x2x32xf32, #tpu.memory_space<vmem>>, vector<8x2x32xf32>,
    } else {
    }
    return
  }
  func.func @transform_0(%arg0: i32) -> (i32, i32, i32) {
    %c0_i32 = arith.constant 0 : i32
    %c0_i32_0 = arith.constant 0 : i32
    %c0_i32_1 = arith.constant 0 : i32
    %c0_i32_2 = arith.constant 0 : i32
    return %c0_i32, %c0_i32_0, %c0_i32_1 : i32, i32, i32
  }
  func.func @transform_1(%arg0: i32) -> (i32, i32, i32) {
    %c0_i32 = arith.constant 0 : i32
    %c0_i32_0 = arith.constant 0 : i32
    %c0_i32_1 = arith.constant 0 : i32
    %c0_i32_2 = arith.constant 0 : i32
    return %c0_i32, %c0_i32_0, %c0_i32_1 : i32, i32, i32
  }
  func.func @transform_2(%arg0: i32) -> (i32, i32, i32) {
    %c0_i32 = arith.constant 0 : i32
    %c0_i32_0 = arith.constant 0 : i32
    %c0_i32_1 = arith.constant 0 : i32
    return %arg0, %c0_i32, %c0_i32_0 : i32, i32, i32
  }
  func.func @transform_3(%arg0: i32) -> (i32, i32, i32) {
    %c0_i32 = arith.constant 0 : i32
    %c0_i32_0 = arith.constant 0 : i32
    %c0_i32_1 = arith.constant 0 : i32
    return %arg0, %c0_i32, %c0_i32_0 : i32, i32, i32
  }
  func.func @transform_4(%arg0: i32) -> (i32, i32, i32) {
    %c0_i32 = arith.constant 0 : i32
    %c0_i32_0 = arith.constant 0 : i32
    %c0_i32_1 = arith.constant 0 : i32
    return %arg0, %c0_i32, %c0_i32_0 : i32, i32, i32
  }
  func.func @transform_5(%arg0: i32) -> (i32, i32, i32) {
    %c0_i32 = arith.constant 0 : i32
    %c0_i32_0 = arith.constant 0 : i32
    %c0_i32_1 = arith.constant 0 : i32
    return %arg0, %c0_i32, %c0_i32_0 : i32, i32, i32
  }
  func.func @transform_6(%arg0: i32) -> (i32, i32, i32) {
    %c0_i32 = arith.constant 0 : i32
    %c0_i32_0 = arith.constant 0 : i32
    %c0_i32_1 = arith.constant 0 : i32
    return %arg0, %c0_i32, %c0_i32_0 : i32, i32, i32
  }
  func.func @transform_7(%arg0: i32) -> (i32, i32, i32) {
    %c0_i32 = arith.constant 0 : i32
    %c0_i32_0 = arith.constant 0 : i32
    %c0_i32_1 = arith.constant 0 : i32
    return %arg0, %c0_i32, %c0_i32_0 : i32, i32, i32
  }
  func.func @transform_8(%arg0: i32) -> (i32, i32, i32) {
    %c0_i32 = arith.constant 0 : i32
    %c0_i32_0 = arith.constant 0 : i32
    %c0_i32_1 = arith.constant 0 : i32
    return %arg0, %c0_i32, %c0_i32_0 : i32, i32, i32
  }
  func.func @transform_9(%arg0: i32) -> (i32, i32, i32) {
    %c0_i32 = arith.constant 0 : i32
    %c0_i32_0 = arith.constant 0 : i32
    %c0_i32_1 = arith.constant 0 : i32
    return %arg0, %c0_i32, %c0_i32_0 : i32, i32, i32
  }
  func.func @transform_10(%arg0: i32) -> (i32, i32, i32) {
    %c0_i32 = arith.constant 0 : i32
    %c0_i32_0 = arith.constant 0 : i32
    %c0_i32_1 = arith.constant 0 : i32
    return %arg0, %c0_i32, %c0_i32_0 : i32, i32, i32
  }
  func.func @transform_11(%arg0: i32) -> (i32, i32, i32) {
    %c0_i32 = arith.constant 0 : i32
    %c0_i32_0 = arith.constant 0 : i32
    %c0_i32_1 = arith.constant 0 : i32
    return %arg0, %c0_i32, %c0_i32_0 : i32, i32, i32
  }
  func.func @transform_12(%arg0: i32) -> (i32, i32, i32) {
    %c0_i32 = arith.constant 0 : i32
    %c0_i32_0 = arith.constant 0 : i32
    %c0_i32_1 = arith.constant 0 : i32
    return %arg0, %c0_i32, %c0_i32_0 : i32, i32, i32
  }
  func.func @transform_13(%arg0: i32) -> (i32, i32, i32) {
    %c0_i32 = arith.constant 0 : i32
    %c0_i32_0 = arith.constant 0 : i32
    %c0_i32_1 = arith.constant 0 : i32
    return %arg0, %c0_i32, %c0_i32_0 : i32, i32, i32
  }
  func.func @transform_14(%arg0: i32) -> (i32, i32, i32) {
    %c0_i32 = arith.constant 0 : i32
    %c0_i32_0 = arith.constant 0 : i32
    %c0_i32_1 = arith.constant 0 : i32
    return %arg0, %c0_i32, %c0_i32_0 : i32, i32, i32
  }
  func.func @transform_15(%arg0: i32) -> (i32, i32, i32) {
    %c0_i32 = arith.constant 0 : i32
    %c0_i32_0 = arith.constant 0 : i32
    %c0_i32_1 = arith.constant 0 : i32
    return %arg0, %c0_i32, %c0_i32_0 : i32, i32, i32
  }
  func.func @transform_16(%arg0: i32) -> (i32, i32, i32) {
    %c0_i32 = arith.constant 0 : i32
    %c0_i32_0 = arith.constant 0 : i32
    %c0_i32_1 = arith.constant 0 : i32
    return %arg0, %c0_i32, %c0_i32_0 : i32, i32, i32
  }
  func.func @transform_17(%arg0: i32) -> (i32, i32, i32) {
    %c0_i32 = arith.constant 0 : i32
    %c0_i32_0 = arith.constant 0 : i32
    %c0_i32_1 = arith.constant 0 : i32
    return %arg0, %c0_i32, %c0_i32_0 : i32, i32, i32
  }
  func.func @transform_18(%arg0: i32) -> (i32, i32, i32) {
    %c0_i32 = arith.constant 0 : i32
    %c0_i32_0 = arith.constant 0 : i32
    %c0_i32_1 = arith.constant 0 : i32
    return %arg0, %c0_i32, %c0_i32_0 : i32, i32, i32
  }
  func.func @transform_19(%arg0: i32) -> (i32, i32, i32) {
    %c0_i32 = arith.constant 0 : i32
    %c0_i32_0 = arith.constant 0 : i32
    %c0_i32_1 = arith.constant 0 : i32
    return %arg0, %c0_i32, %c0_i32_0 : i32, i32, i32
  }
  func.func @transform_20(%arg0: i32) -> (i32, i32, i32) {
    %c0_i32 = arith.constant 0 : i32
    %c0_i32_0 = arith.constant 0 : i32
    %c0_i32_1 = arith.constant 0 : i32
    return %arg0, %c0_i32, %c0_i32_0 : i32, i32, i32
  }
  func.func @transform_21(%arg0: i32) -> (i32, i32, i32) {
    %c0_i32 = arith.constant 0 : i32
    %c0_i32_0 = arith.constant 0 : i32
    %c0_i32_1 = arith.constant 0 : i32
    return %arg0, %c0_i32, %c0_i32_0 : i32, i32, i32
  }
  func.func @transform_22(%arg0: i32) -> (i32, i32, i32) {
    %c0_i32 = arith.constant 0 : i32
    %c0_i32_0 = arith.constant 0 : i32
    %c0_i32_1 = arith.constant 0 : i32
    %c0_i32_2 = arith.constant 0 : i32
    return %c0_i32, %c0_i32_0, %c0_i32_1 : i32, i32, i32
  }
}

</mosaic_0001>

<llo_original>
// kernel: text_scnet_forward.9
$region0: #{text_scnet_forward.9}
  #allocation0 [shape = 'u32[]', space=smem, size = 0x4, offset = 0x4, fixed_abs, tag = 'smem constant byte address 0x4 - core index']
  #allocation1 [shape = 'u32[72,128]{1,0:T(1,128)}', space=vmem, size = 0x9000, scoped, tag = 'internal scratch']
  %s0 = inlined_call_operand.vmem [shape: f32[16,32], index: 0, kind: input, shape index: {}]
  %s1 = inlined_call_operand.vmem [shape: bf16[32,64], index: 1, kind: input, shape index: {}]
  %s2 = inlined_call_operand.vmem [shape: f32[1,64], index: 2, kind: input, shape index: {}]
  %s3 = inlined_call_operand.hbm [shape: f32[16,64], index: 3, kind: output, shape index: {}]
  %s4 = sld [smem:[#allocation0]]
  $region45: #{text_scnet_forward.9} parent=0
    _
  %s6 = ssub.s32 1, %s4
  %s7 = scalar_select 0, %s6, %s4
  $region1: #{text_scnet_forward.9} parent=0
    #allocation2 [shape = 'u8[8192]{0}', space=vmem, size = 0x2000, scoped, tag = 'output window, operand 0']
    #allocation3 [shape = 's32[2]{0}', space=sflag, size = 0x8, scoped, tag = 'scoped memory for text_scnet_forward.9']
    %8 = vsyncpa [#allocation3], 0
    %s9 = scalar_lea.sflag [#allocation3], 1
    %10 = vsyncpa %s9, 0
    loop: start=0, step=1, limit=4
    $region2: #{text_scnet_forward.9} parent=1 // loop_pre_header
      _
    $region3: #{text_scnet_forward.9} parent=1 // loop_header
      %s12 = sphi 0, %s16
      %p13 = scmp.ge.s32.totalorder %s12, 4
      %s19 = sphi 0, %s31
      %s20 = sphi 0, %s27
      %s21 = sphi 0, %s19
      %s22 = sphi 0, %s20
      %s23 = sphi 0, %s21
      %s24 = sphi 0, %s22
      %s34 = sphi 0, %s36
      %s37 = sphi 0, %s34
      %s38 = sphi 0, %s37
      %s54 = sphi 0, %s38
      %s60 = sphi 0, %s62
      %s63 = sphi 0, %s60
      %s64 = sphi 0, %s63
      %s80 = sphi 0, %s64
      %s86 = sphi 0, %s88
      %s89 = sphi 0, %s86
      %s90 = sphi 0, %s89
      %s106 = sphi 0, %s90
      %s114 = sphi 0, %s116
      %s117 = sphi 0, %s114
      %s118 = sphi 0, %s117
      %s134 = sphi 0, %s118
    $region4: #{text_scnet_forward.9} parent=1 // loop_header_branch
      %15 = sbr.rel (%p13) target = $region8
    $region5: #{text_scnet_forward.9} parent=1 // loop_body
      %s17 = ssub.s32 %s12, 1
      %s18 = ssub.s32 %s12, 2
      %s25 = sadd.s32 1, %s20
      %p26 = scmp.ge.s32.totalorder %s25, 1
      %s27 = scalar_select %p26, 0, %s25
      %s28 = sadd.s32 1, %s19
      %s29 = scalar_select %p26, %s28, %s19
      %p30 = scmp.ge.s32.totalorder %s29, 2
      %s31 = scalar_select %p30, 0, %s29
      %s32 = ssub.s32 %s19, %s31
      %p33 = scmp.eq.s32.totalorder %s32, 0
      %s35 = sadd.s32 %s34, 1
      %s36 = scalar_select %p33, %s34, %s35
      %p39 = pneg %p33
      %p40 = scmp.eq.s32.totalorder %s12, 1
      %p41 = por %p39, %p40
      %p42 = scmp.ne.s32.totalorder %s34, %s37
      %p43 = scmp.eq.s32.totalorder %s12, 0
      %p44 = por %p42, %p43
      %p45 = scmp.ne.s32.totalorder %s34, %s37
      %p46 = scmp.eq.s32.totalorder %s17, 1
      %p47 = por %p45, %p46
      %p48 = scmp.ne.s32.totalorder %s37, %s38
      %p49 = scmp.eq.s32.totalorder %s17, 0
      %p50 = por %p48, %p49
      %p51 = scmp.ne.s32.totalorder %s37, %s38
      %p52 = scmp.eq.s32.totalorder %s18, 1
      %p53 = por %p51, %p52
      %p55 = scmp.ne.s32.totalorder %s38, %s54
      %p56 = scmp.eq.s32.totalorder %s18, 0
      %p57 = por %p55, %p56
      %s58 = ssub.s32 %s20, %s27
      %p59 = scmp.eq.s32.totalorder %s58, 0
      %s61 = sadd.s32 %s60, 1
      %s62 = scalar_select %p59, %s60, %s61
      %p65 = pneg %p59
      %p66 = scmp.eq.s32.totalorder %s12, 1
      %p67 = por %p65, %p66
      %p68 = scmp.ne.s32.totalorder %s60, %s63
      %p69 = scmp.eq.s32.totalorder %s12, 0
      %p70 = por %p68, %p69
      %p71 = scmp.ne.s32.totalorder %s60, %s63
      %p72 = scmp.eq.s32.totalorder %s17, 1
      %p73 = por %p71, %p72
      %p74 = scmp.ne.s32.totalorder %s63, %s64
      %p75 = scmp.eq.s32.totalorder %s17, 0
      %p76 = por %p74, %p75
      %p77 = scmp.ne.s32.totalorder %s63, %s64
      %p78 = scmp.eq.s32.totalorder %s18, 1
      %p79 = por %p77, %p78
      %p81 = scmp.ne.s32.totalorder %s64, %s80
      %p82 = scmp.eq.s32.totalorder %s18, 0
      %p83 = por %p81, %p82
      %s84 = ssub.s32 %s20, %s27
      %p85 = scmp.eq.s32.totalorder %s84, 0
      %s87 = sadd.s32 %s86, 1
      %s88 = scalar_select %p85, %s86, %s87
      %p91 = pneg %p85
      %p92 = scmp.eq.s32.totalorder %s12, 1
      %p93 = por %p91, %p92
      %p94 = scmp.ne.s32.totalorder %s86, %s89
      %p95 = scmp.eq.s32.totalorder %s12, 0
      %p96 = por %p94, %p95
      %p97 = scmp.ne.s32.totalorder %s86, %s89
      %p98 = scmp.eq.s32.totalorder %s17, 1
      %p99 = por %p97, %p98
      %p100 = scmp.ne.s32.totalorder %s89, %s90
      %p101 = scmp.eq.s32.totalorder %s17, 0
      %p102 = por %p100, %p101
      %p103 = scmp.ne.s32.totalorder %s89, %s90
      %p104 = scmp.eq.s32.totalorder %s18, 1
      %p105 = por %p103, %p104
      %p107 = scmp.ne.s32.totalorder %s90, %s106
      %p108 = scmp.eq.s32.totalorder %s18, 0
      %p109 = por %p107, %p108
      %s110 = ssub.s32 %s19, %s31
      %s111 = ssub.s32 %s20, %s27
      %s112 = sor.u32 %s110, %s111
      %p113 = scmp.eq.s32.totalorder %s112, 0
      %s115 = sadd.s32 %s114, 1
      %s116 = scalar_select %p113, %s114, %s115
      %p119 = pneg %p113
      %p120 = scmp.eq.s32.totalorder %s12, 1
      %p121 = por %p119, %p120
      %p122 = scmp.ne.s32.totalorder %s114, %s117
      %p123 = scmp.eq.s32.totalorder %s12, 0
      %p124 = por %p122, %p123
      %p125 = scmp.ne.s32.totalorder %s114, %s117
      %p126 = scmp.eq.s32.totalorder %s17, 1
      %p127 = por %p125, %p126
      %p128 = scmp.ne.s32.totalorder %s117, %s118
      %p129 = scmp.eq.s32.totalorder %s17, 0
      %p130 = por %p128, %p129
      %p131 = scmp.ne.s32.totalorder %s117, %s118
      %p132 = scmp.eq.s32.totalorder %s18, 1
      %p133 = por %p131, %p132
      %p135 = scmp.ne.s32.totalorder %s118, %s134
      %p136 = scmp.eq.s32.totalorder %s18, 0
      %p137 = por %p135, %p136
      %p138 = scmp.le.s32.totalorder 1, %s12
      %p139 = scmp.lt.s32.totalorder %s12, 3
      %p140 = pnand %p138, %p139
      %p141 = pneg %p140
      // Predicated region
      $region9: #{text_scnet_forward.9} parent=5 // pred_check
        _
      $region10: #{text_scnet_forward.9} parent=5 // pred_check_branch
        %143 = sbr.rel (%p140) target = $region12
      $region11: #{text_scnet_forward.9} parent=5 // pred_region
        %s144 = ssub.s32 %s12, 1
        // Predicated region
        $region13: #{text_scnet_forward.9} parent=11 // pred_check
          %p145 = pneg %p76
        $region14: #{text_scnet_forward.9} parent=11 // pred_check_branch
          %147 = sbr.rel (%p145) target = $region16
        $region15: #{text_scnet_forward.9} parent=11 // pred_region
          %p148 = scmp.lt.s32.totalorder %s22, 0
          %s149 = scalar_select %p148, %s22, 0
          %s150 = smul.addr %s149, 4
          %s151 = scalar_lea.vmem %s1, %s150
        $region16: #{text_scnet_forward.9} parent=11 // pred_fallthru
          _
        // Predicated region
        $region17: #{text_scnet_forward.9} parent=11 // pred_check
          %p152 = pneg %p102
        $region18: #{text_scnet_forward.9} parent=11 // pred_check_branch
          %154 = sbr.rel (%p152) target = $region20
        $region19: #{text_scnet_forward.9} parent=11 // pred_region
          %p155 = scmp.lt.s32.totalorder %s22, 0
          %s156 = scalar_select %p155, %s22, 0
          %s157 = scalar_lea.vmem %s2, %s156
        $region20: #{text_scnet_forward.9} parent=11 // pred_fallthru
          _
      $region12: #{text_scnet_forward.9} parent=5 // pred_fallthru
        _
      %p158 = scmp.lt.s32.totalorder %s12, 2
      // Predicated region
      $region21: #{text_scnet_forward.9} parent=5 // pred_check
        %p159 = pneg %p158
      $region22: #{text_scnet_forward.9} parent=5 // pred_check_branch
        %161 = sbr.rel (%p159) target = $region24
      $region23: #{text_scnet_forward.9} parent=5 // pred_region
        // Predicated region
        $region25: #{text_scnet_forward.9} parent=23 // pred_check
          %p162 = pneg %p44
        $region26: #{text_scnet_forward.9} parent=23 // pred_check_branch
          %164 = sbr.rel (%p162) target = $region28
        $region27: #{text_scnet_forward.9} parent=23 // pred_region
          %p165 = scmp.lt.s32.totalorder %s19, 1
          %s166 = scalar_select %p165, %s19, 1
          %s167 = smul.addr %s166, 8
          %s168 = scalar_lea.vmem %s0, %s167
        $region28: #{text_scnet_forward.9} parent=23 // pred_fallthru
          _
      $region24: #{text_scnet_forward.9} parent=5 // pred_fallthru
        _
      %p169 = scmp.le.s32.totalorder 1, %s12
      %p170 = scmp.lt.s32.totalorder %s12, 3
      %p171 = pnand %p169, %p170
      %p172 = pneg %p171
      // Predicated region
      $region29: #{text_scnet_forward.9} parent=5 // pred_check
        _
      $region30: #{text_scnet_forward.9} parent=5 // pred_check_branch
        %174 = sbr.rel (%p171) target = $region32
      $region31: #{text_scnet_forward.9} parent=5 // pred_region
        %s175 = ssub.s32 %s12, 1
        %p176 = scmp.lt.s32.totalorder %s21, 1
        %s177 = scalar_select %p176, %s21, 1
        %s178 = smul.addr %s177, 8
        %s179 = scalar_lea.vmem %s0, %s178
        %p180 = pneg %p50
        %p181 = pneg %p47
        %p182 = scmp.lt.s32.totalorder %s22, 0
        %s183 = scalar_select %p182, %s22, 0
        %s184 = smul.addr %s183, 4
        %s185 = scalar_lea.vmem %s1, %s184
        %p186 = pneg %p76
        %p187 = pneg %p73
        %p188 = scmp.lt.s32.totalorder %s22, 0
        %s189 = scalar_select %p188, %s22, 0
        %s190 = scalar_lea.vmem %s2, %s189
        %p191 = pneg %p102
        %p192 = pneg %p99
        %p193 = pneg %p130
        %p194 = pneg %p127
        %s195 = sand.u32 %s117, 1
        %s196 = scalar_lea.sflag [#allocation3], %s195
        %s197 = sand.u32 %s117, 1
        %s198 = smul.addr %s197, 8
        %s199 = scalar_lea.vmem [#allocation2], %s198
        %p200 = scmp.lt.s32.totalorder %s21, 1
        %s201 = scalar_select %p200, %s21, 1
        %s202 = smul.addr %s201, 8
        %s203 = scalar_lea.vmem %s0, %s202
        %p204 = scmp.lt.s32.totalorder %s22, 0
        %s205 = scalar_select %p204, %s22, 0
        %s206 = smul.addr %s205, 4
        %s207 = scalar_lea.vmem %s1, %s206
        %p208 = scmp.lt.s32.totalorder %s22, 0
        %s209 = scalar_select %p208, %s22, 0
        %s210 = scalar_lea.vmem %s2, %s209
        %v212 = vld [vmem:[%s203] sm:$0xff]
        %v213 = vld [vmem:[%s207] sm:$0xf]
        %v214 = vld [vmem:[%s207 + $0x4] sm:$0xf]
        %v215 = vld [vmem:[%s207 + $0x8] sm:$0xf]
        %v216 = vld [vmem:[%s207 + $0xc] sm:$0xf]
        %v217 = vpack.c.bf16 %v212, %v212
        %v218 = vld [vmem:[%s210] sm:$0x1]
        %v220 = vperm.slane %v218, 0
        %v226 = vunpack.c.l.b16 %v213
        %v227 = vunpack.c.l.b16 %v214
        %v228 = vunpack.c.l.b16 %v215
        %v229 = vunpack.c.l.b16 %v216
        %v230 = vpack.c.b16 %v227, %v226
        %v231 = vpack.c.b16 %v229, %v228
        %vm234 = vcmask 261120
        %v236 = vsel %vm234, %v217, 0
        %238 = vmatpush.bf16.msra.mxu0 0
        %239 = vmatpush.bf16.msra.mxu0 0
        %240 = vmatpush.bf16.msra.mxu0 0
        %241 = vmatpush.bf16.msra.mxu0 0
        %242 = vmatpush.bf16.msra.mxu0 0
        %243 = vmatpush.bf16.msra.mxu0 0
        %244 = vmatpush.bf16.msra.mxu0 %v231
        %245 = vmatpush.bf16.msra.mxu0 %v230
        %246 = vmatmul.bf16.gmra.mxu0 %v236
        %v247 = vpop.f32.mrf.mxu0
        %v248 = vadd.f32 %v220, %v247
        %v249 = vpop.f32.mrf.mxu0
        %250 = vdwg.mxu0
        %vm251 = vcmask 523264
        %252 = vst.msk [vmem:[%s199] sm:$0xff] %vm251, %v248
        %s253 = sand.u32 %s117, 1
        %s254 = scalar_lea.sflag [#allocation3], %s253
        %s255 = sand.u32 %s117, 1
        %s256 = smul.addr %s255, 8
        %s257 = scalar_lea.vmem [#allocation2], %s256
        // Predicated region
        $region33: #{text_scnet_forward.9} parent=31 // pred_check
          %p258 = pneg %p127
        $region34: #{text_scnet_forward.9} parent=31 // pred_check_branch
          %260 = sbr.rel (%p258) target = $region36
        $region35: #{text_scnet_forward.9} parent=31 // pred_region
          %262 = vsyncadd %s254, 0
          %s263 = sadd.s32 %s22, %s21
          %s264 = smul.addr %s263, 8
          %s265 = scalar_lea.hbm %s3, %s264
          %s267 = sshll.u32 %s257, 4
          %s268 = int_to_ptr.vmem [resolvable:$true] %s267
          %s269 = sshll.u32 %s265, 4
          %s270 = int_to_ptr.hbm [resolvable:$true] %s269
          %272 = dma.vmem_to_hbm [thread:$0]  %s268, 128, %s270, %s254
        $region36: #{text_scnet_forward.9} parent=31 // pred_fallthru
          _
      $region32: #{text_scnet_forward.9} parent=5 // pred_fallthru
        _
      %p273 = scmp.le.s32.totalorder 2, %s12
      // Predicated region
      $region37: #{text_scnet_forward.9} parent=5 // pred_check
        %p274 = pneg %p273
      $region38: #{text_scnet_forward.9} parent=5 // pred_check_branch
        %276 = sbr.rel (%p274) target = $region40
      $region39: #{text_scnet_forward.9} parent=5 // pred_region
        %s277 = ssub.s32 %s12, 2
        // Predicated region
        $region41: #{text_scnet_forward.9} parent=39 // pred_check
          %p278 = pneg %p133
        $region42: #{text_scnet_forward.9} parent=39 // pred_check_branch
          %280 = sbr.rel (%p278) target = $region44
        $region43: #{text_scnet_forward.9} parent=39 // pred_region
          %s281 = sand.u32 %s118, 1
          %s282 = scalar_lea.sflag [#allocation3], %s281
          %s283 = sand.u32 %s118, 1
          %s284 = smul.addr %s283, 8
          %s285 = scalar_lea.vmem [#allocation2], %s284
          %287 = dma.done %s282, 128
        $region44: #{text_scnet_forward.9} parent=39 // pred_fallthru
          _
      $region40: #{text_scnet_forward.9} parent=5 // pred_fallthru
        _
    $region6: #{text_scnet_forward.9} parent=1 // loop_footer
      %s16 = sadd.s32 1, %s12
    $region7: #{text_scnet_forward.9} parent=1 // loop_footer_branch
      %11 = sbr.rel target = $region3
    $region8: #{text_scnet_forward.9} parent=1 // loop_exit
      _
    %288 = vsyncpa [#allocation3], 1
    %s289 = scalar_lea.sflag [#allocation3], 1
    %290 = vsyncpa %s289, 1

// kernel: text_scnet_forward.7
$region0: #{text_scnet_forward.7}
  #allocation0 [shape = 'u32[]', space=smem, size = 0x4, offset = 0x4, fixed_abs, tag = 'smem constant byte address 0x4 - core index']
  #allocation1 [shape = 'u32[72,128]{1,0:T(1,128)}', space=vmem, size = 0x9000, scoped, tag = 'internal scratch']
  %s0 = inlined_call_operand.vmem [shape: f32[2,256], index: 0, kind: input, shape index: {}]
  %s1 = inlined_call_operand.vmem [shape: bf16[256,64], index: 1, kind: input, shape index: {}]
  %s2 = inlined_call_operand.vmem [shape: f32[1,64], index: 2, kind: input, shape index: {}]
  %s3 = inlined_call_operand.vmem [shape: f32[2,64], index: 3, kind: input, shape index: {}]
  %s4 = inlined_call_operand.vmem [shape: f32[2,64], index: 4, kind: input, shape index: {}]
  %s5 = inlined_call_operand.vmem [shape: bf16[64,256], index: 5, kind: input, shape index: {}]
  %s6 = inlined_call_operand.vmem [shape: f32[1,256], index: 6, kind: input, shape index: {}]
  %s7 = inlined_call_operand.hbm [shape: f32[2,64], index: 7, kind: output, shape index: {0}]
  %s8 = inlined_call_operand.hbm [shape: f32[2,64], index: 8, kind: output, shape index: {1}]
  %s9 = inlined_call_operand.vmem [shape: f32[2,256], index: 9, kind: output, shape index: {2}]
  %10 = xla_tuple %s7, %s8, %s9
  %s11 = sld [smem:[#allocation0]]
  $region54: #{text_scnet_forward.7} parent=0
    _
  %s13 = ssub.s32 1, %s11
  %s14 = scalar_select 0, %s13, %s11
  $region1: #{text_scnet_forward.7} parent=0
    #allocation2 [shape = 'u8[1024]{0}', space=vmem, size = 0x400, scoped, tag = 'output window, operand 0, single buffered']
    #allocation3 [shape = 's32[1]{0}', space=sflag, size = 0x4, scoped, tag = 'scoped memory for text_scnet_forward.7']
    #allocation4 [shape = 'u8[1024]{0}', space=vmem, size = 0x400, scoped, tag = 'output window, operand 1, single buffered']
    #allocation5 [shape = 's32[1]{0}', space=sflag, size = 0x4, scoped, tag = 'scoped memory for text_scnet_forward.7']
    %15 = vsyncpa [#allocation3], 0
    %16 = vsyncpa [#allocation5], 0
    // Predicated region
    $region2: #{text_scnet_forward.7} parent=1 // pred_check
      _
    $region3: #{text_scnet_forward.7} parent=1 // pred_check_branch
      %18 = sbr.rel (0) target = $region5
    $region4: #{text_scnet_forward.7} parent=1 // pred_region
      _
    $region5: #{text_scnet_forward.7} parent=1 // pred_fallthru
      _
    // Predicated region
    $region6: #{text_scnet_forward.7} parent=1 // pred_check
      _
    $region7: #{text_scnet_forward.7} parent=1 // pred_check_branch
      %20 = sbr.rel (0) target = $region9
    $region8: #{text_scnet_forward.7} parent=1 // pred_region
      _
    $region9: #{text_scnet_forward.7} parent=1 // pred_fallthru
      _
    // Predicated region
    $region10: #{text_scnet_forward.7} parent=1 // pred_check
      _
    $region11: #{text_scnet_forward.7} parent=1 // pred_check_branch
      %22 = sbr.rel (0) target = $region13
    $region12: #{text_scnet_forward.7} parent=1 // pred_region
      _
    $region13: #{text_scnet_forward.7} parent=1 // pred_fallthru
      _
    // Predicated region
    $region14: #{text_scnet_forward.7} parent=1 // pred_check
      _
    $region15: #{text_scnet_forward.7} parent=1 // pred_check_branch
      %24 = sbr.rel (0) target = $region17
    $region16: #{text_scnet_forward.7} parent=1 // pred_region
      _
    $region17: #{text_scnet_forward.7} parent=1 // pred_fallthru
      _
    // Predicated region
    $region18: #{text_scnet_forward.7} parent=1 // pred_check
      _
    $region19: #{text_scnet_forward.7} parent=1 // pred_check_branch
      %26 = sbr.rel (0) target = $region21
    $region20: #{text_scnet_forward.7} parent=1 // pred_region
      _
    $region21: #{text_scnet_forward.7} parent=1 // pred_fallthru
      _
    // Predicated region
    $region22: #{text_scnet_forward.7} parent=1 // pred_check
      _
    $region23: #{text_scnet_forward.7} parent=1 // pred_check_branch
      %28 = sbr.rel (0) target = $region25
    $region24: #{text_scnet_forward.7} parent=1 // pred_region
      _
    $region25: #{text_scnet_forward.7} parent=1 // pred_fallthru
      _
    // Predicated region
    $region26: #{text_scnet_forward.7} parent=1 // pred_check
      _
    $region27: #{text_scnet_forward.7} parent=1 // pred_check_branch
      %30 = sbr.rel (0) target = $region29
    $region28: #{text_scnet_forward.7} parent=1 // pred_region
      _
    $region29: #{text_scnet_forward.7} parent=1 // pred_fallthru
      _
    %v32 = vld [vmem:[%s0] sm:$0xf]
    %v33 = vld [vmem:[%s1] sm:$0xf]
    %v34 = vld [vmem:[%s1 + $0x4] sm:$0xf]
    %v35 = vld [vmem:[%s1 + $0x8] sm:$0xf]
    %v36 = vld [vmem:[%s1 + $0xc] sm:$0xf]
    %v37 = vld [vmem:[%s1 + $0x10] sm:$0xf]
    %v38 = vld [vmem:[%s1 + $0x14] sm:$0xf]
    %v39 = vld [vmem:[%s1 + $0x18] sm:$0xf]
    %v40 = vld [vmem:[%s1 + $0x1c] sm:$0xf]
    %v41 = vld [vmem:[%s1 + $0x20] sm:$0xf]
    %v42 = vld [vmem:[%s1 + $0x24] sm:$0xf]
    %v43 = vld [vmem:[%s1 + $0x28] sm:$0xf]
    %v44 = vld [vmem:[%s1 + $0x2c] sm:$0xf]
    %v45 = vld [vmem:[%s1 + $0x30] sm:$0xf]
    %v46 = vld [vmem:[%s1 + $0x34] sm:$0xf]
    %v47 = vld [vmem:[%s1 + $0x38] sm:$0xf]
    %v48 = vld [vmem:[%s1 + $0x3c] sm:$0xf]
    %v49 = vld [vmem:[%s1 + $0x40] sm:$0xf]
    %v50 = vld [vmem:[%s1 + $0x44] sm:$0xf]
    %v51 = vld [vmem:[%s1 + $0x48] sm:$0xf]
    %v52 = vld [vmem:[%s1 + $0x4c] sm:$0xf]
    %v53 = vld [vmem:[%s1 + $0x50] sm:$0xf]
    %v54 = vld [vmem:[%s1 + $0x54] sm:$0xf]
    %v55 = vld [vmem:[%s1 + $0x58] sm:$0xf]
    %v56 = vld [vmem:[%s1 + $0x5c] sm:$0xf]
    %v57 = vld [vmem:[%s1 + $0x60] sm:$0xf]
    %v58 = vld [vmem:[%s1 + $0x64] sm:$0xf]
    %v59 = vld [vmem:[%s1 + $0x68] sm:$0xf]
    %v60 = vld [vmem:[%s1 + $0x6c] sm:$0xf]
    %v61 = vld [vmem:[%s1 + $0x70] sm:$0xf]
    %v62 = vld [vmem:[%s1 + $0x74] sm:$0xf]
    %v63 = vld [vmem:[%s1 + $0x78] sm:$0xf]
    %v64 = vld [vmem:[%s1 + $0x7c] sm:$0xf]
    %66 = vst [vmem:[#allocation1] ss:$4 sm:$0xff] %v32
    %v67 = vld.sshfl [vmem:[#allocation1] sm:$0xff pattern:$0x73625140]
    %v68 = vld.sshfl [vmem:[#allocation1 + $0x8] sm:$0xff pattern:$0x73625140]
    %v71 = vpack.c.bf16 %v67, %v67
    %v72 = vpack.c.bf16 %v68, %v68
    %v73 = vld [vmem:[%s2] sm:$0x1]
    %v75 = vperm.slane %v73, 0
    %v109 = vunpack.c.l.b16 %v33
    %v110 = vunpack.c.l.b16 %v34
    %v111 = vunpack.c.l.b16 %v35
    %v112 = vunpack.c.l.b16 %v36
    %v113 = vunpack.c.l.b16 %v37
    %v114 = vunpack.c.l.b16 %v38
    %v115 = vunpack.c.l.b16 %v39
    %v116 = vunpack.c.l.b16 %v40
    %v117 = vunpack.c.l.b16 %v41
    %v118 = vunpack.c.l.b16 %v42
    %v119 = vunpack.c.l.b16 %v43
    %v120 = vunpack.c.l.b16 %v44
    %v121 = vunpack.c.l.b16 %v45
    %v122 = vunpack.c.l.b16 %v46
    %v123 = vunpack.c.l.b16 %v47
    %v124 = vunpack.c.l.b16 %v48
    %v125 = vunpack.c.l.b16 %v49
    %v126 = vunpack.c.l.b16 %v50
    %v127 = vunpack.c.l.b16 %v51
    %v128 = vunpack.c.l.b16 %v52
    %v129 = vunpack.c.l.b16 %v53
    %v130 = vunpack.c.l.b16 %v54
    %v131 = vunpack.c.l.b16 %v55
    %v132 = vunpack.c.l.b16 %v56
    %v133 = vunpack.c.l.b16 %v57
    %v134 = vunpack.c.l.b16 %v58
    %v135 = vunpack.c.l.b16 %v59
    %v136 = vunpack.c.l.b16 %v60
    %v137 = vunpack.c.l.b16 %v61
    %v138 = vunpack.c.l.b16 %v62
    %v139 = vunpack.c.l.b16 %v63
    %v140 = vunpack.c.l.b16 %v64
    %v141 = vpack.c.b16 %v110, %v109
    %v142 = vpack.c.b16 %v112, %v111
    %v143 = vpack.c.b16 %v114, %v113
    %v144 = vpack.c.b16 %v116, %v115
    %v145 = vpack.c.b16 %v118, %v117
    %v146 = vpack.c.b16 %v120, %v119
    %v147 = vpack.c.b16 %v122, %v121
    %v148 = vpack.c.b16 %v124, %v123
    %v149 = vpack.c.b16 %v126, %v125
    %v150 = vpack.c.b16 %v128, %v127
    %v151 = vpack.c.b16 %v130, %v129
    %v152 = vpack.c.b16 %v132, %v131
    %v153 = vpack.c.b16 %v134, %v133
    %v154 = vpack.c.b16 %v136, %v135
    %v155 = vpack.c.b16 %v138, %v137
    %v156 = vpack.c.b16 %v140, %v139
    %173 = vmatpush.bf16.msra.mxu0 %v148
    %174 = vmatpush.bf16.msra.mxu0 %v147
    %175 = vmatpush.bf16.msra.mxu0 %v146
    %176 = vmatpush.bf16.msra.mxu0 %v145
    %177 = vmatpush.bf16.msra.mxu0 %v144
    %178 = vmatpush.bf16.msra.mxu0 %v143
    %179 = vmatpush.bf16.msra.mxu0 %v142
    %180 = vmatpush.bf16.msra.mxu0 %v141
    %181 = vmatmul.bf16.gmra.mxu0 %v71
    %v182 = vpop.f32.mrf.mxu0
    %v183 = vadd.f32 %v75, %v182
    %v184 = vpop.f32.mrf.mxu0
    %185 = vdwg.mxu0
    %186 = vmatpush.bf16.msra.mxu0 %v156
    %187 = vmatpush.bf16.msra.mxu0 %v155
    %188 = vmatpush.bf16.msra.mxu0 %v154
    %189 = vmatpush.bf16.msra.mxu0 %v153
    %190 = vmatpush.bf16.msra.mxu0 %v152
    %191 = vmatpush.bf16.msra.mxu0 %v151
    %192 = vmatpush.bf16.msra.mxu0 %v150
    %193 = vmatpush.bf16.msra.mxu0 %v149
    %194 = vmatmul.bf16.gmra.mxu0 %v72
    %v195 = vpop.f32.mrf.mxu0
    %v196 = vadd.f32 %v183, %v195
    %v197 = vpop.f32.mrf.mxu0
    %198 = vdwg.mxu0
    %v199 = vmul.f32 %v196, %v196
    %vm200 = vcmask 517120
    %v201 = vsel %vm200, %v199, 0.0
    %202 = vadd.xlane.f32.xlu0 %v201
    %v203 = vpop.xlane.xlu0 %202
    %v204 = vrcp.pop 64.0
    %v205 = vmul.f32 64.0, %v204
    %v206 = vsub.f32 1.0, %v205
    %v207 = vmul.f32 %v204, %v206
    %v208 = vadd.f32 %v204, %v207
    %vm209 = vweird.f32 %v204
    %v210 = vsel %vm209, %v204, %v208
    %v211 = vmul.f32 %v203, %v210
    %v212 = vmul.f32 %v211, 0.031622775
    %v213 = vrsqrt.pop %v212
    %v214 = vmul.f32 %v213, %v212
    %v215 = vmul.f32 %v214, %v213
    %v216 = vmul.f32 0.5, %v215
    %v217 = vsub.f32 1.5, %v216
    %v218 = vmul.f32 %v213, %v217
    %v219 = vmul.f32 %v212, %v218
    %vm220 = vcmp.eq.f32.partialorder %v212, inf
    %v221 = vsel %vm220, %v212, %v219
    %vm222 = vcmp.eq.f32.partialorder %v212, 0.0
    %v223 = vand.u32 %v212, 2147483648
    %v224 = vsel %vm222, %v223, %v221
    %v225 = vld [vmem:[%s4] sm:$0x3]
    %v226 = vmul.f32 %v225, %v224
    %v227 = vld [vmem:[%s3] sm:$0x3]
    %v228 = vmax.f32 %v227, 1e-06
    %v229 = vmul.f32 %v228, %v196
    %v230 = vadd.f32 %v229, %v226
    %v231 = vrcp.pop %v228
    %v232 = vmul.f32 %v228, %v231
    %v233 = vsub.f32 1.0, %v232
    %v234 = vmul.f32 %v231, %v233
    %v235 = vadd.f32 %v231, %v234
    %vm236 = vweird.f32 %v228
    %vm237 = vweird.f32 %v231
    %vm238 = vmor %vm236, %vm237
    %v239 = vsel %vm238, %v231, %v235
    %v240 = vand.u32 2147483647, %v228
    %vm241 = vcmp.eq.f32.partialorder %v240, 8.507059e+37
    %v242 = vand.u32 %v228, 2147483648
    %v243 = vor.u32 1.1754944e-38, %v242
    %v244 = vsel %vm241, %v243, %v239
    %v245 = vmul.f32 %v230, %v244
    %v246 = vld [vmem:[%s5] sm:$0xff]
    %v247 = vld [vmem:[%s5 + $0x8] sm:$0xff]
    %v248 = vld [vmem:[%s5 + $0x10] sm:$0xff]
    %v249 = vld [vmem:[%s5 + $0x18] sm:$0xff]
    %v250 = vld [vmem:[%s5 + $0x20] sm:$0xff]
    %v251 = vld [vmem:[%s5 + $0x28] sm:$0xff]
    %v252 = vld [vmem:[%s5 + $0x30] sm:$0xff]
    %v253 = vld [vmem:[%s5 + $0x38] sm:$0xff]
    %v254 = vpack.c.bf16 %v245, %v245
    %v255 = vld [vmem:[%s6] sm:$0x3]
    %v257 = vperm.slane %v255, 0
    %v258 = vperm.slane %v255, 1
    %v269 = vunpack.c.l.b16 %v246
    %v270 = vunpack.c.h.b16 %v246
    %v271 = vunpack.c.l.b16 %v247
    %v272 = vunpack.c.h.b16 %v247
    %v273 = vunpack.c.l.b16 %v248
    %v274 = vunpack.c.h.b16 %v248
    %v275 = vunpack.c.l.b16 %v249
    %v276 = vunpack.c.h.b16 %v249
    %v277 = vunpack.c.l.b16 %v250
    %v278 = vunpack.c.h.b16 %v250
    %v279 = vunpack.c.l.b16 %v251
    %v280 = vunpack.c.h.b16 %v251
    %v281 = vunpack.c.l.b16 %v252
    %v282 = vunpack.c.h.b16 %v252
    %v283 = vunpack.c.l.b16 %v253
    %v284 = vunpack.c.h.b16 %v253
    %v285 = vpack.c.b16 %v271, %v269
    %v286 = vpack.c.b16 %v272, %v270
    %v287 = vpack.c.b16 %v275, %v273
    %v288 = vpack.c.b16 %v276, %v274
    %v289 = vpack.c.b16 %v279, %v277
    %v290 = vpack.c.b16 %v280, %v278
    %v291 = vpack.c.b16 %v283, %v281
    %v292 = vpack.c.b16 %v284, %v282
    %vm301 = vcmask 523264
    %v303 = vsel %vm301, %v254, 0
    %305 = vmatpush.bf16.msra.mxu0 0
    %306 = vmatpush.bf16.msra.mxu0 0
    %307 = vmatpush.bf16.msra.mxu0 0
    %308 = vmatpush.bf16.msra.mxu0 0
    %309 = vmatpush.bf16.msra.mxu0 %v291
    %310 = vmatpush.bf16.msra.mxu0 %v289
    %311 = vmatpush.bf16.msra.mxu0 %v287
    %312 = vmatpush.bf16.msra.mxu0 %v285
    %313 = vmatmul.bf16.gmra.mxu0 %v303
    %v314 = vpop.f32.mrf.mxu0
    %v315 = vadd.f32 %v257, %v314
    %v316 = vpop.f32.mrf.mxu0
    %317 = vdwg.mxu0
    %318 = vmatpush.bf16.msra.mxu0 0
    %319 = vmatpush.bf16.msra.mxu0 0
    %320 = vmatpush.bf16.msra.mxu0 0
    %321 = vmatpush.bf16.msra.mxu0 0
    %322 = vmatpush.bf16.msra.mxu0 %v292
    %323 = vmatpush.bf16.msra.mxu0 %v290
    %324 = vmatpush.bf16.msra.mxu0 %v288
    %325 = vmatpush.bf16.msra.mxu0 %v286
    %326 = vmatmul.bf16.gmra.mxu0 %v303
    %v327 = vpop.f32.mrf.mxu0
    %v328 = vadd.f32 %v258, %v327
    %v329 = vpop.f32.mrf.mxu0
    %330 = vdwg.mxu0
    %331 = vst.msk [vmem:[#allocation2] sm:$0x3] %vm200, %v196
    %332 = vst.msk [vmem:[#allocation4] sm:$0x3] %vm200, %v245
    %v335 = vrot.slane %v328, 6
    %vm336 = vcmask 1041408
    %v337 = vsel %vm336, %v315, %v335
    %339 = vst [vmem:[%s9] sm:$0xf] %v337
    // Predicated region
    $region30: #{text_scnet_forward.7} parent=1 // pred_check
      _
    $region31: #{text_scnet_forward.7} parent=1 // pred_check_branch
      %341 = sbr.rel (0) target = $region33
    $region32: #{text_scnet_forward.7} parent=1 // pred_region
      %343 = vsyncadd [#allocation3], 0
      %s345 = sshll.u32 [#allocation2], 4
      %s346 = int_to_ptr.vmem [resolvable:$true] %s345
      %s347 = sshll.u32 %s7, 4
      %s348 = int_to_ptr.hbm [resolvable:$true] %s347
      %350 = dma.vmem_to_hbm [thread:$0]  %s346, 32, %s348, [#allocation3]
    $region33: #{text_scnet_forward.7} parent=1 // pred_fallthru
      _
    // Predicated region
    $region34: #{text_scnet_forward.7} parent=1 // pred_check
      _
    $region35: #{text_scnet_forward.7} parent=1 // pred_check_branch
      %352 = sbr.rel (0) target = $region37
    $region36: #{text_scnet_forward.7} parent=1 // pred_region
      %354 = vsyncadd [#allocation5], 0
      %s356 = sshll.u32 [#allocation4], 4
      %s357 = int_to_ptr.vmem [resolvable:$true] %s356
      %s358 = sshll.u32 %s8, 4
      %s359 = int_to_ptr.hbm [resolvable:$true] %s358
      %361 = dma.vmem_to_hbm [thread:$0]  %s357, 32, %s359, [#allocation5]
    $region37: #{text_scnet_forward.7} parent=1 // pred_fallthru
      _
    // Predicated region
    $region38: #{text_scnet_forward.7} parent=1 // pred_check
      _
    $region39: #{text_scnet_forward.7} parent=1 // pred_check_branch
      %363 = sbr.rel (0) target = $region41
    $region40: #{text_scnet_forward.7} parent=1 // pred_region
      _
    $region41: #{text_scnet_forward.7} parent=1 // pred_fallthru
      _
    // Predicated region
    $region42: #{text_scnet_forward.7} parent=1 // pred_check
      _
    $region43: #{text_scnet_forward.7} parent=1 // pred_check_branch
      %365 = sbr.rel (0) target = $region45
    $region44: #{text_scnet_forward.7} parent=1 // pred_region
      %367 = dma.done [#allocation3], 32
    $region45: #{text_scnet_forward.7} parent=1 // pred_fallthru
      _
    // Predicated region
    $region46: #{text_scnet_forward.7} parent=1 // pred_check
      _
    $region47: #{text_scnet_forward.7} parent=1 // pred_check_branch
      %369 = sbr.rel (0) target = $region49
    $region48: #{text_scnet_forward.7} parent=1 // pred_region
      %371 = dma.done [#allocation5], 32
    $region49: #{text_scnet_forward.7} parent=1 // pred_fallthru
      _
    // Predicated region
    $region50: #{text_scnet_forward.7} parent=1 // pred_check
      _
    $region51: #{text_scnet_forward.7} parent=1 // pred_check_branch
      %373 = sbr.rel (0) target = $region53
    $region52: #{text_scnet_forward.7} parent=1 // pred_region
      _
    $region53: #{text_scnet_forward.7} parent=1 // pred_fallthru
      _
    %374 = vsyncpa [#allocation3], 1
    %375 = vsyncpa [#allocation5], 1

// kernel: text_scnet_forward.6
$region0: #{text_scnet_forward.6}
  #allocation0 [shape = 'u32[]', space=smem, size = 0x4, offset = 0x4, fixed_abs, tag = 'smem constant byte address 0x4 - core index']
  #allocation1 [shape = 'u32[72,128]{1,0:T(1,128)}', space=vmem, size = 0x9000, scoped, tag = 'internal scratch']
  #allocation2 [shape = 'f32[8,32]{1,0:T(8,128)}', space=vmem, size = 0x1000, scoped, tag = 'scratch operand']
  %s0 = inlined_call_operand.vmem [shape: f32[2,8,32], index: 0, kind: input, shape index: {}]
  %s1 = inlined_call_operand.vmem [shape: f32[2,1,8], index: 1, kind: input, shape index: {}]
  %s2 = inlined_call_operand.vmem [shape: f32[1,32], index: 2, kind: input, shape index: {}]
  %s3 = inlined_call_operand.vmem [shape: f32[1,32], index: 3, kind: input, shape index: {}]
  %s4 = inlined_call_operand.vmem [shape: bf16[2,32,96], index: 4, kind: input, shape index: {}]
  %s5 = inlined_call_operand.vmem [shape: f32[2,1,96], index: 5, kind: input, shape index: {}]
  %s6 = inlined_call_operand.vmem [shape: bf16[2,32,32], index: 6, kind: input, shape index: {}]
  %s7 = inlined_call_operand.vmem [shape: f32[2,1,32], index: 7, kind: input, shape index: {}]
  %s8 = inlined_call_operand.vmem [shape: f32[2,1,32], index: 8, kind: input, shape index: {}]
  %s9 = inlined_call_operand.vmem [shape: f32[2,1,32], index: 9, kind: input, shape index: {}]
  %s10 = inlined_call_operand.vmem [shape: bf16[2,32,64], index: 10, kind: input, shape index: {}]
  %s11 = inlined_call_operand.vmem [shape: f32[2,1,64], index: 11, kind: input, shape index: {}]
  %s12 = inlined_call_operand.vmem [shape: bf16[2,64,32], index: 12, kind: input, shape index: {}]
  %s13 = inlined_call_operand.vmem [shape: f32[2,1,32], index: 13, kind: input, shape index: {}]
  %s14 = inlined_call_operand.vmem [shape: f32[2,1,32], index: 14, kind: input, shape index: {}]
  %s15 = inlined_call_operand.vmem [shape: f32[2,1,32], index: 15, kind: input, shape index: {}]
  %s16 = inlined_call_operand.vmem [shape: f32[2,8,32], index: 16, kind: output, shape index: {}]
  %s17 = sld [smem:[#allocation0]]
  $region105: #{text_scnet_forward.6} parent=0
    _
  %s19 = ssub.s32 1, %s17
  %s20 = scalar_select 0, %s19, %s17
  loop: start=0, step=1, limit=6
  $region2: #{text_scnet_forward.6} parent=0 // loop_pre_header
    _
  $region3: #{text_scnet_forward.6} parent=0 // loop_header
    %s22 = sphi 0, %s26
    %p23 = scmp.ge.s32.totalorder %s22, 6
    %s29 = sphi 0, %s41
    %s30 = sphi 0, %s37
    %s31 = sphi 0, %s29
    %s32 = sphi 0, %s30
    %s33 = sphi 0, %s31
    %s34 = sphi 0, %s32
    %s44 = sphi 0, %s46
    %s47 = sphi 0, %s44
    %s48 = sphi 0, %s47
    %s64 = sphi 0, %s48
    %s70 = sphi 0, %s72
    %s73 = sphi 0, %s70
    %s74 = sphi 0, %s73
    %s90 = sphi 0, %s74
    %s94 = sphi 0, %s94
    %s96 = sphi 0, %s94
    %s97 = sphi 0, %s96
    %s111 = sphi 0, %s97
    %s115 = sphi 0, %s115
    %s117 = sphi 0, %s115
    %s118 = sphi 0, %s117
    %s132 = sphi 0, %s118
    %s138 = sphi 0, %s140
    %s141 = sphi 0, %s138
    %s142 = sphi 0, %s141
    %s158 = sphi 0, %s142
    %s164 = sphi 0, %s166
    %s167 = sphi 0, %s164
    %s168 = sphi 0, %s167
    %s184 = sphi 0, %s168
    %s190 = sphi 0, %s192
    %s193 = sphi 0, %s190
    %s194 = sphi 0, %s193
    %s210 = sphi 0, %s194
    %s216 = sphi 0, %s218
    %s219 = sphi 0, %s216
    %s220 = sphi 0, %s219
    %s236 = sphi 0, %s220
    %s242 = sphi 0, %s244
    %s245 = sphi 0, %s242
    %s246 = sphi 0, %s245
    %s262 = sphi 0, %s246
    %s268 = sphi 0, %s270
    %s271 = sphi 0, %s268
    %s272 = sphi 0, %s271
    %s288 = sphi 0, %s272
    %s294 = sphi 0, %s296
    %s297 = sphi 0, %s294
    %s298 = sphi 0, %s297
    %s314 = sphi 0, %s298
    %s320 = sphi 0, %s322
    %s323 = sphi 0, %s320
    %s324 = sphi 0, %s323
    %s340 = sphi 0, %s324
    %s346 = sphi 0, %s348
    %s349 = sphi 0, %s346
    %s350 = sphi 0, %s349
    %s366 = sphi 0, %s350
    %s372 = sphi 0, %s374
    %s375 = sphi 0, %s372
    %s376 = sphi 0, %s375
    %s392 = sphi 0, %s376
    %s398 = sphi 0, %s400
    %s401 = sphi 0, %s398
    %s402 = sphi 0, %s401
    %s418 = sphi 0, %s402
    %s424 = sphi 0, %s426
    %s427 = sphi 0, %s424
    %s428 = sphi 0, %s427
    %s444 = sphi 0, %s428
    %s450 = sphi 0, %s452
    %s453 = sphi 0, %s450
    %s454 = sphi 0, %s453
    %s470 = sphi 0, %s454
  $region4: #{text_scnet_forward.6} parent=0 // loop_header_branch
    %25 = sbr.rel (%p23) target = $region8
  $region5: #{text_scnet_forward.6} parent=0 // loop_body
    %s27 = ssub.s32 %s22, 1
    %s28 = ssub.s32 %s22, 2
    %s35 = sadd.s32 1, %s30
    %p36 = scmp.ge.s32.totalorder %s35, 2
    %s37 = scalar_select %p36, 0, %s35
    %s38 = sadd.s32 1, %s29
    %s39 = scalar_select %p36, %s38, %s29
    %p40 = scmp.ge.s32.totalorder %s39, 2
    %s41 = scalar_select %p40, 0, %s39
    %s42 = ssub.s32 %s29, %s41
    %p43 = scmp.eq.s32.totalorder %s42, 0
    %s45 = sadd.s32 %s44, 1
    %s46 = scalar_select %p43, %s44, %s45
    %p49 = pneg %p43
    %p50 = scmp.eq.s32.totalorder %s22, 3
    %p51 = por %p49, %p50
    %p52 = scmp.ne.s32.totalorder %s44, %s47
    %p53 = scmp.eq.s32.totalorder %s22, 0
    %p54 = por %p52, %p53
    %p55 = scmp.ne.s32.totalorder %s44, %s47
    %p56 = scmp.eq.s32.totalorder %s27, 3
    %p57 = por %p55, %p56
    %p58 = scmp.ne.s32.totalorder %s47, %s48
    %p59 = scmp.eq.s32.totalorder %s27, 0
    %p60 = por %p58, %p59
    %p61 = scmp.ne.s32.totalorder %s47, %s48
    %p62 = scmp.eq.s32.totalorder %s28, 3
    %p63 = por %p61, %p62
    %p65 = scmp.ne.s32.totalorder %s48, %s64
    %p66 = scmp.eq.s32.totalorder %s28, 0
    %p67 = por %p65, %p66
    %s68 = ssub.s32 %s29, %s41
    %p69 = scmp.eq.s32.totalorder %s68, 0
    %s71 = sadd.s32 %s70, 1
    %s72 = scalar_select %p69, %s70, %s71
    %p75 = pneg %p69
    %p76 = scmp.eq.s32.totalorder %s22, 3
    %p77 = por %p75, %p76
    %p78 = scmp.ne.s32.totalorder %s70, %s73
    %p79 = scmp.eq.s32.totalorder %s22, 0
    %p80 = por %p78, %p79
    %p81 = scmp.ne.s32.totalorder %s70, %s73
    %p82 = scmp.eq.s32.totalorder %s27, 3
    %p83 = por %p81, %p82
    %p84 = scmp.ne.s32.totalorder %s73, %s74
    %p85 = scmp.eq.s32.totalorder %s27, 0
    %p86 = por %p84, %p85
    %p87 = scmp.ne.s32.totalorder %s73, %s74
    %p88 = scmp.eq.s32.totalorder %s28, 3
    %p89 = por %p87, %p88
    %p91 = scmp.ne.s32.totalorder %s74, %s90
    %p92 = scmp.eq.s32.totalorder %s28, 0
    %p93 = por %p91, %p92
    %s95 = sadd.s32 %s94, 1
    %p98 = scmp.eq.s32.totalorder %s22, 3
    %p99 = scmp.ne.s32.totalorder %s94, %s96
    %p100 = scmp.eq.s32.totalorder %s22, 0
    %p101 = por %p99, %p100
    %p102 = scmp.ne.s32.totalorder %s94, %s96
    %p103 = scmp.eq.s32.totalorder %s27, 3
    %p104 = por %p102, %p103
    %p105 = scmp.ne.s32.totalorder %s96, %s97
    %p106 = scmp.eq.s32.totalorder %s27, 0
    %p107 = por %p105, %p106
    %p108 = scmp.ne.s32.totalorder %s96, %s97
    %p109 = scmp.eq.s32.totalorder %s28, 3
    %p110 = por %p108, %p109
    %p112 = scmp.ne.s32.totalorder %s97, %s111
    %p113 = scmp.eq.s32.totalorder %s28, 0
    %p114 = por %p112, %p113
    %s116 = sadd.s32 %s115, 1
    %p119 = scmp.eq.s32.totalorder %s22, 3
    %p120 = scmp.ne.s32.totalorder %s115, %s117
    %p121 = scmp.eq.s32.totalorder %s22, 0
    %p122 = por %p120, %p121
    %p123 = scmp.ne.s32.totalorder %s115, %s117
    %p124 = scmp.eq.s32.totalorder %s27, 3
    %p125 = por %p123, %p124
    %p126 = scmp.ne.s32.totalorder %s117, %s118
    %p127 = scmp.eq.s32.totalorder %s27, 0
    %p128 = por %p126, %p127
    %p129 = scmp.ne.s32.totalorder %s117, %s118
    %p130 = scmp.eq.s32.totalorder %s28, 3
    %p131 = por %p129, %p130
    %p133 = scmp.ne.s32.totalorder %s118, %s132
    %p134 = scmp.eq.s32.totalorder %s28, 0
    %p135 = por %p133, %p134
    %s136 = ssub.s32 %s30, %s37
    %p137 = scmp.eq.s32.totalorder %s136, 0
    %s139 = sadd.s32 %s138, 1
    %s140 = scalar_select %p137, %s138, %s139
    %p143 = pneg %p137
    %p144 = scmp.eq.s32.totalorder %s22, 3
    %p145 = por %p143, %p144
    %p146 = scmp.ne.s32.totalorder %s138, %s141
    %p147 = scmp.eq.s32.totalorder %s22, 0
    %p148 = por %p146, %p147
    %p149 = scmp.ne.s32.totalorder %s138, %s141
    %p150 = scmp.eq.s32.totalorder %s27, 3
    %p151 = por %p149, %p150
    %p152 = scmp.ne.s32.totalorder %s141, %s142
    %p153 = scmp.eq.s32.totalorder %s27, 0
    %p154 = por %p152, %p153
    %p155 = scmp.ne.s32.totalorder %s141, %s142
    %p156 = scmp.eq.s32.totalorder %s28, 3
    %p157 = por %p155, %p156
    %p159 = scmp.ne.s32.totalorder %s142, %s158
    %p160 = scmp.eq.s32.totalorder %s28, 0
    %p161 = por %p159, %p160
    %s162 = ssub.s32 %s30, %s37
    %p163 = scmp.eq.s32.totalorder %s162, 0
    %s165 = sadd.s32 %s164, 1
    %s166 = scalar_select %p163, %s164, %s165
    %p169 = pneg %p163
    %p170 = scmp.eq.s32.totalorder %s22, 3
    %p171 = por %p169, %p170
    %p172 = scmp.ne.s32.totalorder %s164, %s167
    %p173 = scmp.eq.s32.totalorder %s22, 0
    %p174 = por %p172, %p173
    %p175 = scmp.ne.s32.totalorder %s164, %s167
    %p176 = scmp.eq.s32.totalorder %s27, 3
    %p177 = por %p175, %p176
    %p178 = scmp.ne.s32.totalorder %s167, %s168
    %p179 = scmp.eq.s32.totalorder %s27, 0
    %p180 = por %p178, %p179
    %p181 = scmp.ne.s32.totalorder %s167, %s168
    %p182 = scmp.eq.s32.totalorder %s28, 3
    %p183 = por %p181, %p182
    %p185 = scmp.ne.s32.totalorder %s168, %s184
    %p186 = scmp.eq.s32.totalorder %s28, 0
    %p187 = por %p185, %p186
    %s188 = ssub.s32 %s30, %s37
    %p189 = scmp.eq.s32.totalorder %s188, 0
    %s191 = sadd.s32 %s190, 1
    %s192 = scalar_select %p189, %s190, %s191
    %p195 = pneg %p189
    %p196 = scmp.eq.s32.totalorder %s22, 3
    %p197 = por %p195, %p196
    %p198 = scmp.ne.s32.totalorder %s190, %s193
    %p199 = scmp.eq.s32.totalorder %s22, 0
    %p200 = por %p198, %p199
    %p201 = scmp.ne.s32.totalorder %s190, %s193
    %p202 = scmp.eq.s32.totalorder %s27, 3
    %p203 = por %p201, %p202
    %p204 = scmp.ne.s32.totalorder %s193, %s194
    %p205 = scmp.eq.s32.totalorder %s27, 0
    %p206 = por %p204, %p205
    %p207 = scmp.ne.s32.totalorder %s193, %s194
    %p208 = scmp.eq.s32.totalorder %s28, 3
    %p209 = por %p207, %p208
    %p211 = scmp.ne.s32.totalorder %s194, %s210
    %p212 = scmp.eq.s32.totalorder %s28, 0
    %p213 = por %p211, %p212
    %s214 = ssub.s32 %s30, %s37
    %p215 = scmp.eq.s32.totalorder %s214, 0
    %s217 = sadd.s32 %s216, 1
    %s218 = scalar_select %p215, %s216, %s217
    %p221 = pneg %p215
    %p222 = scmp.eq.s32.totalorder %s22, 3
    %p223 = por %p221, %p222
    %p224 = scmp.ne.s32.totalorder %s216, %s219
    %p225 = scmp.eq.s32.totalorder %s22, 0
    %p226 = por %p224, %p225
    %p227 = scmp.ne.s32.totalorder %s216, %s219
    %p228 = scmp.eq.s32.totalorder %s27, 3
    %p229 = por %p227, %p228
    %p230 = scmp.ne.s32.totalorder %s219, %s220
    %p231 = scmp.eq.s32.totalorder %s27, 0
    %p232 = por %p230, %p231
    %p233 = scmp.ne.s32.totalorder %s219, %s220
    %p234 = scmp.eq.s32.totalorder %s28, 3
    %p235 = por %p233, %p234
    %p237 = scmp.ne.s32.totalorder %s220, %s236
    %p238 = scmp.eq.s32.totalorder %s28, 0
    %p239 = por %p237, %p238
    %s240 = ssub.s32 %s30, %s37
    %p241 = scmp.eq.s32.totalorder %s240, 0
    %s243 = sadd.s32 %s242, 1
    %s244 = scalar_select %p241, %s242, %s243
    %p247 = pneg %p241
    %p248 = scmp.eq.s32.totalorder %s22, 3
    %p249 = por %p247, %p248
    %p250 = scmp.ne.s32.totalorder %s242, %s245
    %p251 = scmp.eq.s32.totalorder %s22, 0
    %p252 = por %p250, %p251
    %p253 = scmp.ne.s32.totalorder %s242, %s245
    %p254 = scmp.eq.s32.totalorder %s27, 3
    %p255 = por %p253, %p254
    %p256 = scmp.ne.s32.totalorder %s245, %s246
    %p257 = scmp.eq.s32.totalorder %s27, 0
    %p258 = por %p256, %p257
    %p259 = scmp.ne.s32.totalorder %s245, %s246
    %p260 = scmp.eq.s32.totalorder %s28, 3
    %p261 = por %p259, %p260
    %p263 = scmp.ne.s32.totalorder %s246, %s262
    %p264 = scmp.eq.s32.totalorder %s28, 0
    %p265 = por %p263, %p264
    %s266 = ssub.s32 %s30, %s37
    %p267 = scmp.eq.s32.totalorder %s266, 0
    %s269 = sadd.s32 %s268, 1
    %s270 = scalar_select %p267, %s268, %s269
    %p273 = pneg %p267
    %p274 = scmp.eq.s32.totalorder %s22, 3
    %p275 = por %p273, %p274
    %p276 = scmp.ne.s32.totalorder %s268, %s271
    %p277 = scmp.eq.s32.totalorder %s22, 0
    %p278 = por %p276, %p277
    %p279 = scmp.ne.s32.totalorder %s268, %s271
    %p280 = scmp.eq.s32.totalorder %s27, 3
    %p281 = por %p279, %p280
    %p282 = scmp.ne.s32.totalorder %s271, %s272
    %p283 = scmp.eq.s32.totalorder %s27, 0
    %p284 = por %p282, %p283
    %p285 = scmp.ne.s32.totalorder %s271, %s272
    %p286 = scmp.eq.s32.totalorder %s28, 3
    %p287 = por %p285, %p286
    %p289 = scmp.ne.s32.totalorder %s272, %s288
    %p290 = scmp.eq.s32.totalorder %s28, 0
    %p291 = por %p289, %p290
    %s292 = ssub.s32 %s30, %s37
    %p293 = scmp.eq.s32.totalorder %s292, 0
    %s295 = sadd.s32 %s294, 1
    %s296 = scalar_select %p293, %s294, %s295
    %p299 = pneg %p293
    %p300 = scmp.eq.s32.totalorder %s22, 3
    %p301 = por %p299, %p300
    %p302 = scmp.ne.s32.totalorder %s294, %s297
    %p303 = scmp.eq.s32.totalorder %s22, 0
    %p304 = por %p302, %p303
    %p305 = scmp.ne.s32.totalorder %s294, %s297
    %p306 = scmp.eq.s32.totalorder %s27, 3
    %p307 = por %p305, %p306
    %p308 = scmp.ne.s32.totalorder %s297, %s298
    %p309 = scmp.eq.s32.totalorder %s27, 0
    %p310 = por %p308, %p309
    %p311 = scmp.ne.s32.totalorder %s297, %s298
    %p312 = scmp.eq.s32.totalorder %s28, 3
    %p313 = por %p311, %p312
    %p315 = scmp.ne.s32.totalorder %s298, %s314
    %p316 = scmp.eq.s32.totalorder %s28, 0
    %p317 = por %p315, %p316
    %s318 = ssub.s32 %s30, %s37
    %p319 = scmp.eq.s32.totalorder %s318, 0
    %s321 = sadd.s32 %s320, 1
    %s322 = scalar_select %p319, %s320, %s321
    %p325 = pneg %p319
    %p326 = scmp.eq.s32.totalorder %s22, 3
    %p327 = por %p325, %p326
    %p328 = scmp.ne.s32.totalorder %s320, %s323
    %p329 = scmp.eq.s32.totalorder %s22, 0
    %p330 = por %p328, %p329
    %p331 = scmp.ne.s32.totalorder %s320, %s323
    %p332 = scmp.eq.s32.totalorder %s27, 3
    %p333 = por %p331, %p332
    %p334 = scmp.ne.s32.totalorder %s323, %s324
    %p335 = scmp.eq.s32.totalorder %s27, 0
    %p336 = por %p334, %p335
    %p337 = scmp.ne.s32.totalorder %s323, %s324
    %p338 = scmp.eq.s32.totalorder %s28, 3
    %p339 = por %p337, %p338
    %p341 = scmp.ne.s32.totalorder %s324, %s340
    %p342 = scmp.eq.s32.totalorder %s28, 0
    %p343 = por %p341, %p342
    %s344 = ssub.s32 %s30, %s37
    %p345 = scmp.eq.s32.totalorder %s344, 0
    %s347 = sadd.s32 %s346, 1
    %s348 = scalar_select %p345, %s346, %s347
    %p351 = pneg %p345
    %p352 = scmp.eq.s32.totalorder %s22, 3
    %p353 = por %p351, %p352
    %p354 = scmp.ne.s32.totalorder %s346, %s349
    %p355 = scmp.eq.s32.totalorder %s22, 0
    %p356 = por %p354, %p355
    %p357 = scmp.ne.s32.totalorder %s346, %s349
    %p358 = scmp.eq.s32.totalorder %s27, 3
    %p359 = por %p357, %p358
    %p360 = scmp.ne.s32.totalorder %s349, %s350
    %p361 = scmp.eq.s32.totalorder %s27, 0
    %p362 = por %p360, %p361
    %p363 = scmp.ne.s32.totalorder %s349, %s350
    %p364 = scmp.eq.s32.totalorder %s28, 3
    %p365 = por %p363, %p364
    %p367 = scmp.ne.s32.totalorder %s350, %s366
    %p368 = scmp.eq.s32.totalorder %s28, 0
    %p369 = por %p367, %p368
    %s370 = ssub.s32 %s30, %s37
    %p371 = scmp.eq.s32.totalorder %s370, 0
    %s373 = sadd.s32 %s372, 1
    %s374 = scalar_select %p371, %s372, %s373
    %p377 = pneg %p371
    %p378 = scmp.eq.s32.totalorder %s22, 3
    %p379 = por %p377, %p378
    %p380 = scmp.ne.s32.totalorder %s372, %s375
    %p381 = scmp.eq.s32.totalorder %s22, 0
    %p382 = por %p380, %p381
    %p383 = scmp.ne.s32.totalorder %s372, %s375
    %p384 = scmp.eq.s32.totalorder %s27, 3
    %p385 = por %p383, %p384
    %p386 = scmp.ne.s32.totalorder %s375, %s376
    %p387 = scmp.eq.s32.totalorder %s27, 0
    %p388 = por %p386, %p387
    %p389 = scmp.ne.s32.totalorder %s375, %s376
    %p390 = scmp.eq.s32.totalorder %s28, 3
    %p391 = por %p389, %p390
    %p393 = scmp.ne.s32.totalorder %s376, %s392
    %p394 = scmp.eq.s32.totalorder %s28, 0
    %p395 = por %p393, %p394
    %s396 = ssub.s32 %s30, %s37
    %p397 = scmp.eq.s32.totalorder %s396, 0
    %s399 = sadd.s32 %s398, 1
    %s400 = scalar_select %p397, %s398, %s399
    %p403 = pneg %p397
    %p404 = scmp.eq.s32.totalorder %s22, 3
    %p405 = por %p403, %p404
    %p406 = scmp.ne.s32.totalorder %s398, %s401
    %p407 = scmp.eq.s32.totalorder %s22, 0
    %p408 = por %p406, %p407
    %p409 = scmp.ne.s32.totalorder %s398, %s401
    %p410 = scmp.eq.s32.totalorder %s27, 3
    %p411 = por %p409, %p410
    %p412 = scmp.ne.s32.totalorder %s401, %s402
    %p413 = scmp.eq.s32.totalorder %s27, 0
    %p414 = por %p412, %p413
    %p415 = scmp.ne.s32.totalorder %s401, %s402
    %p416 = scmp.eq.s32.totalorder %s28, 3
    %p417 = por %p415, %p416
    %p419 = scmp.ne.s32.totalorder %s402, %s418
    %p420 = scmp.eq.s32.totalorder %s28, 0
    %p421 = por %p419, %p420
    %s422 = ssub.s32 %s30, %s37
    %p423 = scmp.eq.s32.totalorder %s422, 0
    %s425 = sadd.s32 %s424, 1
    %s426 = scalar_select %p423, %s424, %s425
    %p429 = pneg %p423
    %p430 = scmp.eq.s32.totalorder %s22, 3
    %p431 = por %p429, %p430
    %p432 = scmp.ne.s32.totalorder %s424, %s427
    %p433 = scmp.eq.s32.totalorder %s22, 0
    %p434 = por %p432, %p433
    %p435 = scmp.ne.s32.totalorder %s424, %s427
    %p436 = scmp.eq.s32.totalorder %s27, 3
    %p437 = por %p435, %p436
    %p438 = scmp.ne.s32.totalorder %s427, %s428
    %p439 = scmp.eq.s32.totalorder %s27, 0
    %p440 = por %p438, %p439
    %p441 = scmp.ne.s32.totalorder %s427, %s428
    %p442 = scmp.eq.s32.totalorder %s28, 3
    %p443 = por %p441, %p442
    %p445 = scmp.ne.s32.totalorder %s428, %s444
    %p446 = scmp.eq.s32.totalorder %s28, 0
    %p447 = por %p445, %p446
    %s448 = ssub.s32 %s29, %s41
    %p449 = scmp.eq.s32.totalorder %s448, 0
    %s451 = sadd.s32 %s450, 1
    %s452 = scalar_select %p449, %s450, %s451
    %p455 = pneg %p449
    %p456 = scmp.eq.s32.totalorder %s22, 3
    %p457 = por %p455, %p456
    %p458 = scmp.ne.s32.totalorder %s450, %s453
    %p459 = scmp.eq.s32.totalorder %s22, 0
    %p460 = por %p458, %p459
    %p461 = scmp.ne.s32.totalorder %s450, %s453
    %p462 = scmp.eq.s32.totalorder %s27, 3
    %p463 = por %p461, %p462
    %p464 = scmp.ne.s32.totalorder %s453, %s454
    %p465 = scmp.eq.s32.totalorder %s27, 0
    %p466 = por %p464, %p465
    %p467 = scmp.ne.s32.totalorder %s453, %s454
    %p468 = scmp.eq.s32.totalorder %s28, 3
    %p469 = por %p467, %p468
    %p471 = scmp.ne.s32.totalorder %s454, %s470
    %p472 = scmp.eq.s32.totalorder %s28, 0
    %p473 = por %p471, %p472
    %p474 = scmp.le.s32.totalorder 1, %s22
    %p475 = scmp.lt.s32.totalorder %s22, 5
    %p476 = pnand %p474, %p475
    %p477 = pneg %p476
    // Predicated region
    $region9: #{text_scnet_forward.6} parent=5 // pred_check
      _
    $region10: #{text_scnet_forward.6} parent=5 // pred_check_branch
      %479 = sbr.rel (%p476) target = $region12
    $region11: #{text_scnet_forward.6} parent=5 // pred_region
      %s480 = ssub.s32 %s22, 1
      // Predicated region
      $region13: #{text_scnet_forward.6} parent=11 // pred_check
        %p481 = pneg %p107
      $region14: #{text_scnet_forward.6} parent=11 // pred_check_branch
        %483 = sbr.rel (%p481) target = $region16
      $region15: #{text_scnet_forward.6} parent=11 // pred_region
        _
      $region16: #{text_scnet_forward.6} parent=11 // pred_fallthru
        _
      // Predicated region
      $region17: #{text_scnet_forward.6} parent=11 // pred_check
        %p484 = pneg %p128
      $region18: #{text_scnet_forward.6} parent=11 // pred_check_branch
        %486 = sbr.rel (%p484) target = $region20
      $region19: #{text_scnet_forward.6} parent=11 // pred_region
        _
      $region20: #{text_scnet_forward.6} parent=11 // pred_fallthru
        _
    $region12: #{text_scnet_forward.6} parent=5 // pred_fallthru
      _
    %p487 = scmp.lt.s32.totalorder %s22, 4
    // Predicated region
    $region21: #{text_scnet_forward.6} parent=5 // pred_check
      %p488 = pneg %p487
    $region22: #{text_scnet_forward.6} parent=5 // pred_check_branch
      %490 = sbr.rel (%p488) target = $region24
    $region23: #{text_scnet_forward.6} parent=5 // pred_region
      // Predicated region
      $region25: #{text_scnet_forward.6} parent=23 // pred_check
        %p491 = pneg %p54
      $region26: #{text_scnet_forward.6} parent=23 // pred_check_branch
        %493 = sbr.rel (%p491) target = $region28
      $region27: #{text_scnet_forward.6} parent=23 // pred_region
        %p494 = scmp.lt.s32.totalorder %s29, 1
        %s495 = scalar_select %p494, %s29, 1
        %s496 = smul.addr %s495, 8
        %s497 = scalar_lea.vmem %s0, %s496
      $region28: #{text_scnet_forward.6} parent=23 // pred_fallthru
        _
      // Predicated region
      $region29: #{text_scnet_forward.6} parent=23 // pred_check
        %p498 = pneg %p80
      $region30: #{text_scnet_forward.6} parent=23 // pred_check_branch
        %500 = sbr.rel (%p498) target = $region32
      $region31: #{text_scnet_forward.6} parent=23 // pred_region
        %p501 = scmp.lt.s32.totalorder %s29, 1
        %s502 = scalar_select %p501, %s29, 1
        %s503 = scalar_lea.vmem %s1, %s502
      $region32: #{text_scnet_forward.6} parent=23 // pred_fallthru
        _
      // Predicated region
      $region33: #{text_scnet_forward.6} parent=23 // pred_check
        %p504 = pneg %p148
      $region34: #{text_scnet_forward.6} parent=23 // pred_check_branch
        %506 = sbr.rel (%p504) target = $region36
      $region35: #{text_scnet_forward.6} parent=23 // pred_region
        %p507 = scmp.lt.s32.totalorder %s30, 1
        %s508 = scalar_select %p507, %s30, 1
        %s509 = smul.addr %s508, 4
        %s510 = smul.addr %s509, 4
        %s511 = scalar_lea.vmem %s4, %s510
      $region36: #{text_scnet_forward.6} parent=23 // pred_fallthru
        _
      // Predicated region
      $region37: #{text_scnet_forward.6} parent=23 // pred_check
        %p512 = pneg %p174
      $region38: #{text_scnet_forward.6} parent=23 // pred_check_branch
        %514 = sbr.rel (%p512) target = $region40
      $region39: #{text_scnet_forward.6} parent=23 // pred_region
        %p515 = scmp.lt.s32.totalorder %s30, 1
        %s516 = scalar_select %p515, %s30, 1
        %s517 = scalar_lea.vmem %s5, %s516
      $region40: #{text_scnet_forward.6} parent=23 // pred_fallthru
        _
      // Predicated region
      $region41: #{text_scnet_forward.6} parent=23 // pred_check
        %p518 = pneg %p200
      $region42: #{text_scnet_forward.6} parent=23 // pred_check_branch
        %520 = sbr.rel (%p518) target = $region44
      $region43: #{text_scnet_forward.6} parent=23 // pred_region
        %p521 = scmp.lt.s32.totalorder %s30, 1
        %s522 = scalar_select %p521, %s30, 1
        %s523 = smul.addr %s522, 4
        %s524 = smul.addr %s523, 4
        %s525 = scalar_lea.vmem %s6, %s524
      $region44: #{text_scnet_forward.6} parent=23 // pred_fallthru
        _
      // Predicated region
      $region45: #{text_scnet_forward.6} parent=23 // pred_check
        %p526 = pneg %p226
      $region46: #{text_scnet_forward.6} parent=23 // pred_check_branch
        %528 = sbr.rel (%p526) target = $region48
      $region47: #{text_scnet_forward.6} parent=23 // pred_region
        %p529 = scmp.lt.s32.totalorder %s30, 1
        %s530 = scalar_select %p529, %s30, 1
        %s531 = scalar_lea.vmem %s7, %s530
      $region48: #{text_scnet_forward.6} parent=23 // pred_fallthru
        _
      // Predicated region
      $region49: #{text_scnet_forward.6} parent=23 // pred_check
        %p532 = pneg %p252
      $region50: #{text_scnet_forward.6} parent=23 // pred_check_branch
        %534 = sbr.rel (%p532) target = $region52
      $region51: #{text_scnet_forward.6} parent=23 // pred_region
        %p535 = scmp.lt.s32.totalorder %s30, 1
        %s536 = scalar_select %p535, %s30, 1
        %s537 = scalar_lea.vmem %s8, %s536
      $region52: #{text_scnet_forward.6} parent=23 // pred_fallthru
        _
      // Predicated region
      $region53: #{text_scnet_forward.6} parent=23 // pred_check
        %p538 = pneg %p278
      $region54: #{text_scnet_forward.6} parent=23 // pred_check_branch
        %540 = sbr.rel (%p538) target = $region56
      $region55: #{text_scnet_forward.6} parent=23 // pred_region
        %p541 = scmp.lt.s32.totalorder %s30, 1
        %s542 = scalar_select %p541, %s30, 1
        %s543 = scalar_lea.vmem %s9, %s542
      $region56: #{text_scnet_forward.6} parent=23 // pred_fallthru
        _
      // Predicated region
      $region57: #{text_scnet_forward.6} parent=23 // pred_check
        %p544 = pneg %p304
      $region58: #{text_scnet_forward.6} parent=23 // pred_check_branch
        %546 = sbr.rel (%p544) target = $region60
      $region59: #{text_scnet_forward.6} parent=23 // pred_region
        %p547 = scmp.lt.s32.totalorder %s30, 1
        %s548 = scalar_select %p547, %s30, 1
        %s549 = smul.addr %s548, 4
        %s550 = smul.addr %s549, 4
        %s551 = scalar_lea.vmem %s10, %s550
      $region60: #{text_scnet_forward.6} parent=23 // pred_fallthru
        _
      // Predicated region
      $region61: #{text_scnet_forward.6} parent=23 // pred_check
        %p552 = pneg %p330
      $region62: #{text_scnet_forward.6} parent=23 // pred_check_branch
        %554 = sbr.rel (%p552) target = $region64
      $region63: #{text_scnet_forward.6} parent=23 // pred_region
        %p555 = scmp.lt.s32.totalorder %s30, 1
        %s556 = scalar_select %p555, %s30, 1
        %s557 = scalar_lea.vmem %s11, %s556
      $region64: #{text_scnet_forward.6} parent=23 // pred_fallthru
        _
      // Predicated region
      $region65: #{text_scnet_forward.6} parent=23 // pred_check
        %p558 = pneg %p356
      $region66: #{text_scnet_forward.6} parent=23 // pred_check_branch
        %560 = sbr.rel (%p558) target = $region68
      $region67: #{text_scnet_forward.6} parent=23 // pred_region
        %p561 = scmp.lt.s32.totalorder %s30, 1
        %s562 = scalar_select %p561, %s30, 1
        %s563 = smul.addr %s562, 8
        %s564 = smul.addr %s563, 4
        %s565 = scalar_lea.vmem %s12, %s564
      $region68: #{text_scnet_forward.6} parent=23 // pred_fallthru
        _
      // Predicated region
      $region69: #{text_scnet_forward.6} parent=23 // pred_check
        %p566 = pneg %p382
      $region70: #{text_scnet_forward.6} parent=23 // pred_check_branch
        %568 = sbr.rel (%p566) target = $region72
      $region71: #{text_scnet_forward.6} parent=23 // pred_region
        %p569 = scmp.lt.s32.totalorder %s30, 1
        %s570 = scalar_select %p569, %s30, 1
        %s571 = scalar_lea.vmem %s13, %s570
      $region72: #{text_scnet_forward.6} parent=23 // pred_fallthru
        _
      // Predicated region
      $region73: #{text_scnet_forward.6} parent=23 // pred_check
        %p572 = pneg %p408
      $region74: #{text_scnet_forward.6} parent=23 // pred_check_branch
        %574 = sbr.rel (%p572) target = $region76
      $region75: #{text_scnet_forward.6} parent=23 // pred_region
        %p575 = scmp.lt.s32.totalorder %s30, 1
        %s576 = scalar_select %p575, %s30, 1
        %s577 = scalar_lea.vmem %s14, %s576
      $region76: #{text_scnet_forward.6} parent=23 // pred_fallthru
        _
      // Predicated region
      $region77: #{text_scnet_forward.6} parent=23 // pred_check
        %p578 = pneg %p434
      $region78: #{text_scnet_forward.6} parent=23 // pred_check_branch
        %580 = sbr.rel (%p578) target = $region80
      $region79: #{text_scnet_forward.6} parent=23 // pred_region
        %p581 = scmp.lt.s32.totalorder %s30, 1
        %s582 = scalar_select %p581, %s30, 1
        %s583 = scalar_lea.vmem %s15, %s582
      $region80: #{text_scnet_forward.6} parent=23 // pred_fallthru
        _
    $region24: #{text_scnet_forward.6} parent=5 // pred_fallthru
      _
    %p584 = scmp.le.s32.totalorder 1, %s22
    %p585 = scmp.lt.s32.totalorder %s22, 5
    %p586 = pnand %p584, %p585
    %p587 = pneg %p586
    // Predicated region
    $region81: #{text_scnet_forward.6} parent=5 // pred_check
      _
    $region82: #{text_scnet_forward.6} parent=5 // pred_check_branch
      %589 = sbr.rel (%p586) target = $region84
    $region83: #{text_scnet_forward.6} parent=5 // pred_region
      %s590 = ssub.s32 %s22, 1
      %p591 = scmp.lt.s32.totalorder %s31, 1
      %s592 = scalar_select %p591, %s31, 1
      %s593 = smul.addr %s592, 8
      %s594 = scalar_lea.vmem %s0, %s593
      %p595 = pneg %p60
      %p596 = pneg %p57
      %p597 = scmp.lt.s32.totalorder %s31, 1
      %s598 = scalar_select %p597, %s31, 1
      %s599 = scalar_lea.vmem %s1, %s598
      %p600 = pneg %p86
      %p601 = pneg %p83
      %p602 = pneg %p107
      %p603 = pneg %p104
      %p604 = pneg %p128
      %p605 = pneg %p125
      %p606 = scmp.lt.s32.totalorder %s32, 1
      %s607 = scalar_select %p606, %s32, 1
      %s608 = smul.addr %s607, 4
      %s609 = smul.addr %s608, 4
      %s610 = scalar_lea.vmem %s4, %s609
      %p611 = pneg %p154
      %p612 = pneg %p151
      %p613 = scmp.lt.s32.totalorder %s32, 1
      %s614 = scalar_select %p613, %s32, 1
      %s615 = scalar_lea.vmem %s5, %s614
      %p616 = pneg %p180
      %p617 = pneg %p177
      %p618 = scmp.lt.s32.totalorder %s32, 1
      %s619 = scalar_select %p618, %s32, 1
      %s620 = smul.addr %s619, 4
      %s621 = smul.addr %s620, 4
      %s622 = scalar_lea.vmem %s6, %s621
      %p623 = pneg %p206
      %p624 = pneg %p203
      %p625 = scmp.lt.s32.totalorder %s32, 1
      %s626 = scalar_select %p625, %s32, 1
      %s627 = scalar_lea.vmem %s7, %s626
      %p628 = pneg %p232
      %p629 = pneg %p229
      %p630 = scmp.lt.s32.totalorder %s32, 1
      %s631 = scalar_select %p630, %s32, 1
      %s632 = scalar_lea.vmem %s8, %s631
      %p633 = pneg %p258
      %p634 = pneg %p255
      %p635 = scmp.lt.s32.totalorder %s32, 1
      %s636 = scalar_select %p635, %s32, 1
      %s637 = scalar_lea.vmem %s9, %s636
      %p638 = pneg %p284
      %p639 = pneg %p281
      %p640 = scmp.lt.s32.totalorder %s32, 1
      %s641 = scalar_select %p640, %s32, 1
      %s642 = smul.addr %s641, 4
      %s643 = smul.addr %s642, 4
      %s644 = scalar_lea.vmem %s10, %s643
      %p645 = pneg %p310
      %p646 = pneg %p307
      %p647 = scmp.lt.s32.totalorder %s32, 1
      %s648 = scalar_select %p647, %s32, 1
      %s649 = scalar_lea.vmem %s11, %s648
      %p650 = pneg %p336
      %p651 = pneg %p333
      %p652 = scmp.lt.s32.totalorder %s32, 1
      %s653 = scalar_select %p652, %s32, 1
      %s654 = smul.addr %s653, 8
      %s655 = smul.addr %s654, 4
      %s656 = scalar_lea.vmem %s12, %s655
      %p657 = pneg %p362
      %p658 = pneg %p359
      %p659 = scmp.lt.s32.totalorder %s32, 1
      %s660 = scalar_select %p659, %s32, 1
      %s661 = scalar_lea.vmem %s13, %s660
      %p662 = pneg %p388
      %p663 = pneg %p385
      %p664 = scmp.lt.s32.totalorder %s32, 1
      %s665 = scalar_select %p664, %s32, 1
      %s666 = scalar_lea.vmem %s14, %s665
      %p667 = pneg %p414
      %p668 = pneg %p411
      %p669 = scmp.lt.s32.totalorder %s32, 1
      %s670 = scalar_select %p669, %s32, 1
      %s671 = scalar_lea.vmem %s15, %s670
      %p672 = pneg %p440
      %p673 = pneg %p437
      %p674 = pneg %p466
      %p675 = pneg %p463
      %p676 = scmp.lt.s32.totalorder %s31, 1
      %s677 = scalar_select %p676, %s31, 1
      %s678 = smul.addr %s677, 8
      %s679 = scalar_lea.vmem %s16, %s678
      %p680 = scmp.lt.s32.totalorder %s31, 1
      %s681 = scalar_select %p680, %s31, 1
      %s682 = smul.addr %s681, 8
      %s683 = scalar_lea.vmem %s0, %s682
      %p684 = scmp.lt.s32.totalorder %s31, 1
      %s685 = scalar_select %p684, %s31, 1
      %s686 = scalar_lea.vmem %s1, %s685
      %p687 = scmp.lt.s32.totalorder %s32, 1
      %s688 = scalar_select %p687, %s32, 1
      %s689 = smul.addr %s688, 4
      %s690 = smul.addr %s689, 4
      %s691 = scalar_lea.vmem %s4, %s690
      %p692 = scmp.lt.s32.totalorder %s32, 1
      %s693 = scalar_select %p692, %s32, 1
      %s694 = scalar_lea.vmem %s5, %s693
      %p695 = scmp.lt.s32.totalorder %s32, 1
      %s696 = scalar_select %p695, %s32, 1
      %s697 = smul.addr %s696, 4
      %s698 = smul.addr %s697, 4
      %s699 = scalar_lea.vmem %s6, %s698
      %p700 = scmp.lt.s32.totalorder %s32, 1
      %s701 = scalar_select %p700, %s32, 1
      %s702 = scalar_lea.vmem %s7, %s701
      %p703 = scmp.lt.s32.totalorder %s32, 1
      %s704 = scalar_select %p703, %s32, 1
      %s705 = scalar_lea.vmem %s8, %s704
      %p706 = scmp.lt.s32.totalorder %s32, 1
      %s707 = scalar_select %p706, %s32, 1
      %s708 = scalar_lea.vmem %s9, %s707
      %p709 = scmp.lt.s32.totalorder %s32, 1
      %s710 = scalar_select %p709, %s32, 1
      %s711 = smul.addr %s710, 4
      %s712 = smul.addr %s711, 4
      %s713 = scalar_lea.vmem %s10, %s712
      %p714 = scmp.lt.s32.totalorder %s32, 1
      %s715 = scalar_select %p714, %s32, 1
      %s716 = scalar_lea.vmem %s11, %s715
      %p717 = scmp.lt.s32.totalorder %s32, 1
      %s718 = scalar_select %p717, %s32, 1
      %s719 = smul.addr %s718, 8
      %s720 = smul.addr %s719, 4
      %s721 = scalar_lea.vmem %s12, %s720
      %p722 = scmp.lt.s32.totalorder %s32, 1
      %s723 = scalar_select %p722, %s32, 1
      %s724 = scalar_lea.vmem %s13, %s723
      %p725 = scmp.lt.s32.totalorder %s32, 1
      %s726 = scalar_select %p725, %s32, 1
      %s727 = scalar_lea.vmem %s14, %s726
      %p728 = scmp.lt.s32.totalorder %s32, 1
      %s729 = scalar_select %p728, %s32, 1
      %s730 = scalar_lea.vmem %s15, %s729
      %p731 = scmp.lt.s32.totalorder %s31, 1
      %s732 = scalar_select %p731, %s31, 1
      %s733 = smul.addr %s732, 8
      %s734 = scalar_lea.vmem %s16, %s733
      %p736 = scmp.eq.s32.totalorder %s32, 0
      // Predicated region
      $region85: #{text_scnet_forward.6} parent=83 // pred_check
        %p737 = pneg %p736
      $region86: #{text_scnet_forward.6} parent=83 // pred_check_branch
        %739 = sbr.rel (%p737) target = $region88
      $region87: #{text_scnet_forward.6} parent=83 // pred_region
        %v740 = vld [vmem:[%s683] sm:$0xff]
        %v741 = vld [vmem:[%s2] sm:$0x1]
        %v742 = vld [vmem:[%s3] sm:$0x1]
        %vm743 = vcmask 261120
        %v744 = vsel %vm743, %v740, 0.0
        %745 = vadd.xlane.f32.xlu0 %v744
        %v746 = vpop.xlane.xlu0 %745
        %v747 = vrcp.pop 32.0
        %v748 = vmul.f32 32.0, %v747
        %v749 = vsub.f32 1.0, %v748
        %v750 = vmul.f32 %v747, %v749
        %v751 = vadd.f32 %v747, %v750
        %vm752 = vweird.f32 %v747
        %v753 = vsel %vm752, %v747, %v751
        %v754 = vmul.f32 %v746, %v753
        %v755 = vsub.f32 %v740, %v754
        %v756 = vmul.f32 %v755, %v755
        %v757 = vsel %vm743, %v756, 0.0
        %758 = vadd.xlane.f32.xlu0 %v757
        %v759 = vpop.xlane.xlu0 %758
        %v760 = vmul.f32 %v759, %v753
        %v761 = vadd.f32 %v760, 1e-12
        %v762 = vrsqrt.pop %v761
        %v763 = vmul.f32 %v762, %v761
        %v764 = vmul.f32 %v763, %v762
        %v765 = vmul.f32 0.5, %v764
        %v766 = vsub.f32 1.5, %v765
        %v767 = vmul.f32 %v762, %v766
        %vm768 = vweird.f32 %v761
        %vm769 = vweird.f32 %v762
        %vm770 = vmor %vm768, %vm769
        %v771 = vsel %vm770, %v762, %v767
        %v772 = vmul.f32 %v755, %v771
        %v774 = vperm.slane %v741, 0
        %v776 = vmul.f32 %v772, %v774
        %v778 = vperm.slane %v742, 0
        %v780 = vadd.f32 %v776, %v778
        %781 = vst.msk [vmem:[#allocation2] sm:$0xff] %vm743, %v780
      $region88: #{text_scnet_forward.6} parent=83 // pred_fallthru
        _
      %v782 = vld [vmem:[#allocation2] sm:$0xff]
      %v783 = vld [vmem:[%s686] sm:$0x1]
      %v784 = vld [vmem:[%s691] sm:$0xf]
      %v785 = vld [vmem:[%s691 + $0x4] sm:$0xf]
      %v786 = vld [vmem:[%s691 + $0x8] sm:$0xf]
      %v787 = vld [vmem:[%s691 + $0xc] sm:$0xf]
      %v788 = vpack.c.bf16 %v782, %v782
      %v789 = vld [vmem:[%s694] sm:$0x1]
      %v791 = vperm.slane %v789, 0
      %v797 = vunpack.c.l.b16 %v784
      %v798 = vunpack.c.l.b16 %v785
      %v799 = vunpack.c.l.b16 %v786
      %v800 = vunpack.c.l.b16 %v787
      %v801 = vpack.c.b16 %v798, %v797
      %v802 = vpack.c.b16 %v800, %v799
      %vm805 = vcmask 261120
      %v807 = vsel %vm805, %v788, 0
      %809 = vmatpush.bf16.msra.mxu0 0
      %810 = vmatpush.bf16.msra.mxu0 0
      %811 = vmatpush.bf16.msra.mxu0 0
      %812 = vmatpush.bf16.msra.mxu0 0
      %813 = vmatpush.bf16.msra.mxu0 0
      %814 = vmatpush.bf16.msra.mxu0 0
      %815 = vmatpush.bf16.msra.mxu0 %v802
      %816 = vmatpush.bf16.msra.mxu0 %v801
      %817 = vmatmul.bf16.gmra.mxu0 %v807
      %v818 = vpop.f32.mrf.mxu0
      %v819 = vadd.f32 %v791, %v818
      %v820 = vpop.f32.mrf.mxu0
      %821 = vdwg.mxu0
      %v822 = vpack.c.bf16 %v819, %v819
      %824 = vrot.lane.b32.xlu0 %v822, 96
      %v825 = vpop.permute.xlu0 %824
      %vm826 = vcmask 64512
      %v828 = vsel %vm826, %v822, 0
      %v831 = vsel %vm826, %v825, 0
      %833 = vmatpush.bf16.xpose.msra.mxu0 0
      %834 = vmatpush.bf16.xpose.msra.mxu0 0
      %835 = vmatpush.bf16.xpose.msra.mxu0 0
      %836 = vmatpush.bf16.xpose.msra.mxu0 0
      %837 = vmatpush.bf16.xpose.msra.mxu0 0
      %838 = vmatpush.bf16.xpose.msra.mxu0 0
      %839 = vmatpush.bf16.xpose.msra.mxu0 0
      %840 = vmatpush.bf16.xpose.msra.mxu0 %v831
      %841 = vmatmul.bf16.gmra.mxu0 %v828
      %v842 = vpop.f32.mrf.mxu0
      %v843 = vadd.f32 0.0, %v842
      %v844 = vpop.f32.mrf.mxu0
      %845 = vdwg.mxu0
      %v846 = vmul.f32 %v843, 0.35355338
      %v848 = vperm.slane %v783, 0
      %v850 = vadd.f32 %v846, %v848
      %v851 = vsel %vm826, %v850, -inf
      %852 = vmax.xlane.f32.xlu0 %v851
      %v853 = vpop.xlane.xlu0 %852
      %v854 = vsub.f32 %v850, %v853
      %v855 = vmul.f32 %v854, 1.442695
      %v856 = vpow.pop %v855
      %v857 = vsel %vm826, %v856, 0.0
      %858 = vadd.xlane.f32.xlu0 %v857
      %v859 = vpop.xlane.xlu0 %858
      %v860 = vrcp.pop %v859
      %v861 = vmul.f32 %v856, %v860
      %v862 = vpack.c.bf16 %v861, %v861
      %863 = vrot.lane.b32.xlu0 %v822, 64
      %v864 = vpop.permute.xlu0 %863
      %v866 = vsel %vm826, %v862, 0
      %vm868 = vcmask 1043456
      %v870 = vsel %vm868, %v864, 0
      %872 = vmatpush.bf16.msra.mxu0 0
      %873 = vmatpush.bf16.msra.mxu0 0
      %874 = vmatpush.bf16.msra.mxu0 0
      %875 = vmatpush.bf16.msra.mxu0 0
      %876 = vmatpush.bf16.msra.mxu0 0
      %877 = vmatpush.bf16.msra.mxu0 0
      %878 = vmatpush.bf16.msra.mxu0 0
      %879 = vmatpush.bf16.msra.mxu0 %v870
      %880 = vmatmul.bf16.gmra.mxu0 %v866
      %v881 = vpop.f32.mrf.mxu0
      %v882 = vadd.f32 0.0, %v881
      %v883 = vpop.f32.mrf.mxu0
      %884 = vdwg.mxu0
      %885 = vrot.lane.b32.xlu0 %v822, 120
      %v886 = vpop.permute.xlu0 %885
      %887 = vrot.lane.b32.xlu0 %v822, 88
      %v888 = vpop.permute.xlu0 %887
      %v890 = vsel %vm826, %v886, 0
      %v893 = vsel %vm826, %v888, 0
      %895 = vmatpush.bf16.xpose.msra.mxu0 0
      %896 = vmatpush.bf16.xpose.msra.mxu0 0
      %897 = vmatpush.bf16.xpose.msra.mxu0 0
      %898 = vmatpush.bf16.xpose.msra.mxu0 0
      %899 = vmatpush.bf16.xpose.msra.mxu0 0
      %900 = vmatpush.bf16.xpose.msra.mxu0 0
      %901 = vmatpush.bf16.xpose.msra.mxu0 0
      %902 = vmatpush.bf16.xpose.msra.mxu0 %v893
      %903 = vmatmul.bf16.gmra.mxu0 %v890
      %v904 = vpop.f32.mrf.mxu0
      %v905 = vadd.f32 0.0, %v904
      %v906 = vpop.f32.mrf.mxu0
      %907 = vdwg.mxu0
      %v908 = vmul.f32 %v905, 0.35355338
      %v909 = vadd.f32 %v908, %v848
      %v910 = vsel %vm826, %v909, -inf
      %911 = vmax.xlane.f32.xlu0 %v910
      %v912 = vpop.xlane.xlu0 %911
      %v913 = vsub.f32 %v909, %v912
      %v914 = vmul.f32 %v913, 1.442695
      %v915 = vpow.pop %v914
      %v916 = vsel %vm826, %v915, 0.0
      %917 = vadd.xlane.f32.xlu0 %v916
      %v918 = vpop.xlane.xlu0 %917
      %v919 = vrcp.pop %v918
      %v920 = vmul.f32 %v915, %v919
      %v921 = vpack.c.bf16 %v920, %v920
      %922 = vrot.lane.b32.xlu0 %v822, 56
      %v923 = vpop.permute.xlu0 %922
      %v925 = vsel %vm826, %v921, 0
      %v928 = vsel %vm868, %v923, 0
      %930 = vmatpush.bf16.msra.mxu0 0
      %931 = vmatpush.bf16.msra.mxu0 0
      %932 = vmatpush.bf16.msra.mxu0 0
      %933 = vmatpush.bf16.msra.mxu0 0
      %934 = vmatpush.bf16.msra.mxu0 0
      %935 = vmatpush.bf16.msra.mxu0 0
      %936 = vmatpush.bf16.msra.mxu0 0
      %937 = vmatpush.bf16.msra.mxu0 %v928
      %938 = vmatmul.bf16.gmra.mxu0 %v925
      %v939 = vpop.f32.mrf.mxu0
      %v940 = vadd.f32 0.0, %v939
      %v941 = vpop.f32.mrf.mxu0
      %942 = vdwg.mxu0
      %943 = vrot.lane.b32.xlu0 %v822, 112
      %v944 = vpop.permute.xlu0 %943
      %945 = vrot.lane.b32.xlu0 %v822, 80
      %v946 = vpop.permute.xlu0 %945
      %v948 = vsel %vm826, %v944, 0
      %v951 = vsel %vm826, %v946, 0
      %953 = vmatpush.bf16.xpose.msra.mxu0 0
      %954 = vmatpush.bf16.xpose.msra.mxu0 0
      %955 = vmatpush.bf16.xpose.msra.mxu0 0
      %956 = vmatpush.bf16.xpose.msra.mxu0 0
      %957 = vmatpush.bf16.xpose.msra.mxu0 0
      %958 = vmatpush.bf16.xpose.msra.mxu0 0
      %959 = vmatpush.bf16.xpose.msra.mxu0 0
      %960 = vmatpush.bf16.xpose.msra.mxu0 %v951
      %961 = vmatmul.bf16.gmra.mxu0 %v948
      %v962 = vpop.f32.mrf.mxu0
      %v963 = vadd.f32 0.0, %v962
      %v964 = vpop.f32.mrf.mxu0
      %965 = vdwg.mxu0
      %v966 = vmul.f32 %v963, 0.35355338
      %v967 = vadd.f32 %v966, %v848
      %v968 = vsel %vm826, %v967, -inf
      %969 = vmax.xlane.f32.xlu0 %v968
      %v970 = vpop.xlane.xlu0 %969
      %v971 = vsub.f32 %v967, %v970
      %v972 = vmul.f32 %v971, 1.442695
      %v973 = vpow.pop %v972
      %v974 = vsel %vm826, %v973, 0.0
      %975 = vadd.xlane.f32.xlu0 %v974
      %v976 = vpop.xlane.xlu0 %975
      %v977 = vrcp.pop %v976
      %v978 = vmul.f32 %v973, %v977
      %v979 = vpack.c.bf16 %v978, %v978
      %980 = vrot.lane.b32.xlu0 %v822, 48
      %v981 = vpop.permute.xlu0 %980
      %v983 = vsel %vm826, %v979, 0
      %v986 = vsel %vm868, %v981, 0
      %988 = vmatpush.bf16.msra.mxu0 0
      %989 = vmatpush.bf16.msra.mxu0 0
      %990 = vmatpush.bf16.msra.mxu0 0
      %991 = vmatpush.bf16.msra.mxu0 0
      %992 = vmatpush.bf16.msra.mxu0 0
      %993 = vmatpush.bf16.msra.mxu0 0
      %994 = vmatpush.bf16.msra.mxu0 0
      %995 = vmatpush.bf16.msra.mxu0 %v986
      %996 = vmatmul.bf16.gmra.mxu0 %v983
      %v997 = vpop.f32.mrf.mxu0
      %v998 = vadd.f32 0.0, %v997
      %v999 = vpop.f32.mrf.mxu0
      %1000 = vdwg.mxu0
      %1001 = vrot.lane.b32.xlu0 %v822, 104
      %v1002 = vpop.permute.xlu0 %1001
      %1003 = vrot.lane.b32.xlu0 %v822, 72
      %v1004 = vpop.permute.xlu0 %1003
      %v1006 = vsel %vm826, %v1002, 0
      %v1009 = vsel %vm826, %v1004, 0
      %1011 = vmatpush.bf16.xpose.msra.mxu0 0
      %1012 = vmatpush.bf16.xpose.msra.mxu0 0
      %1013 = vmatpush.bf16.xpose.msra.mxu0 0
      %1014 = vmatpush.bf16.xpose.msra.mxu0 0
      %1015 = vmatpush.bf16.xpose.msra.mxu0 0
      %1016 = vmatpush.bf16.xpose.msra.mxu0 0
      %1017 = vmatpush.bf16.xpose.msra.mxu0 0
      %1018 = vmatpush.bf16.xpose.msra.mxu0 %v1009
      %1019 = vmatmul.bf16.gmra.mxu0 %v1006
      %v1020 = vpop.f32.mrf.mxu0
      %v1021 = vadd.f32 0.0, %v1020
      %v1022 = vpop.f32.mrf.mxu0
      %1023 = vdwg.mxu0
      %v1024 = vmul.f32 %v1021, 0.35355338
      %v1025 = vadd.f32 %v1024, %v848
      %v1026 = vsel %vm826, %v1025, -inf
      %1027 = vmax.xlane.f32.xlu0 %v1026
      %v1028 = vpop.xlane.xlu0 %1027
      %v1029 = vsub.f32 %v1025, %v1028
      %v1030 = vmul.f32 %v1029, 1.442695
      %v1031 = vpow.pop %v1030
      %v1032 = vsel %vm826, %v1031, 0.0
      %1033 = vadd.xlane.f32.xlu0 %v1032
      %v1034 = vpop.xlane.xlu0 %1033
      %v1035 = vrcp.pop %v1034
      %v1036 = vmul.f32 %v1031, %v1035
      %v1037 = vpack.c.bf16 %v1036, %v1036
      %1038 = vrot.lane.b32.xlu0 %v822, 40
      %v1039 = vpop.permute.xlu0 %1038
      %v1041 = vsel %vm826, %v1037, 0
      %v1044 = vsel %vm868, %v1039, 0
      %1046 = vmatpush.bf16.msra.mxu0 0
      %1047 = vmatpush.bf16.msra.mxu0 0
      %1048 = vmatpush.bf16.msra.mxu0 0
      %1049 = vmatpush.bf16.msra.mxu0 0
      %1050 = vmatpush.bf16.msra.mxu0 0
      %1051 = vmatpush.bf16.msra.mxu0 0
      %1052 = vmatpush.bf16.msra.mxu0 0
      %1053 = vmatpush.bf16.msra.mxu0 %v1044
      %1054 = vmatmul.bf16.gmra.mxu0 %v1041
      %v1055 = vpop.f32.mrf.mxu0
      %v1056 = vadd.f32 0.0, %v1055
      %v1057 = vpop.f32.mrf.mxu0
      %1058 = vdwg.mxu0
      %1060 = vrot.lane.b32.xlu0 %v940, 8
      %v1061 = vpop.permute.xlu0 %1060
      %1064 = vrot.lane.b32.xlu0 %v998, 16
      %v1065 = vpop.permute.xlu0 %1064
      %1068 = vrot.lane.b32.xlu0 %v1056, 24
      %v1069 = vpop.permute.xlu0 %1068
      %v1071 = vsel %vm826, %v882, %v1061
      %vm1072 = vcmask 130048
      %v1073 = vsel %vm1072, %v1071, %v1065
      %vm1074 = vcmask 195584
      %v1075 = vsel %vm1074, %v1073, %v1069
      %v1076 = vld [vmem:[%s699] sm:$0xf]
      %v1077 = vld [vmem:[%s699 + $0x4] sm:$0xf]
      %v1078 = vld [vmem:[%s699 + $0x8] sm:$0xf]
      %v1079 = vld [vmem:[%s699 + $0xc] sm:$0xf]
      %v1080 = vpack.c.bf16 %v1075, %v1075
      %v1081 = vld [vmem:[%s702] sm:$0x1]
      %v1083 = vperm.slane %v1081, 0
      %v1089 = vunpack.c.l.b16 %v1076
      %v1090 = vunpack.c.l.b16 %v1077
      %v1091 = vunpack.c.l.b16 %v1078
      %v1092 = vunpack.c.l.b16 %v1079
      %v1093 = vpack.c.b16 %v1090, %v1089
      %v1094 = vpack.c.b16 %v1092, %v1091
      %v1098 = vsel %vm805, %v1080, 0
      %1100 = vmatpush.bf16.msra.mxu0 0
      %1101 = vmatpush.bf16.msra.mxu0 0
      %1102 = vmatpush.bf16.msra.mxu0 0
      %1103 = vmatpush.bf16.msra.mxu0 0
      %1104 = vmatpush.bf16.msra.mxu0 0
      %1105 = vmatpush.bf16.msra.mxu0 0
      %1106 = vmatpush.bf16.msra.mxu0 %v1094
      %1107 = vmatpush.bf16.msra.mxu0 %v1093
      %1108 = vmatmul.bf16.gmra.mxu0 %v1098
      %v1109 = vpop.f32.mrf.mxu0
      %v1110 = vadd.f32 %v1083, %v1109
      %v1111 = vpop.f32.mrf.mxu0
      %1112 = vdwg.mxu0
      %v1113 = vadd.f32 %v782, %v1110
      %v1114 = vld [vmem:[%s705] sm:$0x1]
      %v1115 = vld [vmem:[%s708] sm:$0x1]
      %v1116 = vsel %vm805, %v1113, 0.0
      %1117 = vadd.xlane.f32.xlu0 %v1116
      %v1118 = vpop.xlane.xlu0 %1117
      %v1119 = vrcp.pop 32.0
      %v1120 = vmul.f32 32.0, %v1119
      %v1121 = vsub.f32 1.0, %v1120
      %v1122 = vmul.f32 %v1119, %v1121
      %v1123 = vadd.f32 %v1119, %v1122
      %vm1124 = vweird.f32 %v1119
      %v1125 = vsel %vm1124, %v1119, %v1123
      %v1126 = vmul.f32 %v1118, %v1125
      %v1127 = vsub.f32 %v1113, %v1126
      %v1128 = vmul.f32 %v1127, %v1127
      %v1129 = vsel %vm805, %v1128, 0.0
      %1130 = vadd.xlane.f32.xlu0 %v1129
      %v1131 = vpop.xlane.xlu0 %1130
      %v1132 = vmul.f32 %v1131, %v1125
      %v1133 = vadd.f32 %v1132, 1e-12
      %v1134 = vrsqrt.pop %v1133
      %v1135 = vmul.f32 %v1134, %v1133
      %v1136 = vmul.f32 %v1135, %v1134
      %v1137 = vmul.f32 0.5, %v1136
      %v1138 = vsub.f32 1.5, %v1137
      %v1139 = vmul.f32 %v1134, %v1138
      %vm1140 = vweird.f32 %v1133
      %vm1141 = vweird.f32 %v1134
      %vm1142 = vmor %vm1140, %vm1141
      %v1143 = vsel %vm1142, %v1134, %v1139
      %v1144 = vmul.f32 %v1127, %v1143
      %v1146 = vperm.slane %v1114, 0
      %v1148 = vmul.f32 %v1144, %v1146
      %v1150 = vperm.slane %v1115, 0
      %v1152 = vadd.f32 %v1148, %v1150
      %v1153 = vld [vmem:[%s713] sm:$0xf]
      %v1154 = vld [vmem:[%s713 + $0x4] sm:$0xf]
      %v1155 = vld [vmem:[%s713 + $0x8] sm:$0xf]
      %v1156 = vld [vmem:[%s713 + $0xc] sm:$0xf]
      %v1157 = vpack.c.bf16 %v1152, %v1152
      %v1158 = vld [vmem:[%s716] sm:$0x1]
      %v1160 = vperm.slane %v1158, 0
      %v1166 = vunpack.c.l.b16 %v1153
      %v1167 = vunpack.c.l.b16 %v1154
      %v1168 = vunpack.c.l.b16 %v1155
      %v1169 = vunpack.c.l.b16 %v1156
      %v1170 = vpack.c.b16 %v1167, %v1166
      %v1171 = vpack.c.b16 %v1169, %v1168
      %v1175 = vsel %vm805, %v1157, 0
      %1177 = vmatpush.bf16.msra.mxu0 0
      %1178 = vmatpush.bf16.msra.mxu0 0
      %1179 = vmatpush.bf16.msra.mxu0 0
      %1180 = vmatpush.bf16.msra.mxu0 0
      %1181 = vmatpush.bf16.msra.mxu0 0
      %1182 = vmatpush.bf16.msra.mxu0 0
      %1183 = vmatpush.bf16.msra.mxu0 %v1171
      %1184 = vmatpush.bf16.msra.mxu0 %v1170
      %1185 = vmatmul.bf16.gmra.mxu0 %v1175
      %v1186 = vpop.f32.mrf.mxu0
      %v1187 = vadd.f32 %v1160, %v1186
      %v1188 = vpop.f32.mrf.mxu0
      %1189 = vdwg.mxu0
      %v1190 = vmul.f32 %v1187, %v1187
      %v1191 = vmul.f32 %v1187, %v1190
      %v1192 = vmul.f32 %v1191, 0.044715
      %v1193 = vadd.f32 %v1187, %v1192
      %v1194 = vmul.f32 %v1193, 0.7978846
      %v1195 = vtanh.pop %v1194
      %v1196 = vadd.f32 %v1195, 1.0
      %v1197 = vmul.f32 %v1196, 0.5
      %v1198 = vmul.f32 %v1187, %v1197
      %v1199 = vld [vmem:[%s721] sm:$0xf]
      %v1200 = vld [vmem:[%s721 + $0x4] sm:$0xf]
      %v1201 = vld [vmem:[%s721 + $0x8] sm:$0xf]
      %v1202 = vld [vmem:[%s721 + $0xc] sm:$0xf]
      %v1203 = vld [vmem:[%s721 + $0x10] sm:$0xf]
      %v1204 = vld [vmem:[%s721 + $0x14] sm:$0xf]
      %v1205 = vld [vmem:[%s721 + $0x18] sm:$0xf]
      %v1206 = vld [vmem:[%s721 + $0x1c] sm:$0xf]
      %v1207 = vpack.c.bf16 %v1198, %v1198
      %v1208 = vld [vmem:[%s724] sm:$0x1]
      %v1210 = vperm.slane %v1208, 0
      %v1220 = vunpack.c.l.b16 %v1199
      %v1221 = vunpack.c.l.b16 %v1200
      %v1222 = vunpack.c.l.b16 %v1201
      %v1223 = vunpack.c.l.b16 %v1202
      %v1224 = vunpack.c.l.b16 %v1203
      %v1225 = vunpack.c.l.b16 %v1204
      %v1226 = vunpack.c.l.b16 %v1205
      %v1227 = vunpack.c.l.b16 %v1206
      %v1228 = vpack.c.b16 %v1221, %v1220
      %v1229 = vpack.c.b16 %v1223, %v1222
      %v1230 = vpack.c.b16 %v1225, %v1224
      %v1231 = vpack.c.b16 %v1227, %v1226
      %vm1236 = vcmask 523264
      %v1238 = vsel %vm1236, %v1207, 0
      %1240 = vmatpush.bf16.msra.mxu0 0
      %1241 = vmatpush.bf16.msra.mxu0 0
      %1242 = vmatpush.bf16.msra.mxu0 0
      %1243 = vmatpush.bf16.msra.mxu0 0
      %1244 = vmatpush.bf16.msra.mxu0 %v1231
      %1245 = vmatpush.bf16.msra.mxu0 %v1230
      %1246 = vmatpush.bf16.msra.mxu0 %v1229
      %1247 = vmatpush.bf16.msra.mxu0 %v1228
      %1248 = vmatmul.bf16.gmra.mxu0 %v1238
      %v1249 = vpop.f32.mrf.mxu0
      %v1250 = vadd.f32 %v1210, %v1249
      %v1251 = vpop.f32.mrf.mxu0
      %1252 = vdwg.mxu0
      %v1253 = vadd.f32 %v1152, %v1250
      %v1254 = vld [vmem:[%s727] sm:$0x1]
      %v1255 = vld [vmem:[%s730] sm:$0x1]
      %v1256 = vsel %vm805, %v1253, 0.0
      %1257 = vadd.xlane.f32.xlu0 %v1256
      %v1258 = vpop.xlane.xlu0 %1257
      %v1259 = vmul.f32 %v1258, %v1125
      %v1260 = vsub.f32 %v1253, %v1259
      %v1261 = vmul.f32 %v1260, %v1260
      %v1262 = vsel %vm805, %v1261, 0.0
      %1263 = vadd.xlane.f32.xlu0 %v1262
      %v1264 = vpop.xlane.xlu0 %1263
      %v1265 = vmul.f32 %v1264, %v1125
      %v1266 = vadd.f32 %v1265, 1e-12
      %v1267 = vrsqrt.pop %v1266
      %v1268 = vmul.f32 %v1267, %v1266
      %v1269 = vmul.f32 %v1268, %v1267
      %v1270 = vmul.f32 0.5, %v1269
      %v1271 = vsub.f32 1.5, %v1270
      %v1272 = vmul.f32 %v1267, %v1271
      %vm1273 = vweird.f32 %v1266
      %vm1274 = vweird.f32 %v1267
      %vm1275 = vmor %vm1273, %vm1274
      %v1276 = vsel %vm1275, %v1267, %v1272
      %v1277 = vmul.f32 %v1260, %v1276
      %v1279 = vperm.slane %v1254, 0
      %v1281 = vmul.f32 %v1277, %v1279
      %v1283 = vperm.slane %v1255, 0
      %v1285 = vadd.f32 %v1281, %v1283
      %1286 = vst.msk [vmem:[#allocation2] sm:$0xff] %vm805, %v1285
      %p1287 = scmp.eq.s32.totalorder %s32, 1
      // Predicated region
      $region89: #{text_scnet_forward.6} parent=83 // pred_check
        %p1288 = pneg %p1287
      $region90: #{text_scnet_forward.6} parent=83 // pred_check_branch
        %1290 = sbr.rel (%p1288) target = $region92
      $region91: #{text_scnet_forward.6} parent=83 // pred_region
        %1291 = vst.msk [vmem:[%s734] sm:$0xff] %vm805, %v1285
      $region92: #{text_scnet_forward.6} parent=83 // pred_fallthru
        _
      %p1292 = scmp.lt.s32.totalorder %s31, 1
      %s1293 = scalar_select %p1292, %s31, 1
      %s1294 = smul.addr %s1293, 8
      %s1295 = scalar_lea.vmem %s16, %s1294
      // Predicated region
      $region93: #{text_scnet_forward.6} parent=83 // pred_check
        %p1296 = pneg %p463
      $region94: #{text_scnet_forward.6} parent=83 // pred_check_branch
        %1298 = sbr.rel (%p1296) target = $region96
      $region95: #{text_scnet_forward.6} parent=83 // pred_region
        _
      $region96: #{text_scnet_forward.6} parent=83 // pred_fallthru
        _
    $region84: #{text_scnet_forward.6} parent=5 // pred_fallthru
      _
    %p1299 = scmp.le.s32.totalorder 2, %s22
    // Predicated region
    $region97: #{text_scnet_forward.6} parent=5 // pred_check
      %p1300 = pneg %p1299
    $region98: #{text_scnet_forward.6} parent=5 // pred_check_branch
      %1302 = sbr.rel (%p1300) target = $region100
    $region99: #{text_scnet_forward.6} parent=5 // pred_region
      %s1303 = ssub.s32 %s22, 2
      // Predicated region
      $region101: #{text_scnet_forward.6} parent=99 // pred_check
        %p1304 = pneg %p469
      $region102: #{text_scnet_forward.6} parent=99 // pred_check_branch
        %1306 = sbr.rel (%p1304) target = $region104
      $region103: #{text_scnet_forward.6} parent=99 // pred_region
        %p1307 = scmp.lt.s32.totalorder %s33, 1
        %s1308 = scalar_select %p1307, %s33, 1
        %s1309 = smul.addr %s1308, 8
        %s1310 = scalar_lea.vmem %s16, %s1309
      $region104: #{text_scnet_forward.6} parent=99 // pred_fallthru
        _
    $region100: #{text_scnet_forward.6} parent=5 // pred_fallthru
      _
  $region6: #{text_scnet_forward.6} parent=0 // loop_footer
    %s26 = sadd.s32 1, %s22
  $region7: #{text_scnet_forward.6} parent=0 // loop_footer_branch
    %21 = sbr.rel target = $region3
  $region8: #{text_scnet_forward.6} parent=0 // loop_exit
    _

// kernel: text_scnet_forward.8
$region0: #{text_scnet_forward.8}
  #allocation0 [shape = 'u32[]', space=smem, size = 0x4, offset = 0x4, fixed_abs, tag = 'smem constant byte address 0x4 - core index']
  #allocation1 [shape = 'u32[72,128]{1,0:T(1,128)}', space=vmem, size = 0x9000, scoped, tag = 'internal scratch']
  #allocation2 [shape = 'f32[16,32]{1,0:T(8,128)}', space=vmem, size = 0x2000, scoped, tag = 'scratch operand']
  %s0 = inlined_call_operand.vmem [shape: f32[8,2,32], index: 0, kind: input, shape index: {}]
  %s1 = inlined_call_operand.vmem [shape: f32[8,2,32], index: 1, kind: input, shape index: {}]
  %s2 = inlined_call_operand.vmem [shape: bf16[2,32,96], index: 2, kind: input, shape index: {}]
  %s3 = inlined_call_operand.vmem [shape: f32[2,1,96], index: 3, kind: input, shape index: {}]
  %s4 = inlined_call_operand.vmem [shape: bf16[2,32,32], index: 4, kind: input, shape index: {}]
  %s5 = inlined_call_operand.vmem [shape: f32[2,1,32], index: 5, kind: input, shape index: {}]
  %s6 = inlined_call_operand.vmem [shape: f32[2,1,32], index: 6, kind: input, shape index: {}]
  %s7 = inlined_call_operand.vmem [shape: f32[2,1,32], index: 7, kind: input, shape index: {}]
  %s8 = inlined_call_operand.vmem [shape: bf16[2,32,32], index: 8, kind: input, shape index: {}]
  %s9 = inlined_call_operand.vmem [shape: f32[2,1,32], index: 9, kind: input, shape index: {}]
  %s10 = inlined_call_operand.vmem [shape: bf16[2,32,64], index: 10, kind: input, shape index: {}]
  %s11 = inlined_call_operand.vmem [shape: f32[2,1,64], index: 11, kind: input, shape index: {}]
  %s12 = inlined_call_operand.vmem [shape: bf16[2,32,32], index: 12, kind: input, shape index: {}]
  %s13 = inlined_call_operand.vmem [shape: f32[2,1,32], index: 13, kind: input, shape index: {}]
  %s14 = inlined_call_operand.vmem [shape: f32[2,1,32], index: 14, kind: input, shape index: {}]
  %s15 = inlined_call_operand.vmem [shape: f32[2,1,32], index: 15, kind: input, shape index: {}]
  %s16 = inlined_call_operand.vmem [shape: bf16[2,32,64], index: 16, kind: input, shape index: {}]
  %s17 = inlined_call_operand.vmem [shape: f32[2,1,64], index: 17, kind: input, shape index: {}]
  %s18 = inlined_call_operand.vmem [shape: bf16[2,64,32], index: 18, kind: input, shape index: {}]
  %s19 = inlined_call_operand.vmem [shape: f32[2,1,32], index: 19, kind: input, shape index: {}]
  %s20 = inlined_call_operand.vmem [shape: f32[2,1,32], index: 20, kind: input, shape index: {}]
  %s21 = inlined_call_operand.vmem [shape: f32[2,1,32], index: 21, kind: input, shape index: {}]
  %s22 = inlined_call_operand.vmem [shape: f32[8,2,32], index: 22, kind: output, shape index: {}]
  %s23 = sld [smem:[#allocation0]]
  $region129: #{text_scnet_forward.8} parent=0
    _
  %s25 = ssub.s32 1, %s23
  %s26 = scalar_select 0, %s25, %s23
  loop: start=0, step=1, limit=4
  $region2: #{text_scnet_forward.8} parent=0 // loop_pre_header
    _
  $region3: #{text_scnet_forward.8} parent=0 // loop_header
    %s28 = sphi 0, %s32
    %p29 = scmp.ge.s32.totalorder %s28, 4
    %s36 = sphi 0, %s36
    %s38 = sphi 0, %s36
    %s39 = sphi 0, %s38
    %s53 = sphi 0, %s39
    %s57 = sphi 0, %s57
    %s59 = sphi 0, %s57
    %s60 = sphi 0, %s59
    %s74 = sphi 0, %s60
    %s80 = sphi 0, %s82
    %s83 = sphi 0, %s80
    %s84 = sphi 0, %s83
    %s100 = sphi 0, %s84
    %s106 = sphi 0, %s108
    %s109 = sphi 0, %s106
    %s110 = sphi 0, %s109
    %s126 = sphi 0, %s110
    %s132 = sphi 0, %s134
    %s135 = sphi 0, %s132
    %s136 = sphi 0, %s135
    %s152 = sphi 0, %s136
    %s158 = sphi 0, %s160
    %s161 = sphi 0, %s158
    %s162 = sphi 0, %s161
    %s178 = sphi 0, %s162
    %s184 = sphi 0, %s186
    %s187 = sphi 0, %s184
    %s188 = sphi 0, %s187
    %s204 = sphi 0, %s188
    %s210 = sphi 0, %s212
    %s213 = sphi 0, %s210
    %s214 = sphi 0, %s213
    %s230 = sphi 0, %s214
    %s236 = sphi 0, %s238
    %s239 = sphi 0, %s236
    %s240 = sphi 0, %s239
    %s256 = sphi 0, %s240
    %s262 = sphi 0, %s264
    %s265 = sphi 0, %s262
    %s266 = sphi 0, %s265
    %s282 = sphi 0, %s266
    %s288 = sphi 0, %s290
    %s291 = sphi 0, %s288
    %s292 = sphi 0, %s291
    %s308 = sphi 0, %s292
    %s314 = sphi 0, %s316
    %s317 = sphi 0, %s314
    %s318 = sphi 0, %s317
    %s334 = sphi 0, %s318
    %s340 = sphi 0, %s342
    %s343 = sphi 0, %s340
    %s344 = sphi 0, %s343
    %s360 = sphi 0, %s344
    %s366 = sphi 0, %s368
    %s369 = sphi 0, %s366
    %s370 = sphi 0, %s369
    %s386 = sphi 0, %s370
    %s392 = sphi 0, %s394
    %s395 = sphi 0, %s392
    %s396 = sphi 0, %s395
    %s412 = sphi 0, %s396
    %s418 = sphi 0, %s420
    %s421 = sphi 0, %s418
    %s422 = sphi 0, %s421
    %s438 = sphi 0, %s422
    %s444 = sphi 0, %s446
    %s447 = sphi 0, %s444
    %s448 = sphi 0, %s447
    %s464 = sphi 0, %s448
    %s470 = sphi 0, %s472
    %s473 = sphi 0, %s470
    %s474 = sphi 0, %s473
    %s490 = sphi 0, %s474
    %s496 = sphi 0, %s498
    %s499 = sphi 0, %s496
    %s500 = sphi 0, %s499
    %s516 = sphi 0, %s500
    %s522 = sphi 0, %s524
    %s525 = sphi 0, %s522
    %s526 = sphi 0, %s525
    %s542 = sphi 0, %s526
    %s548 = sphi 0, %s550
    %s551 = sphi 0, %s548
    %s552 = sphi 0, %s551
    %s568 = sphi 0, %s552
    %s574 = sphi 0, %s576
    %s577 = sphi 0, %s574
    %s578 = sphi 0, %s577
    %s594 = sphi 0, %s578
    %s598 = sphi 0, %s598
    %s600 = sphi 0, %s598
    %s601 = sphi 0, %s600
    %s615 = sphi 0, %s601
  $region4: #{text_scnet_forward.8} parent=0 // loop_header_branch
    %31 = sbr.rel (%p29) target = $region8
  $region5: #{text_scnet_forward.8} parent=0 // loop_body
    %s33 = ssub.s32 %s28, 1
    %s34 = ssub.s32 %s28, 2
    %s35 = sadd.s32 %s28, 1
    %s37 = sadd.s32 %s36, 1
    %p40 = scmp.eq.s32.totalorder %s28, 1
    %p41 = scmp.ne.s32.totalorder %s36, %s38
    %p42 = scmp.eq.s32.totalorder %s28, 0
    %p43 = por %p41, %p42
    %p44 = scmp.ne.s32.totalorder %s36, %s38
    %p45 = scmp.eq.s32.totalorder %s33, 1
    %p46 = por %p44, %p45
    %p47 = scmp.ne.s32.totalorder %s38, %s39
    %p48 = scmp.eq.s32.totalorder %s33, 0
    %p49 = por %p47, %p48
    %p50 = scmp.ne.s32.totalorder %s38, %s39
    %p51 = scmp.eq.s32.totalorder %s34, 1
    %p52 = por %p50, %p51
    %p54 = scmp.ne.s32.totalorder %s39, %s53
    %p55 = scmp.eq.s32.totalorder %s34, 0
    %p56 = por %p54, %p55
    %s58 = sadd.s32 %s57, 1
    %p61 = scmp.eq.s32.totalorder %s28, 1
    %p62 = scmp.ne.s32.totalorder %s57, %s59
    %p63 = scmp.eq.s32.totalorder %s28, 0
    %p64 = por %p62, %p63
    %p65 = scmp.ne.s32.totalorder %s57, %s59
    %p66 = scmp.eq.s32.totalorder %s33, 1
    %p67 = por %p65, %p66
    %p68 = scmp.ne.s32.totalorder %s59, %s60
    %p69 = scmp.eq.s32.totalorder %s33, 0
    %p70 = por %p68, %p69
    %p71 = scmp.ne.s32.totalorder %s59, %s60
    %p72 = scmp.eq.s32.totalorder %s34, 1
    %p73 = por %p71, %p72
    %p75 = scmp.ne.s32.totalorder %s60, %s74
    %p76 = scmp.eq.s32.totalorder %s34, 0
    %p77 = por %p75, %p76
    %s78 = ssub.s32 %s28, %s35
    %p79 = scmp.eq.s32.totalorder %s78, 0
    %s81 = sadd.s32 %s80, 1
    %s82 = scalar_select %p79, %s80, %s81
    %p85 = pneg %p79
    %p86 = scmp.eq.s32.totalorder %s28, 1
    %p87 = por %p85, %p86
    %p88 = scmp.ne.s32.totalorder %s80, %s83
    %p89 = scmp.eq.s32.totalorder %s28, 0
    %p90 = por %p88, %p89
    %p91 = scmp.ne.s32.totalorder %s80, %s83
    %p92 = scmp.eq.s32.totalorder %s33, 1
    %p93 = por %p91, %p92
    %p94 = scmp.ne.s32.totalorder %s83, %s84
    %p95 = scmp.eq.s32.totalorder %s33, 0
    %p96 = por %p94, %p95
    %p97 = scmp.ne.s32.totalorder %s83, %s84
    %p98 = scmp.eq.s32.totalorder %s34, 1
    %p99 = por %p97, %p98
    %p101 = scmp.ne.s32.totalorder %s84, %s100
    %p102 = scmp.eq.s32.totalorder %s34, 0
    %p103 = por %p101, %p102
    %s104 = ssub.s32 %s28, %s35
    %p105 = scmp.eq.s32.totalorder %s104, 0
    %s107 = sadd.s32 %s106, 1
    %s108 = scalar_select %p105, %s106, %s107
    %p111 = pneg %p105
    %p112 = scmp.eq.s32.totalorder %s28, 1
    %p113 = por %p111, %p112
    %p114 = scmp.ne.s32.totalorder %s106, %s109
    %p115 = scmp.eq.s32.totalorder %s28, 0
    %p116 = por %p114, %p115
    %p117 = scmp.ne.s32.totalorder %s106, %s109
    %p118 = scmp.eq.s32.totalorder %s33, 1
    %p119 = por %p117, %p118
    %p120 = scmp.ne.s32.totalorder %s109, %s110
    %p121 = scmp.eq.s32.totalorder %s33, 0
    %p122 = por %p120, %p121
    %p123 = scmp.ne.s32.totalorder %s109, %s110
    %p124 = scmp.eq.s32.totalorder %s34, 1
    %p125 = por %p123, %p124
    %p127 = scmp.ne.s32.totalorder %s110, %s126
    %p128 = scmp.eq.s32.totalorder %s34, 0
    %p129 = por %p127, %p128
    %s130 = ssub.s32 %s28, %s35
    %p131 = scmp.eq.s32.totalorder %s130, 0
    %s133 = sadd.s32 %s132, 1
    %s134 = scalar_select %p131, %s132, %s133
    %p137 = pneg %p131
    %p138 = scmp.eq.s32.totalorder %s28, 1
    %p139 = por %p137, %p138
    %p140 = scmp.ne.s32.totalorder %s132, %s135
    %p141 = scmp.eq.s32.totalorder %s28, 0
    %p142 = por %p140, %p141
    %p143 = scmp.ne.s32.totalorder %s132, %s135
    %p144 = scmp.eq.s32.totalorder %s33, 1
    %p145 = por %p143, %p144
    %p146 = scmp.ne.s32.totalorder %s135, %s136
    %p147 = scmp.eq.s32.totalorder %s33, 0
    %p148 = por %p146, %p147
    %p149 = scmp.ne.s32.totalorder %s135, %s136
    %p150 = scmp.eq.s32.totalorder %s34, 1
    %p151 = por %p149, %p150
    %p153 = scmp.ne.s32.totalorder %s136, %s152
    %p154 = scmp.eq.s32.totalorder %s34, 0
    %p155 = por %p153, %p154
    %s156 = ssub.s32 %s28, %s35
    %p157 = scmp.eq.s32.totalorder %s156, 0
    %s159 = sadd.s32 %s158, 1
    %s160 = scalar_select %p157, %s158, %s159
    %p163 = pneg %p157
    %p164 = scmp.eq.s32.totalorder %s28, 1
    %p165 = por %p163, %p164
    %p166 = scmp.ne.s32.totalorder %s158, %s161
    %p167 = scmp.eq.s32.totalorder %s28, 0
    %p168 = por %p166, %p167
    %p169 = scmp.ne.s32.totalorder %s158, %s161
    %p170 = scmp.eq.s32.totalorder %s33, 1
    %p171 = por %p169, %p170
    %p172 = scmp.ne.s32.totalorder %s161, %s162
    %p173 = scmp.eq.s32.totalorder %s33, 0
    %p174 = por %p172, %p173
    %p175 = scmp.ne.s32.totalorder %s161, %s162
    %p176 = scmp.eq.s32.totalorder %s34, 1
    %p177 = por %p175, %p176
    %p179 = scmp.ne.s32.totalorder %s162, %s178
    %p180 = scmp.eq.s32.totalorder %s34, 0
    %p181 = por %p179, %p180
    %s182 = ssub.s32 %s28, %s35
    %p183 = scmp.eq.s32.totalorder %s182, 0
    %s185 = sadd.s32 %s184, 1
    %s186 = scalar_select %p183, %s184, %s185
    %p189 = pneg %p183
    %p190 = scmp.eq.s32.totalorder %s28, 1
    %p191 = por %p189, %p190
    %p192 = scmp.ne.s32.totalorder %s184, %s187
    %p193 = scmp.eq.s32.totalorder %s28, 0
    %p194 = por %p192, %p193
    %p195 = scmp.ne.s32.totalorder %s184, %s187
    %p196 = scmp.eq.s32.totalorder %s33, 1
    %p197 = por %p195, %p196
    %p198 = scmp.ne.s32.totalorder %s187, %s188
    %p199 = scmp.eq.s32.totalorder %s33, 0
    %p200 = por %p198, %p199
    %p201 = scmp.ne.s32.totalorder %s187, %s188
    %p202 = scmp.eq.s32.totalorder %s34, 1
    %p203 = por %p201, %p202
    %p205 = scmp.ne.s32.totalorder %s188, %s204
    %p206 = scmp.eq.s32.totalorder %s34, 0
    %p207 = por %p205, %p206
    %s208 = ssub.s32 %s28, %s35
    %p209 = scmp.eq.s32.totalorder %s208, 0
    %s211 = sadd.s32 %s210, 1
    %s212 = scalar_select %p209, %s210, %s211
    %p215 = pneg %p209
    %p216 = scmp.eq.s32.totalorder %s28, 1
    %p217 = por %p215, %p216
    %p218 = scmp.ne.s32.totalorder %s210, %s213
    %p219 = scmp.eq.s32.totalorder %s28, 0
    %p220 = por %p218, %p219
    %p221 = scmp.ne.s32.totalorder %s210, %s213
    %p222 = scmp.eq.s32.totalorder %s33, 1
    %p223 = por %p221, %p222
    %p224 = scmp.ne.s32.totalorder %s213, %s214
    %p225 = scmp.eq.s32.totalorder %s33, 0
    %p226 = por %p224, %p225
    %p227 = scmp.ne.s32.totalorder %s213, %s214
    %p228 = scmp.eq.s32.totalorder %s34, 1
    %p229 = por %p227, %p228
    %p231 = scmp.ne.s32.totalorder %s214, %s230
    %p232 = scmp.eq.s32.totalorder %s34, 0
    %p233 = por %p231, %p232
    %s234 = ssub.s32 %s28, %s35
    %p235 = scmp.eq.s32.totalorder %s234, 0
    %s237 = sadd.s32 %s236, 1
    %s238 = scalar_select %p235, %s236, %s237
    %p241 = pneg %p235
    %p242 = scmp.eq.s32.totalorder %s28, 1
    %p243 = por %p241, %p242
    %p244 = scmp.ne.s32.totalorder %s236, %s239
    %p245 = scmp.eq.s32.totalorder %s28, 0
    %p246 = por %p244, %p245
    %p247 = scmp.ne.s32.totalorder %s236, %s239
    %p248 = scmp.eq.s32.totalorder %s33, 1
    %p249 = por %p247, %p248
    %p250 = scmp.ne.s32.totalorder %s239, %s240
    %p251 = scmp.eq.s32.totalorder %s33, 0
    %p252 = por %p250, %p251
    %p253 = scmp.ne.s32.totalorder %s239, %s240
    %p254 = scmp.eq.s32.totalorder %s34, 1
    %p255 = por %p253, %p254
    %p257 = scmp.ne.s32.totalorder %s240, %s256
    %p258 = scmp.eq.s32.totalorder %s34, 0
    %p259 = por %p257, %p258
    %s260 = ssub.s32 %s28, %s35
    %p261 = scmp.eq.s32.totalorder %s260, 0
    %s263 = sadd.s32 %s262, 1
    %s264 = scalar_select %p261, %s262, %s263
    %p267 = pneg %p261
    %p268 = scmp.eq.s32.totalorder %s28, 1
    %p269 = por %p267, %p268
    %p270 = scmp.ne.s32.totalorder %s262, %s265
    %p271 = scmp.eq.s32.totalorder %s28, 0
    %p272 = por %p270, %p271
    %p273 = scmp.ne.s32.totalorder %s262, %s265
    %p274 = scmp.eq.s32.totalorder %s33, 1
    %p275 = por %p273, %p274
    %p276 = scmp.ne.s32.totalorder %s265, %s266
    %p277 = scmp.eq.s32.totalorder %s33, 0
    %p278 = por %p276, %p277
    %p279 = scmp.ne.s32.totalorder %s265, %s266
    %p280 = scmp.eq.s32.totalorder %s34, 1
    %p281 = por %p279, %p280
    %p283 = scmp.ne.s32.totalorder %s266, %s282
    %p284 = scmp.eq.s32.totalorder %s34, 0
    %p285 = por %p283, %p284
    %s286 = ssub.s32 %s28, %s35
    %p287 = scmp.eq.s32.totalorder %s286, 0
    %s289 = sadd.s32 %s288, 1
    %s290 = scalar_select %p287, %s288, %s289
    %p293 = pneg %p287
    %p294 = scmp.eq.s32.totalorder %s28, 1
    %p295 = por %p293, %p294
    %p296 = scmp.ne.s32.totalorder %s288, %s291
    %p297 = scmp.eq.s32.totalorder %s28, 0
    %p298 = por %p296, %p297
    %p299 = scmp.ne.s32.totalorder %s288, %s291
    %p300 = scmp.eq.s32.totalorder %s33, 1
    %p301 = por %p299, %p300
    %p302 = scmp.ne.s32.totalorder %s291, %s292
    %p303 = scmp.eq.s32.totalorder %s33, 0
    %p304 = por %p302, %p303
    %p305 = scmp.ne.s32.totalorder %s291, %s292
    %p306 = scmp.eq.s32.totalorder %s34, 1
    %p307 = por %p305, %p306
    %p309 = scmp.ne.s32.totalorder %s292, %s308
    %p310 = scmp.eq.s32.totalorder %s34, 0
    %p311 = por %p309, %p310
    %s312 = ssub.s32 %s28, %s35
    %p313 = scmp.eq.s32.totalorder %s312, 0
    %s315 = sadd.s32 %s314, 1
    %s316 = scalar_select %p313, %s314, %s315
    %p319 = pneg %p313
    %p320 = scmp.eq.s32.totalorder %s28, 1
    %p321 = por %p319, %p320
    %p322 = scmp.ne.s32.totalorder %s314, %s317
    %p323 = scmp.eq.s32.totalorder %s28, 0
    %p324 = por %p322, %p323
    %p325 = scmp.ne.s32.totalorder %s314, %s317
    %p326 = scmp.eq.s32.totalorder %s33, 1
    %p327 = por %p325, %p326
    %p328 = scmp.ne.s32.totalorder %s317, %s318
    %p329 = scmp.eq.s32.totalorder %s33, 0
    %p330 = por %p328, %p329
    %p331 = scmp.ne.s32.totalorder %s317, %s318
    %p332 = scmp.eq.s32.totalorder %s34, 1
    %p333 = por %p331, %p332
    %p335 = scmp.ne.s32.totalorder %s318, %s334
    %p336 = scmp.eq.s32.totalorder %s34, 0
    %p337 = por %p335, %p336
    %s338 = ssub.s32 %s28, %s35
    %p339 = scmp.eq.s32.totalorder %s338, 0
    %s341 = sadd.s32 %s340, 1
    %s342 = scalar_select %p339, %s340, %s341
    %p345 = pneg %p339
    %p346 = scmp.eq.s32.totalorder %s28, 1
    %p347 = por %p345, %p346
    %p348 = scmp.ne.s32.totalorder %s340, %s343
    %p349 = scmp.eq.s32.totalorder %s28, 0
    %p350 = por %p348, %p349
    %p351 = scmp.ne.s32.totalorder %s340, %s343
    %p352 = scmp.eq.s32.totalorder %s33, 1
    %p353 = por %p351, %p352
    %p354 = scmp.ne.s32.totalorder %s343, %s344
    %p355 = scmp.eq.s32.totalorder %s33, 0
    %p356 = por %p354, %p355
    %p357 = scmp.ne.s32.totalorder %s343, %s344
    %p358 = scmp.eq.s32.totalorder %s34, 1
    %p359 = por %p357, %p358
    %p361 = scmp.ne.s32.totalorder %s344, %s360
    %p362 = scmp.eq.s32.totalorder %s34, 0
    %p363 = por %p361, %p362
    %s364 = ssub.s32 %s28, %s35
    %p365 = scmp.eq.s32.totalorder %s364, 0
    %s367 = sadd.s32 %s366, 1
    %s368 = scalar_select %p365, %s366, %s367
    %p371 = pneg %p365
    %p372 = scmp.eq.s32.totalorder %s28, 1
    %p373 = por %p371, %p372
    %p374 = scmp.ne.s32.totalorder %s366, %s369
    %p375 = scmp.eq.s32.totalorder %s28, 0
    %p376 = por %p374, %p375
    %p377 = scmp.ne.s32.totalorder %s366, %s369
    %p378 = scmp.eq.s32.totalorder %s33, 1
    %p379 = por %p377, %p378
    %p380 = scmp.ne.s32.totalorder %s369, %s370
    %p381 = scmp.eq.s32.totalorder %s33, 0
    %p382 = por %p380, %p381
    %p383 = scmp.ne.s32.totalorder %s369, %s370
    %p384 = scmp.eq.s32.totalorder %s34, 1
    %p385 = por %p383, %p384
    %p387 = scmp.ne.s32.totalorder %s370, %s386
    %p388 = scmp.eq.s32.totalorder %s34, 0
    %p389 = por %p387, %p388
    %s390 = ssub.s32 %s28, %s35
    %p391 = scmp.eq.s32.totalorder %s390, 0
    %s393 = sadd.s32 %s392, 1
    %s394 = scalar_select %p391, %s392, %s393
    %p397 = pneg %p391
    %p398 = scmp.eq.s32.totalorder %s28, 1
    %p399 = por %p397, %p398
    %p400 = scmp.ne.s32.totalorder %s392, %s395
    %p401 = scmp.eq.s32.totalorder %s28, 0
    %p402 = por %p400, %p401
    %p403 = scmp.ne.s32.totalorder %s392, %s395
    %p404 = scmp.eq.s32.totalorder %s33, 1
    %p405 = por %p403, %p404
    %p406 = scmp.ne.s32.totalorder %s395, %s396
    %p407 = scmp.eq.s32.totalorder %s33, 0
    %p408 = por %p406, %p407
    %p409 = scmp.ne.s32.totalorder %s395, %s396
    %p410 = scmp.eq.s32.totalorder %s34, 1
    %p411 = por %p409, %p410
    %p413 = scmp.ne.s32.totalorder %s396, %s412
    %p414 = scmp.eq.s32.totalorder %s34, 0
    %p415 = por %p413, %p414
    %s416 = ssub.s32 %s28, %s35
    %p417 = scmp.eq.s32.totalorder %s416, 0
    %s419 = sadd.s32 %s418, 1
    %s420 = scalar_select %p417, %s418, %s419
    %p423 = pneg %p417
    %p424 = scmp.eq.s32.totalorder %s28, 1
    %p425 = por %p423, %p424
    %p426 = scmp.ne.s32.totalorder %s418, %s421
    %p427 = scmp.eq.s32.totalorder %s28, 0
    %p428 = por %p426, %p427
    %p429 = scmp.ne.s32.totalorder %s418, %s421
    %p430 = scmp.eq.s32.totalorder %s33, 1
    %p431 = por %p429, %p430
    %p432 = scmp.ne.s32.totalorder %s421, %s422
    %p433 = scmp.eq.s32.totalorder %s33, 0
    %p434 = por %p432, %p433
    %p435 = scmp.ne.s32.totalorder %s421, %s422
    %p436 = scmp.eq.s32.totalorder %s34, 1
    %p437 = por %p435, %p436
    %p439 = scmp.ne.s32.totalorder %s422, %s438
    %p440 = scmp.eq.s32.totalorder %s34, 0
    %p441 = por %p439, %p440
    %s442 = ssub.s32 %s28, %s35
    %p443 = scmp.eq.s32.totalorder %s442, 0
    %s445 = sadd.s32 %s444, 1
    %s446 = scalar_select %p443, %s444, %s445
    %p449 = pneg %p443
    %p450 = scmp.eq.s32.totalorder %s28, 1
    %p451 = por %p449, %p450
    %p452 = scmp.ne.s32.totalorder %s444, %s447
    %p453 = scmp.eq.s32.totalorder %s28, 0
    %p454 = por %p452, %p453
    %p455 = scmp.ne.s32.totalorder %s444, %s447
    %p456 = scmp.eq.s32.totalorder %s33, 1
    %p457 = por %p455, %p456
    %p458 = scmp.ne.s32.totalorder %s447, %s448
    %p459 = scmp.eq.s32.totalorder %s33, 0
    %p460 = por %p458, %p459
    %p461 = scmp.ne.s32.totalorder %s447, %s448
    %p462 = scmp.eq.s32.totalorder %s34, 1
    %p463 = por %p461, %p462
    %p465 = scmp.ne.s32.totalorder %s448, %s464
    %p466 = scmp.eq.s32.totalorder %s34, 0
    %p467 = por %p465, %p466
    %s468 = ssub.s32 %s28, %s35
    %p469 = scmp.eq.s32.totalorder %s468, 0
    %s471 = sadd.s32 %s470, 1
    %s472 = scalar_select %p469, %s470, %s471
    %p475 = pneg %p469
    %p476 = scmp.eq.s32.totalorder %s28, 1
    %p477 = por %p475, %p476
    %p478 = scmp.ne.s32.totalorder %s470, %s473
    %p479 = scmp.eq.s32.totalorder %s28, 0
    %p480 = por %p478, %p479
    %p481 = scmp.ne.s32.totalorder %s470, %s473
    %p482 = scmp.eq.s32.totalorder %s33, 1
    %p483 = por %p481, %p482
    %p484 = scmp.ne.s32.totalorder %s473, %s474
    %p485 = scmp.eq.s32.totalorder %s33, 0
    %p486 = por %p484, %p485
    %p487 = scmp.ne.s32.totalorder %s473, %s474
    %p488 = scmp.eq.s32.totalorder %s34, 1
    %p489 = por %p487, %p488
    %p491 = scmp.ne.s32.totalorder %s474, %s490
    %p492 = scmp.eq.s32.totalorder %s34, 0
    %p493 = por %p491, %p492
    %s494 = ssub.s32 %s28, %s35
    %p495 = scmp.eq.s32.totalorder %s494, 0
    %s497 = sadd.s32 %s496, 1
    %s498 = scalar_select %p495, %s496, %s497
    %p501 = pneg %p495
    %p502 = scmp.eq.s32.totalorder %s28, 1
    %p503 = por %p501, %p502
    %p504 = scmp.ne.s32.totalorder %s496, %s499
    %p505 = scmp.eq.s32.totalorder %s28, 0
    %p506 = por %p504, %p505
    %p507 = scmp.ne.s32.totalorder %s496, %s499
    %p508 = scmp.eq.s32.totalorder %s33, 1
    %p509 = por %p507, %p508
    %p510 = scmp.ne.s32.totalorder %s499, %s500
    %p511 = scmp.eq.s32.totalorder %s33, 0
    %p512 = por %p510, %p511
    %p513 = scmp.ne.s32.totalorder %s499, %s500
    %p514 = scmp.eq.s32.totalorder %s34, 1
    %p515 = por %p513, %p514
    %p517 = scmp.ne.s32.totalorder %s500, %s516
    %p518 = scmp.eq.s32.totalorder %s34, 0
    %p519 = por %p517, %p518
    %s520 = ssub.s32 %s28, %s35
    %p521 = scmp.eq.s32.totalorder %s520, 0
    %s523 = sadd.s32 %s522, 1
    %s524 = scalar_select %p521, %s522, %s523
    %p527 = pneg %p521
    %p528 = scmp.eq.s32.totalorder %s28, 1
    %p529 = por %p527, %p528
    %p530 = scmp.ne.s32.totalorder %s522, %s525
    %p531 = scmp.eq.s32.totalorder %s28, 0
    %p532 = por %p530, %p531
    %p533 = scmp.ne.s32.totalorder %s522, %s525
    %p534 = scmp.eq.s32.totalorder %s33, 1
    %p535 = por %p533, %p534
    %p536 = scmp.ne.s32.totalorder %s525, %s526
    %p537 = scmp.eq.s32.totalorder %s33, 0
    %p538 = por %p536, %p537
    %p539 = scmp.ne.s32.totalorder %s525, %s526
    %p540 = scmp.eq.s32.totalorder %s34, 1
    %p541 = por %p539, %p540
    %p543 = scmp.ne.s32.totalorder %s526, %s542
    %p544 = scmp.eq.s32.totalorder %s34, 0
    %p545 = por %p543, %p544
    %s546 = ssub.s32 %s28, %s35
    %p547 = scmp.eq.s32.totalorder %s546, 0
    %s549 = sadd.s32 %s548, 1
    %s550 = scalar_select %p547, %s548, %s549
    %p553 = pneg %p547
    %p554 = scmp.eq.s32.totalorder %s28, 1
    %p555 = por %p553, %p554
    %p556 = scmp.ne.s32.totalorder %s548, %s551
    %p557 = scmp.eq.s32.totalorder %s28, 0
    %p558 = por %p556, %p557
    %p559 = scmp.ne.s32.totalorder %s548, %s551
    %p560 = scmp.eq.s32.totalorder %s33, 1
    %p561 = por %p559, %p560
    %p562 = scmp.ne.s32.totalorder %s551, %s552
    %p563 = scmp.eq.s32.totalorder %s33, 0
    %p564 = por %p562, %p563
    %p565 = scmp.ne.s32.totalorder %s551, %s552
    %p566 = scmp.eq.s32.totalorder %s34, 1
    %p567 = por %p565, %p566
    %p569 = scmp.ne.s32.totalorder %s552, %s568
    %p570 = scmp.eq.s32.totalorder %s34, 0
    %p571 = por %p569, %p570
    %s572 = ssub.s32 %s28, %s35
    %p573 = scmp.eq.s32.totalorder %s572, 0
    %s575 = sadd.s32 %s574, 1
    %s576 = scalar_select %p573, %s574, %s575
    %p579 = pneg %p573
    %p580 = scmp.eq.s32.totalorder %s28, 1
    %p581 = por %p579, %p580
    %p582 = scmp.ne.s32.totalorder %s574, %s577
    %p583 = scmp.eq.s32.totalorder %s28, 0
    %p584 = por %p582, %p583
    %p585 = scmp.ne.s32.totalorder %s574, %s577
    %p586 = scmp.eq.s32.totalorder %s33, 1
    %p587 = por %p585, %p586
    %p588 = scmp.ne.s32.totalorder %s577, %s578
    %p589 = scmp.eq.s32.totalorder %s33, 0
    %p590 = por %p588, %p589
    %p591 = scmp.ne.s32.totalorder %s577, %s578
    %p592 = scmp.eq.s32.totalorder %s34, 1
    %p593 = por %p591, %p592
    %p595 = scmp.ne.s32.totalorder %s578, %s594
    %p596 = scmp.eq.s32.totalorder %s34, 0
    %p597 = por %p595, %p596
    %s599 = sadd.s32 %s598, 1
    %p602 = scmp.eq.s32.totalorder %s28, 1
    %p603 = scmp.ne.s32.totalorder %s598, %s600
    %p604 = scmp.eq.s32.totalorder %s28, 0
    %p605 = por %p603, %p604
    %p606 = scmp.ne.s32.totalorder %s598, %s600
    %p607 = scmp.eq.s32.totalorder %s33, 1
    %p608 = por %p606, %p607
    %p609 = scmp.ne.s32.totalorder %s600, %s601
    %p610 = scmp.eq.s32.totalorder %s33, 0
    %p611 = por %p609, %p610
    %p612 = scmp.ne.s32.totalorder %s600, %s601
    %p613 = scmp.eq.s32.totalorder %s34, 1
    %p614 = por %p612, %p613
    %p616 = scmp.ne.s32.totalorder %s601, %s615
    %p617 = scmp.eq.s32.totalorder %s34, 0
    %p618 = por %p616, %p617
    %p619 = scmp.le.s32.totalorder 1, %s28
    %p620 = scmp.lt.s32.totalorder %s28, 3
    %p621 = pnand %p619, %p620
    %p622 = pneg %p621
    // Predicated region
    $region9: #{text_scnet_forward.8} parent=5 // pred_check
      _
    $region10: #{text_scnet_forward.8} parent=5 // pred_check_branch
      %624 = sbr.rel (%p621) target = $region12
    $region11: #{text_scnet_forward.8} parent=5 // pred_region
      %s625 = ssub.s32 %s28, 1
      // Predicated region
      $region13: #{text_scnet_forward.8} parent=11 // pred_check
        %p626 = pneg %p49
      $region14: #{text_scnet_forward.8} parent=11 // pred_check_branch
        %628 = sbr.rel (%p626) target = $region16
      $region15: #{text_scnet_forward.8} parent=11 // pred_region
        _
      $region16: #{text_scnet_forward.8} parent=11 // pred_fallthru
        _
      // Predicated region
      $region17: #{text_scnet_forward.8} parent=11 // pred_check
        %p629 = pneg %p70
      $region18: #{text_scnet_forward.8} parent=11 // pred_check_branch
        %631 = sbr.rel (%p629) target = $region20
      $region19: #{text_scnet_forward.8} parent=11 // pred_region
        _
      $region20: #{text_scnet_forward.8} parent=11 // pred_fallthru
        _
    $region12: #{text_scnet_forward.8} parent=5 // pred_fallthru
      _
    %p632 = scmp.lt.s32.totalorder %s28, 2
    // Predicated region
    $region21: #{text_scnet_forward.8} parent=5 // pred_check
      %p633 = pneg %p632
    $region22: #{text_scnet_forward.8} parent=5 // pred_check_branch
      %635 = sbr.rel (%p633) target = $region24
    $region23: #{text_scnet_forward.8} parent=5 // pred_region
      // Predicated region
      $region25: #{text_scnet_forward.8} parent=23 // pred_check
        %p636 = pneg %p90
      $region26: #{text_scnet_forward.8} parent=23 // pred_check_branch
        %638 = sbr.rel (%p636) target = $region28
      $region27: #{text_scnet_forward.8} parent=23 // pred_region
        %p639 = scmp.lt.s32.totalorder %s28, 1
        %s640 = scalar_select %p639, %s28, 1
        %s641 = smul.addr %s640, 4
        %s642 = smul.addr %s641, 4
        %s643 = scalar_lea.vmem %s2, %s642
      $region28: #{text_scnet_forward.8} parent=23 // pred_fallthru
        _
      // Predicated region
      $region29: #{text_scnet_forward.8} parent=23 // pred_check
        %p644 = pneg %p116
      $region30: #{text_scnet_forward.8} parent=23 // pred_check_branch
        %646 = sbr.rel (%p644) target = $region32
      $region31: #{text_scnet_forward.8} parent=23 // pred_region
        %p647 = scmp.lt.s32.totalorder %s28, 1
        %s648 = scalar_select %p647, %s28, 1
        %s649 = scalar_lea.vmem %s3, %s648
      $region32: #{text_scnet_forward.8} parent=23 // pred_fallthru
        _
      // Predicated region
      $region33: #{text_scnet_forward.8} parent=23 // pred_check
        %p650 = pneg %p142
      $region34: #{text_scnet_forward.8} parent=23 // pred_check_branch
        %652 = sbr.rel (%p650) target = $region36
      $region35: #{text_scnet_forward.8} parent=23 // pred_region
        %p653 = scmp.lt.s32.totalorder %s28, 1
        %s654 = scalar_select %p653, %s28, 1
        %s655 = smul.addr %s654, 4
        %s656 = smul.addr %s655, 4
        %s657 = scalar_lea.vmem %s4, %s656
      $region36: #{text_scnet_forward.8} parent=23 // pred_fallthru
        _
      // Predicated region
      $region37: #{text_scnet_forward.8} parent=23 // pred_check
        %p658 = pneg %p168
      $region38: #{text_scnet_forward.8} parent=23 // pred_check_branch
        %660 = sbr.rel (%p658) target = $region40
      $region39: #{text_scnet_forward.8} parent=23 // pred_region
        %p661 = scmp.lt.s32.totalorder %s28, 1
        %s662 = scalar_select %p661, %s28, 1
        %s663 = scalar_lea.vmem %s5, %s662
      $region40: #{text_scnet_forward.8} parent=23 // pred_fallthru
        _
      // Predicated region
      $region41: #{text_scnet_forward.8} parent=23 // pred_check
        %p664 = pneg %p194
      $region42: #{text_scnet_forward.8} parent=23 // pred_check_branch
        %666 = sbr.rel (%p664) target = $region44
      $region43: #{text_scnet_forward.8} parent=23 // pred_region
        %p667 = scmp.lt.s32.totalorder %s28, 1
        %s668 = scalar_select %p667, %s28, 1
        %s669 = scalar_lea.vmem %s6, %s668
      $region44: #{text_scnet_forward.8} parent=23 // pred_fallthru
        _
      // Predicated region
      $region45: #{text_scnet_forward.8} parent=23 // pred_check
        %p670 = pneg %p220
      $region46: #{text_scnet_forward.8} parent=23 // pred_check_branch
        %672 = sbr.rel (%p670) target = $region48
      $region47: #{text_scnet_forward.8} parent=23 // pred_region
        %p673 = scmp.lt.s32.totalorder %s28, 1
        %s674 = scalar_select %p673, %s28, 1
        %s675 = scalar_lea.vmem %s7, %s674
      $region48: #{text_scnet_forward.8} parent=23 // pred_fallthru
        _
      // Predicated region
      $region49: #{text_scnet_forward.8} parent=23 // pred_check
        %p676 = pneg %p246
      $region50: #{text_scnet_forward.8} parent=23 // pred_check_branch
        %678 = sbr.rel (%p676) target = $region52
      $region51: #{text_scnet_forward.8} parent=23 // pred_region
        %p679 = scmp.lt.s32.totalorder %s28, 1
        %s680 = scalar_select %p679, %s28, 1
        %s681 = smul.addr %s680, 4
        %s682 = smul.addr %s681, 4
        %s683 = scalar_lea.vmem %s8, %s682
      $region52: #{text_scnet_forward.8} parent=23 // pred_fallthru
        _
      // Predicated region
      $region53: #{text_scnet_forward.8} parent=23 // pred_check
        %p684 = pneg %p272
      $region54: #{text_scnet_forward.8} parent=23 // pred_check_branch
        %686 = sbr.rel (%p684) target = $region56
      $region55: #{text_scnet_forward.8} parent=23 // pred_region
        %p687 = scmp.lt.s32.totalorder %s28, 1
        %s688 = scalar_select %p687, %s28, 1
        %s689 = scalar_lea.vmem %s9, %s688
      $region56: #{text_scnet_forward.8} parent=23 // pred_fallthru
        _
      // Predicated region
      $region57: #{text_scnet_forward.8} parent=23 // pred_check
        %p690 = pneg %p298
      $region58: #{text_scnet_forward.8} parent=23 // pred_check_branch
        %692 = sbr.rel (%p690) target = $region60
      $region59: #{text_scnet_forward.8} parent=23 // pred_region
        %p693 = scmp.lt.s32.totalorder %s28, 1
        %s694 = scalar_select %p693, %s28, 1
        %s695 = smul.addr %s694, 4
        %s696 = smul.addr %s695, 4
        %s697 = scalar_lea.vmem %s10, %s696
      $region60: #{text_scnet_forward.8} parent=23 // pred_fallthru
        _
      // Predicated region
      $region61: #{text_scnet_forward.8} parent=23 // pred_check
        %p698 = pneg %p324
      $region62: #{text_scnet_forward.8} parent=23 // pred_check_branch
        %700 = sbr.rel (%p698) target = $region64
      $region63: #{text_scnet_forward.8} parent=23 // pred_region
        %p701 = scmp.lt.s32.totalorder %s28, 1
        %s702 = scalar_select %p701, %s28, 1
        %s703 = scalar_lea.vmem %s11, %s702
      $region64: #{text_scnet_forward.8} parent=23 // pred_fallthru
        _
      // Predicated region
      $region65: #{text_scnet_forward.8} parent=23 // pred_check
        %p704 = pneg %p350
      $region66: #{text_scnet_forward.8} parent=23 // pred_check_branch
        %706 = sbr.rel (%p704) target = $region68
      $region67: #{text_scnet_forward.8} parent=23 // pred_region
        %p707 = scmp.lt.s32.totalorder %s28, 1
        %s708 = scalar_select %p707, %s28, 1
        %s709 = smul.addr %s708, 4
        %s710 = smul.addr %s709, 4
        %s711 = scalar_lea.vmem %s12, %s710
      $region68: #{text_scnet_forward.8} parent=23 // pred_fallthru
        _
      // Predicated region
      $region69: #{text_scnet_forward.8} parent=23 // pred_check
        %p712 = pneg %p376
      $region70: #{text_scnet_forward.8} parent=23 // pred_check_branch
        %714 = sbr.rel (%p712) target = $region72
      $region71: #{text_scnet_forward.8} parent=23 // pred_region
        %p715 = scmp.lt.s32.totalorder %s28, 1
        %s716 = scalar_select %p715, %s28, 1
        %s717 = scalar_lea.vmem %s13, %s716
      $region72: #{text_scnet_forward.8} parent=23 // pred_fallthru
        _
      // Predicated region
      $region73: #{text_scnet_forward.8} parent=23 // pred_check
        %p718 = pneg %p402
      $region74: #{text_scnet_forward.8} parent=23 // pred_check_branch
        %720 = sbr.rel (%p718) target = $region76
      $region75: #{text_scnet_forward.8} parent=23 // pred_region
        %p721 = scmp.lt.s32.totalorder %s28, 1
        %s722 = scalar_select %p721, %s28, 1
        %s723 = scalar_lea.vmem %s14, %s722
      $region76: #{text_scnet_forward.8} parent=23 // pred_fallthru
        _
      // Predicated region
      $region77: #{text_scnet_forward.8} parent=23 // pred_check
        %p724 = pneg %p428
      $region78: #{text_scnet_forward.8} parent=23 // pred_check_branch
        %726 = sbr.rel (%p724) target = $region80
      $region79: #{text_scnet_forward.8} parent=23 // pred_region
        %p727 = scmp.lt.s32.totalorder %s28, 1
        %s728 = scalar_select %p727, %s28, 1
        %s729 = scalar_lea.vmem %s15, %s728
      $region80: #{text_scnet_forward.8} parent=23 // pred_fallthru
        _
      // Predicated region
      $region81: #{text_scnet_forward.8} parent=23 // pred_check
        %p730 = pneg %p454
      $region82: #{text_scnet_forward.8} parent=23 // pred_check_branch
        %732 = sbr.rel (%p730) target = $region84
      $region83: #{text_scnet_forward.8} parent=23 // pred_region
        %p733 = scmp.lt.s32.totalorder %s28, 1
        %s734 = scalar_select %p733, %s28, 1
        %s735 = smul.addr %s734, 4
        %s736 = smul.addr %s735, 4
        %s737 = scalar_lea.vmem %s16, %s736
      $region84: #{text_scnet_forward.8} parent=23 // pred_fallthru
        _
      // Predicated region
      $region85: #{text_scnet_forward.8} parent=23 // pred_check
        %p738 = pneg %p480
      $region86: #{text_scnet_forward.8} parent=23 // pred_check_branch
        %740 = sbr.rel (%p738) target = $region88
      $region87: #{text_scnet_forward.8} parent=23 // pred_region
        %p741 = scmp.lt.s32.totalorder %s28, 1
        %s742 = scalar_select %p741, %s28, 1
        %s743 = scalar_lea.vmem %s17, %s742
      $region88: #{text_scnet_forward.8} parent=23 // pred_fallthru
        _
      // Predicated region
      $region89: #{text_scnet_forward.8} parent=23 // pred_check
        %p744 = pneg %p506
      $region90: #{text_scnet_forward.8} parent=23 // pred_check_branch
        %746 = sbr.rel (%p744) target = $region92
      $region91: #{text_scnet_forward.8} parent=23 // pred_region
        %p747 = scmp.lt.s32.totalorder %s28, 1
        %s748 = scalar_select %p747, %s28, 1
        %s749 = smul.addr %s748, 8
        %s750 = smul.addr %s749, 4
        %s751 = scalar_lea.vmem %s18, %s750
      $region92: #{text_scnet_forward.8} parent=23 // pred_fallthru
        _
      // Predicated region
      $region93: #{text_scnet_forward.8} parent=23 // pred_check
        %p752 = pneg %p532
      $region94: #{text_scnet_forward.8} parent=23 // pred_check_branch
        %754 = sbr.rel (%p752) target = $region96
      $region95: #{text_scnet_forward.8} parent=23 // pred_region
        %p755 = scmp.lt.s32.totalorder %s28, 1
        %s756 = scalar_select %p755, %s28, 1
        %s757 = scalar_lea.vmem %s19, %s756
      $region96: #{text_scnet_forward.8} parent=23 // pred_fallthru
        _
      // Predicated region
      $region97: #{text_scnet_forward.8} parent=23 // pred_check
        %p758 = pneg %p558
      $region98: #{text_scnet_forward.8} parent=23 // pred_check_branch
        %760 = sbr.rel (%p758) target = $region100
      $region99: #{text_scnet_forward.8} parent=23 // pred_region
        %p761 = scmp.lt.s32.totalorder %s28, 1
        %s762 = scalar_select %p761, %s28, 1
        %s763 = scalar_lea.vmem %s20, %s762
      $region100: #{text_scnet_forward.8} parent=23 // pred_fallthru
        _
      // Predicated region
      $region101: #{text_scnet_forward.8} parent=23 // pred_check
        %p764 = pneg %p584
      $region102: #{text_scnet_forward.8} parent=23 // pred_check_branch
        %766 = sbr.rel (%p764) target = $region104
      $region103: #{text_scnet_forward.8} parent=23 // pred_region
        %p767 = scmp.lt.s32.totalorder %s28, 1
        %s768 = scalar_select %p767, %s28, 1
        %s769 = scalar_lea.vmem %s21, %s768
      $region104: #{text_scnet_forward.8} parent=23 // pred_fallthru
        _
    $region24: #{text_scnet_forward.8} parent=5 // pred_fallthru
      _
    %p770 = scmp.le.s32.totalorder 1, %s28
    %p771 = scmp.lt.s32.totalorder %s28, 3
    %p772 = pnand %p770, %p771
    %p773 = pneg %p772
    // Predicated region
    $region105: #{text_scnet_forward.8} parent=5 // pred_check
      _
    $region106: #{text_scnet_forward.8} parent=5 // pred_check_branch
      %775 = sbr.rel (%p772) target = $region108
    $region107: #{text_scnet_forward.8} parent=5 // pred_region
      %s776 = ssub.s32 %s28, 1
      %p777 = pneg %p49
      %p778 = pneg %p46
      %p779 = pneg %p70
      %p780 = pneg %p67
      %p781 = scmp.lt.s32.totalorder %s33, 1
      %s782 = scalar_select %p781, %s33, 1
      %s783 = smul.addr %s782, 4
      %s784 = smul.addr %s783, 4
      %s785 = scalar_lea.vmem %s2, %s784
      %p786 = pneg %p96
      %p787 = pneg %p93
      %p788 = scmp.lt.s32.totalorder %s33, 1
      %s789 = scalar_select %p788, %s33, 1
      %s790 = scalar_lea.vmem %s3, %s789
      %p791 = pneg %p122
      %p792 = pneg %p119
      %p793 = scmp.lt.s32.totalorder %s33, 1
      %s794 = scalar_select %p793, %s33, 1
      %s795 = smul.addr %s794, 4
      %s796 = smul.addr %s795, 4
      %s797 = scalar_lea.vmem %s4, %s796
      %p798 = pneg %p148
      %p799 = pneg %p145
      %p800 = scmp.lt.s32.totalorder %s33, 1
      %s801 = scalar_select %p800, %s33, 1
      %s802 = scalar_lea.vmem %s5, %s801
      %p803 = pneg %p174
      %p804 = pneg %p171
      %p805 = scmp.lt.s32.totalorder %s33, 1
      %s806 = scalar_select %p805, %s33, 1
      %s807 = scalar_lea.vmem %s6, %s806
      %p808 = pneg %p200
      %p809 = pneg %p197
      %p810 = scmp.lt.s32.totalorder %s33, 1
      %s811 = scalar_select %p810, %s33, 1
      %s812 = scalar_lea.vmem %s7, %s811
      %p813 = pneg %p226
      %p814 = pneg %p223
      %p815 = scmp.lt.s32.totalorder %s33, 1
      %s816 = scalar_select %p815, %s33, 1
      %s817 = smul.addr %s816, 4
      %s818 = smul.addr %s817, 4
      %s819 = scalar_lea.vmem %s8, %s818
      %p820 = pneg %p252
      %p821 = pneg %p249
      %p822 = scmp.lt.s32.totalorder %s33, 1
      %s823 = scalar_select %p822, %s33, 1
      %s824 = scalar_lea.vmem %s9, %s823
      %p825 = pneg %p278
      %p826 = pneg %p275
      %p827 = scmp.lt.s32.totalorder %s33, 1
      %s828 = scalar_select %p827, %s33, 1
      %s829 = smul.addr %s828, 4
      %s830 = smul.addr %s829, 4
      %s831 = scalar_lea.vmem %s10, %s830
      %p832 = pneg %p304
      %p833 = pneg %p301
      %p834 = scmp.lt.s32.totalorder %s33, 1
      %s835 = scalar_select %p834, %s33, 1
      %s836 = scalar_lea.vmem %s11, %s835
      %p837 = pneg %p330
      %p838 = pneg %p327
      %p839 = scmp.lt.s32.totalorder %s33, 1
      %s840 = scalar_select %p839, %s33, 1
      %s841 = smul.addr %s840, 4
      %s842 = smul.addr %s841, 4
      %s843 = scalar_lea.vmem %s12, %s842
      %p844 = pneg %p356
      %p845 = pneg %p353
      %p846 = scmp.lt.s32.totalorder %s33, 1
      %s847 = scalar_select %p846, %s33, 1
      %s848 = scalar_lea.vmem %s13, %s847
      %p849 = pneg %p382
      %p850 = pneg %p379
      %p851 = scmp.lt.s32.totalorder %s33, 1
      %s852 = scalar_select %p851, %s33, 1
      %s853 = scalar_lea.vmem %s14, %s852
      %p854 = pneg %p408
      %p855 = pneg %p405
      %p856 = scmp.lt.s32.totalorder %s33, 1
      %s857 = scalar_select %p856, %s33, 1
      %s858 = scalar_lea.vmem %s15, %s857
      %p859 = pneg %p434
      %p860 = pneg %p431
      %p861 = scmp.lt.s32.totalorder %s33, 1
      %s862 = scalar_select %p861, %s33, 1
      %s863 = smul.addr %s862, 4
      %s864 = smul.addr %s863, 4
      %s865 = scalar_lea.vmem %s16, %s864
      %p866 = pneg %p460
      %p867 = pneg %p457
      %p868 = scmp.lt.s32.totalorder %s33, 1
      %s869 = scalar_select %p868, %s33, 1
      %s870 = scalar_lea.vmem %s17, %s869
      %p871 = pneg %p486
      %p872 = pneg %p483
      %p873 = scmp.lt.s32.totalorder %s33, 1
      %s874 = scalar_select %p873, %s33, 1
      %s875 = smul.addr %s874, 8
      %s876 = smul.addr %s875, 4
      %s877 = scalar_lea.vmem %s18, %s876
      %p878 = pneg %p512
      %p879 = pneg %p509
      %p880 = scmp.lt.s32.totalorder %s33, 1
      %s881 = scalar_select %p880, %s33, 1
      %s882 = scalar_lea.vmem %s19, %s881
      %p883 = pneg %p538
      %p884 = pneg %p535
      %p885 = scmp.lt.s32.totalorder %s33, 1
      %s886 = scalar_select %p885, %s33, 1
      %s887 = scalar_lea.vmem %s20, %s886
      %p888 = pneg %p564
      %p889 = pneg %p561
      %p890 = scmp.lt.s32.totalorder %s33, 1
      %s891 = scalar_select %p890, %s33, 1
      %s892 = scalar_lea.vmem %s21, %s891
      %p893 = pneg %p590
      %p894 = pneg %p587
      %p895 = pneg %p611
      %p896 = pneg %p608
      %p897 = scmp.lt.s32.totalorder %s33, 1
      %s898 = scalar_select %p897, %s33, 1
      %s899 = smul.addr %s898, 4
      %s900 = smul.addr %s899, 4
      %s901 = scalar_lea.vmem %s2, %s900
      %p902 = scmp.lt.s32.totalorder %s33, 1
      %s903 = scalar_select %p902, %s33, 1
      %s904 = scalar_lea.vmem %s3, %s903
      %p905 = scmp.lt.s32.totalorder %s33, 1
      %s906 = scalar_select %p905, %s33, 1
      %s907 = smul.addr %s906, 4
      %s908 = smul.addr %s907, 4
      %s909 = scalar_lea.vmem %s4, %s908
      %p910 = scmp.lt.s32.totalorder %s33, 1
      %s911 = scalar_select %p910, %s33, 1
      %s912 = scalar_lea.vmem %s5, %s911
      %p913 = scmp.lt.s32.totalorder %s33, 1
      %s914 = scalar_select %p913, %s33, 1
      %s915 = scalar_lea.vmem %s6, %s914
      %p916 = scmp.lt.s32.totalorder %s33, 1
      %s917 = scalar_select %p916, %s33, 1
      %s918 = scalar_lea.vmem %s7, %s917
      %p919 = scmp.lt.s32.totalorder %s33, 1
      %s920 = scalar_select %p919, %s33, 1
      %s921 = smul.addr %s920, 4
      %s922 = smul.addr %s921, 4
      %s923 = scalar_lea.vmem %s8, %s922
      %p924 = scmp.lt.s32.totalorder %s33, 1
      %s925 = scalar_select %p924, %s33, 1
      %s926 = scalar_lea.vmem %s9, %s925
      %p927 = scmp.lt.s32.totalorder %s33, 1
      %s928 = scalar_select %p927, %s33, 1
      %s929 = smul.addr %s928, 4
      %s930 = smul.addr %s929, 4
      %s931 = scalar_lea.vmem %s10, %s930
      %p932 = scmp.lt.s32.totalorder %s33, 1
      %s933 = scalar_select %p932, %s33, 1
      %s934 = scalar_lea.vmem %s11, %s933
      %p935 = scmp.lt.s32.totalorder %s33, 1
      %s936 = scalar_select %p935, %s33, 1
      %s937 = smul.addr %s936, 4
      %s938 = smul.addr %s937, 4
      %s939 = scalar_lea.vmem %s12, %s938
      %p940 = scmp.lt.s32.totalorder %s33, 1
      %s941 = scalar_select %p940, %s33, 1
      %s942 = scalar_lea.vmem %s13, %s941
      %p943 = scmp.lt.s32.totalorder %s33, 1
      %s944 = scalar_select %p943, %s33, 1
      %s945 = scalar_lea.vmem %s14, %s944
      %p946 = scmp.lt.s32.totalorder %s33, 1
      %s947 = scalar_select %p946, %s33, 1
      %s948 = scalar_lea.vmem %s15, %s947
      %p949 = scmp.lt.s32.totalorder %s33, 1
      %s950 = scalar_select %p949, %s33, 1
      %s951 = smul.addr %s950, 4
      %s952 = smul.addr %s951, 4
      %s953 = scalar_lea.vmem %s16, %s952
      %p954 = scmp.lt.s32.totalorder %s33, 1
      %s955 = scalar_select %p954, %s33, 1
      %s956 = scalar_lea.vmem %s17, %s955
      %p957 = scmp.lt.s32.totalorder %s33, 1
      %s958 = scalar_select %p957, %s33, 1
      %s959 = smul.addr %s958, 8
      %s960 = smul.addr %s959, 4
      %s961 = scalar_lea.vmem %s18, %s960
      %p962 = scmp.lt.s32.totalorder %s33, 1
      %s963 = scalar_select %p962, %s33, 1
      %s964 = scalar_lea.vmem %s19, %s963
      %p965 = scmp.lt.s32.totalorder %s33, 1
      %s966 = scalar_select %p965, %s33, 1
      %s967 = scalar_lea.vmem %s20, %s966
      %p968 = scmp.lt.s32.totalorder %s33, 1
      %s969 = scalar_select %p968, %s33, 1
      %s970 = scalar_lea.vmem %s21, %s969
      %p972 = scmp.eq.s32.totalorder %s33, 0
      // Predicated region
      $region109: #{text_scnet_forward.8} parent=107 // pred_check
        %p973 = pneg %p972
      $region110: #{text_scnet_forward.8} parent=107 // pred_check_branch
        %975 = sbr.rel (%p973) target = $region112
      $region111: #{text_scnet_forward.8} parent=107 // pred_region
        %v976 = vld [vmem:[%s0] sm:$0x3]
        %v977 = vld [vmem:[%s0 + $0x2] sm:$0x3]
        %v978 = vld [vmem:[%s0 + $0x4] sm:$0x3]
        %v979 = vld [vmem:[%s0 + $0x6] sm:$0x3]
        %v980 = vld [vmem:[%s0 + $0x8] sm:$0x3]
        %v981 = vld [vmem:[%s0 + $0xa] sm:$0x3]
        %v982 = vld [vmem:[%s0 + $0xc] sm:$0x3]
        %v983 = vld [vmem:[%s0 + $0xe] sm:$0x3]
        %992 = vst [vmem:[#allocation1] ss:$4 sm:$0xff] %v976
        %s993 = scalar_lea.vmem [#allocation1], 1
        %994 = vst [vmem:[%s993] ss:$4 sm:$0xff] %v977
        %s995 = scalar_lea.vmem [#allocation1], 2
        %996 = vst [vmem:[%s995] ss:$4 sm:$0xff] %v978
        %s997 = scalar_lea.vmem [#allocation1], 3
        %998 = vst [vmem:[%s997] ss:$4 sm:$0xff] %v979
        %s999 = scalar_lea.vmem [#allocation1], 32
        %1000 = vst [vmem:[%s999] ss:$4 sm:$0xff] %v980
        %s1001 = scalar_lea.vmem [#allocation1], 33
        %1002 = vst [vmem:[%s1001] ss:$4 sm:$0xff] %v981
        %s1003 = scalar_lea.vmem [#allocation1], 34
        %1004 = vst [vmem:[%s1003] ss:$4 sm:$0xff] %v982
        %s1005 = scalar_lea.vmem [#allocation1], 35
        %1006 = vst [vmem:[%s1005] ss:$4 sm:$0xff] %v983
        %v1007 = vld.sshfl [vmem:[#allocation1] sm:$0xff pattern:$0x73625140]
        %v1008 = vld.sshfl [vmem:[#allocation1 + $0x20] sm:$0xff pattern:$0x73625140]
        %vm1011 = vcmask 261120
        %1012 = vst.msk [vmem:[#allocation2] sm:$0xff] %vm1011, %v1007
        %1013 = vst.msk [vmem:[#allocation2 + $0x8] sm:$0xff] %vm1011, %v1008
      $region112: #{text_scnet_forward.8} parent=107 // pred_fallthru
        _
      %v1014 = vld [vmem:[#allocation2] sm:$0xff]
      %v1015 = vld [vmem:[#allocation2 + $0x8] sm:$0xff]
      %v1016 = vld [vmem:[%s1] sm:$0x3]
      %v1017 = vld [vmem:[%s1 + $0x2] sm:$0x3]
      %v1018 = vld [vmem:[%s1 + $0x4] sm:$0x3]
      %v1019 = vld [vmem:[%s1 + $0x6] sm:$0x3]
      %v1020 = vld [vmem:[%s1 + $0x8] sm:$0x3]
      %v1021 = vld [vmem:[%s1 + $0xa] sm:$0x3]
      %v1022 = vld [vmem:[%s1 + $0xc] sm:$0x3]
      %v1023 = vld [vmem:[%s1 + $0xe] sm:$0x3]
      %v1024 = vld [vmem:[%s901] sm:$0xf]
      %v1025 = vld [vmem:[%s901 + $0x4] sm:$0xf]
      %v1026 = vld [vmem:[%s901 + $0x8] sm:$0xf]
      %v1027 = vld [vmem:[%s901 + $0xc] sm:$0xf]
      %v1028 = vpack.c.bf16 %v1015, %v1014
      %v1029 = vld [vmem:[%s904] sm:$0x1]
      %v1031 = vperm.slane %v1029, 0
      %v1037 = vunpack.c.l.b16 %v1024
      %v1038 = vunpack.c.l.b16 %v1025
      %v1039 = vunpack.c.l.b16 %v1026
      %v1040 = vunpack.c.l.b16 %v1027
      %v1041 = vpack.c.b16 %v1038, %v1037
      %v1042 = vpack.c.b16 %v1040, %v1039
      %vm1045 = vcmask 261120
      %v1047 = vsel %vm1045, %v1028, 0
      %1049 = vmatpush.bf16.msra.mxu0 0
      %1050 = vmatpush.bf16.msra.mxu0 0
      %1051 = vmatpush.bf16.msra.mxu0 0
      %1052 = vmatpush.bf16.msra.mxu0 0
      %1053 = vmatpush.bf16.msra.mxu0 0
      %1054 = vmatpush.bf16.msra.mxu0 0
      %1055 = vmatpush.bf16.msra.mxu0 %v1042
      %1056 = vmatpush.bf16.msra.mxu0 %v1041
      %1057 = vmatmul.bf16.gmra.mxu0 %v1047
      %v1058 = vpop.f32.mrf.mxu0
      %v1059 = vadd.f32 %v1031, %v1058
      %v1060 = vpop.f32.mrf.mxu0
      %v1061 = vadd.f32 %v1031, %v1060
      %1062 = vdwg.mxu0
      %v1065 = vrot.slane %v1059, 2
      %v1066 = vrot.slane %v1059, 4
      %v1067 = vrot.slane %v1059, 6
      %v1068 = vrot.slane %v1061, 2
      %v1069 = vrot.slane %v1061, 4
      %v1070 = vrot.slane %v1061, 6
      %v1077 = vpack.c.bf16 %v1059, %v1059
      %v1078 = vpack.c.bf16 %v1065, %v1065
      %v1079 = vpack.c.bf16 %v1066, %v1066
      %v1080 = vpack.c.bf16 %v1067, %v1067
      %v1081 = vpack.c.bf16 %v1061, %v1061
      %v1082 = vpack.c.bf16 %v1068, %v1068
      %v1083 = vpack.c.bf16 %v1069, %v1069
      %v1084 = vpack.c.bf16 %v1070, %v1070
      %v1086 = vunpack.c.l.b16 %v1077
      %v1087 = vpack.c.b16 %v1086, %v1086
      %1088 = vrot.lane.b32.xlu0 %v1087, 96
      %v1089 = vpop.permute.xlu0 %1088
      %vm1090 = vcmask 64512
      %v1092 = vsel %vm1090, %v1077, 0
      %v1095 = vsel %vm1090, %v1089, 0
      %1097 = vmatpush.bf16.xpose.msra.mxu0 0
      %1098 = vmatpush.bf16.xpose.msra.mxu0 0
      %1099 = vmatpush.bf16.xpose.msra.mxu0 0
      %1100 = vmatpush.bf16.xpose.msra.mxu0 0
      %1101 = vmatpush.bf16.xpose.msra.mxu0 0
      %1102 = vmatpush.bf16.xpose.msra.mxu0 0
      %1103 = vmatpush.bf16.xpose.msra.mxu0 0
      %1104 = vmatpush.bf16.xpose.msra.mxu0 %v1095
      %1105 = vmatmul.bf16.gmra.mxu0 %v1092
      %v1106 = vpop.f32.mrf.mxu0
      %v1107 = vadd.f32 0.0, %v1106
      %v1108 = vpop.f32.mrf.mxu0
      %1109 = vdwg.mxu0
      %v1111 = vunpack.c.l.b16 %v1078
      %v1112 = vpack.c.b16 %v1111, %v1111
      %1113 = vrot.lane.b32.xlu0 %v1112, 96
      %v1114 = vpop.permute.xlu0 %1113
      %v1116 = vsel %vm1090, %v1078, 0
      %v1119 = vsel %vm1090, %v1114, 0
      %1121 = vmatpush.bf16.xpose.msra.mxu0 0
      %1122 = vmatpush.bf16.xpose.msra.mxu0 0
      %1123 = vmatpush.bf16.xpose.msra.mxu0 0
      %1124 = vmatpush.bf16.xpose.msra.mxu0 0
      %1125 = vmatpush.bf16.xpose.msra.mxu0 0
      %1126 = vmatpush.bf16.xpose.msra.mxu0 0
      %1127 = vmatpush.bf16.xpose.msra.mxu0 0
      %1128 = vmatpush.bf16.xpose.msra.mxu0 %v1119
      %1129 = vmatmul.bf16.gmra.mxu0 %v1116
      %v1130 = vpop.f32.mrf.mxu0
      %v1131 = vadd.f32 0.0, %v1130
      %v1132 = vpop.f32.mrf.mxu0
      %1133 = vdwg.mxu0
      %v1135 = vunpack.c.l.b16 %v1079
      %v1136 = vpack.c.b16 %v1135, %v1135
      %1137 = vrot.lane.b32.xlu0 %v1136, 96
      %v1138 = vpop.permute.xlu0 %1137
      %v1140 = vsel %vm1090, %v1079, 0
      %v1143 = vsel %vm1090, %v1138, 0
      %1145 = vmatpush.bf16.xpose.msra.mxu0 0
      %1146 = vmatpush.bf16.xpose.msra.mxu0 0
      %1147 = vmatpush.bf16.xpose.msra.mxu0 0
      %1148 = vmatpush.bf16.xpose.msra.mxu0 0
      %1149 = vmatpush.bf16.xpose.msra.mxu0 0
      %1150 = vmatpush.bf16.xpose.msra.mxu0 0
      %1151 = vmatpush.bf16.xpose.msra.mxu0 0
      %1152 = vmatpush.bf16.xpose.msra.mxu0 %v1143
      %1153 = vmatmul.bf16.gmra.mxu0 %v1140
      %v1154 = vpop.f32.mrf.mxu0
      %v1155 = vadd.f32 0.0, %v1154
      %v1156 = vpop.f32.mrf.mxu0
      %1157 = vdwg.mxu0
      %v1159 = vunpack.c.l.b16 %v1080
      %v1160 = vpack.c.b16 %v1159, %v1159
      %1161 = vrot.lane.b32.xlu0 %v1160, 96
      %v1162 = vpop.permute.xlu0 %1161
      %v1164 = vsel %vm1090, %v1080, 0
      %v1167 = vsel %vm1090, %v1162, 0
      %1169 = vmatpush.bf16.xpose.msra.mxu0 0
      %1170 = vmatpush.bf16.xpose.msra.mxu0 0
      %1171 = vmatpush.bf16.xpose.msra.mxu0 0
      %1172 = vmatpush.bf16.xpose.msra.mxu0 0
      %1173 = vmatpush.bf16.xpose.msra.mxu0 0
      %1174 = vmatpush.bf16.xpose.msra.mxu0 0
      %1175 = vmatpush.bf16.xpose.msra.mxu0 0
      %1176 = vmatpush.bf16.xpose.msra.mxu0 %v1167
      %1177 = vmatmul.bf16.gmra.mxu0 %v1164
      %v1178 = vpop.f32.mrf.mxu0
      %v1179 = vadd.f32 0.0, %v1178
      %v1180 = vpop.f32.mrf.mxu0
      %1181 = vdwg.mxu0
      %v1183 = vunpack.c.l.b16 %v1081
      %v1184 = vpack.c.b16 %v1183, %v1183
      %1185 = vrot.lane.b32.xlu0 %v1184, 96
      %v1186 = vpop.permute.xlu0 %1185
      %v1188 = vsel %vm1090, %v1081, 0
      %v1191 = vsel %vm1090, %v1186, 0
      %1193 = vmatpush.bf16.xpose.msra.mxu0 0
      %1194 = vmatpush.bf16.xpose.msra.mxu0 0
      %1195 = vmatpush.bf16.xpose.msra.mxu0 0
      %1196 = vmatpush.bf16.xpose.msra.mxu0 0
      %1197 = vmatpush.bf16.xpose.msra.mxu0 0
      %1198 = vmatpush.bf16.xpose.msra.mxu0 0
      %1199 = vmatpush.bf16.xpose.msra.mxu0 0
      %1200 = vmatpush.bf16.xpose.msra.mxu0 %v1191
      %1201 = vmatmul.bf16.gmra.mxu0 %v1188
      %v1202 = vpop.f32.mrf.mxu0
      %v1203 = vadd.f32 0.0, %v1202
      %v1204 = vpop.f32.mrf.mxu0
      %1205 = vdwg.mxu0
      %v1207 = vunpack.c.l.b16 %v1082
      %v1208 = vpack.c.b16 %v1207, %v1207
      %1209 = vrot.lane.b32.xlu0 %v1208, 96
      %v1210 = vpop.permute.xlu0 %1209
      %v1212 = vsel %vm1090, %v1082, 0
      %v1215 = vsel %vm1090, %v1210, 0
      %1217 = vmatpush.bf16.xpose.msra.mxu0 0
      %1218 = vmatpush.bf16.xpose.msra.mxu0 0
      %1219 = vmatpush.bf16.xpose.msra.mxu0 0
      %1220 = vmatpush.bf16.xpose.msra.mxu0 0
      %1221 = vmatpush.bf16.xpose.msra.mxu0 0
      %1222 = vmatpush.bf16.xpose.msra.mxu0 0
      %1223 = vmatpush.bf16.xpose.msra.mxu0 0
      %1224 = vmatpush.bf16.xpose.msra.mxu0 %v1215
      %1225 = vmatmul.bf16.gmra.mxu0 %v1212
      %v1226 = vpop.f32.mrf.mxu0
      %v1227 = vadd.f32 0.0, %v1226
      %v1228 = vpop.f32.mrf.mxu0
      %1229 = vdwg.mxu0
      %v1231 = vunpack.c.l.b16 %v1083
      %v1232 = vpack.c.b16 %v1231, %v1231
      %1233 = vrot.lane.b32.xlu0 %v1232, 96
      %v1234 = vpop.permute.xlu0 %1233
      %v1236 = vsel %vm1090, %v1083, 0
      %v1239 = vsel %vm1090, %v1234, 0
      %1241 = vmatpush.bf16.xpose.msra.mxu0 0
      %1242 = vmatpush.bf16.xpose.msra.mxu0 0
      %1243 = vmatpush.bf16.xpose.msra.mxu0 0
      %1244 = vmatpush.bf16.xpose.msra.mxu0 0
      %1245 = vmatpush.bf16.xpose.msra.mxu0 0
      %1246 = vmatpush.bf16.xpose.msra.mxu0 0
      %1247 = vmatpush.bf16.xpose.msra.mxu0 0
      %1248 = vmatpush.bf16.xpose.msra.mxu0 %v1239
      %1249 = vmatmul.bf16.gmra.mxu0 %v1236
      %v1250 = vpop.f32.mrf.mxu0
      %v1251 = vadd.f32 0.0, %v1250
      %v1252 = vpop.f32.mrf.mxu0
      %1253 = vdwg.mxu0
      %v1255 = vunpack.c.l.b16 %v1084
      %v1256 = vpack.c.b16 %v1255, %v1255
      %1257 = vrot.lane.b32.xlu0 %v1256, 96
      %v1258 = vpop.permute.xlu0 %1257
      %v1260 = vsel %vm1090, %v1084, 0
      %v1263 = vsel %vm1090, %v1258, 0
      %1265 = vmatpush.bf16.xpose.msra.mxu0 0
      %1266 = vmatpush.bf16.xpose.msra.mxu0 0
      %1267 = vmatpush.bf16.xpose.msra.mxu0 0
      %1268 = vmatpush.bf16.xpose.msra.mxu0 0
      %1269 = vmatpush.bf16.xpose.msra.mxu0 0
      %1270 = vmatpush.bf16.xpose.msra.mxu0 0
      %1271 = vmatpush.bf16.xpose.msra.mxu0 0
      %1272 = vmatpush.bf16.xpose.msra.mxu0 %v1263
      %1273 = vmatmul.bf16.gmra.mxu0 %v1260
      %v1274 = vpop.f32.mrf.mxu0
      %v1275 = vadd.f32 0.0, %v1274
      %v1276 = vpop.f32.mrf.mxu0
      %1277 = vdwg.mxu0
      %v1278 = vmul.f32 %v1107, 0.35355338
      %v1279 = vmul.f32 %v1131, 0.35355338
      %v1280 = vmul.f32 %v1155, 0.35355338
      %v1281 = vmul.f32 %v1179, 0.35355338
      %v1282 = vmul.f32 %v1203, 0.35355338
      %v1283 = vmul.f32 %v1227, 0.35355338
      %v1284 = vmul.f32 %v1251, 0.35355338
      %v1285 = vmul.f32 %v1275, 0.35355338
      %vm1286 = vcmask 9216
      %v1287 = vsel %vm1286, %v1278, -inf
      %1288 = vmax.xlane.f32.xlu0 %v1287
      %v1289 = vpop.xlane.xlu0 %1288
      %v1290 = vsel %vm1286, %v1279, -inf
      %1291 = vmax.xlane.f32.xlu0 %v1290
      %v1292 = vpop.xlane.xlu0 %1291
      %v1293 = vsel %vm1286, %v1280, -inf
      %1294 = vmax.xlane.f32.xlu0 %v1293
      %v1295 = vpop.xlane.xlu0 %1294
      %v1296 = vsel %vm1286, %v1281, -inf
      %1297 = vmax.xlane.f32.xlu0 %v1296
      %v1298 = vpop.xlane.xlu0 %1297
      %v1299 = vsel %vm1286, %v1282, -inf
      %1300 = vmax.xlane.f32.xlu0 %v1299
      %v1301 = vpop.xlane.xlu0 %1300
      %v1302 = vsel %vm1286, %v1283, -inf
      %1303 = vmax.xlane.f32.xlu0 %v1302
      %v1304 = vpop.xlane.xlu0 %1303
      %v1305 = vsel %vm1286, %v1284, -inf
      %1306 = vmax.xlane.f32.xlu0 %v1305
      %v1307 = vpop.xlane.xlu0 %1306
      %v1308 = vsel %vm1286, %v1285, -inf
      %1309 = vmax.xlane.f32.xlu0 %v1308
      %v1310 = vpop.xlane.xlu0 %1309
      %v1311 = vsub.f32 %v1278, %v1289
      %v1312 = vsub.f32 %v1279, %v1292
      %v1313 = vsub.f32 %v1280, %v1295
      %v1314 = vsub.f32 %v1281, %v1298
      %v1315 = vsub.f32 %v1282, %v1301
      %v1316 = vsub.f32 %v1283, %v1304
      %v1317 = vsub.f32 %v1284, %v1307
      %v1318 = vsub.f32 %v1285, %v1310
      %v1319 = vmul.f32 %v1311, 1.442695
      %v1320 = vpow.pop %v1319
      %v1321 = vmul.f32 %v1312, 1.442695
      %v1322 = vpow.pop %v1321
      %v1323 = vmul.f32 %v1313, 1.442695
      %v1324 = vpow.pop %v1323
      %v1325 = vmul.f32 %v1314, 1.442695
      %v1326 = vpow.pop %v1325
      %v1327 = vmul.f32 %v1315, 1.442695
      %v1328 = vpow.pop %v1327
      %v1329 = vmul.f32 %v1316, 1.442695
      %v1330 = vpow.pop %v1329
      %v1331 = vmul.f32 %v1317, 1.442695
      %v1332 = vpow.pop %v1331
      %v1333 = vmul.f32 %v1318, 1.442695
      %v1334 = vpow.pop %v1333
      %v1335 = vsel %vm1286, %v1320, 0.0
      %1336 = vadd.xlane.f32.xlu0 %v1335
      %v1337 = vpop.xlane.xlu0 %1336
      %v1338 = vsel %vm1286, %v1322, 0.0
      %1339 = vadd.xlane.f32.xlu0 %v1338
      %v1340 = vpop.xlane.xlu0 %1339
      %v1341 = vsel %vm1286, %v1324, 0.0
      %1342 = vadd.xlane.f32.xlu0 %v1341
      %v1343 = vpop.xlane.xlu0 %1342
      %v1344 = vsel %vm1286, %v1326, 0.0
      %1345 = vadd.xlane.f32.xlu0 %v1344
      %v1346 = vpop.xlane.xlu0 %1345
      %v1347 = vsel %vm1286, %v1328, 0.0
      %1348 = vadd.xlane.f32.xlu0 %v1347
      %v1349 = vpop.xlane.xlu0 %1348
      %v1350 = vsel %vm1286, %v1330, 0.0
      %1351 = vadd.xlane.f32.xlu0 %v1350
      %v1352 = vpop.xlane.xlu0 %1351
      %v1353 = vsel %vm1286, %v1332, 0.0
      %1354 = vadd.xlane.f32.xlu0 %v1353
      %v1355 = vpop.xlane.xlu0 %1354
      %v1356 = vsel %vm1286, %v1334, 0.0
      %1357 = vadd.xlane.f32.xlu0 %v1356
      %v1358 = vpop.xlane.xlu0 %1357
      %v1359 = vrcp.pop %v1337
      %v1360 = vrcp.pop %v1340
      %v1361 = vrcp.pop %v1343
      %v1362 = vrcp.pop %v1346
      %v1363 = vrcp.pop %v1349
      %v1364 = vrcp.pop %v1352
      %v1365 = vrcp.pop %v1355
      %v1366 = vrcp.pop %v1358
      %v1367 = vmul.f32 %v1320, %v1359
      %v1368 = vmul.f32 %v1322, %v1360
      %v1369 = vmul.f32 %v1324, %v1361
      %v1370 = vmul.f32 %v1326, %v1362
      %v1371 = vmul.f32 %v1328, %v1363
      %v1372 = vmul.f32 %v1330, %v1364
      %v1373 = vmul.f32 %v1332, %v1365
      %v1374 = vmul.f32 %v1334, %v1366
      %v1375 = vpack.c.bf16 %v1367, %v1367
      %v1376 = vpack.c.bf16 %v1368, %v1368
      %v1377 = vpack.c.bf16 %v1369, %v1369
      %v1378 = vpack.c.bf16 %v1370, %v1370
      %v1379 = vpack.c.bf16 %v1371, %v1371
      %v1380 = vpack.c.bf16 %v1372, %v1372
      %v1381 = vpack.c.bf16 %v1373, %v1373
      %v1382 = vpack.c.bf16 %v1374, %v1374
      %1383 = vrot.lane.b32.xlu0 %v1087, 64
      %v1384 = vpop.permute.xlu0 %1383
      %vm1385 = vcmask 15360
      %v1387 = vsel %vm1385, %v1375, 0
      %vm1389 = vcmask 1040384
      %v1391 = vsel %vm1389, %v1384, 0
      %1393 = vmatpush.bf16.msra.mxu0 0
      %1394 = vmatpush.bf16.msra.mxu0 0
      %1395 = vmatpush.bf16.msra.mxu0 0
      %1396 = vmatpush.bf16.msra.mxu0 0
      %1397 = vmatpush.bf16.msra.mxu0 0
      %1398 = vmatpush.bf16.msra.mxu0 0
      %1399 = vmatpush.bf16.msra.mxu0 0
      %1400 = vmatpush.bf16.msra.mxu0 %v1391
      %1401 = vmatmul.bf16.gmra.mxu0 %v1387
      %v1402 = vpop.f32.mrf.mxu0
      %v1403 = vadd.f32 0.0, %v1402
      %v1404 = vpop.f32.mrf.mxu0
      %1405 = vdwg.mxu0
      %1406 = vrot.lane.b32.xlu0 %v1112, 64
      %v1407 = vpop.permute.xlu0 %1406
      %v1409 = vsel %vm1385, %v1376, 0
      %v1412 = vsel %vm1389, %v1407, 0
      %1414 = vmatpush.bf16.msra.mxu0 0
      %1415 = vmatpush.bf16.msra.mxu0 0
      %1416 = vmatpush.bf16.msra.mxu0 0
      %1417 = vmatpush.bf16.msra.mxu0 0
      %1418 = vmatpush.bf16.msra.mxu0 0
      %1419 = vmatpush.bf16.msra.mxu0 0
      %1420 = vmatpush.bf16.msra.mxu0 0
      %1421 = vmatpush.bf16.msra.mxu0 %v1412
      %1422 = vmatmul.bf16.gmra.mxu0 %v1409
      %v1423 = vpop.f32.mrf.mxu0
      %v1424 = vadd.f32 0.0, %v1423
      %v1425 = vpop.f32.mrf.mxu0
      %1426 = vdwg.mxu0
      %1427 = vrot.lane.b32.xlu0 %v1136, 64
      %v1428 = vpop.permute.xlu0 %1427
      %v1430 = vsel %vm1385, %v1377, 0
      %v1433 = vsel %vm1389, %v1428, 0
      %1435 = vmatpush.bf16.msra.mxu0 0
      %1436 = vmatpush.bf16.msra.mxu0 0
      %1437 = vmatpush.bf16.msra.mxu0 0
      %1438 = vmatpush.bf16.msra.mxu0 0
      %1439 = vmatpush.bf16.msra.mxu0 0
      %1440 = vmatpush.bf16.msra.mxu0 0
      %1441 = vmatpush.bf16.msra.mxu0 0
      %1442 = vmatpush.bf16.msra.mxu0 %v1433
      %1443 = vmatmul.bf16.gmra.mxu0 %v1430
      %v1444 = vpop.f32.mrf.mxu0
      %v1445 = vadd.f32 0.0, %v1444
      %v1446 = vpop.f32.mrf.mxu0
      %1447 = vdwg.mxu0
      %1448 = vrot.lane.b32.xlu0 %v1160, 64
      %v1449 = vpop.permute.xlu0 %1448
      %v1451 = vsel %vm1385, %v1378, 0
      %v1454 = vsel %vm1389, %v1449, 0
      %1456 = vmatpush.bf16.msra.mxu0 0
      %1457 = vmatpush.bf16.msra.mxu0 0
      %1458 = vmatpush.bf16.msra.mxu0 0
      %1459 = vmatpush.bf16.msra.mxu0 0
      %1460 = vmatpush.bf16.msra.mxu0 0
      %1461 = vmatpush.bf16.msra.mxu0 0
      %1462 = vmatpush.bf16.msra.mxu0 0
      %1463 = vmatpush.bf16.msra.mxu0 %v1454
      %1464 = vmatmul.bf16.gmra.mxu0 %v1451
      %v1465 = vpop.f32.mrf.mxu0
      %v1466 = vadd.f32 0.0, %v1465
      %v1467 = vpop.f32.mrf.mxu0
      %1468 = vdwg.mxu0
      %1469 = vrot.lane.b32.xlu0 %v1184, 64
      %v1470 = vpop.permute.xlu0 %1469
      %v1472 = vsel %vm1385, %v1379, 0
      %v1475 = vsel %vm1389, %v1470, 0
      %1477 = vmatpush.bf16.msra.mxu0 0
      %1478 = vmatpush.bf16.msra.mxu0 0
      %1479 = vmatpush.bf16.msra.mxu0 0
      %1480 = vmatpush.bf16.msra.mxu0 0
      %1481 = vmatpush.bf16.msra.mxu0 0
      %1482 = vmatpush.bf16.msra.mxu0 0
      %1483 = vmatpush.bf16.msra.mxu0 0
      %1484 = vmatpush.bf16.msra.mxu0 %v1475
      %1485 = vmatmul.bf16.gmra.mxu0 %v1472
      %v1486 = vpop.f32.mrf.mxu0
      %v1487 = vadd.f32 0.0, %v1486
      %v1488 = vpop.f32.mrf.mxu0
      %1489 = vdwg.mxu0
      %1490 = vrot.lane.b32.xlu0 %v1208, 64
      %v1491 = vpop.permute.xlu0 %1490
      %v1493 = vsel %vm1385, %v1380, 0
      %v1496 = vsel %vm1389, %v1491, 0
      %1498 = vmatpush.bf16.msra.mxu0 0
      %1499 = vmatpush.bf16.msra.mxu0 0
      %1500 = vmatpush.bf16.msra.mxu0 0
      %1501 = vmatpush.bf16.msra.mxu0 0
      %1502 = vmatpush.bf16.msra.mxu0 0
      %1503 = vmatpush.bf16.msra.mxu0 0
      %1504 = vmatpush.bf16.msra.mxu0 0
      %1505 = vmatpush.bf16.msra.mxu0 %v1496
      %1506 = vmatmul.bf16.gmra.mxu0 %v1493
      %v1507 = vpop.f32.mrf.mxu0
      %v1508 = vadd.f32 0.0, %v1507
      %v1509 = vpop.f32.mrf.mxu0
      %1510 = vdwg.mxu0
      %1511 = vrot.lane.b32.xlu0 %v1232, 64
      %v1512 = vpop.permute.xlu0 %1511
      %v1514 = vsel %vm1385, %v1381, 0
      %v1517 = vsel %vm1389, %v1512, 0
      %1519 = vmatpush.bf16.msra.mxu0 0
      %1520 = vmatpush.bf16.msra.mxu0 0
      %1521 = vmatpush.bf16.msra.mxu0 0
      %1522 = vmatpush.bf16.msra.mxu0 0
      %1523 = vmatpush.bf16.msra.mxu0 0
      %1524 = vmatpush.bf16.msra.mxu0 0
      %1525 = vmatpush.bf16.msra.mxu0 0
      %1526 = vmatpush.bf16.msra.mxu0 %v1517
      %1527 = vmatmul.bf16.gmra.mxu0 %v1514
      %v1528 = vpop.f32.mrf.mxu0
      %v1529 = vadd.f32 0.0, %v1528
      %v1530 = vpop.f32.mrf.mxu0
      %1531 = vdwg.mxu0
      %1532 = vrot.lane.b32.xlu0 %v1256, 64
      %v1533 = vpop.permute.xlu0 %1532
      %v1535 = vsel %vm1385, %v1382, 0
      %v1538 = vsel %vm1389, %v1533, 0
      %1540 = vmatpush.bf16.msra.mxu0 0
      %1541 = vmatpush.bf16.msra.mxu0 0
      %1542 = vmatpush.bf16.msra.mxu0 0
      %1543 = vmatpush.bf16.msra.mxu0 0
      %1544 = vmatpush.bf16.msra.mxu0 0
      %1545 = vmatpush.bf16.msra.mxu0 0
      %1546 = vmatpush.bf16.msra.mxu0 0
      %1547 = vmatpush.bf16.msra.mxu0 %v1538
      %1548 = vmatmul.bf16.gmra.mxu0 %v1535
      %v1549 = vpop.f32.mrf.mxu0
      %v1550 = vadd.f32 0.0, %v1549
      %v1551 = vpop.f32.mrf.mxu0
      %1552 = vdwg.mxu0
      %1553 = vrot.lane.b32.xlu0 %v1087, 120
      %v1554 = vpop.permute.xlu0 %1553
      %1555 = vrot.lane.b32.xlu0 %v1087, 88
      %v1556 = vpop.permute.xlu0 %1555
      %v1558 = vsel %vm1090, %v1554, 0
      %v1561 = vsel %vm1090, %v1556, 0
      %1563 = vmatpush.bf16.xpose.msra.mxu0 0
      %1564 = vmatpush.bf16.xpose.msra.mxu0 0
      %1565 = vmatpush.bf16.xpose.msra.mxu0 0
      %1566 = vmatpush.bf16.xpose.msra.mxu0 0
      %1567 = vmatpush.bf16.xpose.msra.mxu0 0
      %1568 = vmatpush.bf16.xpose.msra.mxu0 0
      %1569 = vmatpush.bf16.xpose.msra.mxu0 0
      %1570 = vmatpush.bf16.xpose.msra.mxu0 %v1561
      %1571 = vmatmul.bf16.gmra.mxu0 %v1558
      %v1572 = vpop.f32.mrf.mxu0
      %v1573 = vadd.f32 0.0, %v1572
      %v1574 = vpop.f32.mrf.mxu0
      %1575 = vdwg.mxu0
      %1576 = vrot.lane.b32.xlu0 %v1112, 120
      %v1577 = vpop.permute.xlu0 %1576
      %1578 = vrot.lane.b32.xlu0 %v1112, 88
      %v1579 = vpop.permute.xlu0 %1578
      %v1581 = vsel %vm1090, %v1577, 0
      %v1584 = vsel %vm1090, %v1579, 0
      %1586 = vmatpush.bf16.xpose.msra.mxu0 0
      %1587 = vmatpush.bf16.xpose.msra.mxu0 0
      %1588 = vmatpush.bf16.xpose.msra.mxu0 0
      %1589 = vmatpush.bf16.xpose.msra.mxu0 0
      %1590 = vmatpush.bf16.xpose.msra.mxu0 0
      %1591 = vmatpush.bf16.xpose.msra.mxu0 0
      %1592 = vmatpush.bf16.xpose.msra.mxu0 0
      %1593 = vmatpush.bf16.xpose.msra.mxu0 %v1584
      %1594 = vmatmul.bf16.gmra.mxu0 %v1581
      %v1595 = vpop.f32.mrf.mxu0
      %v1596 = vadd.f32 0.0, %v1595
      %v1597 = vpop.f32.mrf.mxu0
      %1598 = vdwg.mxu0
      %1599 = vrot.lane.b32.xlu0 %v1136, 120
      %v1600 = vpop.permute.xlu0 %1599
      %1601 = vrot.lane.b32.xlu0 %v1136, 88
      %v1602 = vpop.permute.xlu0 %1601
      %v1604 = vsel %vm1090, %v1600, 0
      %v1607 = vsel %vm1090, %v1602, 0
      %1609 = vmatpush.bf16.xpose.msra.mxu0 0
      %1610 = vmatpush.bf16.xpose.msra.mxu0 0
      %1611 = vmatpush.bf16.xpose.msra.mxu0 0
      %1612 = vmatpush.bf16.xpose.msra.mxu0 0
      %1613 = vmatpush.bf16.xpose.msra.mxu0 0
      %1614 = vmatpush.bf16.xpose.msra.mxu0 0
      %1615 = vmatpush.bf16.xpose.msra.mxu0 0
      %1616 = vmatpush.bf16.xpose.msra.mxu0 %v1607
      %1617 = vmatmul.bf16.gmra.mxu0 %v1604
      %v1618 = vpop.f32.mrf.mxu0
      %v1619 = vadd.f32 0.0, %v1618
      %v1620 = vpop.f32.mrf.mxu0
      %1621 = vdwg.mxu0
      %1622 = vrot.lane.b32.xlu0 %v1160, 120
      %v1623 = vpop.permute.xlu0 %1622
      %1624 = vrot.lane.b32.xlu0 %v1160, 88
      %v1625 = vpop.permute.xlu0 %1624
      %v1627 = vsel %vm1090, %v1623, 0
      %v1630 = vsel %vm1090, %v1625, 0
      %1632 = vmatpush.bf16.xpose.msra.mxu0 0
      %1633 = vmatpush.bf16.xpose.msra.mxu0 0
      %1634 = vmatpush.bf16.xpose.msra.mxu0 0
      %1635 = vmatpush.bf16.xpose.msra.mxu0 0
      %1636 = vmatpush.bf16.xpose.msra.mxu0 0
      %1637 = vmatpush.bf16.xpose.msra.mxu0 0
      %1638 = vmatpush.bf16.xpose.msra.mxu0 0
      %1639 = vmatpush.bf16.xpose.msra.mxu0 %v1630
      %1640 = vmatmul.bf16.gmra.mxu0 %v1627
      %v1641 = vpop.f32.mrf.mxu0
      %v1642 = vadd.f32 0.0, %v1641
      %v1643 = vpop.f32.mrf.mxu0
      %1644 = vdwg.mxu0
      %1645 = vrot.lane.b32.xlu0 %v1184, 120
      %v1646 = vpop.permute.xlu0 %1645
      %1647 = vrot.lane.b32.xlu0 %v1184, 88
      %v1648 = vpop.permute.xlu0 %1647
      %v1650 = vsel %vm1090, %v1646, 0
      %v1653 = vsel %vm1090, %v1648, 0
      %1655 = vmatpush.bf16.xpose.msra.mxu0 0
      %1656 = vmatpush.bf16.xpose.msra.mxu0 0
      %1657 = vmatpush.bf16.xpose.msra.mxu0 0
      %1658 = vmatpush.bf16.xpose.msra.mxu0 0
      %1659 = vmatpush.bf16.xpose.msra.mxu0 0
      %1660 = vmatpush.bf16.xpose.msra.mxu0 0
      %1661 = vmatpush.bf16.xpose.msra.mxu0 0
      %1662 = vmatpush.bf16.xpose.msra.mxu0 %v1653
      %1663 = vmatmul.bf16.gmra.mxu0 %v1650
      %v1664 = vpop.f32.mrf.mxu0
      %v1665 = vadd.f32 0.0, %v1664
      %v1666 = vpop.f32.mrf.mxu0
      %1667 = vdwg.mxu0
      %1668 = vrot.lane.b32.xlu0 %v1208, 120
      %v1669 = vpop.permute.xlu0 %1668
      %1670 = vrot.lane.b32.xlu0 %v1208, 88
      %v1671 = vpop.permute.xlu0 %1670
      %v1673 = vsel %vm1090, %v1669, 0
      %v1676 = vsel %vm1090, %v1671, 0
      %1678 = vmatpush.bf16.xpose.msra.mxu0 0
      %1679 = vmatpush.bf16.xpose.msra.mxu0 0
      %1680 = vmatpush.bf16.xpose.msra.mxu0 0
      %1681 = vmatpush.bf16.xpose.msra.mxu0 0
      %1682 = vmatpush.bf16.xpose.msra.mxu0 0
      %1683 = vmatpush.bf16.xpose.msra.mxu0 0
      %1684 = vmatpush.bf16.xpose.msra.mxu0 0
      %1685 = vmatpush.bf16.xpose.msra.mxu0 %v1676
      %1686 = vmatmul.bf16.gmra.mxu0 %v1673
      %v1687 = vpop.f32.mrf.mxu0
      %v1688 = vadd.f32 0.0, %v1687
      %v1689 = vpop.f32.mrf.mxu0
      %1690 = vdwg.mxu0
      %1691 = vrot.lane.b32.xlu0 %v1232, 120
      %v1692 = vpop.permute.xlu0 %1691
      %1693 = vrot.lane.b32.xlu0 %v1232, 88
      %v1694 = vpop.permute.xlu0 %1693
      %v1696 = vsel %vm1090, %v1692, 0
      %v1699 = vsel %vm1090, %v1694, 0
      %1701 = vmatpush.bf16.xpose.msra.mxu0 0
      %1702 = vmatpush.bf16.xpose.msra.mxu0 0
      %1703 = vmatpush.bf16.xpose.msra.mxu0 0
      %1704 = vmatpush.bf16.xpose.msra.mxu0 0
      %1705 = vmatpush.bf16.xpose.msra.mxu0 0
      %1706 = vmatpush.bf16.xpose.msra.mxu0 0
      %1707 = vmatpush.bf16.xpose.msra.mxu0 0
      %1708 = vmatpush.bf16.xpose.msra.mxu0 %v1699
      %1709 = vmatmul.bf16.gmra.mxu0 %v1696
      %v1710 = vpop.f32.mrf.mxu0
      %v1711 = vadd.f32 0.0, %v1710
      %v1712 = vpop.f32.mrf.mxu0
      %1713 = vdwg.mxu0
      %1714 = vrot.lane.b32.xlu0 %v1256, 120
      %v1715 = vpop.permute.xlu0 %1714
      %1716 = vrot.lane.b32.xlu0 %v1256, 88
      %v1717 = vpop.permute.xlu0 %1716
      %v1719 = vsel %vm1090, %v1715, 0
      %v1722 = vsel %vm1090, %v1717, 0
      %1724 = vmatpush.bf16.xpose.msra.mxu0 0
      %1725 = vmatpush.bf16.xpose.msra.mxu0 0
      %1726 = vmatpush.bf16.xpose.msra.mxu0 0
      %1727 = vmatpush.bf16.xpose.msra.mxu0 0
      %1728 = vmatpush.bf16.xpose.msra.mxu0 0
      %1729 = vmatpush.bf16.xpose.msra.mxu0 0
      %1730 = vmatpush.bf16.xpose.msra.mxu0 0
      %1731 = vmatpush.bf16.xpose.msra.mxu0 %v1722
      %1732 = vmatmul.bf16.gmra.mxu0 %v1719
      %v1733 = vpop.f32.mrf.mxu0
      %v1734 = vadd.f32 0.0, %v1733
      %v1735 = vpop.f32.mrf.mxu0
      %1736 = vdwg.mxu0
      %v1737 = vmul.f32 %v1573, 0.35355338
      %v1738 = vmul.f32 %v1596, 0.35355338
      %v1739 = vmul.f32 %v1619, 0.35355338
      %v1740 = vmul.f32 %v1642, 0.35355338
      %v1741 = vmul.f32 %v1665, 0.35355338
      %v1742 = vmul.f32 %v1688, 0.35355338
      %v1743 = vmul.f32 %v1711, 0.35355338
      %v1744 = vmul.f32 %v1734, 0.35355338
      %v1745 = vsel %vm1286, %v1737, -inf
      %1746 = vmax.xlane.f32.xlu0 %v1745
      %v1747 = vpop.xlane.xlu0 %1746
      %v1748 = vsel %vm1286, %v1738, -inf
      %1749 = vmax.xlane.f32.xlu0 %v1748
      %v1750 = vpop.xlane.xlu0 %1749
      %v1751 = vsel %vm1286, %v1739, -inf
      %1752 = vmax.xlane.f32.xlu0 %v1751
      %v1753 = vpop.xlane.xlu0 %1752
      %v1754 = vsel %vm1286, %v1740, -inf
      %1755 = vmax.xlane.f32.xlu0 %v1754
      %v1756 = vpop.xlane.xlu0 %1755
      %v1757 = vsel %vm1286, %v1741, -inf
      %1758 = vmax.xlane.f32.xlu0 %v1757
      %v1759 = vpop.xlane.xlu0 %1758
      %v1760 = vsel %vm1286, %v1742, -inf
      %1761 = vmax.xlane.f32.xlu0 %v1760
      %v1762 = vpop.xlane.xlu0 %1761
      %v1763 = vsel %vm1286, %v1743, -inf
      %1764 = vmax.xlane.f32.xlu0 %v1763
      %v1765 = vpop.xlane.xlu0 %1764
      %v1766 = vsel %vm1286, %v1744, -inf
      %1767 = vmax.xlane.f32.xlu0 %v1766
      %v1768 = vpop.xlane.xlu0 %1767
      %v1769 = vsub.f32 %v1737, %v1747
      %v1770 = vsub.f32 %v1738, %v1750
      %v1771 = vsub.f32 %v1739, %v1753
      %v1772 = vsub.f32 %v1740, %v1756
      %v1773 = vsub.f32 %v1741, %v1759
      %v1774 = vsub.f32 %v1742, %v1762
      %v1775 = vsub.f32 %v1743, %v1765
      %v1776 = vsub.f32 %v1744, %v1768
      %v1777 = vmul.f32 %v1769, 1.442695
      %v1778 = vpow.pop %v1777
      %v1779 = vmul.f32 %v1770, 1.442695
      %v1780 = vpow.pop %v1779
      %v1781 = vmul.f32 %v1771, 1.442695
      %v1782 = vpow.pop %v1781
      %v1783 = vmul.f32 %v1772, 1.442695
      %v1784 = vpow.pop %v1783
      %v1785 = vmul.f32 %v1773, 1.442695
      %v1786 = vpow.pop %v1785
      %v1787 = vmul.f32 %v1774, 1.442695
      %v1788 = vpow.pop %v1787
      %v1789 = vmul.f32 %v1775, 1.442695
      %v1790 = vpow.pop %v1789
      %v1791 = vmul.f32 %v1776, 1.442695
      %v1792 = vpow.pop %v1791
      %v1793 = vsel %vm1286, %v1778, 0.0
      %1794 = vadd.xlane.f32.xlu0 %v1793
      %v1795 = vpop.xlane.xlu0 %1794
      %v1796 = vsel %vm1286, %v1780, 0.0
      %1797 = vadd.xlane.f32.xlu0 %v1796
      %v1798 = vpop.xlane.xlu0 %1797
      %v1799 = vsel %vm1286, %v1782, 0.0
      %1800 = vadd.xlane.f32.xlu0 %v1799
      %v1801 = vpop.xlane.xlu0 %1800
      %v1802 = vsel %vm1286, %v1784, 0.0
      %1803 = vadd.xlane.f32.xlu0 %v1802
      %v1804 = vpop.xlane.xlu0 %1803
      %v1805 = vsel %vm1286, %v1786, 0.0
      %1806 = vadd.xlane.f32.xlu0 %v1805
      %v1807 = vpop.xlane.xlu0 %1806
      %v1808 = vsel %vm1286, %v1788, 0.0
      %1809 = vadd.xlane.f32.xlu0 %v1808
      %v1810 = vpop.xlane.xlu0 %1809
      %v1811 = vsel %vm1286, %v1790, 0.0
      %1812 = vadd.xlane.f32.xlu0 %v1811
      %v1813 = vpop.xlane.xlu0 %1812
      %v1814 = vsel %vm1286, %v1792, 0.0
      %1815 = vadd.xlane.f32.xlu0 %v1814
      %v1816 = vpop.xlane.xlu0 %1815
      %v1817 = vrcp.pop %v1795
      %v1818 = vrcp.pop %v1798
      %v1819 = vrcp.pop %v1801
      %v1820 = vrcp.pop %v1804
      %v1821 = vrcp.pop %v1807
      %v1822 = vrcp.pop %v1810
      %v1823 = vrcp.pop %v1813
      %v1824 = vrcp.pop %v1816
      %v1825 = vmul.f32 %v1778, %v1817
      %v1826 = vmul.f32 %v1780, %v1818
      %v1827 = vmul.f32 %v1782, %v1819
      %v1828 = vmul.f32 %v1784, %v1820
      %v1829 = vmul.f32 %v1786, %v1821
      %v1830 = vmul.f32 %v1788, %v1822
      %v1831 = vmul.f32 %v1790, %v1823
      %v1832 = vmul.f32 %v1792, %v1824
      %v1833 = vpack.c.bf16 %v1825, %v1825
      %v1834 = vpack.c.bf16 %v1826, %v1826
      %v1835 = vpack.c.bf16 %v1827, %v1827
      %v1836 = vpack.c.bf16 %v1828, %v1828
      %v1837 = vpack.c.bf16 %v1829, %v1829
      %v1838 = vpack.c.bf16 %v1830, %v1830
      %v1839 = vpack.c.bf16 %v1831, %v1831
      %v1840 = vpack.c.bf16 %v1832, %v1832
      %1841 = vrot.lane.b32.xlu0 %v1087, 56
      %v1842 = vpop.permute.xlu0 %1841
      %v1844 = vsel %vm1385, %v1833, 0
      %v1847 = vsel %vm1389, %v1842, 0
      %1849 = vmatpush.bf16.msra.mxu0 0
      %1850 = vmatpush.bf16.msra.mxu0 0
      %1851 = vmatpush.bf16.msra.mxu0 0
      %1852 = vmatpush.bf16.msra.mxu0 0
      %1853 = vmatpush.bf16.msra.mxu0 0
      %1854 = vmatpush.bf16.msra.mxu0 0
      %1855 = vmatpush.bf16.msra.mxu0 0
      %1856 = vmatpush.bf16.msra.mxu0 %v1847
      %1857 = vmatmul.bf16.gmra.mxu0 %v1844
      %v1858 = vpop.f32.mrf.mxu0
      %v1859 = vadd.f32 0.0, %v1858
      %v1860 = vpop.f32.mrf.mxu0
      %1861 = vdwg.mxu0
      %1862 = vrot.lane.b32.xlu0 %v1112, 56
      %v1863 = vpop.permute.xlu0 %1862
      %v1865 = vsel %vm1385, %v1834, 0
      %v1868 = vsel %vm1389, %v1863, 0
      %1870 = vmatpush.bf16.msra.mxu0 0
      %1871 = vmatpush.bf16.msra.mxu0 0
      %1872 = vmatpush.bf16.msra.mxu0 0
      %1873 = vmatpush.bf16.msra.mxu0 0
      %1874 = vmatpush.bf16.msra.mxu0 0
      %1875 = vmatpush.bf16.msra.mxu0 0
      %1876 = vmatpush.bf16.msra.mxu0 0
      %1877 = vmatpush.bf16.msra.mxu0 %v1868
      %1878 = vmatmul.bf16.gmra.mxu0 %v1865
      %v1879 = vpop.f32.mrf.mxu0
      %v1880 = vadd.f32 0.0, %v1879
      %v1881 = vpop.f32.mrf.mxu0
      %1882 = vdwg.mxu0
      %1883 = vrot.lane.b32.xlu0 %v1136, 56
      %v1884 = vpop.permute.xlu0 %1883
      %v1886 = vsel %vm1385, %v1835, 0
      %v1889 = vsel %vm1389, %v1884, 0
      %1891 = vmatpush.bf16.msra.mxu0 0
      %1892 = vmatpush.bf16.msra.mxu0 0
      %1893 = vmatpush.bf16.msra.mxu0 0
      %1894 = vmatpush.bf16.msra.mxu0 0
      %1895 = vmatpush.bf16.msra.mxu0 0
      %1896 = vmatpush.bf16.msra.mxu0 0
      %1897 = vmatpush.bf16.msra.mxu0 0
      %1898 = vmatpush.bf16.msra.mxu0 %v1889
      %1899 = vmatmul.bf16.gmra.mxu0 %v1886
      %v1900 = vpop.f32.mrf.mxu0
      %v1901 = vadd.f32 0.0, %v1900
      %v1902 = vpop.f32.mrf.mxu0
      %1903 = vdwg.mxu0
      %1904 = vrot.lane.b32.xlu0 %v1160, 56
      %v1905 = vpop.permute.xlu0 %1904
      %v1907 = vsel %vm1385, %v1836, 0
      %v1910 = vsel %vm1389, %v1905, 0
      %1912 = vmatpush.bf16.msra.mxu0 0
      %1913 = vmatpush.bf16.msra.mxu0 0
      %1914 = vmatpush.bf16.msra.mxu0 0
      %1915 = vmatpush.bf16.msra.mxu0 0
      %1916 = vmatpush.bf16.msra.mxu0 0
      %1917 = vmatpush.bf16.msra.mxu0 0
      %1918 = vmatpush.bf16.msra.mxu0 0
      %1919 = vmatpush.bf16.msra.mxu0 %v1910
      %1920 = vmatmul.bf16.gmra.mxu0 %v1907
      %v1921 = vpop.f32.mrf.mxu0
      %v1922 = vadd.f32 0.0, %v1921
      %v1923 = vpop.f32.mrf.mxu0
      %1924 = vdwg.mxu0
      %1925 = vrot.lane.b32.xlu0 %v1184, 56
      %v1926 = vpop.permute.xlu0 %1925
      %v1928 = vsel %vm1385, %v1837, 0
      %v1931 = vsel %vm1389, %v1926, 0
      %1933 = vmatpush.bf16.msra.mxu0 0
      %1934 = vmatpush.bf16.msra.mxu0 0
      %1935 = vmatpush.bf16.msra.mxu0 0
      %1936 = vmatpush.bf16.msra.mxu0 0
      %1937 = vmatpush.bf16.msra.mxu0 0
      %1938 = vmatpush.bf16.msra.mxu0 0
      %1939 = vmatpush.bf16.msra.mxu0 0
      %1940 = vmatpush.bf16.msra.mxu0 %v1931
      %1941 = vmatmul.bf16.gmra.mxu0 %v1928
      %v1942 = vpop.f32.mrf.mxu0
      %v1943 = vadd.f32 0.0, %v1942
      %v1944 = vpop.f32.mrf.mxu0
      %1945 = vdwg.mxu0
      %1946 = vrot.lane.b32.xlu0 %v1208, 56
      %v1947 = vpop.permute.xlu0 %1946
      %v1949 = vsel %vm1385, %v1838, 0
      %v1952 = vsel %vm1389, %v1947, 0
      %1954 = vmatpush.bf16.msra.mxu0 0
      %1955 = vmatpush.bf16.msra.mxu0 0
      %1956 = vmatpush.bf16.msra.mxu0 0
      %1957 = vmatpush.bf16.msra.mxu0 0
      %1958 = vmatpush.bf16.msra.mxu0 0
      %1959 = vmatpush.bf16.msra.mxu0 0
      %1960 = vmatpush.bf16.msra.mxu0 0
      %1961 = vmatpush.bf16.msra.mxu0 %v1952
      %1962 = vmatmul.bf16.gmra.mxu0 %v1949
      %v1963 = vpop.f32.mrf.mxu0
      %v1964 = vadd.f32 0.0, %v1963
      %v1965 = vpop.f32.mrf.mxu0
      %1966 = vdwg.mxu0
      %1967 = vrot.lane.b32.xlu0 %v1232, 56
      %v1968 = vpop.permute.xlu0 %1967
      %v1970 = vsel %vm1385, %v1839, 0
      %v1973 = vsel %vm1389, %v1968, 0
      %1975 = vmatpush.bf16.msra.mxu0 0
      %1976 = vmatpush.bf16.msra.mxu0 0
      %1977 = vmatpush.bf16.msra.mxu0 0
      %1978 = vmatpush.bf16.msra.mxu0 0
      %1979 = vmatpush.bf16.msra.mxu0 0
      %1980 = vmatpush.bf16.msra.mxu0 0
      %1981 = vmatpush.bf16.msra.mxu0 0
      %1982 = vmatpush.bf16.msra.mxu0 %v1973
      %1983 = vmatmul.bf16.gmra.mxu0 %v1970
      %v1984 = vpop.f32.mrf.mxu0
      %v1985 = vadd.f32 0.0, %v1984
      %v1986 = vpop.f32.mrf.mxu0
      %1987 = vdwg.mxu0
      %1988 = vrot.lane.b32.xlu0 %v1256, 56
      %v1989 = vpop.permute.xlu0 %1988
      %v1991 = vsel %vm1385, %v1840, 0
      %v1994 = vsel %vm1389, %v1989, 0
      %1996 = vmatpush.bf16.msra.mxu0 0
      %1997 = vmatpush.bf16.msra.mxu0 0
      %1998 = vmatpush.bf16.msra.mxu0 0
      %1999 = vmatpush.bf16.msra.mxu0 0
      %2000 = vmatpush.bf16.msra.mxu0 0
      %2001 = vmatpush.bf16.msra.mxu0 0
      %2002 = vmatpush.bf16.msra.mxu0 0
      %2003 = vmatpush.bf16.msra.mxu0 %v1994
      %2004 = vmatmul.bf16.gmra.mxu0 %v1991
      %v2005 = vpop.f32.mrf.mxu0
      %v2006 = vadd.f32 0.0, %v2005
      %v2007 = vpop.f32.mrf.mxu0
      %2008 = vdwg.mxu0
      %2009 = vrot.lane.b32.xlu0 %v1087, 112
      %v2010 = vpop.permute.xlu0 %2009
      %2011 = vrot.lane.b32.xlu0 %v1087, 80
      %v2012 = vpop.permute.xlu0 %2011
      %v2014 = vsel %vm1090, %v2010, 0
      %v2017 = vsel %vm1090, %v2012, 0
      %2019 = vmatpush.bf16.xpose.msra.mxu0 0
      %2020 = vmatpush.bf16.xpose.msra.mxu0 0
      %2021 = vmatpush.bf16.xpose.msra.mxu0 0
      %2022 = vmatpush.bf16.xpose.msra.mxu0 0
      %2023 = vmatpush.bf16.xpose.msra.mxu0 0
      %2024 = vmatpush.bf16.xpose.msra.mxu0 0
      %2025 = vmatpush.bf16.xpose.msra.mxu0 0
      %2026 = vmatpush.bf16.xpose.msra.mxu0 %v2017
      %2027 = vmatmul.bf16.gmra.mxu0 %v2014
      %v2028 = vpop.f32.mrf.mxu0
      %v2029 = vadd.f32 0.0, %v2028
      %v2030 = vpop.f32.mrf.mxu0
      %2031 = vdwg.mxu0
      %2032 = vrot.lane.b32.xlu0 %v1112, 112
      %v2033 = vpop.permute.xlu0 %2032
      %2034 = vrot.lane.b32.xlu0 %v1112, 80
      %v2035 = vpop.permute.xlu0 %2034
      %v2037 = vsel %vm1090, %v2033, 0
      %v2040 = vsel %vm1090, %v2035, 0
      %2042 = vmatpush.bf16.xpose.msra.mxu0 0
      %2043 = vmatpush.bf16.xpose.msra.mxu0 0
      %2044 = vmatpush.bf16.xpose.msra.mxu0 0
      %2045 = vmatpush.bf16.xpose.msra.mxu0 0
      %2046 = vmatpush.bf16.xpose.msra.mxu0 0
      %2047 = vmatpush.bf16.xpose.msra.mxu0 0
      %2048 = vmatpush.bf16.xpose.msra.mxu0 0
      %2049 = vmatpush.bf16.xpose.msra.mxu0 %v2040
      %2050 = vmatmul.bf16.gmra.mxu0 %v2037
      %v2051 = vpop.f32.mrf.mxu0
      %v2052 = vadd.f32 0.0, %v2051
      %v2053 = vpop.f32.mrf.mxu0
      %2054 = vdwg.mxu0
      %2055 = vrot.lane.b32.xlu0 %v1136, 112
      %v2056 = vpop.permute.xlu0 %2055
      %2057 = vrot.lane.b32.xlu0 %v1136, 80
      %v2058 = vpop.permute.xlu0 %2057
      %v2060 = vsel %vm1090, %v2056, 0
      %v2063 = vsel %vm1090, %v2058, 0
      %2065 = vmatpush.bf16.xpose.msra.mxu0 0
      %2066 = vmatpush.bf16.xpose.msra.mxu0 0
      %2067 = vmatpush.bf16.xpose.msra.mxu0 0
      %2068 = vmatpush.bf16.xpose.msra.mxu0 0
      %2069 = vmatpush.bf16.xpose.msra.mxu0 0
      %2070 = vmatpush.bf16.xpose.msra.mxu0 0
      %2071 = vmatpush.bf16.xpose.msra.mxu0 0
      %2072 = vmatpush.bf16.xpose.msra.mxu0 %v2063
      %2073 = vmatmul.bf16.gmra.mxu0 %v2060
      %v2074 = vpop.f32.mrf.mxu0
      %v2075 = vadd.f32 0.0, %v2074
      %v2076 = vpop.f32.mrf.mxu0
      %2077 = vdwg.mxu0
      %2078 = vrot.lane.b32.xlu0 %v1160, 112
      %v2079 = vpop.permute.xlu0 %2078
      %2080 = vrot.lane.b32.xlu0 %v1160, 80
      %v2081 = vpop.permute.xlu0 %2080
      %v2083 = vsel %vm1090, %v2079, 0
      %v2086 = vsel %vm1090, %v2081, 0
      %2088 = vmatpush.bf16.xpose.msra.mxu0 0
      %2089 = vmatpush.bf16.xpose.msra.mxu0 0
      %2090 = vmatpush.bf16.xpose.msra.mxu0 0
      %2091 = vmatpush.bf16.xpose.msra.mxu0 0
      %2092 = vmatpush.bf16.xpose.msra.mxu0 0
      %2093 = vmatpush.bf16.xpose.msra.mxu0 0
      %2094 = vmatpush.bf16.xpose.msra.mxu0 0
      %2095 = vmatpush.bf16.xpose.msra.mxu0 %v2086
      %2096 = vmatmul.bf16.gmra.mxu0 %v2083
      %v2097 = vpop.f32.mrf.mxu0
      %v2098 = vadd.f32 0.0, %v2097
      %v2099 = vpop.f32.mrf.mxu0
      %2100 = vdwg.mxu0
      %2101 = vrot.lane.b32.xlu0 %v1184, 112
      %v2102 = vpop.permute.xlu0 %2101
      %2103 = vrot.lane.b32.xlu0 %v1184, 80
      %v2104 = vpop.permute.xlu0 %2103
      %v2106 = vsel %vm1090, %v2102, 0
      %v2109 = vsel %vm1090, %v2104, 0
      %2111 = vmatpush.bf16.xpose.msra.mxu0 0
      %2112 = vmatpush.bf16.xpose.msra.mxu0 0
      %2113 = vmatpush.bf16.xpose.msra.mxu0 0
      %2114 = vmatpush.bf16.xpose.msra.mxu0 0
      %2115 = vmatpush.bf16.xpose.msra.mxu0 0
      %2116 = vmatpush.bf16.xpose.msra.mxu0 0
      %2117 = vmatpush.bf16.xpose.msra.mxu0 0
      %2118 = vmatpush.bf16.xpose.msra.mxu0 %v2109
      %2119 = vmatmul.bf16.gmra.mxu0 %v2106
      %v2120 = vpop.f32.mrf.mxu0
      %v2121 = vadd.f32 0.0, %v2120
      %v2122 = vpop.f32.mrf.mxu0
      %2123 = vdwg.mxu0
      %2124 = vrot.lane.b32.xlu0 %v1208, 112
      %v2125 = vpop.permute.xlu0 %2124
      %2126 = vrot.lane.b32.xlu0 %v1208, 80
      %v2127 = vpop.permute.xlu0 %2126
      %v2129 = vsel %vm1090, %v2125, 0
      %v2132 = vsel %vm1090, %v2127, 0
      %2134 = vmatpush.bf16.xpose.msra.mxu0 0
      %2135 = vmatpush.bf16.xpose.msra.mxu0 0
      %2136 = vmatpush.bf16.xpose.msra.mxu0 0
      %2137 = vmatpush.bf16.xpose.msra.mxu0 0
      %2138 = vmatpush.bf16.xpose.msra.mxu0 0
      %2139 = vmatpush.bf16.xpose.msra.mxu0 0
      %2140 = vmatpush.bf16.xpose.msra.mxu0 0
      %2141 = vmatpush.bf16.xpose.msra.mxu0 %v2132
      %2142 = vmatmul.bf16.gmra.mxu0 %v2129
      %v2143 = vpop.f32.mrf.mxu0
      %v2144 = vadd.f32 0.0, %v2143
      %v2145 = vpop.f32.mrf.mxu0
      %2146 = vdwg.mxu0
      %2147 = vrot.lane.b32.xlu0 %v1232, 112
      %v2148 = vpop.permute.xlu0 %2147
      %2149 = vrot.lane.b32.xlu0 %v1232, 80
      %v2150 = vpop.permute.xlu0 %2149
      %v2152 = vsel %vm1090, %v2148, 0
      %v2155 = vsel %vm1090, %v2150, 0
      %2157 = vmatpush.bf16.xpose.msra.mxu0 0
      %2158 = vmatpush.bf16.xpose.msra.mxu0 0
      %2159 = vmatpush.bf16.xpose.msra.mxu0 0
      %2160 = vmatpush.bf16.xpose.msra.mxu0 0
      %2161 = vmatpush.bf16.xpose.msra.mxu0 0
      %2162 = vmatpush.bf16.xpose.msra.mxu0 0
      %2163 = vmatpush.bf16.xpose.msra.mxu0 0
      %2164 = vmatpush.bf16.xpose.msra.mxu0 %v2155
      %2165 = vmatmul.bf16.gmra.mxu0 %v2152
      %v2166 = vpop.f32.mrf.mxu0
      %v2167 = vadd.f32 0.0, %v2166
      %v2168 = vpop.f32.mrf.mxu0
      %2169 = vdwg.mxu0
      %2170 = vrot.lane.b32.xlu0 %v1256, 112
      %v2171 = vpop.permute.xlu0 %2170
      %2172 = vrot.lane.b32.xlu0 %v1256, 80
      %v2173 = vpop.permute.xlu0 %2172
      %v2175 = vsel %vm1090, %v2171, 0
      %v2178 = vsel %vm1090, %v2173, 0
      %2180 = vmatpush.bf16.xpose.msra.mxu0 0
      %2181 = vmatpush.bf16.xpose.msra.mxu0 0
      %2182 = vmatpush.bf16.xpose.msra.mxu0 0
      %2183 = vmatpush.bf16.xpose.msra.mxu0 0
      %2184 = vmatpush.bf16.xpose.msra.mxu0 0
      %2185 = vmatpush.bf16.xpose.msra.mxu0 0
      %2186 = vmatpush.bf16.xpose.msra.mxu0 0
      %2187 = vmatpush.bf16.xpose.msra.mxu0 %v2178
      %2188 = vmatmul.bf16.gmra.mxu0 %v2175
      %v2189 = vpop.f32.mrf.mxu0
      %v2190 = vadd.f32 0.0, %v2189
      %v2191 = vpop.f32.mrf.mxu0
      %2192 = vdwg.mxu0
      %v2193 = vmul.f32 %v2029, 0.35355338
      %v2194 = vmul.f32 %v2052, 0.35355338
      %v2195 = vmul.f32 %v2075, 0.35355338
      %v2196 = vmul.f32 %v2098, 0.35355338
      %v2197 = vmul.f32 %v2121, 0.35355338
      %v2198 = vmul.f32 %v2144, 0.35355338
      %v2199 = vmul.f32 %v2167, 0.35355338
      %v2200 = vmul.f32 %v2190, 0.35355338
      %v2201 = vsel %vm1286, %v2193, -inf
      %2202 = vmax.xlane.f32.xlu0 %v2201
      %v2203 = vpop.xlane.xlu0 %2202
      %v2204 = vsel %vm1286, %v2194, -inf
      %2205 = vmax.xlane.f32.xlu0 %v2204
      %v2206 = vpop.xlane.xlu0 %2205
      %v2207 = vsel %vm1286, %v2195, -inf
      %2208 = vmax.xlane.f32.xlu0 %v2207
      %v2209 = vpop.xlane.xlu0 %2208
      %v2210 = vsel %vm1286, %v2196, -inf
      %2211 = vmax.xlane.f32.xlu0 %v2210
      %v2212 = vpop.xlane.xlu0 %2211
      %v2213 = vsel %vm1286, %v2197, -inf
      %2214 = vmax.xlane.f32.xlu0 %v2213
      %v2215 = vpop.xlane.xlu0 %2214
      %v2216 = vsel %vm1286, %v2198, -inf
      %2217 = vmax.xlane.f32.xlu0 %v2216
      %v2218 = vpop.xlane.xlu0 %2217
      %v2219 = vsel %vm1286, %v2199, -inf
      %2220 = vmax.xlane.f32.xlu0 %v2219
      %v2221 = vpop.xlane.xlu0 %2220
      %v2222 = vsel %vm1286, %v2200, -inf
      %2223 = vmax.xlane.f32.xlu0 %v2222
      %v2224 = vpop.xlane.xlu0 %2223
      %v2225 = vsub.f32 %v2193, %v2203
      %v2226 = vsub.f32 %v2194, %v2206
      %v2227 = vsub.f32 %v2195, %v2209
      %v2228 = vsub.f32 %v2196, %v2212
      %v2229 = vsub.f32 %v2197, %v2215
      %v2230 = vsub.f32 %v2198, %v2218
      %v2231 = vsub.f32 %v2199, %v2221
      %v2232 = vsub.f32 %v2200, %v2224
      %v2233 = vmul.f32 %v2225, 1.442695
      %v2234 = vpow.pop %v2233
      %v2235 = vmul.f32 %v2226, 1.442695
      %v2236 = vpow.pop %v2235
      %v2237 = vmul.f32 %v2227, 1.442695
      %v2238 = vpow.pop %v2237
      %v2239 = vmul.f32 %v2228, 1.442695
      %v2240 = vpow.pop %v2239
      %v2241 = vmul.f32 %v2229, 1.442695
      %v2242 = vpow.pop %v2241
      %v2243 = vmul.f32 %v2230, 1.442695
      %v2244 = vpow.pop %v2243
      %v2245 = vmul.f32 %v2231, 1.442695
      %v2246 = vpow.pop %v2245
      %v2247 = vmul.f32 %v2232, 1.442695
      %v2248 = vpow.pop %v2247
      %v2249 = vsel %vm1286, %v2234, 0.0
      %2250 = vadd.xlane.f32.xlu0 %v2249
      %v2251 = vpop.xlane.xlu0 %2250
      %v2252 = vsel %vm1286, %v2236, 0.0
      %2253 = vadd.xlane.f32.xlu0 %v2252
      %v2254 = vpop.xlane.xlu0 %2253
      %v2255 = vsel %vm1286, %v2238, 0.0
      %2256 = vadd.xlane.f32.xlu0 %v2255
      %v2257 = vpop.xlane.xlu0 %2256
      %v2258 = vsel %vm1286, %v2240, 0.0
      %2259 = vadd.xlane.f32.xlu0 %v2258
      %v2260 = vpop.xlane.xlu0 %2259
      %v2261 = vsel %vm1286, %v2242, 0.0
      %2262 = vadd.xlane.f32.xlu0 %v2261
      %v2263 = vpop.xlane.xlu0 %2262
      %v2264 = vsel %vm1286, %v2244, 0.0
      %2265 = vadd.xlane.f32.xlu0 %v2264
      %v2266 = vpop.xlane.xlu0 %2265
      %v2267 = vsel %vm1286, %v2246, 0.0
      %2268 = vadd.xlane.f32.xlu0 %v2267
      %v2269 = vpop.xlane.xlu0 %2268
      %v2270 = vsel %vm1286, %v2248, 0.0
      %2271 = vadd.xlane.f32.xlu0 %v2270
      %v2272 = vpop.xlane.xlu0 %2271
      %v2273 = vrcp.pop %v2251
      %v2274 = vrcp.pop %v2254
      %v2275 = vrcp.pop %v2257
      %v2276 = vrcp.pop %v2260
      %v2277 = vrcp.pop %v2263
      %v2278 = vrcp.pop %v2266
      %v2279 = vrcp.pop %v2269
      %v2280 = vrcp.pop %v2272
      %v2281 = vmul.f32 %v2234, %v2273
      %v2282 = vmul.f32 %v2236, %v2274
      %v2283 = vmul.f32 %v2238, %v2275
      %v2284 = vmul.f32 %v2240, %v2276
      %v2285 = vmul.f32 %v2242, %v2277
      %v2286 = vmul.f32 %v2244, %v2278
      %v2287 = vmul.f32 %v2246, %v2279
      %v2288 = vmul.f32 %v2248, %v2280
      %v2289 = vpack.c.bf16 %v2281, %v2281
      %v2290 = vpack.c.bf16 %v2282, %v2282
      %v2291 = vpack.c.bf16 %v2283, %v2283
      %v2292 = vpack.c.bf16 %v2284, %v2284
      %v2293 = vpack.c.bf16 %v2285, %v2285
      %v2294 = vpack.c.bf16 %v2286, %v2286
      %v2295 = vpack.c.bf16 %v2287, %v2287
      %v2296 = vpack.c.bf16 %v2288, %v2288
      %2297 = vrot.lane.b32.xlu0 %v1087, 48
      %v2298 = vpop.permute.xlu0 %2297
      %v2300 = vsel %vm1385, %v2289, 0
      %v2303 = vsel %vm1389, %v2298, 0
      %2305 = vmatpush.bf16.msra.mxu0 0
      %2306 = vmatpush.bf16.msra.mxu0 0
      %2307 = vmatpush.bf16.msra.mxu0 0
      %2308 = vmatpush.bf16.msra.mxu0 0
      %2309 = vmatpush.bf16.msra.mxu0 0
      %2310 = vmatpush.bf16.msra.mxu0 0
      %2311 = vmatpush.bf16.msra.mxu0 0
      %2312 = vmatpush.bf16.msra.mxu0 %v2303
      %2313 = vmatmul.bf16.gmra.mxu0 %v2300
      %v2314 = vpop.f32.mrf.mxu0
      %v2315 = vadd.f32 0.0, %v2314
      %v2316 = vpop.f32.mrf.mxu0
      %2317 = vdwg.mxu0
      %2318 = vrot.lane.b32.xlu0 %v1112, 48
      %v2319 = vpop.permute.xlu0 %2318
      %v2321 = vsel %vm1385, %v2290, 0
      %v2324 = vsel %vm1389, %v2319, 0
      %2326 = vmatpush.bf16.msra.mxu0 0
      %2327 = vmatpush.bf16.msra.mxu0 0
      %2328 = vmatpush.bf16.msra.mxu0 0
      %2329 = vmatpush.bf16.msra.mxu0 0
      %2330 = vmatpush.bf16.msra.mxu0 0
      %2331 = vmatpush.bf16.msra.mxu0 0
      %2332 = vmatpush.bf16.msra.mxu0 0
      %2333 = vmatpush.bf16.msra.mxu0 %v2324
      %2334 = vmatmul.bf16.gmra.mxu0 %v2321
      %v2335 = vpop.f32.mrf.mxu0
      %v2336 = vadd.f32 0.0, %v2335
      %v2337 = vpop.f32.mrf.mxu0
      %2338 = vdwg.mxu0
      %2339 = vrot.lane.b32.xlu0 %v1136, 48
      %v2340 = vpop.permute.xlu0 %2339
      %v2342 = vsel %vm1385, %v2291, 0
      %v2345 = vsel %vm1389, %v2340, 0
      %2347 = vmatpush.bf16.msra.mxu0 0
      %2348 = vmatpush.bf16.msra.mxu0 0
      %2349 = vmatpush.bf16.msra.mxu0 0
      %2350 = vmatpush.bf16.msra.mxu0 0
      %2351 = vmatpush.bf16.msra.mxu0 0
      %2352 = vmatpush.bf16.msra.mxu0 0
      %2353 = vmatpush.bf16.msra.mxu0 0
      %2354 = vmatpush.bf16.msra.mxu0 %v2345
      %2355 = vmatmul.bf16.gmra.mxu0 %v2342
      %v2356 = vpop.f32.mrf.mxu0
      %v2357 = vadd.f32 0.0, %v2356
      %v2358 = vpop.f32.mrf.mxu0
      %2359 = vdwg.mxu0
      %2360 = vrot.lane.b32.xlu0 %v1160, 48
      %v2361 = vpop.permute.xlu0 %2360
      %v2363 = vsel %vm1385, %v2292, 0
      %v2366 = vsel %vm1389, %v2361, 0
      %2368 = vmatpush.bf16.msra.mxu0 0
      %2369 = vmatpush.bf16.msra.mxu0 0
      %2370 = vmatpush.bf16.msra.mxu0 0
      %2371 = vmatpush.bf16.msra.mxu0 0
      %2372 = vmatpush.bf16.msra.mxu0 0
      %2373 = vmatpush.bf16.msra.mxu0 0
      %2374 = vmatpush.bf16.msra.mxu0 0
      %2375 = vmatpush.bf16.msra.mxu0 %v2366
      %2376 = vmatmul.bf16.gmra.mxu0 %v2363
      %v2377 = vpop.f32.mrf.mxu0
      %v2378 = vadd.f32 0.0, %v2377
      %v2379 = vpop.f32.mrf.mxu0
      %2380 = vdwg.mxu0
      %2381 = vrot.lane.b32.xlu0 %v1184, 48
      %v2382 = vpop.permute.xlu0 %2381
      %v2384 = vsel %vm1385, %v2293, 0
      %v2387 = vsel %vm1389, %v2382, 0
      %2389 = vmatpush.bf16.msra.mxu0 0
      %2390 = vmatpush.bf16.msra.mxu0 0
      %2391 = vmatpush.bf16.msra.mxu0 0
      %2392 = vmatpush.bf16.msra.mxu0 0
      %2393 = vmatpush.bf16.msra.mxu0 0
      %2394 = vmatpush.bf16.msra.mxu0 0
      %2395 = vmatpush.bf16.msra.mxu0 0
      %2396 = vmatpush.bf16.msra.mxu0 %v2387
      %2397 = vmatmul.bf16.gmra.mxu0 %v2384
      %v2398 = vpop.f32.mrf.mxu0
      %v2399 = vadd.f32 0.0, %v2398
      %v2400 = vpop.f32.mrf.mxu0
      %2401 = vdwg.mxu0
      %2402 = vrot.lane.b32.xlu0 %v1208, 48
      %v2403 = vpop.permute.xlu0 %2402
      %v2405 = vsel %vm1385, %v2294, 0
      %v2408 = vsel %vm1389, %v2403, 0
      %2410 = vmatpush.bf16.msra.mxu0 0
      %2411 = vmatpush.bf16.msra.mxu0 0
      %2412 = vmatpush.bf16.msra.mxu0 0
      %2413 = vmatpush.bf16.msra.mxu0 0
      %2414 = vmatpush.bf16.msra.mxu0 0
      %2415 = vmatpush.bf16.msra.mxu0 0
      %2416 = vmatpush.bf16.msra.mxu0 0
      %2417 = vmatpush.bf16.msra.mxu0 %v2408
      %2418 = vmatmul.bf16.gmra.mxu0 %v2405
      %v2419 = vpop.f32.mrf.mxu0
      %v2420 = vadd.f32 0.0, %v2419
      %v2421 = vpop.f32.mrf.mxu0
      %2422 = vdwg.mxu0
      %2423 = vrot.lane.b32.xlu0 %v1232, 48
      %v2424 = vpop.permute.xlu0 %2423
      %v2426 = vsel %vm1385, %v2295, 0
      %v2429 = vsel %vm1389, %v2424, 0
      %2431 = vmatpush.bf16.msra.mxu0 0
      %2432 = vmatpush.bf16.msra.mxu0 0
      %2433 = vmatpush.bf16.msra.mxu0 0
      %2434 = vmatpush.bf16.msra.mxu0 0
      %2435 = vmatpush.bf16.msra.mxu0 0
      %2436 = vmatpush.bf16.msra.mxu0 0
      %2437 = vmatpush.bf16.msra.mxu0 0
      %2438 = vmatpush.bf16.msra.mxu0 %v2429
      %2439 = vmatmul.bf16.gmra.mxu0 %v2426
      %v2440 = vpop.f32.mrf.mxu0
      %v2441 = vadd.f32 0.0, %v2440
      %v2442 = vpop.f32.mrf.mxu0
      %2443 = vdwg.mxu0
      %2444 = vrot.lane.b32.xlu0 %v1256, 48
      %v2445 = vpop.permute.xlu0 %2444
      %v2447 = vsel %vm1385, %v2296, 0
      %v2450 = vsel %vm1389, %v2445, 0
      %2452 = vmatpush.bf16.msra.mxu0 0
      %2453 = vmatpush.bf16.msra.mxu0 0
      %2454 = vmatpush.bf16.msra.mxu0 0
      %2455 = vmatpush.bf16.msra.mxu0 0
      %2456 = vmatpush.bf16.msra.mxu0 0
      %2457 = vmatpush.bf16.msra.mxu0 0
      %2458 = vmatpush.bf16.msra.mxu0 0
      %2459 = vmatpush.bf16.msra.mxu0 %v2450
      %2460 = vmatmul.bf16.gmra.mxu0 %v2447
      %v2461 = vpop.f32.mrf.mxu0
      %v2462 = vadd.f32 0.0, %v2461
      %v2463 = vpop.f32.mrf.mxu0
      %2464 = vdwg.mxu0
      %2465 = vrot.lane.b32.xlu0 %v1087, 104
      %v2466 = vpop.permute.xlu0 %2465
      %2467 = vrot.lane.b32.xlu0 %v1087, 72
      %v2468 = vpop.permute.xlu0 %2467
      %v2470 = vsel %vm1090, %v2466, 0
      %v2473 = vsel %vm1090, %v2468, 0
      %2475 = vmatpush.bf16.xpose.msra.mxu0 0
      %2476 = vmatpush.bf16.xpose.msra.mxu0 0
      %2477 = vmatpush.bf16.xpose.msra.mxu0 0
      %2478 = vmatpush.bf16.xpose.msra.mxu0 0
      %2479 = vmatpush.bf16.xpose.msra.mxu0 0
      %2480 = vmatpush.bf16.xpose.msra.mxu0 0
      %2481 = vmatpush.bf16.xpose.msra.mxu0 0
      %2482 = vmatpush.bf16.xpose.msra.mxu0 %v2473
      %2483 = vmatmul.bf16.gmra.mxu0 %v2470
      %v2484 = vpop.f32.mrf.mxu0
      %v2485 = vadd.f32 0.0, %v2484
      %v2486 = vpop.f32.mrf.mxu0
      %2487 = vdwg.mxu0
      %2488 = vrot.lane.b32.xlu0 %v1112, 104
      %v2489 = vpop.permute.xlu0 %2488
      %2490 = vrot.lane.b32.xlu0 %v1112, 72
      %v2491 = vpop.permute.xlu0 %2490
      %v2493 = vsel %vm1090, %v2489, 0
      %v2496 = vsel %vm1090, %v2491, 0
      %2498 = vmatpush.bf16.xpose.msra.mxu0 0
      %2499 = vmatpush.bf16.xpose.msra.mxu0 0
      %2500 = vmatpush.bf16.xpose.msra.mxu0 0
      %2501 = vmatpush.bf16.xpose.msra.mxu0 0
      %2502 = vmatpush.bf16.xpose.msra.mxu0 0
      %2503 = vmatpush.bf16.xpose.msra.mxu0 0
      %2504 = vmatpush.bf16.xpose.msra.mxu0 0
      %2505 = vmatpush.bf16.xpose.msra.mxu0 %v2496
      %2506 = vmatmul.bf16.gmra.mxu0 %v2493
      %v2507 = vpop.f32.mrf.mxu0
      %v2508 = vadd.f32 0.0, %v2507
      %v2509 = vpop.f32.mrf.mxu0
      %2510 = vdwg.mxu0
      %2511 = vrot.lane.b32.xlu0 %v1136, 104
      %v2512 = vpop.permute.xlu0 %2511
      %2513 = vrot.lane.b32.xlu0 %v1136, 72
      %v2514 = vpop.permute.xlu0 %2513
      %v2516 = vsel %vm1090, %v2512, 0
      %v2519 = vsel %vm1090, %v2514, 0
      %2521 = vmatpush.bf16.xpose.msra.mxu0 0
      %2522 = vmatpush.bf16.xpose.msra.mxu0 0
      %2523 = vmatpush.bf16.xpose.msra.mxu0 0
      %2524 = vmatpush.bf16.xpose.msra.mxu0 0
      %2525 = vmatpush.bf16.xpose.msra.mxu0 0
      %2526 = vmatpush.bf16.xpose.msra.mxu0 0
      %2527 = vmatpush.bf16.xpose.msra.mxu0 0
      %2528 = vmatpush.bf16.xpose.msra.mxu0 %v2519
      %2529 = vmatmul.bf16.gmra.mxu0 %v2516
      %v2530 = vpop.f32.mrf.mxu0
      %v2531 = vadd.f32 0.0, %v2530
      %v2532 = vpop.f32.mrf.mxu0
      %2533 = vdwg.mxu0
      %2534 = vrot.lane.b32.xlu0 %v1160, 104
      %v2535 = vpop.permute.xlu0 %2534
      %2536 = vrot.lane.b32.xlu0 %v1160, 72
      %v2537 = vpop.permute.xlu0 %2536
      %v2539 = vsel %vm1090, %v2535, 0
      %v2542 = vsel %vm1090, %v2537, 0
      %2544 = vmatpush.bf16.xpose.msra.mxu0 0
      %2545 = vmatpush.bf16.xpose.msra.mxu0 0
      %2546 = vmatpush.bf16.xpose.msra.mxu0 0
      %2547 = vmatpush.bf16.xpose.msra.mxu0 0
      %2548 = vmatpush.bf16.xpose.msra.mxu0 0
      %2549 = vmatpush.bf16.xpose.msra.mxu0 0
      %2550 = vmatpush.bf16.xpose.msra.mxu0 0
      %2551 = vmatpush.bf16.xpose.msra.mxu0 %v2542
      %2552 = vmatmul.bf16.gmra.mxu0 %v2539
      %v2553 = vpop.f32.mrf.mxu0
      %v2554 = vadd.f32 0.0, %v2553
      %v2555 = vpop.f32.mrf.mxu0
      %2556 = vdwg.mxu0
      %2557 = vrot.lane.b32.xlu0 %v1184, 104
      %v2558 = vpop.permute.xlu0 %2557
      %2559 = vrot.lane.b32.xlu0 %v1184, 72
      %v2560 = vpop.permute.xlu0 %2559
      %v2562 = vsel %vm1090, %v2558, 0
      %v2565 = vsel %vm1090, %v2560, 0
      %2567 = vmatpush.bf16.xpose.msra.mxu0 0
      %2568 = vmatpush.bf16.xpose.msra.mxu0 0
      %2569 = vmatpush.bf16.xpose.msra.mxu0 0
      %2570 = vmatpush.bf16.xpose.msra.mxu0 0
      %2571 = vmatpush.bf16.xpose.msra.mxu0 0
      %2572 = vmatpush.bf16.xpose.msra.mxu0 0
      %2573 = vmatpush.bf16.xpose.msra.mxu0 0
      %2574 = vmatpush.bf16.xpose.msra.mxu0 %v2565
      %2575 = vmatmul.bf16.gmra.mxu0 %v2562
      %v2576 = vpop.f32.mrf.mxu0
      %v2577 = vadd.f32 0.0, %v2576
      %v2578 = vpop.f32.mrf.mxu0
      %2579 = vdwg.mxu0
      %2580 = vrot.lane.b32.xlu0 %v1208, 104
      %v2581 = vpop.permute.xlu0 %2580
      %2582 = vrot.lane.b32.xlu0 %v1208, 72
      %v2583 = vpop.permute.xlu0 %2582
      %v2585 = vsel %vm1090, %v2581, 0
      %v2588 = vsel %vm1090, %v2583, 0
      %2590 = vmatpush.bf16.xpose.msra.mxu0 0
      %2591 = vmatpush.bf16.xpose.msra.mxu0 0
      %2592 = vmatpush.bf16.xpose.msra.mxu0 0
      %2593 = vmatpush.bf16.xpose.msra.mxu0 0
      %2594 = vmatpush.bf16.xpose.msra.mxu0 0
      %2595 = vmatpush.bf16.xpose.msra.mxu0 0
      %2596 = vmatpush.bf16.xpose.msra.mxu0 0
      %2597 = vmatpush.bf16.xpose.msra.mxu0 %v2588
      %2598 = vmatmul.bf16.gmra.mxu0 %v2585
      %v2599 = vpop.f32.mrf.mxu0
      %v2600 = vadd.f32 0.0, %v2599
      %v2601 = vpop.f32.mrf.mxu0
      %2602 = vdwg.mxu0
      %2603 = vrot.lane.b32.xlu0 %v1232, 104
      %v2604 = vpop.permute.xlu0 %2603
      %2605 = vrot.lane.b32.xlu0 %v1232, 72
      %v2606 = vpop.permute.xlu0 %2605
      %v2608 = vsel %vm1090, %v2604, 0
      %v2611 = vsel %vm1090, %v2606, 0
      %2613 = vmatpush.bf16.xpose.msra.mxu0 0
      %2614 = vmatpush.bf16.xpose.msra.mxu0 0
      %2615 = vmatpush.bf16.xpose.msra.mxu0 0
      %2616 = vmatpush.bf16.xpose.msra.mxu0 0
      %2617 = vmatpush.bf16.xpose.msra.mxu0 0
      %2618 = vmatpush.bf16.xpose.msra.mxu0 0
      %2619 = vmatpush.bf16.xpose.msra.mxu0 0
      %2620 = vmatpush.bf16.xpose.msra.mxu0 %v2611
      %2621 = vmatmul.bf16.gmra.mxu0 %v2608
      %v2622 = vpop.f32.mrf.mxu0
      %v2623 = vadd.f32 0.0, %v2622
      %v2624 = vpop.f32.mrf.mxu0
      %2625 = vdwg.mxu0
      %2626 = vrot.lane.b32.xlu0 %v1256, 104
      %v2627 = vpop.permute.xlu0 %2626
      %2628 = vrot.lane.b32.xlu0 %v1256, 72
      %v2629 = vpop.permute.xlu0 %2628
      %v2631 = vsel %vm1090, %v2627, 0
      %v2634 = vsel %vm1090, %v2629, 0
      %2636 = vmatpush.bf16.xpose.msra.mxu0 0
      %2637 = vmatpush.bf16.xpose.msra.mxu0 0
      %2638 = vmatpush.bf16.xpose.msra.mxu0 0
      %2639 = vmatpush.bf16.xpose.msra.mxu0 0
      %2640 = vmatpush.bf16.xpose.msra.mxu0 0
      %2641 = vmatpush.bf16.xpose.msra.mxu0 0
      %2642 = vmatpush.bf16.xpose.msra.mxu0 0
      %2643 = vmatpush.bf16.xpose.msra.mxu0 %v2634
      %2644 = vmatmul.bf16.gmra.mxu0 %v2631
      %v2645 = vpop.f32.mrf.mxu0
      %v2646 = vadd.f32 0.0, %v2645
      %v2647 = vpop.f32.mrf.mxu0
      %2648 = vdwg.mxu0
      %v2649 = vmul.f32 %v2485, 0.35355338
      %v2650 = vmul.f32 %v2508, 0.35355338
      %v2651 = vmul.f32 %v2531, 0.35355338
      %v2652 = vmul.f32 %v2554, 0.35355338
      %v2653 = vmul.f32 %v2577, 0.35355338
      %v2654 = vmul.f32 %v2600, 0.35355338
      %v2655 = vmul.f32 %v2623, 0.35355338
      %v2656 = vmul.f32 %v2646, 0.35355338
      %v2657 = vsel %vm1286, %v2649, -inf
      %2658 = vmax.xlane.f32.xlu0 %v2657
      %v2659 = vpop.xlane.xlu0 %2658
      %v2660 = vsel %vm1286, %v2650, -inf
      %2661 = vmax.xlane.f32.xlu0 %v2660
      %v2662 = vpop.xlane.xlu0 %2661
      %v2663 = vsel %vm1286, %v2651, -inf
      %2664 = vmax.xlane.f32.xlu0 %v2663
      %v2665 = vpop.xlane.xlu0 %2664
      %v2666 = vsel %vm1286, %v2652, -inf
      %2667 = vmax.xlane.f32.xlu0 %v2666
      %v2668 = vpop.xlane.xlu0 %2667
      %v2669 = vsel %vm1286, %v2653, -inf
      %2670 = vmax.xlane.f32.xlu0 %v2669
      %v2671 = vpop.xlane.xlu0 %2670
      %v2672 = vsel %vm1286, %v2654, -inf
      %2673 = vmax.xlane.f32.xlu0 %v2672
      %v2674 = vpop.xlane.xlu0 %2673
      %v2675 = vsel %vm1286, %v2655, -inf
      %2676 = vmax.xlane.f32.xlu0 %v2675
      %v2677 = vpop.xlane.xlu0 %2676
      %v2678 = vsel %vm1286, %v2656, -inf
      %2679 = vmax.xlane.f32.xlu0 %v2678
      %v2680 = vpop.xlane.xlu0 %2679
      %v2681 = vsub.f32 %v2649, %v2659
      %v2682 = vsub.f32 %v2650, %v2662
      %v2683 = vsub.f32 %v2651, %v2665
      %v2684 = vsub.f32 %v2652, %v2668
      %v2685 = vsub.f32 %v2653, %v2671
      %v2686 = vsub.f32 %v2654, %v2674
      %v2687 = vsub.f32 %v2655, %v2677
      %v2688 = vsub.f32 %v2656, %v2680
      %v2689 = vmul.f32 %v2681, 1.442695
      %v2690 = vpow.pop %v2689
      %v2691 = vmul.f32 %v2682, 1.442695
      %v2692 = vpow.pop %v2691
      %v2693 = vmul.f32 %v2683, 1.442695
      %v2694 = vpow.pop %v2693
      %v2695 = vmul.f32 %v2684, 1.442695
      %v2696 = vpow.pop %v2695
      %v2697 = vmul.f32 %v2685, 1.442695
      %v2698 = vpow.pop %v2697
      %v2699 = vmul.f32 %v2686, 1.442695
      %v2700 = vpow.pop %v2699
      %v2701 = vmul.f32 %v2687, 1.442695
      %v2702 = vpow.pop %v2701
      %v2703 = vmul.f32 %v2688, 1.442695
      %v2704 = vpow.pop %v2703
      %v2705 = vsel %vm1286, %v2690, 0.0
      %2706 = vadd.xlane.f32.xlu0 %v2705
      %v2707 = vpop.xlane.xlu0 %2706
      %v2708 = vsel %vm1286, %v2692, 0.0
      %2709 = vadd.xlane.f32.xlu0 %v2708
      %v2710 = vpop.xlane.xlu0 %2709
      %v2711 = vsel %vm1286, %v2694, 0.0
      %2712 = vadd.xlane.f32.xlu0 %v2711
      %v2713 = vpop.xlane.xlu0 %2712
      %v2714 = vsel %vm1286, %v2696, 0.0
      %2715 = vadd.xlane.f32.xlu0 %v2714
      %v2716 = vpop.xlane.xlu0 %2715
      %v2717 = vsel %vm1286, %v2698, 0.0
      %2718 = vadd.xlane.f32.xlu0 %v2717
      %v2719 = vpop.xlane.xlu0 %2718
      %v2720 = vsel %vm1286, %v2700, 0.0
      %2721 = vadd.xlane.f32.xlu0 %v2720
      %v2722 = vpop.xlane.xlu0 %2721
      %v2723 = vsel %vm1286, %v2702, 0.0
      %2724 = vadd.xlane.f32.xlu0 %v2723
      %v2725 = vpop.xlane.xlu0 %2724
      %v2726 = vsel %vm1286, %v2704, 0.0
      %2727 = vadd.xlane.f32.xlu0 %v2726
      %v2728 = vpop.xlane.xlu0 %2727
      %v2729 = vrcp.pop %v2707
      %v2730 = vrcp.pop %v2710
      %v2731 = vrcp.pop %v2713
      %v2732 = vrcp.pop %v2716
      %v2733 = vrcp.pop %v2719
      %v2734 = vrcp.pop %v2722
      %v2735 = vrcp.pop %v2725
      %v2736 = vrcp.pop %v2728
      %v2737 = vmul.f32 %v2690, %v2729
      %v2738 = vmul.f32 %v2692, %v2730
      %v2739 = vmul.f32 %v2694, %v2731
      %v2740 = vmul.f32 %v2696, %v2732
      %v2741 = vmul.f32 %v2698, %v2733
      %v2742 = vmul.f32 %v2700, %v2734
      %v2743 = vmul.f32 %v2702, %v2735
      %v2744 = vmul.f32 %v2704, %v2736
      %v2745 = vpack.c.bf16 %v2737, %v2737
      %v2746 = vpack.c.bf16 %v2738, %v2738
      %v2747 = vpack.c.bf16 %v2739, %v2739
      %v2748 = vpack.c.bf16 %v2740, %v2740
      %v2749 = vpack.c.bf16 %v2741, %v2741
      %v2750 = vpack.c.bf16 %v2742, %v2742
      %v2751 = vpack.c.bf16 %v2743, %v2743
      %v2752 = vpack.c.bf16 %v2744, %v2744
      %2753 = vrot.lane.b32.xlu0 %v1087, 40
      %v2754 = vpop.permute.xlu0 %2753
      %v2756 = vsel %vm1385, %v2745, 0
      %v2759 = vsel %vm1389, %v2754, 0
      %2761 = vmatpush.bf16.msra.mxu0 0
      %2762 = vmatpush.bf16.msra.mxu0 0
      %2763 = vmatpush.bf16.msra.mxu0 0
      %2764 = vmatpush.bf16.msra.mxu0 0
      %2765 = vmatpush.bf16.msra.mxu0 0
      %2766 = vmatpush.bf16.msra.mxu0 0
      %2767 = vmatpush.bf16.msra.mxu0 0
      %2768 = vmatpush.bf16.msra.mxu0 %v2759
      %2769 = vmatmul.bf16.gmra.mxu0 %v2756
      %v2770 = vpop.f32.mrf.mxu0
      %v2771 = vadd.f32 0.0, %v2770
      %v2772 = vpop.f32.mrf.mxu0
      %2773 = vdwg.mxu0
      %2774 = vrot.lane.b32.xlu0 %v1112, 40
      %v2775 = vpop.permute.xlu0 %2774
      %v2777 = vsel %vm1385, %v2746, 0
      %v2780 = vsel %vm1389, %v2775, 0
      %2782 = vmatpush.bf16.msra.mxu0 0
      %2783 = vmatpush.bf16.msra.mxu0 0
      %2784 = vmatpush.bf16.msra.mxu0 0
      %2785 = vmatpush.bf16.msra.mxu0 0
      %2786 = vmatpush.bf16.msra.mxu0 0
      %2787 = vmatpush.bf16.msra.mxu0 0
      %2788 = vmatpush.bf16.msra.mxu0 0
      %2789 = vmatpush.bf16.msra.mxu0 %v2780
      %2790 = vmatmul.bf16.gmra.mxu0 %v2777
      %v2791 = vpop.f32.mrf.mxu0
      %v2792 = vadd.f32 0.0, %v2791
      %v2793 = vpop.f32.mrf.mxu0
      %2794 = vdwg.mxu0
      %2795 = vrot.lane.b32.xlu0 %v1136, 40
      %v2796 = vpop.permute.xlu0 %2795
      %v2798 = vsel %vm1385, %v2747, 0
      %v2801 = vsel %vm1389, %v2796, 0
      %2803 = vmatpush.bf16.msra.mxu0 0
      %2804 = vmatpush.bf16.msra.mxu0 0
      %2805 = vmatpush.bf16.msra.mxu0 0
      %2806 = vmatpush.bf16.msra.mxu0 0
      %2807 = vmatpush.bf16.msra.mxu0 0
      %2808 = vmatpush.bf16.msra.mxu0 0
      %2809 = vmatpush.bf16.msra.mxu0 0
      %2810 = vmatpush.bf16.msra.mxu0 %v2801
      %2811 = vmatmul.bf16.gmra.mxu0 %v2798
      %v2812 = vpop.f32.mrf.mxu0
      %v2813 = vadd.f32 0.0, %v2812
      %v2814 = vpop.f32.mrf.mxu0
      %2815 = vdwg.mxu0
      %2816 = vrot.lane.b32.xlu0 %v1160, 40
      %v2817 = vpop.permute.xlu0 %2816
      %v2819 = vsel %vm1385, %v2748, 0
      %v2822 = vsel %vm1389, %v2817, 0
      %2824 = vmatpush.bf16.msra.mxu0 0
      %2825 = vmatpush.bf16.msra.mxu0 0
      %2826 = vmatpush.bf16.msra.mxu0 0
      %2827 = vmatpush.bf16.msra.mxu0 0
      %2828 = vmatpush.bf16.msra.mxu0 0
      %2829 = vmatpush.bf16.msra.mxu0 0
      %2830 = vmatpush.bf16.msra.mxu0 0
      %2831 = vmatpush.bf16.msra.mxu0 %v2822
      %2832 = vmatmul.bf16.gmra.mxu0 %v2819
      %v2833 = vpop.f32.mrf.mxu0
      %v2834 = vadd.f32 0.0, %v2833
      %v2835 = vpop.f32.mrf.mxu0
      %2836 = vdwg.mxu0
      %2837 = vrot.lane.b32.xlu0 %v1184, 40
      %v2838 = vpop.permute.xlu0 %2837
      %v2840 = vsel %vm1385, %v2749, 0
      %v2843 = vsel %vm1389, %v2838, 0
      %2845 = vmatpush.bf16.msra.mxu0 0
      %2846 = vmatpush.bf16.msra.mxu0 0
      %2847 = vmatpush.bf16.msra.mxu0 0
      %2848 = vmatpush.bf16.msra.mxu0 0
      %2849 = vmatpush.bf16.msra.mxu0 0
      %2850 = vmatpush.bf16.msra.mxu0 0
      %2851 = vmatpush.bf16.msra.mxu0 0
      %2852 = vmatpush.bf16.msra.mxu0 %v2843
      %2853 = vmatmul.bf16.gmra.mxu0 %v2840
      %v2854 = vpop.f32.mrf.mxu0
      %v2855 = vadd.f32 0.0, %v2854
      %v2856 = vpop.f32.mrf.mxu0
      %2857 = vdwg.mxu0
      %2858 = vrot.lane.b32.xlu0 %v1208, 40
      %v2859 = vpop.permute.xlu0 %2858
      %v2861 = vsel %vm1385, %v2750, 0
      %v2864 = vsel %vm1389, %v2859, 0
      %2866 = vmatpush.bf16.msra.mxu0 0
      %2867 = vmatpush.bf16.msra.mxu0 0
      %2868 = vmatpush.bf16.msra.mxu0 0
      %2869 = vmatpush.bf16.msra.mxu0 0
      %2870 = vmatpush.bf16.msra.mxu0 0
      %2871 = vmatpush.bf16.msra.mxu0 0
      %2872 = vmatpush.bf16.msra.mxu0 0
      %2873 = vmatpush.bf16.msra.mxu0 %v2864
      %2874 = vmatmul.bf16.gmra.mxu0 %v2861
      %v2875 = vpop.f32.mrf.mxu0
      %v2876 = vadd.f32 0.0, %v2875
      %v2877 = vpop.f32.mrf.mxu0
      %2878 = vdwg.mxu0
      %2879 = vrot.lane.b32.xlu0 %v1232, 40
      %v2880 = vpop.permute.xlu0 %2879
      %v2882 = vsel %vm1385, %v2751, 0
      %v2885 = vsel %vm1389, %v2880, 0
      %2887 = vmatpush.bf16.msra.mxu0 0
      %2888 = vmatpush.bf16.msra.mxu0 0
      %2889 = vmatpush.bf16.msra.mxu0 0
      %2890 = vmatpush.bf16.msra.mxu0 0
      %2891 = vmatpush.bf16.msra.mxu0 0
      %2892 = vmatpush.bf16.msra.mxu0 0
      %2893 = vmatpush.bf16.msra.mxu0 0
      %2894 = vmatpush.bf16.msra.mxu0 %v2885
      %2895 = vmatmul.bf16.gmra.mxu0 %v2882
      %v2896 = vpop.f32.mrf.mxu0
      %v2897 = vadd.f32 0.0, %v2896
      %v2898 = vpop.f32.mrf.mxu0
      %2899 = vdwg.mxu0
      %2900 = vrot.lane.b32.xlu0 %v1256, 40
      %v2901 = vpop.permute.xlu0 %2900
      %v2903 = vsel %vm1385, %v2752, 0
      %v2906 = vsel %vm1389, %v2901, 0
      %2908 = vmatpush.bf16.msra.mxu0 0
      %2909 = vmatpush.bf16.msra.mxu0 0
      %2910 = vmatpush.bf16.msra.mxu0 0
      %2911 = vmatpush.bf16.msra.mxu0 0
      %2912 = vmatpush.bf16.msra.mxu0 0
      %2913 = vmatpush.bf16.msra.mxu0 0
      %2914 = vmatpush.bf16.msra.mxu0 0
      %2915 = vmatpush.bf16.msra.mxu0 %v2906
      %2916 = vmatmul.bf16.gmra.mxu0 %v2903
      %v2917 = vpop.f32.mrf.mxu0
      %v2918 = vadd.f32 0.0, %v2917
      %v2919 = vpop.f32.mrf.mxu0
      %2920 = vdwg.mxu0
      %2929 = vrot.lane.b32.xlu0 %v1859, 8
      %v2930 = vpop.permute.xlu0 %2929
      %2931 = vrot.lane.b32.xlu0 %v1880, 8
      %v2932 = vpop.permute.xlu0 %2931
      %2933 = vrot.lane.b32.xlu0 %v1901, 8
      %v2934 = vpop.permute.xlu0 %2933
      %2935 = vrot.lane.b32.xlu0 %v1922, 8
      %v2936 = vpop.permute.xlu0 %2935
      %2937 = vrot.lane.b32.xlu0 %v1943, 8
      %v2938 = vpop.permute.xlu0 %2937
      %2939 = vrot.lane.b32.xlu0 %v1964, 8
      %v2940 = vpop.permute.xlu0 %2939
      %2941 = vrot.lane.b32.xlu0 %v1985, 8
      %v2942 = vpop.permute.xlu0 %2941
      %2943 = vrot.lane.b32.xlu0 %v2006, 8
      %v2944 = vpop.permute.xlu0 %2943
      %2961 = vrot.lane.b32.xlu0 %v2315, 16
      %v2962 = vpop.permute.xlu0 %2961
      %2963 = vrot.lane.b32.xlu0 %v2336, 16
      %v2964 = vpop.permute.xlu0 %2963
      %2965 = vrot.lane.b32.xlu0 %v2357, 16
      %v2966 = vpop.permute.xlu0 %2965
      %2967 = vrot.lane.b32.xlu0 %v2378, 16
      %v2968 = vpop.permute.xlu0 %2967
      %2969 = vrot.lane.b32.xlu0 %v2399, 16
      %v2970 = vpop.permute.xlu0 %2969
      %2971 = vrot.lane.b32.xlu0 %v2420, 16
      %v2972 = vpop.permute.xlu0 %2971
      %2973 = vrot.lane.b32.xlu0 %v2441, 16
      %v2974 = vpop.permute.xlu0 %2973
      %2975 = vrot.lane.b32.xlu0 %v2462, 16
      %v2976 = vpop.permute.xlu0 %2975
      %2993 = vrot.lane.b32.xlu0 %v2771, 24
      %v2994 = vpop.permute.xlu0 %2993
      %2995 = vrot.lane.b32.xlu0 %v2792, 24
      %v2996 = vpop.permute.xlu0 %2995
      %2997 = vrot.lane.b32.xlu0 %v2813, 24
      %v2998 = vpop.permute.xlu0 %2997
      %2999 = vrot.lane.b32.xlu0 %v2834, 24
      %v3000 = vpop.permute.xlu0 %2999
      %3001 = vrot.lane.b32.xlu0 %v2855, 24
      %v3002 = vpop.permute.xlu0 %3001
      %3003 = vrot.lane.b32.xlu0 %v2876, 24
      %v3004 = vpop.permute.xlu0 %3003
      %3005 = vrot.lane.b32.xlu0 %v2897, 24
      %v3006 = vpop.permute.xlu0 %3005
      %3007 = vrot.lane.b32.xlu0 %v2918, 24
      %v3008 = vpop.permute.xlu0 %3007
      %v3017 = vsel %vm1090, %v1403, %v2930
      %v3018 = vsel %vm1090, %v1424, %v2932
      %v3019 = vsel %vm1090, %v1445, %v2934
      %v3020 = vsel %vm1090, %v1466, %v2936
      %v3021 = vsel %vm1090, %v1487, %v2938
      %v3022 = vsel %vm1090, %v1508, %v2940
      %v3023 = vsel %vm1090, %v1529, %v2942
      %v3024 = vsel %vm1090, %v1550, %v2944
      %vm3025 = vcmask 130048
      %v3026 = vsel %vm3025, %v3017, %v2962
      %v3027 = vsel %vm3025, %v3018, %v2964
      %v3028 = vsel %vm3025, %v3019, %v2966
      %v3029 = vsel %vm3025, %v3020, %v2968
      %v3030 = vsel %vm3025, %v3021, %v2970
      %v3031 = vsel %vm3025, %v3022, %v2972
      %v3032 = vsel %vm3025, %v3023, %v2974
      %v3033 = vsel %vm3025, %v3024, %v2976
      %vm3034 = vcmask 195584
      %v3035 = vsel %vm3034, %v3026, %v2994
      %v3036 = vsel %vm3034, %v3027, %v2996
      %v3037 = vsel %vm3034, %v3028, %v2998
      %v3038 = vsel %vm3034, %v3029, %v3000
      %v3039 = vsel %vm3034, %v3030, %v3002
      %v3040 = vsel %vm3034, %v3031, %v3004
      %v3041 = vsel %vm3034, %v3032, %v3006
      %v3042 = vsel %vm3034, %v3033, %v3008
      %v3043 = vld [vmem:[%s909] sm:$0xf]
      %v3044 = vld [vmem:[%s909 + $0x4] sm:$0xf]
      %v3045 = vld [vmem:[%s909 + $0x8] sm:$0xf]
      %v3046 = vld [vmem:[%s909 + $0xc] sm:$0xf]
      %3055 = vst [vmem:[#allocation1] ss:$4 sm:$0xff] %v3035
      %s3056 = scalar_lea.vmem [#allocation1], 1
      %3057 = vst [vmem:[%s3056] ss:$4 sm:$0xff] %v3036
      %s3058 = scalar_lea.vmem [#allocation1], 2
      %3059 = vst [vmem:[%s3058] ss:$4 sm:$0xff] %v3037
      %s3060 = scalar_lea.vmem [#allocation1], 3
      %3061 = vst [vmem:[%s3060] ss:$4 sm:$0xff] %v3038
      %s3062 = scalar_lea.vmem [#allocation1], 32
      %3063 = vst [vmem:[%s3062] ss:$4 sm:$0xff] %v3039
      %s3064 = scalar_lea.vmem [#allocation1], 33
      %3065 = vst [vmem:[%s3064] ss:$4 sm:$0xff] %v3040
      %s3066 = scalar_lea.vmem [#allocation1], 34
      %3067 = vst [vmem:[%s3066] ss:$4 sm:$0xff] %v3041
      %s3068 = scalar_lea.vmem [#allocation1], 35
      %3069 = vst [vmem:[%s3068] ss:$4 sm:$0xff] %v3042
      %v3070 = vld.sshfl [vmem:[#allocation1] sm:$0xff pattern:$0x73625140]
      %v3071 = vld.sshfl [vmem:[#allocation1 + $0x20] sm:$0xff pattern:$0x73625140]
      %v3074 = vpack.c.bf16 %v3071, %v3070
      %v3079 = vunpack.c.l.b16 %v3043
      %v3080 = vunpack.c.l.b16 %v3044
      %v3081 = vunpack.c.l.b16 %v3045
      %v3082 = vunpack.c.l.b16 %v3046
      %v3083 = vpack.c.b16 %v3080, %v3079
      %v3084 = vpack.c.b16 %v3082, %v3081
      %v3088 = vsel %vm1045, %v3074, 0
      %3090 = vmatpush.bf16.msra.mxu0 0
      %3091 = vmatpush.bf16.msra.mxu0 0
      %3092 = vmatpush.bf16.msra.mxu0 0
      %3093 = vmatpush.bf16.msra.mxu0 0
      %3094 = vmatpush.bf16.msra.mxu0 0
      %3095 = vmatpush.bf16.msra.mxu0 0
      %3096 = vmatpush.bf16.msra.mxu0 %v3084
      %3097 = vmatpush.bf16.msra.mxu0 %v3083
      %3098 = vmatmul.bf16.gmra.mxu0 %v3088
      %v3099 = vpop.f32.mrf.mxu0
      %v3100 = vadd.f32 0.0, %v3099
      %v3101 = vpop.f32.mrf.mxu0
      %v3102 = vadd.f32 0.0, %v3101
      %3103 = vdwg.mxu0
      %v3104 = vadd.f32 %v1014, %v3100
      %v3105 = vadd.f32 %v1015, %v3102
      %v3106 = vld [vmem:[%s912] sm:$0x1]
      %v3108 = vperm.slane %v3106, 0
      %v3110 = vadd.f32 %v3104, %v3108
      %v3111 = vadd.f32 %v3105, %v3108
      %v3112 = vld [vmem:[%s915] sm:$0x1]
      %v3113 = vld [vmem:[%s918] sm:$0x1]
      %v3114 = vsel %vm1045, %v3110, 0.0
      %3115 = vadd.xlane.f32.xlu0 %v3114
      %v3116 = vpop.xlane.xlu0 %3115
      %v3117 = vsel %vm1045, %v3111, 0.0
      %3118 = vadd.xlane.f32.xlu0 %v3117
      %v3119 = vpop.xlane.xlu0 %3118
      %v3120 = vrcp.pop 32.0
      %v3121 = vmul.f32 32.0, %v3120
      %v3122 = vsub.f32 1.0, %v3121
      %v3123 = vmul.f32 %v3120, %v3122
      %v3124 = vadd.f32 %v3120, %v3123
      %vm3125 = vweird.f32 %v3120
      %v3126 = vsel %vm3125, %v3120, %v3124
      %v3127 = vmul.f32 %v3116, %v3126
      %v3128 = vmul.f32 %v3119, %v3126
      %v3129 = vsub.f32 %v3110, %v3127
      %v3130 = vsub.f32 %v3111, %v3128
      %v3131 = vmul.f32 %v3129, %v3129
      %v3132 = vmul.f32 %v3130, %v3130
      %v3133 = vsel %vm1045, %v3131, 0.0
      %3134 = vadd.xlane.f32.xlu0 %v3133
      %v3135 = vpop.xlane.xlu0 %3134
      %v3136 = vsel %vm1045, %v3132, 0.0
      %3137 = vadd.xlane.f32.xlu0 %v3136
      %v3138 = vpop.xlane.xlu0 %3137
      %v3139 = vmul.f32 %v3135, %v3126
      %v3140 = vmul.f32 %v3138, %v3126
      %v3141 = vadd.f32 %v3139, 1e-05
      %v3142 = vadd.f32 %v3140, 1e-05
      %v3143 = vrsqrt.pop %v3141
      %v3144 = vmul.f32 %v3143, %v3141
      %v3145 = vmul.f32 %v3144, %v3143
      %v3146 = vmul.f32 0.5, %v3145
      %v3147 = vsub.f32 1.5, %v3146
      %v3148 = vmul.f32 %v3143, %v3147
      %vm3149 = vweird.f32 %v3141
      %vm3150 = vweird.f32 %v3143
      %vm3151 = vmor %vm3149, %vm3150
      %v3152 = vsel %vm3151, %v3143, %v3148
      %v3153 = vrsqrt.pop %v3142
      %v3154 = vmul.f32 %v3153, %v3142
      %v3155 = vmul.f32 %v3154, %v3153
      %v3156 = vmul.f32 0.5, %v3155
      %v3157 = vsub.f32 1.5, %v3156
      %v3158 = vmul.f32 %v3153, %v3157
      %vm3159 = vweird.f32 %v3142
      %vm3160 = vweird.f32 %v3153
      %vm3161 = vmor %vm3159, %vm3160
      %v3162 = vsel %vm3161, %v3153, %v3158
      %v3163 = vmul.f32 %v3129, %v3152
      %v3164 = vmul.f32 %v3130, %v3162
      %v3166 = vperm.slane %v3112, 0
      %v3168 = vmul.f32 %v3163, %v3166
      %v3169 = vmul.f32 %v3164, %v3166
      %v3171 = vperm.slane %v3113, 0
      %v3173 = vadd.f32 %v3168, %v3171
      %v3174 = vadd.f32 %v3169, %v3171
      %v3175 = vld [vmem:[%s923] sm:$0xf]
      %v3176 = vld [vmem:[%s923 + $0x4] sm:$0xf]
      %v3177 = vld [vmem:[%s923 + $0x8] sm:$0xf]
      %v3178 = vld [vmem:[%s923 + $0xc] sm:$0xf]
      %v3179 = vpack.c.bf16 %v3174, %v3173
      %v3180 = vld [vmem:[%s926] sm:$0x1]
      %v3182 = vperm.slane %v3180, 0
      %v3188 = vunpack.c.l.b16 %v3175
      %v3189 = vunpack.c.l.b16 %v3176
      %v3190 = vunpack.c.l.b16 %v3177
      %v3191 = vunpack.c.l.b16 %v3178
      %v3192 = vpack.c.b16 %v3189, %v3188
      %v3193 = vpack.c.b16 %v3191, %v3190
      %v3197 = vsel %vm1045, %v3179, 0
      %3199 = vmatpush.bf16.msra.mxu0 0
      %3200 = vmatpush.bf16.msra.mxu0 0
      %3201 = vmatpush.bf16.msra.mxu0 0
      %3202 = vmatpush.bf16.msra.mxu0 0
      %3203 = vmatpush.bf16.msra.mxu0 0
      %3204 = vmatpush.bf16.msra.mxu0 0
      %3205 = vmatpush.bf16.msra.mxu0 %v3193
      %3206 = vmatpush.bf16.msra.mxu0 %v3192
      %3207 = vmatmul.bf16.gmra.mxu0 %v3197
      %v3208 = vpop.f32.mrf.mxu0
      %v3209 = vadd.f32 %v3182, %v3208
      %v3210 = vpop.f32.mrf.mxu0
      %v3211 = vadd.f32 %v3182, %v3210
      %3212 = vdwg.mxu0
      %v3215 = vrot.slane %v3209, 2
      %v3216 = vrot.slane %v3209, 4
      %v3217 = vrot.slane %v3209, 6
      %v3218 = vrot.slane %v3211, 2
      %v3219 = vrot.slane %v3211, 4
      %v3220 = vrot.slane %v3211, 6
      %v3227 = vld [vmem:[%s931] sm:$0xf]
      %v3228 = vld [vmem:[%s931 + $0x4] sm:$0xf]
      %v3229 = vld [vmem:[%s931 + $0x8] sm:$0xf]
      %v3230 = vld [vmem:[%s931 + $0xc] sm:$0xf]
      %3239 = vst [vmem:[#allocation1] ss:$4 sm:$0xff] %v1016
      %s3240 = scalar_lea.vmem [#allocation1], 1
      %3241 = vst [vmem:[%s3240] ss:$4 sm:$0xff] %v1017
      %s3242 = scalar_lea.vmem [#allocation1], 2
      %3243 = vst [vmem:[%s3242] ss:$4 sm:$0xff] %v1018
      %s3244 = scalar_lea.vmem [#allocation1], 3
      %3245 = vst [vmem:[%s3244] ss:$4 sm:$0xff] %v1019
      %s3246 = scalar_lea.vmem [#allocation1], 32
      %3247 = vst [vmem:[%s3246] ss:$4 sm:$0xff] %v1020
      %s3248 = scalar_lea.vmem [#allocation1], 33
      %3249 = vst [vmem:[%s3248] ss:$4 sm:$0xff] %v1021
      %s3250 = scalar_lea.vmem [#allocation1], 34
      %3251 = vst [vmem:[%s3250] ss:$4 sm:$0xff] %v1022
      %s3252 = scalar_lea.vmem [#allocation1], 35
      %3253 = vst [vmem:[%s3252] ss:$4 sm:$0xff] %v1023
      %v3254 = vld.sshfl [vmem:[#allocation1] sm:$0xff pattern:$0x73625140]
      %v3255 = vld.sshfl [vmem:[#allocation1 + $0x20] sm:$0xff pattern:$0x73625140]
      %v3258 = vpack.c.bf16 %v3255, %v3254
      %v3259 = vld [vmem:[%s934] sm:$0x1]
      %v3261 = vperm.slane %v3259, 0
      %v3267 = vunpack.c.l.b16 %v3227
      %v3268 = vunpack.c.l.b16 %v3228
      %v3269 = vunpack.c.l.b16 %v3229
      %v3270 = vunpack.c.l.b16 %v3230
      %v3271 = vpack.c.b16 %v3268, %v3267
      %v3272 = vpack.c.b16 %v3270, %v3269
      %v3276 = vsel %vm1045, %v3258, 0
      %3278 = vmatpush.bf16.msra.mxu0 0
      %3279 = vmatpush.bf16.msra.mxu0 0
      %3280 = vmatpush.bf16.msra.mxu0 0
      %3281 = vmatpush.bf16.msra.mxu0 0
      %3282 = vmatpush.bf16.msra.mxu0 0
      %3283 = vmatpush.bf16.msra.mxu0 0
      %3284 = vmatpush.bf16.msra.mxu0 %v3272
      %3285 = vmatpush.bf16.msra.mxu0 %v3271
      %3286 = vmatmul.bf16.gmra.mxu0 %v3276
      %v3287 = vpop.f32.mrf.mxu0
      %v3288 = vadd.f32 %v3261, %v3287
      %v3289 = vpop.f32.mrf.mxu0
      %v3290 = vadd.f32 %v3261, %v3289
      %3291 = vdwg.mxu0
      %v3294 = vrot.slane %v3288, 2
      %v3295 = vrot.slane %v3288, 4
      %v3296 = vrot.slane %v3288, 6
      %v3297 = vrot.slane %v3290, 2
      %v3298 = vrot.slane %v3290, 4
      %v3299 = vrot.slane %v3290, 6
      %v3306 = vpack.c.bf16 %v3209, %v3209
      %v3307 = vpack.c.bf16 %v3215, %v3215
      %v3308 = vpack.c.bf16 %v3216, %v3216
      %v3309 = vpack.c.bf16 %v3217, %v3217
      %v3310 = vpack.c.bf16 %v3211, %v3211
      %v3311 = vpack.c.bf16 %v3218, %v3218
      %v3312 = vpack.c.bf16 %v3219, %v3219
      %v3313 = vpack.c.bf16 %v3220, %v3220
      %v3314 = vpack.c.bf16 %v3288, %v3288
      %v3315 = vpack.c.bf16 %v3294, %v3294
      %v3316 = vpack.c.bf16 %v3295, %v3295
      %v3317 = vpack.c.bf16 %v3296, %v3296
      %v3318 = vpack.c.bf16 %v3290, %v3290
      %v3319 = vpack.c.bf16 %v3297, %v3297
      %v3320 = vpack.c.bf16 %v3298, %v3298
      %v3321 = vpack.c.bf16 %v3299, %v3299
      %v3323 = vsel %vm1090, %v3306, 0
      %v3326 = vsel %vm1090, %v3314, 0
      %3328 = vmatpush.bf16.xpose.msra.mxu0 0
      %3329 = vmatpush.bf16.xpose.msra.mxu0 0
      %3330 = vmatpush.bf16.xpose.msra.mxu0 0
      %3331 = vmatpush.bf16.xpose.msra.mxu0 0
      %3332 = vmatpush.bf16.xpose.msra.mxu0 0
      %3333 = vmatpush.bf16.xpose.msra.mxu0 0
      %3334 = vmatpush.bf16.xpose.msra.mxu0 0
      %3335 = vmatpush.bf16.xpose.msra.mxu0 %v3326
      %3336 = vmatmul.bf16.gmra.mxu0 %v3323
      %v3337 = vpop.f32.mrf.mxu0
      %v3338 = vadd.f32 0.0, %v3337
      %v3339 = vpop.f32.mrf.mxu0
      %3340 = vdwg.mxu0
      %v3342 = vsel %vm1090, %v3307, 0
      %v3345 = vsel %vm1090, %v3315, 0
      %3347 = vmatpush.bf16.xpose.msra.mxu0 0
      %3348 = vmatpush.bf16.xpose.msra.mxu0 0
      %3349 = vmatpush.bf16.xpose.msra.mxu0 0
      %3350 = vmatpush.bf16.xpose.msra.mxu0 0
      %3351 = vmatpush.bf16.xpose.msra.mxu0 0
      %3352 = vmatpush.bf16.xpose.msra.mxu0 0
      %3353 = vmatpush.bf16.xpose.msra.mxu0 0
      %3354 = vmatpush.bf16.xpose.msra.mxu0 %v3345
      %3355 = vmatmul.bf16.gmra.mxu0 %v3342
      %v3356 = vpop.f32.mrf.mxu0
      %v3357 = vadd.f32 0.0, %v3356
      %v3358 = vpop.f32.mrf.mxu0
      %3359 = vdwg.mxu0
      %v3361 = vsel %vm1090, %v3308, 0
      %v3364 = vsel %vm1090, %v3316, 0
      %3366 = vmatpush.bf16.xpose.msra.mxu0 0
      %3367 = vmatpush.bf16.xpose.msra.mxu0 0
      %3368 = vmatpush.bf16.xpose.msra.mxu0 0
      %3369 = vmatpush.bf16.xpose.msra.mxu0 0
      %3370 = vmatpush.bf16.xpose.msra.mxu0 0
      %3371 = vmatpush.bf16.xpose.msra.mxu0 0
      %3372 = vmatpush.bf16.xpose.msra.mxu0 0
      %3373 = vmatpush.bf16.xpose.msra.mxu0 %v3364
      %3374 = vmatmul.bf16.gmra.mxu0 %v3361
      %v3375 = vpop.f32.mrf.mxu0
      %v3376 = vadd.f32 0.0, %v3375
      %v3377 = vpop.f32.mrf.mxu0
      %3378 = vdwg.mxu0
      %v3380 = vsel %vm1090, %v3309, 0
      %v3383 = vsel %vm1090, %v3317, 0
      %3385 = vmatpush.bf16.xpose.msra.mxu0 0
      %3386 = vmatpush.bf16.xpose.msra.mxu0 0
      %3387 = vmatpush.bf16.xpose.msra.mxu0 0
      %3388 = vmatpush.bf16.xpose.msra.mxu0 0
      %3389 = vmatpush.bf16.xpose.msra.mxu0 0
      %3390 = vmatpush.bf16.xpose.msra.mxu0 0
      %3391 = vmatpush.bf16.xpose.msra.mxu0 0
      %3392 = vmatpush.bf16.xpose.msra.mxu0 %v3383
      %3393 = vmatmul.bf16.gmra.mxu0 %v3380
      %v3394 = vpop.f32.mrf.mxu0
      %v3395 = vadd.f32 0.0, %v3394
      %v3396 = vpop.f32.mrf.mxu0
      %3397 = vdwg.mxu0
      %v3399 = vsel %vm1090, %v3310, 0
      %v3402 = vsel %vm1090, %v3318, 0
      %3404 = vmatpush.bf16.xpose.msra.mxu0 0
      %3405 = vmatpush.bf16.xpose.msra.mxu0 0
      %3406 = vmatpush.bf16.xpose.msra.mxu0 0
      %3407 = vmatpush.bf16.xpose.msra.mxu0 0
      %3408 = vmatpush.bf16.xpose.msra.mxu0 0
      %3409 = vmatpush.bf16.xpose.msra.mxu0 0
      %3410 = vmatpush.bf16.xpose.msra.mxu0 0
      %3411 = vmatpush.bf16.xpose.msra.mxu0 %v3402
      %3412 = vmatmul.bf16.gmra.mxu0 %v3399
      %v3413 = vpop.f32.mrf.mxu0
      %v3414 = vadd.f32 0.0, %v3413
      %v3415 = vpop.f32.mrf.mxu0
      %3416 = vdwg.mxu0
      %v3418 = vsel %vm1090, %v3311, 0
      %v3421 = vsel %vm1090, %v3319, 0
      %3423 = vmatpush.bf16.xpose.msra.mxu0 0
      %3424 = vmatpush.bf16.xpose.msra.mxu0 0
      %3425 = vmatpush.bf16.xpose.msra.mxu0 0
      %3426 = vmatpush.bf16.xpose.msra.mxu0 0
      %3427 = vmatpush.bf16.xpose.msra.mxu0 0
      %3428 = vmatpush.bf16.xpose.msra.mxu0 0
      %3429 = vmatpush.bf16.xpose.msra.mxu0 0
      %3430 = vmatpush.bf16.xpose.msra.mxu0 %v3421
      %3431 = vmatmul.bf16.gmra.mxu0 %v3418
      %v3432 = vpop.f32.mrf.mxu0
      %v3433 = vadd.f32 0.0, %v3432
      %v3434 = vpop.f32.mrf.mxu0
      %3435 = vdwg.mxu0
      %v3437 = vsel %vm1090, %v3312, 0
      %v3440 = vsel %vm1090, %v3320, 0
      %3442 = vmatpush.bf16.xpose.msra.mxu0 0
      %3443 = vmatpush.bf16.xpose.msra.mxu0 0
      %3444 = vmatpush.bf16.xpose.msra.mxu0 0
      %3445 = vmatpush.bf16.xpose.msra.mxu0 0
      %3446 = vmatpush.bf16.xpose.msra.mxu0 0
      %3447 = vmatpush.bf16.xpose.msra.mxu0 0
      %3448 = vmatpush.bf16.xpose.msra.mxu0 0
      %3449 = vmatpush.bf16.xpose.msra.mxu0 %v3440
      %3450 = vmatmul.bf16.gmra.mxu0 %v3437
      %v3451 = vpop.f32.mrf.mxu0
      %v3452 = vadd.f32 0.0, %v3451
      %v3453 = vpop.f32.mrf.mxu0
      %3454 = vdwg.mxu0
      %v3456 = vsel %vm1090, %v3313, 0
      %v3459 = vsel %vm1090, %v3321, 0
      %3461 = vmatpush.bf16.xpose.msra.mxu0 0
      %3462 = vmatpush.bf16.xpose.msra.mxu0 0
      %3463 = vmatpush.bf16.xpose.msra.mxu0 0
      %3464 = vmatpush.bf16.xpose.msra.mxu0 0
      %3465 = vmatpush.bf16.xpose.msra.mxu0 0
      %3466 = vmatpush.bf16.xpose.msra.mxu0 0
      %3467 = vmatpush.bf16.xpose.msra.mxu0 0
      %3468 = vmatpush.bf16.xpose.msra.mxu0 %v3459
      %3469 = vmatmul.bf16.gmra.mxu0 %v3456
      %v3470 = vpop.f32.mrf.mxu0
      %v3471 = vadd.f32 0.0, %v3470
      %v3472 = vpop.f32.mrf.mxu0
      %3473 = vdwg.mxu0
      %v3474 = vmul.f32 %v3338, 0.35355338
      %v3475 = vmul.f32 %v3357, 0.35355338
      %v3476 = vmul.f32 %v3376, 0.35355338
      %v3477 = vmul.f32 %v3395, 0.35355338
      %v3478 = vmul.f32 %v3414, 0.35355338
      %v3479 = vmul.f32 %v3433, 0.35355338
      %v3480 = vmul.f32 %v3452, 0.35355338
      %v3481 = vmul.f32 %v3471, 0.35355338
      %v3482 = vsel %vm1286, %v3474, -inf
      %3483 = vmax.xlane.f32.xlu0 %v3482
      %v3484 = vpop.xlane.xlu0 %3483
      %v3485 = vsel %vm1286, %v3475, -inf
      %3486 = vmax.xlane.f32.xlu0 %v3485
      %v3487 = vpop.xlane.xlu0 %3486
      %v3488 = vsel %vm1286, %v3476, -inf
      %3489 = vmax.xlane.f32.xlu0 %v3488
      %v3490 = vpop.xlane.xlu0 %3489
      %v3491 = vsel %vm1286, %v3477, -inf
      %3492 = vmax.xlane.f32.xlu0 %v3491
      %v3493 = vpop.xlane.xlu0 %3492
      %v3494 = vsel %vm1286, %v3478, -inf
      %3495 = vmax.xlane.f32.xlu0 %v3494
      %v3496 = vpop.xlane.xlu0 %3495
      %v3497 = vsel %vm1286, %v3479, -inf
      %3498 = vmax.xlane.f32.xlu0 %v3497
      %v3499 = vpop.xlane.xlu0 %3498
      %v3500 = vsel %vm1286, %v3480, -inf
      %3501 = vmax.xlane.f32.xlu0 %v3500
      %v3502 = vpop.xlane.xlu0 %3501
      %v3503 = vsel %vm1286, %v3481, -inf
      %3504 = vmax.xlane.f32.xlu0 %v3503
      %v3505 = vpop.xlane.xlu0 %3504
      %v3506 = vsub.f32 %v3474, %v3484
      %v3507 = vsub.f32 %v3475, %v3487
      %v3508 = vsub.f32 %v3476, %v3490
      %v3509 = vsub.f32 %v3477, %v3493
      %v3510 = vsub.f32 %v3478, %v3496
      %v3511 = vsub.f32 %v3479, %v3499
      %v3512 = vsub.f32 %v3480, %v3502
      %v3513 = vsub.f32 %v3481, %v3505
      %v3514 = vmul.f32 %v3506, 1.442695
      %v3515 = vpow.pop %v3514
      %v3516 = vmul.f32 %v3507, 1.442695
      %v3517 = vpow.pop %v3516
      %v3518 = vmul.f32 %v3508, 1.442695
      %v3519 = vpow.pop %v3518
      %v3520 = vmul.f32 %v3509, 1.442695
      %v3521 = vpow.pop %v3520
      %v3522 = vmul.f32 %v3510, 1.442695
      %v3523 = vpow.pop %v3522
      %v3524 = vmul.f32 %v3511, 1.442695
      %v3525 = vpow.pop %v3524
      %v3526 = vmul.f32 %v3512, 1.442695
      %v3527 = vpow.pop %v3526
      %v3528 = vmul.f32 %v3513, 1.442695
      %v3529 = vpow.pop %v3528
      %v3530 = vsel %vm1286, %v3515, 0.0
      %3531 = vadd.xlane.f32.xlu0 %v3530
      %v3532 = vpop.xlane.xlu0 %3531
      %v3533 = vsel %vm1286, %v3517, 0.0
      %3534 = vadd.xlane.f32.xlu0 %v3533
      %v3535 = vpop.xlane.xlu0 %3534
      %v3536 = vsel %vm1286, %v3519, 0.0
      %3537 = vadd.xlane.f32.xlu0 %v3536
      %v3538 = vpop.xlane.xlu0 %3537
      %v3539 = vsel %vm1286, %v3521, 0.0
      %3540 = vadd.xlane.f32.xlu0 %v3539
      %v3541 = vpop.xlane.xlu0 %3540
      %v3542 = vsel %vm1286, %v3523, 0.0
      %3543 = vadd.xlane.f32.xlu0 %v3542
      %v3544 = vpop.xlane.xlu0 %3543
      %v3545 = vsel %vm1286, %v3525, 0.0
      %3546 = vadd.xlane.f32.xlu0 %v3545
      %v3547 = vpop.xlane.xlu0 %3546
      %v3548 = vsel %vm1286, %v3527, 0.0
      %3549 = vadd.xlane.f32.xlu0 %v3548
      %v3550 = vpop.xlane.xlu0 %3549
      %v3551 = vsel %vm1286, %v3529, 0.0
      %3552 = vadd.xlane.f32.xlu0 %v3551
      %v3553 = vpop.xlane.xlu0 %3552
      %v3554 = vrcp.pop %v3532
      %v3555 = vrcp.pop %v3535
      %v3556 = vrcp.pop %v3538
      %v3557 = vrcp.pop %v3541
      %v3558 = vrcp.pop %v3544
      %v3559 = vrcp.pop %v3547
      %v3560 = vrcp.pop %v3550
      %v3561 = vrcp.pop %v3553
      %v3562 = vmul.f32 %v3515, %v3554
      %v3563 = vmul.f32 %v3517, %v3555
      %v3564 = vmul.f32 %v3519, %v3556
      %v3565 = vmul.f32 %v3521, %v3557
      %v3566 = vmul.f32 %v3523, %v3558
      %v3567 = vmul.f32 %v3525, %v3559
      %v3568 = vmul.f32 %v3527, %v3560
      %v3569 = vmul.f32 %v3529, %v3561
      %v3570 = vpack.c.bf16 %v3562, %v3562
      %v3571 = vpack.c.bf16 %v3563, %v3563
      %v3572 = vpack.c.bf16 %v3564, %v3564
      %v3573 = vpack.c.bf16 %v3565, %v3565
      %v3574 = vpack.c.bf16 %v3566, %v3566
      %v3575 = vpack.c.bf16 %v3567, %v3567
      %v3576 = vpack.c.bf16 %v3568, %v3568
      %v3577 = vpack.c.bf16 %v3569, %v3569
      %v3579 = vunpack.c.l.b16 %v3314
      %v3580 = vpack.c.b16 %v3579, %v3579
      %3581 = vrot.lane.b32.xlu0 %v3580, 96
      %v3582 = vpop.permute.xlu0 %3581
      %v3584 = vsel %vm1385, %v3570, 0
      %v3587 = vsel %vm1389, %v3582, 0
      %3589 = vmatpush.bf16.msra.mxu0 0
      %3590 = vmatpush.bf16.msra.mxu0 0
      %3591 = vmatpush.bf16.msra.mxu0 0
      %3592 = vmatpush.bf16.msra.mxu0 0
      %3593 = vmatpush.bf16.msra.mxu0 0
      %3594 = vmatpush.bf16.msra.mxu0 0
      %3595 = vmatpush.bf16.msra.mxu0 0
      %3596 = vmatpush.bf16.msra.mxu0 %v3587
      %3597 = vmatmul.bf16.gmra.mxu0 %v3584
      %v3598 = vpop.f32.mrf.mxu0
      %v3599 = vadd.f32 0.0, %v3598
      %v3600 = vpop.f32.mrf.mxu0
      %3601 = vdwg.mxu0
      %v3603 = vunpack.c.l.b16 %v3315
      %v3604 = vpack.c.b16 %v3603, %v3603
      %3605 = vrot.lane.b32.xlu0 %v3604, 96
      %v3606 = vpop.permute.xlu0 %3605
      %v3608 = vsel %vm1385, %v3571, 0
      %v3611 = vsel %vm1389, %v3606, 0
      %3613 = vmatpush.bf16.msra.mxu0 0
      %3614 = vmatpush.bf16.msra.mxu0 0
      %3615 = vmatpush.bf16.msra.mxu0 0
      %3616 = vmatpush.bf16.msra.mxu0 0
      %3617 = vmatpush.bf16.msra.mxu0 0
      %3618 = vmatpush.bf16.msra.mxu0 0
      %3619 = vmatpush.bf16.msra.mxu0 0
      %3620 = vmatpush.bf16.msra.mxu0 %v3611
      %3621 = vmatmul.bf16.gmra.mxu0 %v3608
      %v3622 = vpop.f32.mrf.mxu0
      %v3623 = vadd.f32 0.0, %v3622
      %v3624 = vpop.f32.mrf.mxu0
      %3625 = vdwg.mxu0
      %v3627 = vunpack.c.l.b16 %v3316
      %v3628 = vpack.c.b16 %v3627, %v3627
      %3629 = vrot.lane.b32.xlu0 %v3628, 96
      %v3630 = vpop.permute.xlu0 %3629
      %v3632 = vsel %vm1385, %v3572, 0
      %v3635 = vsel %vm1389, %v3630, 0
      %3637 = vmatpush.bf16.msra.mxu0 0
      %3638 = vmatpush.bf16.msra.mxu0 0
      %3639 = vmatpush.bf16.msra.mxu0 0
      %3640 = vmatpush.bf16.msra.mxu0 0
      %3641 = vmatpush.bf16.msra.mxu0 0
      %3642 = vmatpush.bf16.msra.mxu0 0
      %3643 = vmatpush.bf16.msra.mxu0 0
      %3644 = vmatpush.bf16.msra.mxu0 %v3635
      %3645 = vmatmul.bf16.gmra.mxu0 %v3632
      %v3646 = vpop.f32.mrf.mxu0
      %v3647 = vadd.f32 0.0, %v3646
      %v3648 = vpop.f32.mrf.mxu0
      %3649 = vdwg.mxu0
      %v3651 = vunpack.c.l.b16 %v3317
      %v3652 = vpack.c.b16 %v3651, %v3651
      %3653 = vrot.lane.b32.xlu0 %v3652, 96
      %v3654 = vpop.permute.xlu0 %3653
      %v3656 = vsel %vm1385, %v3573, 0
      %v3659 = vsel %vm1389, %v3654, 0
      %3661 = vmatpush.bf16.msra.mxu0 0
      %3662 = vmatpush.bf16.msra.mxu0 0
      %3663 = vmatpush.bf16.msra.mxu0 0
      %3664 = vmatpush.bf16.msra.mxu0 0
      %3665 = vmatpush.bf16.msra.mxu0 0
      %3666 = vmatpush.bf16.msra.mxu0 0
      %3667 = vmatpush.bf16.msra.mxu0 0
      %3668 = vmatpush.bf16.msra.mxu0 %v3659
      %3669 = vmatmul.bf16.gmra.mxu0 %v3656
      %v3670 = vpop.f32.mrf.mxu0
      %v3671 = vadd.f32 0.0, %v3670
      %v3672 = vpop.f32.mrf.mxu0
      %3673 = vdwg.mxu0
      %v3675 = vunpack.c.l.b16 %v3318
      %v3676 = vpack.c.b16 %v3675, %v3675
      %3677 = vrot.lane.b32.xlu0 %v3676, 96
      %v3678 = vpop.permute.xlu0 %3677
      %v3680 = vsel %vm1385, %v3574, 0
      %v3683 = vsel %vm1389, %v3678, 0
      %3685 = vmatpush.bf16.msra.mxu0 0
      %3686 = vmatpush.bf16.msra.mxu0 0
      %3687 = vmatpush.bf16.msra.mxu0 0
      %3688 = vmatpush.bf16.msra.mxu0 0
      %3689 = vmatpush.bf16.msra.mxu0 0
      %3690 = vmatpush.bf16.msra.mxu0 0
      %3691 = vmatpush.bf16.msra.mxu0 0
      %3692 = vmatpush.bf16.msra.mxu0 %v3683
      %3693 = vmatmul.bf16.gmra.mxu0 %v3680
      %v3694 = vpop.f32.mrf.mxu0
      %v3695 = vadd.f32 0.0, %v3694
      %v3696 = vpop.f32.mrf.mxu0
      %3697 = vdwg.mxu0
      %v3699 = vunpack.c.l.b16 %v3319
      %v3700 = vpack.c.b16 %v3699, %v3699
      %3701 = vrot.lane.b32.xlu0 %v3700, 96
      %v3702 = vpop.permute.xlu0 %3701
      %v3704 = vsel %vm1385, %v3575, 0
      %v3707 = vsel %vm1389, %v3702, 0
      %3709 = vmatpush.bf16.msra.mxu0 0
      %3710 = vmatpush.bf16.msra.mxu0 0
      %3711 = vmatpush.bf16.msra.mxu0 0
      %3712 = vmatpush.bf16.msra.mxu0 0
      %3713 = vmatpush.bf16.msra.mxu0 0
      %3714 = vmatpush.bf16.msra.mxu0 0
      %3715 = vmatpush.bf16.msra.mxu0 0
      %3716 = vmatpush.bf16.msra.mxu0 %v3707
      %3717 = vmatmul.bf16.gmra.mxu0 %v3704
      %v3718 = vpop.f32.mrf.mxu0
      %v3719 = vadd.f32 0.0, %v3718
      %v3720 = vpop.f32.mrf.mxu0
      %3721 = vdwg.mxu0
      %v3723 = vunpack.c.l.b16 %v3320
      %v3724 = vpack.c.b16 %v3723, %v3723
      %3725 = vrot.lane.b32.xlu0 %v3724, 96
      %v3726 = vpop.permute.xlu0 %3725
      %v3728 = vsel %vm1385, %v3576, 0
      %v3731 = vsel %vm1389, %v3726, 0
      %3733 = vmatpush.bf16.msra.mxu0 0
      %3734 = vmatpush.bf16.msra.mxu0 0
      %3735 = vmatpush.bf16.msra.mxu0 0
      %3736 = vmatpush.bf16.msra.mxu0 0
      %3737 = vmatpush.bf16.msra.mxu0 0
      %3738 = vmatpush.bf16.msra.mxu0 0
      %3739 = vmatpush.bf16.msra.mxu0 0
      %3740 = vmatpush.bf16.msra.mxu0 %v3731
      %3741 = vmatmul.bf16.gmra.mxu0 %v3728
      %v3742 = vpop.f32.mrf.mxu0
      %v3743 = vadd.f32 0.0, %v3742
      %v3744 = vpop.f32.mrf.mxu0
      %3745 = vdwg.mxu0
      %v3747 = vunpack.c.l.b16 %v3321
      %v3748 = vpack.c.b16 %v3747, %v3747
      %3749 = vrot.lane.b32.xlu0 %v3748, 96
      %v3750 = vpop.permute.xlu0 %3749
      %v3752 = vsel %vm1385, %v3577, 0
      %v3755 = vsel %vm1389, %v3750, 0
      %3757 = vmatpush.bf16.msra.mxu0 0
      %3758 = vmatpush.bf16.msra.mxu0 0
      %3759 = vmatpush.bf16.msra.mxu0 0
      %3760 = vmatpush.bf16.msra.mxu0 0
      %3761 = vmatpush.bf16.msra.mxu0 0
      %3762 = vmatpush.bf16.msra.mxu0 0
      %3763 = vmatpush.bf16.msra.mxu0 0
      %3764 = vmatpush.bf16.msra.mxu0 %v3755
      %3765 = vmatmul.bf16.gmra.mxu0 %v3752
      %v3766 = vpop.f32.mrf.mxu0
      %v3767 = vadd.f32 0.0, %v3766
      %v3768 = vpop.f32.mrf.mxu0
      %3769 = vdwg.mxu0
      %v3771 = vunpack.c.l.b16 %v3306
      %v3772 = vpack.c.b16 %v3771, %v3771
      %3773 = vrot.lane.b32.xlu0 %v3772, 120
      %v3774 = vpop.permute.xlu0 %3773
      %3775 = vrot.lane.b32.xlu0 %v3580, 120
      %v3776 = vpop.permute.xlu0 %3775
      %v3778 = vsel %vm1090, %v3774, 0
      %v3781 = vsel %vm1090, %v3776, 0
      %3783 = vmatpush.bf16.xpose.msra.mxu0 0
      %3784 = vmatpush.bf16.xpose.msra.mxu0 0
      %3785 = vmatpush.bf16.xpose.msra.mxu0 0
      %3786 = vmatpush.bf16.xpose.msra.mxu0 0
      %3787 = vmatpush.bf16.xpose.msra.mxu0 0
      %3788 = vmatpush.bf16.xpose.msra.mxu0 0
      %3789 = vmatpush.bf16.xpose.msra.mxu0 0
      %3790 = vmatpush.bf16.xpose.msra.mxu0 %v3781
      %3791 = vmatmul.bf16.gmra.mxu0 %v3778
      %v3792 = vpop.f32.mrf.mxu0
      %v3793 = vadd.f32 0.0, %v3792
      %v3794 = vpop.f32.mrf.mxu0
      %3795 = vdwg.mxu0
      %v3797 = vunpack.c.l.b16 %v3307
      %v3798 = vpack.c.b16 %v3797, %v3797
      %3799 = vrot.lane.b32.xlu0 %v3798, 120
      %v3800 = vpop.permute.xlu0 %3799
      %3801 = vrot.lane.b32.xlu0 %v3604, 120
      %v3802 = vpop.permute.xlu0 %3801
      %v3804 = vsel %vm1090, %v3800, 0
      %v3807 = vsel %vm1090, %v3802, 0
      %3809 = vmatpush.bf16.xpose.msra.mxu0 0
      %3810 = vmatpush.bf16.xpose.msra.mxu0 0
      %3811 = vmatpush.bf16.xpose.msra.mxu0 0
      %3812 = vmatpush.bf16.xpose.msra.mxu0 0
      %3813 = vmatpush.bf16.xpose.msra.mxu0 0
      %3814 = vmatpush.bf16.xpose.msra.mxu0 0
      %3815 = vmatpush.bf16.xpose.msra.mxu0 0
      %3816 = vmatpush.bf16.xpose.msra.mxu0 %v3807
      %3817 = vmatmul.bf16.gmra.mxu0 %v3804
      %v3818 = vpop.f32.mrf.mxu0
      %v3819 = vadd.f32 0.0, %v3818
      %v3820 = vpop.f32.mrf.mxu0
      %3821 = vdwg.mxu0
      %v3823 = vunpack.c.l.b16 %v3308
      %v3824 = vpack.c.b16 %v3823, %v3823
      %3825 = vrot.lane.b32.xlu0 %v3824, 120
      %v3826 = vpop.permute.xlu0 %3825
      %3827 = vrot.lane.b32.xlu0 %v3628, 120
      %v3828 = vpop.permute.xlu0 %3827
      %v3830 = vsel %vm1090, %v3826, 0
      %v3833 = vsel %vm1090, %v3828, 0
      %3835 = vmatpush.bf16.xpose.msra.mxu0 0
      %3836 = vmatpush.bf16.xpose.msra.mxu0 0
      %3837 = vmatpush.bf16.xpose.msra.mxu0 0
      %3838 = vmatpush.bf16.xpose.msra.mxu0 0
      %3839 = vmatpush.bf16.xpose.msra.mxu0 0
      %3840 = vmatpush.bf16.xpose.msra.mxu0 0
      %3841 = vmatpush.bf16.xpose.msra.mxu0 0
      %3842 = vmatpush.bf16.xpose.msra.mxu0 %v3833
      %3843 = vmatmul.bf16.gmra.mxu0 %v3830
      %v3844 = vpop.f32.mrf.mxu0
      %v3845 = vadd.f32 0.0, %v3844
      %v3846 = vpop.f32.mrf.mxu0
      %3847 = vdwg.mxu0
      %v3849 = vunpack.c.l.b16 %v3309
      %v3850 = vpack.c.b16 %v3849, %v3849
      %3851 = vrot.lane.b32.xlu0 %v3850, 120
      %v3852 = vpop.permute.xlu0 %3851
      %3853 = vrot.lane.b32.xlu0 %v3652, 120
      %v3854 = vpop.permute.xlu0 %3853
      %v3856 = vsel %vm1090, %v3852, 0
      %v3859 = vsel %vm1090, %v3854, 0
      %3861 = vmatpush.bf16.xpose.msra.mxu0 0
      %3862 = vmatpush.bf16.xpose.msra.mxu0 0
      %3863 = vmatpush.bf16.xpose.msra.mxu0 0
      %3864 = vmatpush.bf16.xpose.msra.mxu0 0
      %3865 = vmatpush.bf16.xpose.msra.mxu0 0
      %3866 = vmatpush.bf16.xpose.msra.mxu0 0
      %3867 = vmatpush.bf16.xpose.msra.mxu0 0
      %3868 = vmatpush.bf16.xpose.msra.mxu0 %v3859
      %3869 = vmatmul.bf16.gmra.mxu0 %v3856
      %v3870 = vpop.f32.mrf.mxu0
      %v3871 = vadd.f32 0.0, %v3870
      %v3872 = vpop.f32.mrf.mxu0
      %3873 = vdwg.mxu0
      %v3875 = vunpack.c.l.b16 %v3310
      %v3876 = vpack.c.b16 %v3875, %v3875
      %3877 = vrot.lane.b32.xlu0 %v3876, 120
      %v3878 = vpop.permute.xlu0 %3877
      %3879 = vrot.lane.b32.xlu0 %v3676, 120
      %v3880 = vpop.permute.xlu0 %3879
      %v3882 = vsel %vm1090, %v3878, 0
      %v3885 = vsel %vm1090, %v3880, 0
      %3887 = vmatpush.bf16.xpose.msra.mxu0 0
      %3888 = vmatpush.bf16.xpose.msra.mxu0 0
      %3889 = vmatpush.bf16.xpose.msra.mxu0 0
      %3890 = vmatpush.bf16.xpose.msra.mxu0 0
      %3891 = vmatpush.bf16.xpose.msra.mxu0 0
      %3892 = vmatpush.bf16.xpose.msra.mxu0 0
      %3893 = vmatpush.bf16.xpose.msra.mxu0 0
      %3894 = vmatpush.bf16.xpose.msra.mxu0 %v3885
      %3895 = vmatmul.bf16.gmra.mxu0 %v3882
      %v3896 = vpop.f32.mrf.mxu0
      %v3897 = vadd.f32 0.0, %v3896
      %v3898 = vpop.f32.mrf.mxu0
      %3899 = vdwg.mxu0
      %v3901 = vunpack.c.l.b16 %v3311
      %v3902 = vpack.c.b16 %v3901, %v3901
      %3903 = vrot.lane.b32.xlu0 %v3902, 120
      %v3904 = vpop.permute.xlu0 %3903
      %3905 = vrot.lane.b32.xlu0 %v3700, 120
      %v3906 = vpop.permute.xlu0 %3905
      %v3908 = vsel %vm1090, %v3904, 0
      %v3911 = vsel %vm1090, %v3906, 0
      %3913 = vmatpush.bf16.xpose.msra.mxu0 0
      %3914 = vmatpush.bf16.xpose.msra.mxu0 0
      %3915 = vmatpush.bf16.xpose.msra.mxu0 0
      %3916 = vmatpush.bf16.xpose.msra.mxu0 0
      %3917 = vmatpush.bf16.xpose.msra.mxu0 0
      %3918 = vmatpush.bf16.xpose.msra.mxu0 0
      %3919 = vmatpush.bf16.xpose.msra.mxu0 0
      %3920 = vmatpush.bf16.xpose.msra.mxu0 %v3911
      %3921 = vmatmul.bf16.gmra.mxu0 %v3908
      %v3922 = vpop.f32.mrf.mxu0
      %v3923 = vadd.f32 0.0, %v3922
      %v3924 = vpop.f32.mrf.mxu0
      %3925 = vdwg.mxu0
      %v3927 = vunpack.c.l.b16 %v3312
      %v3928 = vpack.c.b16 %v3927, %v3927
      %3929 = vrot.lane.b32.xlu0 %v3928, 120
      %v3930 = vpop.permute.xlu0 %3929
      %3931 = vrot.lane.b32.xlu0 %v3724, 120
      %v3932 = vpop.permute.xlu0 %3931
      %v3934 = vsel %vm1090, %v3930, 0
      %v3937 = vsel %vm1090, %v3932, 0
      %3939 = vmatpush.bf16.xpose.msra.mxu0 0
      %3940 = vmatpush.bf16.xpose.msra.mxu0 0
      %3941 = vmatpush.bf16.xpose.msra.mxu0 0
      %3942 = vmatpush.bf16.xpose.msra.mxu0 0
      %3943 = vmatpush.bf16.xpose.msra.mxu0 0
      %3944 = vmatpush.bf16.xpose.msra.mxu0 0
      %3945 = vmatpush.bf16.xpose.msra.mxu0 0
      %3946 = vmatpush.bf16.xpose.msra.mxu0 %v3937
      %3947 = vmatmul.bf16.gmra.mxu0 %v3934
      %v3948 = vpop.f32.mrf.mxu0
      %v3949 = vadd.f32 0.0, %v3948
      %v3950 = vpop.f32.mrf.mxu0
      %3951 = vdwg.mxu0
      %v3953 = vunpack.c.l.b16 %v3313
      %v3954 = vpack.c.b16 %v3953, %v3953
      %3955 = vrot.lane.b32.xlu0 %v3954, 120
      %v3956 = vpop.permute.xlu0 %3955
      %3957 = vrot.lane.b32.xlu0 %v3748, 120
      %v3958 = vpop.permute.xlu0 %3957
      %v3960 = vsel %vm1090, %v3956, 0
      %v3963 = vsel %vm1090, %v3958, 0
      %3965 = vmatpush.bf16.xpose.msra.mxu0 0
      %3966 = vmatpush.bf16.xpose.msra.mxu0 0
      %3967 = vmatpush.bf16.xpose.msra.mxu0 0
      %3968 = vmatpush.bf16.xpose.msra.mxu0 0
      %3969 = vmatpush.bf16.xpose.msra.mxu0 0
      %3970 = vmatpush.bf16.xpose.msra.mxu0 0
      %3971 = vmatpush.bf16.xpose.msra.mxu0 0
      %3972 = vmatpush.bf16.xpose.msra.mxu0 %v3963
      %3973 = vmatmul.bf16.gmra.mxu0 %v3960
      %v3974 = vpop.f32.mrf.mxu0
      %v3975 = vadd.f32 0.0, %v3974
      %v3976 = vpop.f32.mrf.mxu0
      %3977 = vdwg.mxu0
      %v3978 = vmul.f32 %v3793, 0.35355338
      %v3979 = vmul.f32 %v3819, 0.35355338
      %v3980 = vmul.f32 %v3845, 0.35355338
      %v3981 = vmul.f32 %v3871, 0.35355338
      %v3982 = vmul.f32 %v3897, 0.35355338
      %v3983 = vmul.f32 %v3923, 0.35355338
      %v3984 = vmul.f32 %v3949, 0.35355338
      %v3985 = vmul.f32 %v3975, 0.35355338
      %v3986 = vsel %vm1286, %v3978, -inf
      %3987 = vmax.xlane.f32.xlu0 %v3986
      %v3988 = vpop.xlane.xlu0 %3987
      %v3989 = vsel %vm1286, %v3979, -inf
      %3990 = vmax.xlane.f32.xlu0 %v3989
      %v3991 = vpop.xlane.xlu0 %3990
      %v3992 = vsel %vm1286, %v3980, -inf
      %3993 = vmax.xlane.f32.xlu0 %v3992
      %v3994 = vpop.xlane.xlu0 %3993
      %v3995 = vsel %vm1286, %v3981, -inf
      %3996 = vmax.xlane.f32.xlu0 %v3995
      %v3997 = vpop.xlane.xlu0 %3996
      %v3998 = vsel %vm1286, %v3982, -inf
      %3999 = vmax.xlane.f32.xlu0 %v3998
      %v4000 = vpop.xlane.xlu0 %3999
      %v4001 = vsel %vm1286, %v3983, -inf
      %4002 = vmax.xlane.f32.xlu0 %v4001
      %v4003 = vpop.xlane.xlu0 %4002
      %v4004 = vsel %vm1286, %v3984, -inf
      %4005 = vmax.xlane.f32.xlu0 %v4004
      %v4006 = vpop.xlane.xlu0 %4005
      %v4007 = vsel %vm1286, %v3985, -inf
      %4008 = vmax.xlane.f32.xlu0 %v4007
      %v4009 = vpop.xlane.xlu0 %4008
      %v4010 = vsub.f32 %v3978, %v3988
      %v4011 = vsub.f32 %v3979, %v3991
      %v4012 = vsub.f32 %v3980, %v3994
      %v4013 = vsub.f32 %v3981, %v3997
      %v4014 = vsub.f32 %v3982, %v4000
      %v4015 = vsub.f32 %v3983, %v4003
      %v4016 = vsub.f32 %v3984, %v4006
      %v4017 = vsub.f32 %v3985, %v4009
      %v4018 = vmul.f32 %v4010, 1.442695
      %v4019 = vpow.pop %v4018
      %v4020 = vmul.f32 %v4011, 1.442695
      %v4021 = vpow.pop %v4020
      %v4022 = vmul.f32 %v4012, 1.442695
      %v4023 = vpow.pop %v4022
      %v4024 = vmul.f32 %v4013, 1.442695
      %v4025 = vpow.pop %v4024
      %v4026 = vmul.f32 %v4014, 1.442695
      %v4027 = vpow.pop %v4026
      %v4028 = vmul.f32 %v4015, 1.442695
      %v4029 = vpow.pop %v4028
      %v4030 = vmul.f32 %v4016, 1.442695
      %v4031 = vpow.pop %v4030
      %v4032 = vmul.f32 %v4017, 1.442695
      %v4033 = vpow.pop %v4032
      %v4034 = vsel %vm1286, %v4019, 0.0
      %4035 = vadd.xlane.f32.xlu0 %v4034
      %v4036 = vpop.xlane.xlu0 %4035
      %v4037 = vsel %vm1286, %v4021, 0.0
      %4038 = vadd.xlane.f32.xlu0 %v4037
      %v4039 = vpop.xlane.xlu0 %4038
      %v4040 = vsel %vm1286, %v4023, 0.0
      %4041 = vadd.xlane.f32.xlu0 %v4040
      %v4042 = vpop.xlane.xlu0 %4041
      %v4043 = vsel %vm1286, %v4025, 0.0
      %4044 = vadd.xlane.f32.xlu0 %v4043
      %v4045 = vpop.xlane.xlu0 %4044
      %v4046 = vsel %vm1286, %v4027, 0.0
      %4047 = vadd.xlane.f32.xlu0 %v4046
      %v4048 = vpop.xlane.xlu0 %4047
      %v4049 = vsel %vm1286, %v4029, 0.0
      %4050 = vadd.xlane.f32.xlu0 %v4049
      %v4051 = vpop.xlane.xlu0 %4050
      %v4052 = vsel %vm1286, %v4031, 0.0
      %4053 = vadd.xlane.f32.xlu0 %v4052
      %v4054 = vpop.xlane.xlu0 %4053
      %v4055 = vsel %vm1286, %v4033, 0.0
      %4056 = vadd.xlane.f32.xlu0 %v4055
      %v4057 = vpop.xlane.xlu0 %4056
      %v4058 = vrcp.pop %v4036
      %v4059 = vrcp.pop %v4039
      %v4060 = vrcp.pop %v4042
      %v4061 = vrcp.pop %v4045
      %v4062 = vrcp.pop %v4048
      %v4063 = vrcp.pop %v4051
      %v4064 = vrcp.pop %v4054
      %v4065 = vrcp.pop %v4057
      %v4066 = vmul.f32 %v4019, %v4058
      %v4067 = vmul.f32 %v4021, %v4059
      %v4068 = vmul.f32 %v4023, %v4060
      %v4069 = vmul.f32 %v4025, %v4061
      %v4070 = vmul.f32 %v4027, %v4062
      %v4071 = vmul.f32 %v4029, %v4063
      %v4072 = vmul.f32 %v4031, %v4064
      %v4073 = vmul.f32 %v4033, %v4065
      %v4074 = vpack.c.bf16 %v4066, %v4066
      %v4075 = vpack.c.bf16 %v4067, %v4067
      %v4076 = vpack.c.bf16 %v4068, %v4068
      %v4077 = vpack.c.bf16 %v4069, %v4069
      %v4078 = vpack.c.bf16 %v4070, %v4070
      %v4079 = vpack.c.bf16 %v4071, %v4071
      %v4080 = vpack.c.bf16 %v4072, %v4072
      %v4081 = vpack.c.bf16 %v4073, %v4073
      %4082 = vrot.lane.b32.xlu0 %v3580, 88
      %v4083 = vpop.permute.xlu0 %4082
      %v4085 = vsel %vm1385, %v4074, 0
      %v4088 = vsel %vm1389, %v4083, 0
      %4090 = vmatpush.bf16.msra.mxu0 0
      %4091 = vmatpush.bf16.msra.mxu0 0
      %4092 = vmatpush.bf16.msra.mxu0 0
      %4093 = vmatpush.bf16.msra.mxu0 0
      %4094 = vmatpush.bf16.msra.mxu0 0
      %4095 = vmatpush.bf16.msra.mxu0 0
      %4096 = vmatpush.bf16.msra.mxu0 0
      %4097 = vmatpush.bf16.msra.mxu0 %v4088
      %4098 = vmatmul.bf16.gmra.mxu0 %v4085
      %v4099 = vpop.f32.mrf.mxu0
      %v4100 = vadd.f32 0.0, %v4099
      %v4101 = vpop.f32.mrf.mxu0
      %4102 = vdwg.mxu0
      %4103 = vrot.lane.b32.xlu0 %v3604, 88
      %v4104 = vpop.permute.xlu0 %4103
      %v4106 = vsel %vm1385, %v4075, 0
      %v4109 = vsel %vm1389, %v4104, 0
      %4111 = vmatpush.bf16.msra.mxu0 0
      %4112 = vmatpush.bf16.msra.mxu0 0
      %4113 = vmatpush.bf16.msra.mxu0 0
      %4114 = vmatpush.bf16.msra.mxu0 0
      %4115 = vmatpush.bf16.msra.mxu0 0
      %4116 = vmatpush.bf16.msra.mxu0 0
      %4117 = vmatpush.bf16.msra.mxu0 0
      %4118 = vmatpush.bf16.msra.mxu0 %v4109
      %4119 = vmatmul.bf16.gmra.mxu0 %v4106
      %v4120 = vpop.f32.mrf.mxu0
      %v4121 = vadd.f32 0.0, %v4120
      %v4122 = vpop.f32.mrf.mxu0
      %4123 = vdwg.mxu0
      %4124 = vrot.lane.b32.xlu0 %v3628, 88
      %v4125 = vpop.permute.xlu0 %4124
      %v4127 = vsel %vm1385, %v4076, 0
      %v4130 = vsel %vm1389, %v4125, 0
      %4132 = vmatpush.bf16.msra.mxu0 0
      %4133 = vmatpush.bf16.msra.mxu0 0
      %4134 = vmatpush.bf16.msra.mxu0 0
      %4135 = vmatpush.bf16.msra.mxu0 0
      %4136 = vmatpush.bf16.msra.mxu0 0
      %4137 = vmatpush.bf16.msra.mxu0 0
      %4138 = vmatpush.bf16.msra.mxu0 0
      %4139 = vmatpush.bf16.msra.mxu0 %v4130
      %4140 = vmatmul.bf16.gmra.mxu0 %v4127
      %v4141 = vpop.f32.mrf.mxu0
      %v4142 = vadd.f32 0.0, %v4141
      %v4143 = vpop.f32.mrf.mxu0
      %4144 = vdwg.mxu0
      %4145 = vrot.lane.b32.xlu0 %v3652, 88
      %v4146 = vpop.permute.xlu0 %4145
      %v4148 = vsel %vm1385, %v4077, 0
      %v4151 = vsel %vm1389, %v4146, 0
      %4153 = vmatpush.bf16.msra.mxu0 0
      %4154 = vmatpush.bf16.msra.mxu0 0
      %4155 = vmatpush.bf16.msra.mxu0 0
      %4156 = vmatpush.bf16.msra.mxu0 0
      %4157 = vmatpush.bf16.msra.mxu0 0
      %4158 = vmatpush.bf16.msra.mxu0 0
      %4159 = vmatpush.bf16.msra.mxu0 0
      %4160 = vmatpush.bf16.msra.mxu0 %v4151
      %4161 = vmatmul.bf16.gmra.mxu0 %v4148
      %v4162 = vpop.f32.mrf.mxu0
      %v4163 = vadd.f32 0.0, %v4162
      %v4164 = vpop.f32.mrf.mxu0
      %4165 = vdwg.mxu0
      %4166 = vrot.lane.b32.xlu0 %v3676, 88
      %v4167 = vpop.permute.xlu0 %4166
      %v4169 = vsel %vm1385, %v4078, 0
      %v4172 = vsel %vm1389, %v4167, 0
      %4174 = vmatpush.bf16.msra.mxu0 0
      %4175 = vmatpush.bf16.msra.mxu0 0
      %4176 = vmatpush.bf16.msra.mxu0 0
      %4177 = vmatpush.bf16.msra.mxu0 0
      %4178 = vmatpush.bf16.msra.mxu0 0
      %4179 = vmatpush.bf16.msra.mxu0 0
      %4180 = vmatpush.bf16.msra.mxu0 0
      %4181 = vmatpush.bf16.msra.mxu0 %v4172
      %4182 = vmatmul.bf16.gmra.mxu0 %v4169
      %v4183 = vpop.f32.mrf.mxu0
      %v4184 = vadd.f32 0.0, %v4183
      %v4185 = vpop.f32.mrf.mxu0
      %4186 = vdwg.mxu0
      %4187 = vrot.lane.b32.xlu0 %v3700, 88
      %v4188 = vpop.permute.xlu0 %4187
      %v4190 = vsel %vm1385, %v4079, 0
      %v4193 = vsel %vm1389, %v4188, 0
      %4195 = vmatpush.bf16.msra.mxu0 0
      %4196 = vmatpush.bf16.msra.mxu0 0
      %4197 = vmatpush.bf16.msra.mxu0 0
      %4198 = vmatpush.bf16.msra.mxu0 0
      %4199 = vmatpush.bf16.msra.mxu0 0
      %4200 = vmatpush.bf16.msra.mxu0 0
      %4201 = vmatpush.bf16.msra.mxu0 0
      %4202 = vmatpush.bf16.msra.mxu0 %v4193
      %4203 = vmatmul.bf16.gmra.mxu0 %v4190
      %v4204 = vpop.f32.mrf.mxu0
      %v4205 = vadd.f32 0.0, %v4204
      %v4206 = vpop.f32.mrf.mxu0
      %4207 = vdwg.mxu0
      %4208 = vrot.lane.b32.xlu0 %v3724, 88
      %v4209 = vpop.permute.xlu0 %4208
      %v4211 = vsel %vm1385, %v4080, 0
      %v4214 = vsel %vm1389, %v4209, 0
      %4216 = vmatpush.bf16.msra.mxu0 0
      %4217 = vmatpush.bf16.msra.mxu0 0
      %4218 = vmatpush.bf16.msra.mxu0 0
      %4219 = vmatpush.bf16.msra.mxu0 0
      %4220 = vmatpush.bf16.msra.mxu0 0
      %4221 = vmatpush.bf16.msra.mxu0 0
      %4222 = vmatpush.bf16.msra.mxu0 0
      %4223 = vmatpush.bf16.msra.mxu0 %v4214
      %4224 = vmatmul.bf16.gmra.mxu0 %v4211
      %v4225 = vpop.f32.mrf.mxu0
      %v4226 = vadd.f32 0.0, %v4225
      %v4227 = vpop.f32.mrf.mxu0
      %4228 = vdwg.mxu0
      %4229 = vrot.lane.b32.xlu0 %v3748, 88
      %v4230 = vpop.permute.xlu0 %4229
      %v4232 = vsel %vm1385, %v4081, 0
      %v4235 = vsel %vm1389, %v4230, 0
      %4237 = vmatpush.bf16.msra.mxu0 0
      %4238 = vmatpush.bf16.msra.mxu0 0
      %4239 = vmatpush.bf16.msra.mxu0 0
      %4240 = vmatpush.bf16.msra.mxu0 0
      %4241 = vmatpush.bf16.msra.mxu0 0
      %4242 = vmatpush.bf16.msra.mxu0 0
      %4243 = vmatpush.bf16.msra.mxu0 0
      %4244 = vmatpush.bf16.msra.mxu0 %v4235
      %4245 = vmatmul.bf16.gmra.mxu0 %v4232
      %v4246 = vpop.f32.mrf.mxu0
      %v4247 = vadd.f32 0.0, %v4246
      %v4248 = vpop.f32.mrf.mxu0
      %4249 = vdwg.mxu0
      %4250 = vrot.lane.b32.xlu0 %v3772, 112
      %v4251 = vpop.permute.xlu0 %4250
      %4252 = vrot.lane.b32.xlu0 %v3580, 112
      %v4253 = vpop.permute.xlu0 %4252
      %v4255 = vsel %vm1090, %v4251, 0
      %v4258 = vsel %vm1090, %v4253, 0
      %4260 = vmatpush.bf16.xpose.msra.mxu0 0
      %4261 = vmatpush.bf16.xpose.msra.mxu0 0
      %4262 = vmatpush.bf16.xpose.msra.mxu0 0
      %4263 = vmatpush.bf16.xpose.msra.mxu0 0
      %4264 = vmatpush.bf16.xpose.msra.mxu0 0
      %4265 = vmatpush.bf16.xpose.msra.mxu0 0
      %4266 = vmatpush.bf16.xpose.msra.mxu0 0
      %4267 = vmatpush.bf16.xpose.msra.mxu0 %v4258
      %4268 = vmatmul.bf16.gmra.mxu0 %v4255
      %v4269 = vpop.f32.mrf.mxu0
      %v4270 = vadd.f32 0.0, %v4269
      %v4271 = vpop.f32.mrf.mxu0
      %4272 = vdwg.mxu0
      %4273 = vrot.lane.b32.xlu0 %v3798, 112
      %v4274 = vpop.permute.xlu0 %4273
      %4275 = vrot.lane.b32.xlu0 %v3604, 112
      %v4276 = vpop.permute.xlu0 %4275
      %v4278 = vsel %vm1090, %v4274, 0
      %v4281 = vsel %vm1090, %v4276, 0
      %4283 = vmatpush.bf16.xpose.msra.mxu0 0
      %4284 = vmatpush.bf16.xpose.msra.mxu0 0
      %4285 = vmatpush.bf16.xpose.msra.mxu0 0
      %4286 = vmatpush.bf16.xpose.msra.mxu0 0
      %4287 = vmatpush.bf16.xpose.msra.mxu0 0
      %4288 = vmatpush.bf16.xpose.msra.mxu0 0
      %4289 = vmatpush.bf16.xpose.msra.mxu0 0
      %4290 = vmatpush.bf16.xpose.msra.mxu0 %v4281
      %4291 = vmatmul.bf16.gmra.mxu0 %v4278
      %v4292 = vpop.f32.mrf.mxu0
      %v4293 = vadd.f32 0.0, %v4292
      %v4294 = vpop.f32.mrf.mxu0
      %4295 = vdwg.mxu0
      %4296 = vrot.lane.b32.xlu0 %v3824, 112
      %v4297 = vpop.permute.xlu0 %4296
      %4298 = vrot.lane.b32.xlu0 %v3628, 112
      %v4299 = vpop.permute.xlu0 %4298
      %v4301 = vsel %vm1090, %v4297, 0
      %v4304 = vsel %vm1090, %v4299, 0
      %4306 = vmatpush.bf16.xpose.msra.mxu0 0
      %4307 = vmatpush.bf16.xpose.msra.mxu0 0
      %4308 = vmatpush.bf16.xpose.msra.mxu0 0
      %4309 = vmatpush.bf16.xpose.msra.mxu0 0
      %4310 = vmatpush.bf16.xpose.msra.mxu0 0
      %4311 = vmatpush.bf16.xpose.msra.mxu0 0
      %4312 = vmatpush.bf16.xpose.msra.mxu0 0
      %4313 = vmatpush.bf16.xpose.msra.mxu0 %v4304
      %4314 = vmatmul.bf16.gmra.mxu0 %v4301
      %v4315 = vpop.f32.mrf.mxu0
      %v4316 = vadd.f32 0.0, %v4315
      %v4317 = vpop.f32.mrf.mxu0
      %4318 = vdwg.mxu0
      %4319 = vrot.lane.b32.xlu0 %v3850, 112
      %v4320 = vpop.permute.xlu0 %4319
      %4321 = vrot.lane.b32.xlu0 %v3652, 112
      %v4322 = vpop.permute.xlu0 %4321
      %v4324 = vsel %vm1090, %v4320, 0
      %v4327 = vsel %vm1090, %v4322, 0
      %4329 = vmatpush.bf16.xpose.msra.mxu0 0
      %4330 = vmatpush.bf16.xpose.msra.mxu0 0
      %4331 = vmatpush.bf16.xpose.msra.mxu0 0
      %4332 = vmatpush.bf16.xpose.msra.mxu0 0
      %4333 = vmatpush.bf16.xpose.msra.mxu0 0
      %4334 = vmatpush.bf16.xpose.msra.mxu0 0
      %4335 = vmatpush.bf16.xpose.msra.mxu0 0
      %4336 = vmatpush.bf16.xpose.msra.mxu0 %v4327
      %4337 = vmatmul.bf16.gmra.mxu0 %v4324
      %v4338 = vpop.f32.mrf.mxu0
      %v4339 = vadd.f32 0.0, %v4338
      %v4340 = vpop.f32.mrf.mxu0
      %4341 = vdwg.mxu0
      %4342 = vrot.lane.b32.xlu0 %v3876, 112
      %v4343 = vpop.permute.xlu0 %4342
      %4344 = vrot.lane.b32.xlu0 %v3676, 112
      %v4345 = vpop.permute.xlu0 %4344
      %v4347 = vsel %vm1090, %v4343, 0
      %v4350 = vsel %vm1090, %v4345, 0
      %4352 = vmatpush.bf16.xpose.msra.mxu0 0
      %4353 = vmatpush.bf16.xpose.msra.mxu0 0
      %4354 = vmatpush.bf16.xpose.msra.mxu0 0
      %4355 = vmatpush.bf16.xpose.msra.mxu0 0
      %4356 = vmatpush.bf16.xpose.msra.mxu0 0
      %4357 = vmatpush.bf16.xpose.msra.mxu0 0
      %4358 = vmatpush.bf16.xpose.msra.mxu0 0
      %4359 = vmatpush.bf16.xpose.msra.mxu0 %v4350
      %4360 = vmatmul.bf16.gmra.mxu0 %v4347
      %v4361 = vpop.f32.mrf.mxu0
      %v4362 = vadd.f32 0.0, %v4361
      %v4363 = vpop.f32.mrf.mxu0
      %4364 = vdwg.mxu0
      %4365 = vrot.lane.b32.xlu0 %v3902, 112
      %v4366 = vpop.permute.xlu0 %4365
      %4367 = vrot.lane.b32.xlu0 %v3700, 112
      %v4368 = vpop.permute.xlu0 %4367
      %v4370 = vsel %vm1090, %v4366, 0
      %v4373 = vsel %vm1090, %v4368, 0
      %4375 = vmatpush.bf16.xpose.msra.mxu0 0
      %4376 = vmatpush.bf16.xpose.msra.mxu0 0
      %4377 = vmatpush.bf16.xpose.msra.mxu0 0
      %4378 = vmatpush.bf16.xpose.msra.mxu0 0
      %4379 = vmatpush.bf16.xpose.msra.mxu0 0
      %4380 = vmatpush.bf16.xpose.msra.mxu0 0
      %4381 = vmatpush.bf16.xpose.msra.mxu0 0
      %4382 = vmatpush.bf16.xpose.msra.mxu0 %v4373
      %4383 = vmatmul.bf16.gmra.mxu0 %v4370
      %v4384 = vpop.f32.mrf.mxu0
      %v4385 = vadd.f32 0.0, %v4384
      %v4386 = vpop.f32.mrf.mxu0
      %4387 = vdwg.mxu0
      %4388 = vrot.lane.b32.xlu0 %v3928, 112
      %v4389 = vpop.permute.xlu0 %4388
      %4390 = vrot.lane.b32.xlu0 %v3724, 112
      %v4391 = vpop.permute.xlu0 %4390
      %v4393 = vsel %vm1090, %v4389, 0
      %v4396 = vsel %vm1090, %v4391, 0
      %4398 = vmatpush.bf16.xpose.msra.mxu0 0
      %4399 = vmatpush.bf16.xpose.msra.mxu0 0
      %4400 = vmatpush.bf16.xpose.msra.mxu0 0
      %4401 = vmatpush.bf16.xpose.msra.mxu0 0
      %4402 = vmatpush.bf16.xpose.msra.mxu0 0
      %4403 = vmatpush.bf16.xpose.msra.mxu0 0
      %4404 = vmatpush.bf16.xpose.msra.mxu0 0
      %4405 = vmatpush.bf16.xpose.msra.mxu0 %v4396
      %4406 = vmatmul.bf16.gmra.mxu0 %v4393
      %v4407 = vpop.f32.mrf.mxu0
      %v4408 = vadd.f32 0.0, %v4407
      %v4409 = vpop.f32.mrf.mxu0
      %4410 = vdwg.mxu0
      %4411 = vrot.lane.b32.xlu0 %v3954, 112
      %v4412 = vpop.permute.xlu0 %4411
      %4413 = vrot.lane.b32.xlu0 %v3748, 112
      %v4414 = vpop.permute.xlu0 %4413
      %v4416 = vsel %vm1090, %v4412, 0
      %v4419 = vsel %vm1090, %v4414, 0
      %4421 = vmatpush.bf16.xpose.msra.mxu0 0
      %4422 = vmatpush.bf16.xpose.msra.mxu0 0
      %4423 = vmatpush.bf16.xpose.msra.mxu0 0
      %4424 = vmatpush.bf16.xpose.msra.mxu0 0
      %4425 = vmatpush.bf16.xpose.msra.mxu0 0
      %4426 = vmatpush.bf16.xpose.msra.mxu0 0
      %4427 = vmatpush.bf16.xpose.msra.mxu0 0
      %4428 = vmatpush.bf16.xpose.msra.mxu0 %v4419
      %4429 = vmatmul.bf16.gmra.mxu0 %v4416
      %v4430 = vpop.f32.mrf.mxu0
      %v4431 = vadd.f32 0.0, %v4430
      %v4432 = vpop.f32.mrf.mxu0
      %4433 = vdwg.mxu0
      %v4434 = vmul.f32 %v4270, 0.35355338
      %v4435 = vmul.f32 %v4293, 0.35355338
      %v4436 = vmul.f32 %v4316, 0.35355338
      %v4437 = vmul.f32 %v4339, 0.35355338
      %v4438 = vmul.f32 %v4362, 0.35355338
      %v4439 = vmul.f32 %v4385, 0.35355338
      %v4440 = vmul.f32 %v4408, 0.35355338
      %v4441 = vmul.f32 %v4431, 0.35355338
      %v4442 = vsel %vm1286, %v4434, -inf
      %4443 = vmax.xlane.f32.xlu0 %v4442
      %v4444 = vpop.xlane.xlu0 %4443
      %v4445 = vsel %vm1286, %v4435, -inf
      %4446 = vmax.xlane.f32.xlu0 %v4445
      %v4447 = vpop.xlane.xlu0 %4446
      %v4448 = vsel %vm1286, %v4436, -inf
      %4449 = vmax.xlane.f32.xlu0 %v4448
      %v4450 = vpop.xlane.xlu0 %4449
      %v4451 = vsel %vm1286, %v4437, -inf
      %4452 = vmax.xlane.f32.xlu0 %v4451
      %v4453 = vpop.xlane.xlu0 %4452
      %v4454 = vsel %vm1286, %v4438, -inf
      %4455 = vmax.xlane.f32.xlu0 %v4454
      %v4456 = vpop.xlane.xlu0 %4455
      %v4457 = vsel %vm1286, %v4439, -inf
      %4458 = vmax.xlane.f32.xlu0 %v4457
      %v4459 = vpop.xlane.xlu0 %4458
      %v4460 = vsel %vm1286, %v4440, -inf
      %4461 = vmax.xlane.f32.xlu0 %v4460
      %v4462 = vpop.xlane.xlu0 %4461
      %v4463 = vsel %vm1286, %v4441, -inf
      %4464 = vmax.xlane.f32.xlu0 %v4463
      %v4465 = vpop.xlane.xlu0 %4464
      %v4466 = vsub.f32 %v4434, %v4444
      %v4467 = vsub.f32 %v4435, %v4447
      %v4468 = vsub.f32 %v4436, %v4450
      %v4469 = vsub.f32 %v4437, %v4453
      %v4470 = vsub.f32 %v4438, %v4456
      %v4471 = vsub.f32 %v4439, %v4459
      %v4472 = vsub.f32 %v4440, %v4462
      %v4473 = vsub.f32 %v4441, %v4465
      %v4474 = vmul.f32 %v4466, 1.442695
      %v4475 = vpow.pop %v4474
      %v4476 = vmul.f32 %v4467, 1.442695
      %v4477 = vpow.pop %v4476
      %v4478 = vmul.f32 %v4468, 1.442695
      %v4479 = vpow.pop %v4478
      %v4480 = vmul.f32 %v4469, 1.442695
      %v4481 = vpow.pop %v4480
      %v4482 = vmul.f32 %v4470, 1.442695
      %v4483 = vpow.pop %v4482
      %v4484 = vmul.f32 %v4471, 1.442695
      %v4485 = vpow.pop %v4484
      %v4486 = vmul.f32 %v4472, 1.442695
      %v4487 = vpow.pop %v4486
      %v4488 = vmul.f32 %v4473, 1.442695
      %v4489 = vpow.pop %v4488
      %v4490 = vsel %vm1286, %v4475, 0.0
      %4491 = vadd.xlane.f32.xlu0 %v4490
      %v4492 = vpop.xlane.xlu0 %4491
      %v4493 = vsel %vm1286, %v4477, 0.0
      %4494 = vadd.xlane.f32.xlu0 %v4493
      %v4495 = vpop.xlane.xlu0 %4494
      %v4496 = vsel %vm1286, %v4479, 0.0
      %4497 = vadd.xlane.f32.xlu0 %v4496
      %v4498 = vpop.xlane.xlu0 %4497
      %v4499 = vsel %vm1286, %v4481, 0.0
      %4500 = vadd.xlane.f32.xlu0 %v4499
      %v4501 = vpop.xlane.xlu0 %4500
      %v4502 = vsel %vm1286, %v4483, 0.0
      %4503 = vadd.xlane.f32.xlu0 %v4502
      %v4504 = vpop.xlane.xlu0 %4503
      %v4505 = vsel %vm1286, %v4485, 0.0
      %4506 = vadd.xlane.f32.xlu0 %v4505
      %v4507 = vpop.xlane.xlu0 %4506
      %v4508 = vsel %vm1286, %v4487, 0.0
      %4509 = vadd.xlane.f32.xlu0 %v4508
      %v4510 = vpop.xlane.xlu0 %4509
      %v4511 = vsel %vm1286, %v4489, 0.0
      %4512 = vadd.xlane.f32.xlu0 %v4511
      %v4513 = vpop.xlane.xlu0 %4512
      %v4514 = vrcp.pop %v4492
      %v4515 = vrcp.pop %v4495
      %v4516 = vrcp.pop %v4498
      %v4517 = vrcp.pop %v4501
      %v4518 = vrcp.pop %v4504
      %v4519 = vrcp.pop %v4507
      %v4520 = vrcp.pop %v4510
      %v4521 = vrcp.pop %v4513
      %v4522 = vmul.f32 %v4475, %v4514
      %v4523 = vmul.f32 %v4477, %v4515
      %v4524 = vmul.f32 %v4479, %v4516
      %v4525 = vmul.f32 %v4481, %v4517
      %v4526 = vmul.f32 %v4483, %v4518
      %v4527 = vmul.f32 %v4485, %v4519
      %v4528 = vmul.f32 %v4487, %v4520
      %v4529 = vmul.f32 %v4489, %v4521
      %v4530 = vpack.c.bf16 %v4522, %v4522
      %v4531 = vpack.c.bf16 %v4523, %v4523
      %v4532 = vpack.c.bf16 %v4524, %v4524
      %v4533 = vpack.c.bf16 %v4525, %v4525
      %v4534 = vpack.c.bf16 %v4526, %v4526
      %v4535 = vpack.c.bf16 %v4527, %v4527
      %v4536 = vpack.c.bf16 %v4528, %v4528
      %v4537 = vpack.c.bf16 %v4529, %v4529
      %4538 = vrot.lane.b32.xlu0 %v3580, 80
      %v4539 = vpop.permute.xlu0 %4538
      %v4541 = vsel %vm1385, %v4530, 0
      %v4544 = vsel %vm1389, %v4539, 0
      %4546 = vmatpush.bf16.msra.mxu0 0
      %4547 = vmatpush.bf16.msra.mxu0 0
      %4548 = vmatpush.bf16.msra.mxu0 0
      %4549 = vmatpush.bf16.msra.mxu0 0
      %4550 = vmatpush.bf16.msra.mxu0 0
      %4551 = vmatpush.bf16.msra.mxu0 0
      %4552 = vmatpush.bf16.msra.mxu0 0
      %4553 = vmatpush.bf16.msra.mxu0 %v4544
      %4554 = vmatmul.bf16.gmra.mxu0 %v4541
      %v4555 = vpop.f32.mrf.mxu0
      %v4556 = vadd.f32 0.0, %v4555
      %v4557 = vpop.f32.mrf.mxu0
      %4558 = vdwg.mxu0
      %4559 = vrot.lane.b32.xlu0 %v3604, 80
      %v4560 = vpop.permute.xlu0 %4559
      %v4562 = vsel %vm1385, %v4531, 0
      %v4565 = vsel %vm1389, %v4560, 0
      %4567 = vmatpush.bf16.msra.mxu0 0
      %4568 = vmatpush.bf16.msra.mxu0 0
      %4569 = vmatpush.bf16.msra.mxu0 0
      %4570 = vmatpush.bf16.msra.mxu0 0
      %4571 = vmatpush.bf16.msra.mxu0 0
      %4572 = vmatpush.bf16.msra.mxu0 0
      %4573 = vmatpush.bf16.msra.mxu0 0
      %4574 = vmatpush.bf16.msra.mxu0 %v4565
      %4575 = vmatmul.bf16.gmra.mxu0 %v4562
      %v4576 = vpop.f32.mrf.mxu0
      %v4577 = vadd.f32 0.0, %v4576
      %v4578 = vpop.f32.mrf.mxu0
      %4579 = vdwg.mxu0
      %4580 = vrot.lane.b32.xlu0 %v3628, 80
      %v4581 = vpop.permute.xlu0 %4580
      %v4583 = vsel %vm1385, %v4532, 0
      %v4586 = vsel %vm1389, %v4581, 0
      %4588 = vmatpush.bf16.msra.mxu0 0
      %4589 = vmatpush.bf16.msra.mxu0 0
      %4590 = vmatpush.bf16.msra.mxu0 0
      %4591 = vmatpush.bf16.msra.mxu0 0
      %4592 = vmatpush.bf16.msra.mxu0 0
      %4593 = vmatpush.bf16.msra.mxu0 0
      %4594 = vmatpush.bf16.msra.mxu0 0
      %4595 = vmatpush.bf16.msra.mxu0 %v4586
      %4596 = vmatmul.bf16.gmra.mxu0 %v4583
      %v4597 = vpop.f32.mrf.mxu0
      %v4598 = vadd.f32 0.0, %v4597
      %v4599 = vpop.f32.mrf.mxu0
      %4600 = vdwg.mxu0
      %4601 = vrot.lane.b32.xlu0 %v3652, 80
      %v4602 = vpop.permute.xlu0 %4601
      %v4604 = vsel %vm1385, %v4533, 0
      %v4607 = vsel %vm1389, %v4602, 0
      %4609 = vmatpush.bf16.msra.mxu0 0
      %4610 = vmatpush.bf16.msra.mxu0 0
      %4611 = vmatpush.bf16.msra.mxu0 0
      %4612 = vmatpush.bf16.msra.mxu0 0
      %4613 = vmatpush.bf16.msra.mxu0 0
      %4614 = vmatpush.bf16.msra.mxu0 0
      %4615 = vmatpush.bf16.msra.mxu0 0
      %4616 = vmatpush.bf16.msra.mxu0 %v4607
      %4617 = vmatmul.bf16.gmra.mxu0 %v4604
      %v4618 = vpop.f32.mrf.mxu0
      %v4619 = vadd.f32 0.0, %v4618
      %v4620 = vpop.f32.mrf.mxu0
      %4621 = vdwg.mxu0
      %4622 = vrot.lane.b32.xlu0 %v3676, 80
      %v4623 = vpop.permute.xlu0 %4622
      %v4625 = vsel %vm1385, %v4534, 0
      %v4628 = vsel %vm1389, %v4623, 0
      %4630 = vmatpush.bf16.msra.mxu0 0
      %4631 = vmatpush.bf16.msra.mxu0 0
      %4632 = vmatpush.bf16.msra.mxu0 0
      %4633 = vmatpush.bf16.msra.mxu0 0
      %4634 = vmatpush.bf16.msra.mxu0 0
      %4635 = vmatpush.bf16.msra.mxu0 0
      %4636 = vmatpush.bf16.msra.mxu0 0
      %4637 = vmatpush.bf16.msra.mxu0 %v4628
      %4638 = vmatmul.bf16.gmra.mxu0 %v4625
      %v4639 = vpop.f32.mrf.mxu0
      %v4640 = vadd.f32 0.0, %v4639
      %v4641 = vpop.f32.mrf.mxu0
      %4642 = vdwg.mxu0
      %4643 = vrot.lane.b32.xlu0 %v3700, 80
      %v4644 = vpop.permute.xlu0 %4643
      %v4646 = vsel %vm1385, %v4535, 0
      %v4649 = vsel %vm1389, %v4644, 0
      %4651 = vmatpush.bf16.msra.mxu0 0
      %4652 = vmatpush.bf16.msra.mxu0 0
      %4653 = vmatpush.bf16.msra.mxu0 0
      %4654 = vmatpush.bf16.msra.mxu0 0
      %4655 = vmatpush.bf16.msra.mxu0 0
      %4656 = vmatpush.bf16.msra.mxu0 0
      %4657 = vmatpush.bf16.msra.mxu0 0
      %4658 = vmatpush.bf16.msra.mxu0 %v4649
      %4659 = vmatmul.bf16.gmra.mxu0 %v4646
      %v4660 = vpop.f32.mrf.mxu0
      %v4661 = vadd.f32 0.0, %v4660
      %v4662 = vpop.f32.mrf.mxu0
      %4663 = vdwg.mxu0
      %4664 = vrot.lane.b32.xlu0 %v3724, 80
      %v4665 = vpop.permute.xlu0 %4664
      %v4667 = vsel %vm1385, %v4536, 0
      %v4670 = vsel %vm1389, %v4665, 0
      %4672 = vmatpush.bf16.msra.mxu0 0
      %4673 = vmatpush.bf16.msra.mxu0 0
      %4674 = vmatpush.bf16.msra.mxu0 0
      %4675 = vmatpush.bf16.msra.mxu0 0
      %4676 = vmatpush.bf16.msra.mxu0 0
      %4677 = vmatpush.bf16.msra.mxu0 0
      %4678 = vmatpush.bf16.msra.mxu0 0
      %4679 = vmatpush.bf16.msra.mxu0 %v4670
      %4680 = vmatmul.bf16.gmra.mxu0 %v4667
      %v4681 = vpop.f32.mrf.mxu0
      %v4682 = vadd.f32 0.0, %v4681
      %v4683 = vpop.f32.mrf.mxu0
      %4684 = vdwg.mxu0
      %4685 = vrot.lane.b32.xlu0 %v3748, 80
      %v4686 = vpop.permute.xlu0 %4685
      %v4688 = vsel %vm1385, %v4537, 0
      %v4691 = vsel %vm1389, %v4686, 0
      %4693 = vmatpush.bf16.msra.mxu0 0
      %4694 = vmatpush.bf16.msra.mxu0 0
      %4695 = vmatpush.bf16.msra.mxu0 0
      %4696 = vmatpush.bf16.msra.mxu0 0
      %4697 = vmatpush.bf16.msra.mxu0 0
      %4698 = vmatpush.bf16.msra.mxu0 0
      %4699 = vmatpush.bf16.msra.mxu0 0
      %4700 = vmatpush.bf16.msra.mxu0 %v4691
      %4701 = vmatmul.bf16.gmra.mxu0 %v4688
      %v4702 = vpop.f32.mrf.mxu0
      %v4703 = vadd.f32 0.0, %v4702
      %v4704 = vpop.f32.mrf.mxu0
      %4705 = vdwg.mxu0
      %4706 = vrot.lane.b32.xlu0 %v3772, 104
      %v4707 = vpop.permute.xlu0 %4706
      %4708 = vrot.lane.b32.xlu0 %v3580, 104
      %v4709 = vpop.permute.xlu0 %4708
      %v4711 = vsel %vm1090, %v4707, 0
      %v4714 = vsel %vm1090, %v4709, 0
      %4716 = vmatpush.bf16.xpose.msra.mxu0 0
      %4717 = vmatpush.bf16.xpose.msra.mxu0 0
      %4718 = vmatpush.bf16.xpose.msra.mxu0 0
      %4719 = vmatpush.bf16.xpose.msra.mxu0 0
      %4720 = vmatpush.bf16.xpose.msra.mxu0 0
      %4721 = vmatpush.bf16.xpose.msra.mxu0 0
      %4722 = vmatpush.bf16.xpose.msra.mxu0 0
      %4723 = vmatpush.bf16.xpose.msra.mxu0 %v4714
      %4724 = vmatmul.bf16.gmra.mxu0 %v4711
      %v4725 = vpop.f32.mrf.mxu0
      %v4726 = vadd.f32 0.0, %v4725
      %v4727 = vpop.f32.mrf.mxu0
      %4728 = vdwg.mxu0
      %4729 = vrot.lane.b32.xlu0 %v3798, 104
      %v4730 = vpop.permute.xlu0 %4729
      %4731 = vrot.lane.b32.xlu0 %v3604, 104
      %v4732 = vpop.permute.xlu0 %4731
      %v4734 = vsel %vm1090, %v4730, 0
      %v4737 = vsel %vm1090, %v4732, 0
      %4739 = vmatpush.bf16.xpose.msra.mxu0 0
      %4740 = vmatpush.bf16.xpose.msra.mxu0 0
      %4741 = vmatpush.bf16.xpose.msra.mxu0 0
      %4742 = vmatpush.bf16.xpose.msra.mxu0 0
      %4743 = vmatpush.bf16.xpose.msra.mxu0 0
      %4744 = vmatpush.bf16.xpose.msra.mxu0 0
      %4745 = vmatpush.bf16.xpose.msra.mxu0 0
      %4746 = vmatpush.bf16.xpose.msra.mxu0 %v4737
      %4747 = vmatmul.bf16.gmra.mxu0 %v4734
      %v4748 = vpop.f32.mrf.mxu0
      %v4749 = vadd.f32 0.0, %v4748
      %v4750 = vpop.f32.mrf.mxu0
      %4751 = vdwg.mxu0
      %4752 = vrot.lane.b32.xlu0 %v3824, 104
      %v4753 = vpop.permute.xlu0 %4752
      %4754 = vrot.lane.b32.xlu0 %v3628, 104
      %v4755 = vpop.permute.xlu0 %4754
      %v4757 = vsel %vm1090, %v4753, 0
      %v4760 = vsel %vm1090, %v4755, 0
      %4762 = vmatpush.bf16.xpose.msra.mxu0 0
      %4763 = vmatpush.bf16.xpose.msra.mxu0 0
      %4764 = vmatpush.bf16.xpose.msra.mxu0 0
      %4765 = vmatpush.bf16.xpose.msra.mxu0 0
      %4766 = vmatpush.bf16.xpose.msra.mxu0 0
      %4767 = vmatpush.bf16.xpose.msra.mxu0 0
      %4768 = vmatpush.bf16.xpose.msra.mxu0 0
      %4769 = vmatpush.bf16.xpose.msra.mxu0 %v4760
      %4770 = vmatmul.bf16.gmra.mxu0 %v4757
      %v4771 = vpop.f32.mrf.mxu0
      %v4772 = vadd.f32 0.0, %v4771
      %v4773 = vpop.f32.mrf.mxu0
      %4774 = vdwg.mxu0
      %4775 = vrot.lane.b32.xlu0 %v3850, 104
      %v4776 = vpop.permute.xlu0 %4775
      %4777 = vrot.lane.b32.xlu0 %v3652, 104
      %v4778 = vpop.permute.xlu0 %4777
      %v4780 = vsel %vm1090, %v4776, 0
      %v4783 = vsel %vm1090, %v4778, 0
      %4785 = vmatpush.bf16.xpose.msra.mxu0 0
      %4786 = vmatpush.bf16.xpose.msra.mxu0 0
      %4787 = vmatpush.bf16.xpose.msra.mxu0 0
      %4788 = vmatpush.bf16.xpose.msra.mxu0 0
      %4789 = vmatpush.bf16.xpose.msra.mxu0 0
      %4790 = vmatpush.bf16.xpose.msra.mxu0 0
      %4791 = vmatpush.bf16.xpose.msra.mxu0 0
      %4792 = vmatpush.bf16.xpose.msra.mxu0 %v4783
      %4793 = vmatmul.bf16.gmra.mxu0 %v4780
      %v4794 = vpop.f32.mrf.mxu0
      %v4795 = vadd.f32 0.0, %v4794
      %v4796 = vpop.f32.mrf.mxu0
      %4797 = vdwg.mxu0
      %4798 = vrot.lane.b32.xlu0 %v3876, 104
      %v4799 = vpop.permute.xlu0 %4798
      %4800 = vrot.lane.b32.xlu0 %v3676, 104
      %v4801 = vpop.permute.xlu0 %4800
      %v4803 = vsel %vm1090, %v4799, 0
      %v4806 = vsel %vm1090, %v4801, 0
      %4808 = vmatpush.bf16.xpose.msra.mxu0 0
      %4809 = vmatpush.bf16.xpose.msra.mxu0 0
      %4810 = vmatpush.bf16.xpose.msra.mxu0 0
      %4811 = vmatpush.bf16.xpose.msra.mxu0 0
      %4812 = vmatpush.bf16.xpose.msra.mxu0 0
      %4813 = vmatpush.bf16.xpose.msra.mxu0 0
      %4814 = vmatpush.bf16.xpose.msra.mxu0 0
      %4815 = vmatpush.bf16.xpose.msra.mxu0 %v4806
      %4816 = vmatmul.bf16.gmra.mxu0 %v4803
      %v4817 = vpop.f32.mrf.mxu0
      %v4818 = vadd.f32 0.0, %v4817
      %v4819 = vpop.f32.mrf.mxu0
      %4820 = vdwg.mxu0
      %4821 = vrot.lane.b32.xlu0 %v3902, 104
      %v4822 = vpop.permute.xlu0 %4821
      %4823 = vrot.lane.b32.xlu0 %v3700, 104
      %v4824 = vpop.permute.xlu0 %4823
      %v4826 = vsel %vm1090, %v4822, 0
      %v4829 = vsel %vm1090, %v4824, 0
      %4831 = vmatpush.bf16.xpose.msra.mxu0 0
      %4832 = vmatpush.bf16.xpose.msra.mxu0 0
      %4833 = vmatpush.bf16.xpose.msra.mxu0 0
      %4834 = vmatpush.bf16.xpose.msra.mxu0 0
      %4835 = vmatpush.bf16.xpose.msra.mxu0 0
      %4836 = vmatpush.bf16.xpose.msra.mxu0 0
      %4837 = vmatpush.bf16.xpose.msra.mxu0 0
      %4838 = vmatpush.bf16.xpose.msra.mxu0 %v4829
      %4839 = vmatmul.bf16.gmra.mxu0 %v4826
      %v4840 = vpop.f32.mrf.mxu0
      %v4841 = vadd.f32 0.0, %v4840
      %v4842 = vpop.f32.mrf.mxu0
      %4843 = vdwg.mxu0
      %4844 = vrot.lane.b32.xlu0 %v3928, 104
      %v4845 = vpop.permute.xlu0 %4844
      %4846 = vrot.lane.b32.xlu0 %v3724, 104
      %v4847 = vpop.permute.xlu0 %4846
      %v4849 = vsel %vm1090, %v4845, 0
      %v4852 = vsel %vm1090, %v4847, 0
      %4854 = vmatpush.bf16.xpose.msra.mxu0 0
      %4855 = vmatpush.bf16.xpose.msra.mxu0 0
      %4856 = vmatpush.bf16.xpose.msra.mxu0 0
      %4857 = vmatpush.bf16.xpose.msra.mxu0 0
      %4858 = vmatpush.bf16.xpose.msra.mxu0 0
      %4859 = vmatpush.bf16.xpose.msra.mxu0 0
      %4860 = vmatpush.bf16.xpose.msra.mxu0 0
      %4861 = vmatpush.bf16.xpose.msra.mxu0 %v4852
      %4862 = vmatmul.bf16.gmra.mxu0 %v4849
      %v4863 = vpop.f32.mrf.mxu0
      %v4864 = vadd.f32 0.0, %v4863
      %v4865 = vpop.f32.mrf.mxu0
      %4866 = vdwg.mxu0
      %4867 = vrot.lane.b32.xlu0 %v3954, 104
      %v4868 = vpop.permute.xlu0 %4867
      %4869 = vrot.lane.b32.xlu0 %v3748, 104
      %v4870 = vpop.permute.xlu0 %4869
      %v4872 = vsel %vm1090, %v4868, 0
      %v4875 = vsel %vm1090, %v4870, 0
      %4877 = vmatpush.bf16.xpose.msra.mxu0 0
      %4878 = vmatpush.bf16.xpose.msra.mxu0 0
      %4879 = vmatpush.bf16.xpose.msra.mxu0 0
      %4880 = vmatpush.bf16.xpose.msra.mxu0 0
      %4881 = vmatpush.bf16.xpose.msra.mxu0 0
      %4882 = vmatpush.bf16.xpose.msra.mxu0 0
      %4883 = vmatpush.bf16.xpose.msra.mxu0 0
      %4884 = vmatpush.bf16.xpose.msra.mxu0 %v4875
      %4885 = vmatmul.bf16.gmra.mxu0 %v4872
      %v4886 = vpop.f32.mrf.mxu0
      %v4887 = vadd.f32 0.0, %v4886
      %v4888 = vpop.f32.mrf.mxu0
      %4889 = vdwg.mxu0
      %v4890 = vmul.f32 %v4726, 0.35355338
      %v4891 = vmul.f32 %v4749, 0.35355338
      %v4892 = vmul.f32 %v4772, 0.35355338
      %v4893 = vmul.f32 %v4795, 0.35355338
      %v4894 = vmul.f32 %v4818, 0.35355338
      %v4895 = vmul.f32 %v4841, 0.35355338
      %v4896 = vmul.f32 %v4864, 0.35355338
      %v4897 = vmul.f32 %v4887, 0.35355338
      %v4898 = vsel %vm1286, %v4890, -inf
      %4899 = vmax.xlane.f32.xlu0 %v4898
      %v4900 = vpop.xlane.xlu0 %4899
      %v4901 = vsel %vm1286, %v4891, -inf
      %4902 = vmax.xlane.f32.xlu0 %v4901
      %v4903 = vpop.xlane.xlu0 %4902
      %v4904 = vsel %vm1286, %v4892, -inf
      %4905 = vmax.xlane.f32.xlu0 %v4904
      %v4906 = vpop.xlane.xlu0 %4905
      %v4907 = vsel %vm1286, %v4893, -inf
      %4908 = vmax.xlane.f32.xlu0 %v4907
      %v4909 = vpop.xlane.xlu0 %4908
      %v4910 = vsel %vm1286, %v4894, -inf
      %4911 = vmax.xlane.f32.xlu0 %v4910
      %v4912 = vpop.xlane.xlu0 %4911
      %v4913 = vsel %vm1286, %v4895, -inf
      %4914 = vmax.xlane.f32.xlu0 %v4913
      %v4915 = vpop.xlane.xlu0 %4914
      %v4916 = vsel %vm1286, %v4896, -inf
      %4917 = vmax.xlane.f32.xlu0 %v4916
      %v4918 = vpop.xlane.xlu0 %4917
      %v4919 = vsel %vm1286, %v4897, -inf
      %4920 = vmax.xlane.f32.xlu0 %v4919
      %v4921 = vpop.xlane.xlu0 %4920
      %v4922 = vsub.f32 %v4890, %v4900
      %v4923 = vsub.f32 %v4891, %v4903
      %v4924 = vsub.f32 %v4892, %v4906
      %v4925 = vsub.f32 %v4893, %v4909
      %v4926 = vsub.f32 %v4894, %v4912
      %v4927 = vsub.f32 %v4895, %v4915
      %v4928 = vsub.f32 %v4896, %v4918
      %v4929 = vsub.f32 %v4897, %v4921
      %v4930 = vmul.f32 %v4922, 1.442695
      %v4931 = vpow.pop %v4930
      %v4932 = vmul.f32 %v4923, 1.442695
      %v4933 = vpow.pop %v4932
      %v4934 = vmul.f32 %v4924, 1.442695
      %v4935 = vpow.pop %v4934
      %v4936 = vmul.f32 %v4925, 1.442695
      %v4937 = vpow.pop %v4936
      %v4938 = vmul.f32 %v4926, 1.442695
      %v4939 = vpow.pop %v4938
      %v4940 = vmul.f32 %v4927, 1.442695
      %v4941 = vpow.pop %v4940
      %v4942 = vmul.f32 %v4928, 1.442695
      %v4943 = vpow.pop %v4942
      %v4944 = vmul.f32 %v4929, 1.442695
      %v4945 = vpow.pop %v4944
      %v4946 = vsel %vm1286, %v4931, 0.0
      %4947 = vadd.xlane.f32.xlu0 %v4946
      %v4948 = vpop.xlane.xlu0 %4947
      %v4949 = vsel %vm1286, %v4933, 0.0
      %4950 = vadd.xlane.f32.xlu0 %v4949
      %v4951 = vpop.xlane.xlu0 %4950
      %v4952 = vsel %vm1286, %v4935, 0.0
      %4953 = vadd.xlane.f32.xlu0 %v4952
      %v4954 = vpop.xlane.xlu0 %4953
      %v4955 = vsel %vm1286, %v4937, 0.0
      %4956 = vadd.xlane.f32.xlu0 %v4955
      %v4957 = vpop.xlane.xlu0 %4956
      %v4958 = vsel %vm1286, %v4939, 0.0
      %4959 = vadd.xlane.f32.xlu0 %v4958
      %v4960 = vpop.xlane.xlu0 %4959
      %v4961 = vsel %vm1286, %v4941, 0.0
      %4962 = vadd.xlane.f32.xlu0 %v4961
      %v4963 = vpop.xlane.xlu0 %4962
      %v4964 = vsel %vm1286, %v4943, 0.0
      %4965 = vadd.xlane.f32.xlu0 %v4964
      %v4966 = vpop.xlane.xlu0 %4965
      %v4967 = vsel %vm1286, %v4945, 0.0
      %4968 = vadd.xlane.f32.xlu0 %v4967
      %v4969 = vpop.xlane.xlu0 %4968
      %v4970 = vrcp.pop %v4948
      %v4971 = vrcp.pop %v4951
      %v4972 = vrcp.pop %v4954
      %v4973 = vrcp.pop %v4957
      %v4974 = vrcp.pop %v4960
      %v4975 = vrcp.pop %v4963
      %v4976 = vrcp.pop %v4966
      %v4977 = vrcp.pop %v4969
      %v4978 = vmul.f32 %v4931, %v4970
      %v4979 = vmul.f32 %v4933, %v4971
      %v4980 = vmul.f32 %v4935, %v4972
      %v4981 = vmul.f32 %v4937, %v4973
      %v4982 = vmul.f32 %v4939, %v4974
      %v4983 = vmul.f32 %v4941, %v4975
      %v4984 = vmul.f32 %v4943, %v4976
      %v4985 = vmul.f32 %v4945, %v4977
      %v4986 = vpack.c.bf16 %v4978, %v4978
      %v4987 = vpack.c.bf16 %v4979, %v4979
      %v4988 = vpack.c.bf16 %v4980, %v4980
      %v4989 = vpack.c.bf16 %v4981, %v4981
      %v4990 = vpack.c.bf16 %v4982, %v4982
      %v4991 = vpack.c.bf16 %v4983, %v4983
      %v4992 = vpack.c.bf16 %v4984, %v4984
      %v4993 = vpack.c.bf16 %v4985, %v4985
      %4994 = vrot.lane.b32.xlu0 %v3580, 72
      %v4995 = vpop.permute.xlu0 %4994
      %v4997 = vsel %vm1385, %v4986, 0
      %v5000 = vsel %vm1389, %v4995, 0
      %5002 = vmatpush.bf16.msra.mxu0 0
      %5003 = vmatpush.bf16.msra.mxu0 0
      %5004 = vmatpush.bf16.msra.mxu0 0
      %5005 = vmatpush.bf16.msra.mxu0 0
      %5006 = vmatpush.bf16.msra.mxu0 0
      %5007 = vmatpush.bf16.msra.mxu0 0
      %5008 = vmatpush.bf16.msra.mxu0 0
      %5009 = vmatpush.bf16.msra.mxu0 %v5000
      %5010 = vmatmul.bf16.gmra.mxu0 %v4997
      %v5011 = vpop.f32.mrf.mxu0
      %v5012 = vadd.f32 0.0, %v5011
      %v5013 = vpop.f32.mrf.mxu0
      %5014 = vdwg.mxu0
      %5015 = vrot.lane.b32.xlu0 %v3604, 72
      %v5016 = vpop.permute.xlu0 %5015
      %v5018 = vsel %vm1385, %v4987, 0
      %v5021 = vsel %vm1389, %v5016, 0
      %5023 = vmatpush.bf16.msra.mxu0 0
      %5024 = vmatpush.bf16.msra.mxu0 0
      %5025 = vmatpush.bf16.msra.mxu0 0
      %5026 = vmatpush.bf16.msra.mxu0 0
      %5027 = vmatpush.bf16.msra.mxu0 0
      %5028 = vmatpush.bf16.msra.mxu0 0
      %5029 = vmatpush.bf16.msra.mxu0 0
      %5030 = vmatpush.bf16.msra.mxu0 %v5021
      %5031 = vmatmul.bf16.gmra.mxu0 %v5018
      %v5032 = vpop.f32.mrf.mxu0
      %v5033 = vadd.f32 0.0, %v5032
      %v5034 = vpop.f32.mrf.mxu0
      %5035 = vdwg.mxu0
      %5036 = vrot.lane.b32.xlu0 %v3628, 72
      %v5037 = vpop.permute.xlu0 %5036
      %v5039 = vsel %vm1385, %v4988, 0
      %v5042 = vsel %vm1389, %v5037, 0
      %5044 = vmatpush.bf16.msra.mxu0 0
      %5045 = vmatpush.bf16.msra.mxu0 0
      %5046 = vmatpush.bf16.msra.mxu0 0
      %5047 = vmatpush.bf16.msra.mxu0 0
      %5048 = vmatpush.bf16.msra.mxu0 0
      %5049 = vmatpush.bf16.msra.mxu0 0
      %5050 = vmatpush.bf16.msra.mxu0 0
      %5051 = vmatpush.bf16.msra.mxu0 %v5042
      %5052 = vmatmul.bf16.gmra.mxu0 %v5039
      %v5053 = vpop.f32.mrf.mxu0
      %v5054 = vadd.f32 0.0, %v5053
      %v5055 = vpop.f32.mrf.mxu0
      %5056 = vdwg.mxu0
      %5057 = vrot.lane.b32.xlu0 %v3652, 72
      %v5058 = vpop.permute.xlu0 %5057
      %v5060 = vsel %vm1385, %v4989, 0
      %v5063 = vsel %vm1389, %v5058, 0
      %5065 = vmatpush.bf16.msra.mxu0 0
      %5066 = vmatpush.bf16.msra.mxu0 0
      %5067 = vmatpush.bf16.msra.mxu0 0
      %5068 = vmatpush.bf16.msra.mxu0 0
      %5069 = vmatpush.bf16.msra.mxu0 0
      %5070 = vmatpush.bf16.msra.mxu0 0
      %5071 = vmatpush.bf16.msra.mxu0 0
      %5072 = vmatpush.bf16.msra.mxu0 %v5063
      %5073 = vmatmul.bf16.gmra.mxu0 %v5060
      %v5074 = vpop.f32.mrf.mxu0
      %v5075 = vadd.f32 0.0, %v5074
      %v5076 = vpop.f32.mrf.mxu0
      %5077 = vdwg.mxu0
      %5078 = vrot.lane.b32.xlu0 %v3676, 72
      %v5079 = vpop.permute.xlu0 %5078
      %v5081 = vsel %vm1385, %v4990, 0
      %v5084 = vsel %vm1389, %v5079, 0
      %5086 = vmatpush.bf16.msra.mxu0 0
      %5087 = vmatpush.bf16.msra.mxu0 0
      %5088 = vmatpush.bf16.msra.mxu0 0
      %5089 = vmatpush.bf16.msra.mxu0 0
      %5090 = vmatpush.bf16.msra.mxu0 0
      %5091 = vmatpush.bf16.msra.mxu0 0
      %5092 = vmatpush.bf16.msra.mxu0 0
      %5093 = vmatpush.bf16.msra.mxu0 %v5084
      %5094 = vmatmul.bf16.gmra.mxu0 %v5081
      %v5095 = vpop.f32.mrf.mxu0
      %v5096 = vadd.f32 0.0, %v5095
      %v5097 = vpop.f32.mrf.mxu0
      %5098 = vdwg.mxu0
      %5099 = vrot.lane.b32.xlu0 %v3700, 72
      %v5100 = vpop.permute.xlu0 %5099
      %v5102 = vsel %vm1385, %v4991, 0
      %v5105 = vsel %vm1389, %v5100, 0
      %5107 = vmatpush.bf16.msra.mxu0 0
      %5108 = vmatpush.bf16.msra.mxu0 0
      %5109 = vmatpush.bf16.msra.mxu0 0
      %5110 = vmatpush.bf16.msra.mxu0 0
      %5111 = vmatpush.bf16.msra.mxu0 0
      %5112 = vmatpush.bf16.msra.mxu0 0
      %5113 = vmatpush.bf16.msra.mxu0 0
      %5114 = vmatpush.bf16.msra.mxu0 %v5105
      %5115 = vmatmul.bf16.gmra.mxu0 %v5102
      %v5116 = vpop.f32.mrf.mxu0
      %v5117 = vadd.f32 0.0, %v5116
      %v5118 = vpop.f32.mrf.mxu0
      %5119 = vdwg.mxu0
      %5120 = vrot.lane.b32.xlu0 %v3724, 72
      %v5121 = vpop.permute.xlu0 %5120
      %v5123 = vsel %vm1385, %v4992, 0
      %v5126 = vsel %vm1389, %v5121, 0
      %5128 = vmatpush.bf16.msra.mxu0 0
      %5129 = vmatpush.bf16.msra.mxu0 0
      %5130 = vmatpush.bf16.msra.mxu0 0
      %5131 = vmatpush.bf16.msra.mxu0 0
      %5132 = vmatpush.bf16.msra.mxu0 0
      %5133 = vmatpush.bf16.msra.mxu0 0
      %5134 = vmatpush.bf16.msra.mxu0 0
      %5135 = vmatpush.bf16.msra.mxu0 %v5126
      %5136 = vmatmul.bf16.gmra.mxu0 %v5123
      %v5137 = vpop.f32.mrf.mxu0
      %v5138 = vadd.f32 0.0, %v5137
      %v5139 = vpop.f32.mrf.mxu0
      %5140 = vdwg.mxu0
      %5141 = vrot.lane.b32.xlu0 %v3748, 72
      %v5142 = vpop.permute.xlu0 %5141
      %v5144 = vsel %vm1385, %v4993, 0
      %v5147 = vsel %vm1389, %v5142, 0
      %5149 = vmatpush.bf16.msra.mxu0 0
      %5150 = vmatpush.bf16.msra.mxu0 0
      %5151 = vmatpush.bf16.msra.mxu0 0
      %5152 = vmatpush.bf16.msra.mxu0 0
      %5153 = vmatpush.bf16.msra.mxu0 0
      %5154 = vmatpush.bf16.msra.mxu0 0
      %5155 = vmatpush.bf16.msra.mxu0 0
      %5156 = vmatpush.bf16.msra.mxu0 %v5147
      %5157 = vmatmul.bf16.gmra.mxu0 %v5144
      %v5158 = vpop.f32.mrf.mxu0
      %v5159 = vadd.f32 0.0, %v5158
      %v5160 = vpop.f32.mrf.mxu0
      %5161 = vdwg.mxu0
      %5170 = vrot.lane.b32.xlu0 %v4100, 8
      %v5171 = vpop.permute.xlu0 %5170
      %5172 = vrot.lane.b32.xlu0 %v4121, 8
      %v5173 = vpop.permute.xlu0 %5172
      %5174 = vrot.lane.b32.xlu0 %v4142, 8
      %v5175 = vpop.permute.xlu0 %5174
      %5176 = vrot.lane.b32.xlu0 %v4163, 8
      %v5177 = vpop.permute.xlu0 %5176
      %5178 = vrot.lane.b32.xlu0 %v4184, 8
      %v5179 = vpop.permute.xlu0 %5178
      %5180 = vrot.lane.b32.xlu0 %v4205, 8
      %v5181 = vpop.permute.xlu0 %5180
      %5182 = vrot.lane.b32.xlu0 %v4226, 8
      %v5183 = vpop.permute.xlu0 %5182
      %5184 = vrot.lane.b32.xlu0 %v4247, 8
      %v5185 = vpop.permute.xlu0 %5184
      %5202 = vrot.lane.b32.xlu0 %v4556, 16
      %v5203 = vpop.permute.xlu0 %5202
      %5204 = vrot.lane.b32.xlu0 %v4577, 16
      %v5205 = vpop.permute.xlu0 %5204
      %5206 = vrot.lane.b32.xlu0 %v4598, 16
      %v5207 = vpop.permute.xlu0 %5206
      %5208 = vrot.lane.b32.xlu0 %v4619, 16
      %v5209 = vpop.permute.xlu0 %5208
      %5210 = vrot.lane.b32.xlu0 %v4640, 16
      %v5211 = vpop.permute.xlu0 %5210
      %5212 = vrot.lane.b32.xlu0 %v4661, 16
      %v5213 = vpop.permute.xlu0 %5212
      %5214 = vrot.lane.b32.xlu0 %v4682, 16
      %v5215 = vpop.permute.xlu0 %5214
      %5216 = vrot.lane.b32.xlu0 %v4703, 16
      %v5217 = vpop.permute.xlu0 %5216
      %5234 = vrot.lane.b32.xlu0 %v5012, 24
      %v5235 = vpop.permute.xlu0 %5234
      %5236 = vrot.lane.b32.xlu0 %v5033, 24
      %v5237 = vpop.permute.xlu0 %5236
      %5238 = vrot.lane.b32.xlu0 %v5054, 24
      %v5239 = vpop.permute.xlu0 %5238
      %5240 = vrot.lane.b32.xlu0 %v5075, 24
      %v5241 = vpop.permute.xlu0 %5240
      %5242 = vrot.lane.b32.xlu0 %v5096, 24
      %v5243 = vpop.permute.xlu0 %5242
      %5244 = vrot.lane.b32.xlu0 %v5117, 24
      %v5245 = vpop.permute.xlu0 %5244
      %5246 = vrot.lane.b32.xlu0 %v5138, 24
      %v5247 = vpop.permute.xlu0 %5246
      %5248 = vrot.lane.b32.xlu0 %v5159, 24
      %v5249 = vpop.permute.xlu0 %5248
      %v5258 = vsel %vm1090, %v3599, %v5171
      %v5259 = vsel %vm1090, %v3623, %v5173
      %v5260 = vsel %vm1090, %v3647, %v5175
      %v5261 = vsel %vm1090, %v3671, %v5177
      %v5262 = vsel %vm1090, %v3695, %v5179
      %v5263 = vsel %vm1090, %v3719, %v5181
      %v5264 = vsel %vm1090, %v3743, %v5183
      %v5265 = vsel %vm1090, %v3767, %v5185
      %v5266 = vsel %vm3025, %v5258, %v5203
      %v5267 = vsel %vm3025, %v5259, %v5205
      %v5268 = vsel %vm3025, %v5260, %v5207
      %v5269 = vsel %vm3025, %v5261, %v5209
      %v5270 = vsel %vm3025, %v5262, %v5211
      %v5271 = vsel %vm3025, %v5263, %v5213
      %v5272 = vsel %vm3025, %v5264, %v5215
      %v5273 = vsel %vm3025, %v5265, %v5217
      %v5274 = vsel %vm3034, %v5266, %v5235
      %v5275 = vsel %vm3034, %v5267, %v5237
      %v5276 = vsel %vm3034, %v5268, %v5239
      %v5277 = vsel %vm3034, %v5269, %v5241
      %v5278 = vsel %vm3034, %v5270, %v5243
      %v5279 = vsel %vm3034, %v5271, %v5245
      %v5280 = vsel %vm3034, %v5272, %v5247
      %v5281 = vsel %vm3034, %v5273, %v5249
      %v5282 = vld [vmem:[%s939] sm:$0xf]
      %v5283 = vld [vmem:[%s939 + $0x4] sm:$0xf]
      %v5284 = vld [vmem:[%s939 + $0x8] sm:$0xf]
      %v5285 = vld [vmem:[%s939 + $0xc] sm:$0xf]
      %5294 = vst [vmem:[#allocation1] ss:$4 sm:$0xff] %v5274
      %s5295 = scalar_lea.vmem [#allocation1], 1
      %5296 = vst [vmem:[%s5295] ss:$4 sm:$0xff] %v5275
      %s5297 = scalar_lea.vmem [#allocation1], 2
      %5298 = vst [vmem:[%s5297] ss:$4 sm:$0xff] %v5276
      %s5299 = scalar_lea.vmem [#allocation1], 3
      %5300 = vst [vmem:[%s5299] ss:$4 sm:$0xff] %v5277
      %s5301 = scalar_lea.vmem [#allocation1], 32
      %5302 = vst [vmem:[%s5301] ss:$4 sm:$0xff] %v5278
      %s5303 = scalar_lea.vmem [#allocation1], 33
      %5304 = vst [vmem:[%s5303] ss:$4 sm:$0xff] %v5279
      %s5305 = scalar_lea.vmem [#allocation1], 34
      %5306 = vst [vmem:[%s5305] ss:$4 sm:$0xff] %v5280
      %s5307 = scalar_lea.vmem [#allocation1], 35
      %5308 = vst [vmem:[%s5307] ss:$4 sm:$0xff] %v5281
      %v5309 = vld.sshfl [vmem:[#allocation1] sm:$0xff pattern:$0x73625140]
      %v5310 = vld.sshfl [vmem:[#allocation1 + $0x20] sm:$0xff pattern:$0x73625140]
      %v5313 = vpack.c.bf16 %v5310, %v5309
      %v5318 = vunpack.c.l.b16 %v5282
      %v5319 = vunpack.c.l.b16 %v5283
      %v5320 = vunpack.c.l.b16 %v5284
      %v5321 = vunpack.c.l.b16 %v5285
      %v5322 = vpack.c.b16 %v5319, %v5318
      %v5323 = vpack.c.b16 %v5321, %v5320
      %v5327 = vsel %vm1045, %v5313, 0
      %5329 = vmatpush.bf16.msra.mxu0 0
      %5330 = vmatpush.bf16.msra.mxu0 0
      %5331 = vmatpush.bf16.msra.mxu0 0
      %5332 = vmatpush.bf16.msra.mxu0 0
      %5333 = vmatpush.bf16.msra.mxu0 0
      %5334 = vmatpush.bf16.msra.mxu0 0
      %5335 = vmatpush.bf16.msra.mxu0 %v5323
      %5336 = vmatpush.bf16.msra.mxu0 %v5322
      %5337 = vmatmul.bf16.gmra.mxu0 %v5327
      %v5338 = vpop.f32.mrf.mxu0
      %v5339 = vadd.f32 0.0, %v5338
      %v5340 = vpop.f32.mrf.mxu0
      %v5341 = vadd.f32 0.0, %v5340
      %5342 = vdwg.mxu0
      %v5343 = vadd.f32 %v3173, %v5339
      %v5344 = vadd.f32 %v3174, %v5341
      %v5345 = vld [vmem:[%s942] sm:$0x1]
      %v5347 = vperm.slane %v5345, 0
      %v5349 = vadd.f32 %v5343, %v5347
      %v5350 = vadd.f32 %v5344, %v5347
      %v5351 = vld [vmem:[%s945] sm:$0x1]
      %v5352 = vld [vmem:[%s948] sm:$0x1]
      %v5353 = vsel %vm1045, %v5349, 0.0
      %5354 = vadd.xlane.f32.xlu0 %v5353
      %v5355 = vpop.xlane.xlu0 %5354
      %v5356 = vsel %vm1045, %v5350, 0.0
      %5357 = vadd.xlane.f32.xlu0 %v5356
      %v5358 = vpop.xlane.xlu0 %5357
      %v5359 = vmul.f32 %v5355, %v3126
      %v5360 = vmul.f32 %v5358, %v3126
      %v5361 = vsub.f32 %v5349, %v5359
      %v5362 = vsub.f32 %v5350, %v5360
      %v5363 = vmul.f32 %v5361, %v5361
      %v5364 = vmul.f32 %v5362, %v5362
      %v5365 = vsel %vm1045, %v5363, 0.0
      %5366 = vadd.xlane.f32.xlu0 %v5365
      %v5367 = vpop.xlane.xlu0 %5366
      %v5368 = vsel %vm1045, %v5364, 0.0
      %5369 = vadd.xlane.f32.xlu0 %v5368
      %v5370 = vpop.xlane.xlu0 %5369
      %v5371 = vmul.f32 %v5367, %v3126
      %v5372 = vmul.f32 %v5370, %v3126
      %v5373 = vadd.f32 %v5371, 1e-05
      %v5374 = vadd.f32 %v5372, 1e-05
      %v5375 = vrsqrt.pop %v5373
      %v5376 = vmul.f32 %v5375, %v5373
      %v5377 = vmul.f32 %v5376, %v5375
      %v5378 = vmul.f32 0.5, %v5377
      %v5379 = vsub.f32 1.5, %v5378
      %v5380 = vmul.f32 %v5375, %v5379
      %vm5381 = vweird.f32 %v5373
      %vm5382 = vweird.f32 %v5375
      %vm5383 = vmor %vm5381, %vm5382
      %v5384 = vsel %vm5383, %v5375, %v5380
      %v5385 = vrsqrt.pop %v5374
      %v5386 = vmul.f32 %v5385, %v5374
      %v5387 = vmul.f32 %v5386, %v5385
      %v5388 = vmul.f32 0.5, %v5387
      %v5389 = vsub.f32 1.5, %v5388
      %v5390 = vmul.f32 %v5385, %v5389
      %vm5391 = vweird.f32 %v5374
      %vm5392 = vweird.f32 %v5385
      %vm5393 = vmor %vm5391, %vm5392
      %v5394 = vsel %vm5393, %v5385, %v5390
      %v5395 = vmul.f32 %v5361, %v5384
      %v5396 = vmul.f32 %v5362, %v5394
      %v5398 = vperm.slane %v5351, 0
      %v5400 = vmul.f32 %v5395, %v5398
      %v5401 = vmul.f32 %v5396, %v5398
      %v5403 = vperm.slane %v5352, 0
      %v5405 = vadd.f32 %v5400, %v5403
      %v5406 = vadd.f32 %v5401, %v5403
      %v5407 = vld [vmem:[%s953] sm:$0xf]
      %v5408 = vld [vmem:[%s953 + $0x4] sm:$0xf]
      %v5409 = vld [vmem:[%s953 + $0x8] sm:$0xf]
      %v5410 = vld [vmem:[%s953 + $0xc] sm:$0xf]
      %v5411 = vpack.c.bf16 %v5406, %v5405
      %v5412 = vld [vmem:[%s956] sm:$0x1]
      %v5414 = vperm.slane %v5412, 0
      %v5420 = vunpack.c.l.b16 %v5407
      %v5421 = vunpack.c.l.b16 %v5408
      %v5422 = vunpack.c.l.b16 %v5409
      %v5423 = vunpack.c.l.b16 %v5410
      %v5424 = vpack.c.b16 %v5421, %v5420
      %v5425 = vpack.c.b16 %v5423, %v5422
      %v5429 = vsel %vm1045, %v5411, 0
      %5431 = vmatpush.bf16.msra.mxu0 0
      %5432 = vmatpush.bf16.msra.mxu0 0
      %5433 = vmatpush.bf16.msra.mxu0 0
      %5434 = vmatpush.bf16.msra.mxu0 0
      %5435 = vmatpush.bf16.msra.mxu0 0
      %5436 = vmatpush.bf16.msra.mxu0 0
      %5437 = vmatpush.bf16.msra.mxu0 %v5425
      %5438 = vmatpush.bf16.msra.mxu0 %v5424
      %5439 = vmatmul.bf16.gmra.mxu0 %v5429
      %v5440 = vpop.f32.mrf.mxu0
      %v5441 = vadd.f32 %v5414, %v5440
      %v5442 = vpop.f32.mrf.mxu0
      %v5443 = vadd.f32 %v5414, %v5442
      %5444 = vdwg.mxu0
      %v5445 = vmax.f32 %v5441, 0.0
      %v5446 = vmax.f32 %v5443, 0.0
      %v5447 = vld [vmem:[%s961] sm:$0xf]
      %v5448 = vld [vmem:[%s961 + $0x4] sm:$0xf]
      %v5449 = vld [vmem:[%s961 + $0x8] sm:$0xf]
      %v5450 = vld [vmem:[%s961 + $0xc] sm:$0xf]
      %v5451 = vld [vmem:[%s961 + $0x10] sm:$0xf]
      %v5452 = vld [vmem:[%s961 + $0x14] sm:$0xf]
      %v5453 = vld [vmem:[%s961 + $0x18] sm:$0xf]
      %v5454 = vld [vmem:[%s961 + $0x1c] sm:$0xf]
      %v5455 = vpack.c.bf16 %v5446, %v5445
      %v5464 = vunpack.c.l.b16 %v5447
      %v5465 = vunpack.c.l.b16 %v5448
      %v5466 = vunpack.c.l.b16 %v5449
      %v5467 = vunpack.c.l.b16 %v5450
      %v5468 = vunpack.c.l.b16 %v5451
      %v5469 = vunpack.c.l.b16 %v5452
      %v5470 = vunpack.c.l.b16 %v5453
      %v5471 = vunpack.c.l.b16 %v5454
      %v5472 = vpack.c.b16 %v5465, %v5464
      %v5473 = vpack.c.b16 %v5467, %v5466
      %v5474 = vpack.c.b16 %v5469, %v5468
      %v5475 = vpack.c.b16 %v5471, %v5470
      %vm5480 = vcmask 523264
      %v5482 = vsel %vm5480, %v5455, 0
      %5484 = vmatpush.bf16.msra.mxu0 0
      %5485 = vmatpush.bf16.msra.mxu0 0
      %5486 = vmatpush.bf16.msra.mxu0 0
      %5487 = vmatpush.bf16.msra.mxu0 0
      %5488 = vmatpush.bf16.msra.mxu0 %v5475
      %5489 = vmatpush.bf16.msra.mxu0 %v5474
      %5490 = vmatpush.bf16.msra.mxu0 %v5473
      %5491 = vmatpush.bf16.msra.mxu0 %v5472
      %5492 = vmatmul.bf16.gmra.mxu0 %v5482
      %v5493 = vpop.f32.mrf.mxu0
      %v5494 = vadd.f32 0.0, %v5493
      %v5495 = vpop.f32.mrf.mxu0
      %v5496 = vadd.f32 0.0, %v5495
      %5497 = vdwg.mxu0
      %v5498 = vadd.f32 %v5405, %v5494
      %v5499 = vadd.f32 %v5406, %v5496
      %v5500 = vld [vmem:[%s964] sm:$0x1]
      %v5502 = vperm.slane %v5500, 0
      %v5504 = vadd.f32 %v5498, %v5502
      %v5505 = vadd.f32 %v5499, %v5502
      %v5506 = vld [vmem:[%s967] sm:$0x1]
      %v5507 = vld [vmem:[%s970] sm:$0x1]
      %v5508 = vsel %vm1045, %v5504, 0.0
      %5509 = vadd.xlane.f32.xlu0 %v5508
      %v5510 = vpop.xlane.xlu0 %5509
      %v5511 = vsel %vm1045, %v5505, 0.0
      %5512 = vadd.xlane.f32.xlu0 %v5511
      %v5513 = vpop.xlane.xlu0 %5512
      %v5514 = vmul.f32 %v5510, %v3126
      %v5515 = vmul.f32 %v5513, %v3126
      %v5516 = vsub.f32 %v5504, %v5514
      %v5517 = vsub.f32 %v5505, %v5515
      %v5518 = vmul.f32 %v5516, %v5516
      %v5519 = vmul.f32 %v5517, %v5517
      %v5520 = vsel %vm1045, %v5518, 0.0
      %5521 = vadd.xlane.f32.xlu0 %v5520
      %v5522 = vpop.xlane.xlu0 %5521
      %v5523 = vsel %vm1045, %v5519, 0.0
      %5524 = vadd.xlane.f32.xlu0 %v5523
      %v5525 = vpop.xlane.xlu0 %5524
      %v5526 = vmul.f32 %v5522, %v3126
      %v5527 = vmul.f32 %v5525, %v3126
      %v5528 = vadd.f32 %v5526, 1e-05
      %v5529 = vadd.f32 %v5527, 1e-05
      %v5530 = vrsqrt.pop %v5528
      %v5531 = vmul.f32 %v5530, %v5528
      %v5532 = vmul.f32 %v5531, %v5530
      %v5533 = vmul.f32 0.5, %v5532
      %v5534 = vsub.f32 1.5, %v5533
      %v5535 = vmul.f32 %v5530, %v5534
      %vm5536 = vweird.f32 %v5528
      %vm5537 = vweird.f32 %v5530
      %vm5538 = vmor %vm5536, %vm5537
      %v5539 = vsel %vm5538, %v5530, %v5535
      %v5540 = vrsqrt.pop %v5529
      %v5541 = vmul.f32 %v5540, %v5529
      %v5542 = vmul.f32 %v5541, %v5540
      %v5543 = vmul.f32 0.5, %v5542
      %v5544 = vsub.f32 1.5, %v5543
      %v5545 = vmul.f32 %v5540, %v5544
      %vm5546 = vweird.f32 %v5529
      %vm5547 = vweird.f32 %v5540
      %vm5548 = vmor %vm5546, %vm5547
      %v5549 = vsel %vm5548, %v5540, %v5545
      %v5550 = vmul.f32 %v5516, %v5539
      %v5551 = vmul.f32 %v5517, %v5549
      %v5553 = vperm.slane %v5506, 0
      %v5555 = vmul.f32 %v5550, %v5553
      %v5556 = vmul.f32 %v5551, %v5553
      %v5558 = vperm.slane %v5507, 0
      %v5560 = vadd.f32 %v5555, %v5558
      %v5561 = vadd.f32 %v5556, %v5558
      %5562 = vst.msk [vmem:[#allocation2] sm:$0xff] %vm1045, %v5560
      %5563 = vst.msk [vmem:[#allocation2 + $0x8] sm:$0xff] %vm1045, %v5561
      %p5564 = scmp.eq.s32.totalorder %s33, 1
      // Predicated region
      $region113: #{text_scnet_forward.8} parent=107 // pred_check
        %p5565 = pneg %p5564
      $region114: #{text_scnet_forward.8} parent=107 // pred_check_branch
        %5567 = sbr.rel (%p5565) target = $region116
      $region115: #{text_scnet_forward.8} parent=107 // pred_region
        %v5570 = vrot.slane %v5560, 2
        %v5571 = vrot.slane %v5560, 4
        %v5572 = vrot.slane %v5560, 6
        %v5573 = vrot.slane %v5561, 2
        %v5574 = vrot.slane %v5561, 4
        %v5575 = vrot.slane %v5561, 6
        %vm5582 = vcmask 254976
        %5583 = vst.msk [vmem:[%s22] sm:$0x3] %vm5582, %v5560
        %5584 = vst.msk [vmem:[%s22 + $0x2] sm:$0x3] %vm5582, %v5570
        %5585 = vst.msk [vmem:[%s22 + $0x4] sm:$0x3] %vm5582, %v5571
        %5586 = vst.msk [vmem:[%s22 + $0x6] sm:$0x3] %vm5582, %v5572
        %5587 = vst.msk [vmem:[%s22 + $0x8] sm:$0x3] %vm5582, %v5561
        %5588 = vst.msk [vmem:[%s22 + $0xa] sm:$0x3] %vm5582, %v5573
        %5589 = vst.msk [vmem:[%s22 + $0xc] sm:$0x3] %vm5582, %v5574
        %5590 = vst.msk [vmem:[%s22 + $0xe] sm:$0x3] %vm5582, %v5575
      $region116: #{text_scnet_forward.8} parent=107 // pred_fallthru
        _
      // Predicated region
      $region117: #{text_scnet_forward.8} parent=107 // pred_check
        %p5591 = pneg %p608
      $region118: #{text_scnet_forward.8} parent=107 // pred_check_branch
        %5593 = sbr.rel (%p5591) target = $region120
      $region119: #{text_scnet_forward.8} parent=107 // pred_region
        _
      $region120: #{text_scnet_forward.8} parent=107 // pred_fallthru
        _
      // Predicated region
      $region121: #{text_scnet_forward.8} parent=107 // pred_check
        %p5594 = pneg %p608
      $region122: #{text_scnet_forward.8} parent=107 // pred_check_branch
        %5596 = sbr.rel (%p5594) target = $region124
      $region123: #{text_scnet_forward.8} parent=107 // pred_region
        _
      $region124: #{text_scnet_forward.8} parent=107 // pred_fallthru
        _
    $region108: #{text_scnet_forward.8} parent=5 // pred_fallthru
      _
    %p5597 = scmp.le.s32.totalorder 2, %s28
    // Predicated region
    $region125: #{text_scnet_forward.8} parent=5 // pred_check
      %p5598 = pneg %p5597
    $region126: #{text_scnet_forward.8} parent=5 // pred_check_branch
      %5600 = sbr.rel (%p5598) target = $region128
    $region127: #{text_scnet_forward.8} parent=5 // pred_region
      %s5601 = ssub.s32 %s28, 2
    $region128: #{text_scnet_forward.8} parent=5 // pred_fallthru
      _
  $region6: #{text_scnet_forward.8} parent=0 // loop_footer
    %s32 = sadd.s32 1, %s28
  $region7: #{text_scnet_forward.8} parent=0 // loop_footer_branch
    %27 = sbr.rel target = $region3
  $region8: #{text_scnet_forward.8} parent=0 // loop_exit
    _

</llo_original>
